<compile_context>
chip_gen: v5e
topology: v5e:2x2
jax: 0.10.0
libtpu: 0.0.40
codegen_flags: <defaults>
</compile_context>

<pallas_src>
import numpy as np

import jax
import jax.numpy as jnp
from jax.experimental import pallas as pl
from jax.experimental.pallas import tpu as pltpu


# ------------------------------- model constants ----------------------------

B = 2                 # batch
CIN = 1               # input channels
HIN = 32              # input spatial size
C = 8                 # feature channels (out_channels)
H = W = 8             # feature map after quarter downscale
PAD = 4               # frame padding = max ASPP dilation
HP = H + 2 * PAD      # 16
WP = W + 2 * PAD      # 16
LP = HP * WP          # 256   per-batch padded frame
N = B * LP            # 512   flat padded activation length (lane axis)
S0 = PAD * (WP + 1)   # 68    first flat index that can hold a valid output
NCOMP = N - 2 * S0    # 376   positions actually computed per conv
NB = 4                # residual blocks
SE_H = max(1, C // 4) # SE hidden dim (=2), zero-padded to C in the weights
H1 = 16               # intermediate 16x16 map after first stride-2 conv
M1 = B * H1 * H1      # 512
M2 = B * H * W        # 128
NUM_CLASSES = 5

TAPS = tuple((di, dj) for di in range(3) for dj in range(3))


# ------------------------------- shared helpers -----------------------------

def _conv3x3_taps(x_full, get_w, dilation):
    """3x3 'same' conv (dilation=d, padding=d) on a padded-frame activation.

    x_full : (C, N) value, zero halo.  get_w(t) -> (Cout, Cin) tap weight.
    Returns (Cout, NCOMP) for flat positions [S0, S0+NCOMP); halo positions in
    that range contain garbage and must be masked by the Place matmul.
    """
    acc = None
    for t, (di, dj) in enumerate(TAPS):
        s = dilation * ((di - 1) * WP + (dj - 1))
        win = x_full[:, S0 + s: S0 + s + NCOMP]
        term = jnp.dot(get_w(t), win, preferred_element_type=jnp.float32)
        acc = term if acc is None else acc + term
    return acc


def _fixed(shape):
    nd = len(shape)
    return pl.BlockSpec(shape, lambda *args, _nd=nd: (0,) * _nd)


def _perblock(shape):
    nd = len(shape)
    blk = (1,) + tuple(shape[1:])
    return pl.BlockSpec(blk, lambda i, _nd=nd: (i,) + (0,) * (_nd - 1))


# --------------------------------- kernels ----------------------------------

def _stem_kernel(cols1_ref, w1_ref, b1_ref, w2_ref, b2_ref, g2_ref, scat_ref,
                 wa_ref, ba_ref, wp_ref, bp_ref, place_ref, o_ref):
    f32 = jnp.float32
    # conv_d1 (stride 2): wrapper supplies the 9-tap window matrix (9, 512).
    h1 = jnp.maximum(
        jnp.dot(w1_ref[...], cols1_ref[...], preferred_element_type=f32)
        + b1_ref[...], 0.0)                                    # (C, M1) compact 16x16

    # conv_d2 (stride 2): per-tap constant gather matrices, accumulate on MXU.
    acc = None
    for t in range(9):
        xt = jnp.dot(h1, g2_ref[t], preferred_element_type=f32)        # (C, M2)
        term = jnp.dot(w2_ref[t], xt, preferred_element_type=f32)      # (C, M2)
        acc = term if acc is None else acc + term
    h2 = jnp.maximum(acc + b2_ref[...], 0.0)                   # (C, M2) compact 8x8

    # scatter compact 8x8 into the padded-frame layout (zero halo).
    a = jnp.dot(h2, scat_ref[...], preferred_element_type=f32)         # (C, N)

    # ASPP: three dilated 3x3 branches + fused 1x1 projection.
    proj = None
    for r, d in enumerate((1, 2, 4)):
        br = _conv3x3_taps(a, lambda t, _r=r: wa_ref[_r, t], d)
        br = jnp.maximum(br + ba_ref[r], 0.0)                  # (C, NCOMP)
        term = jnp.dot(wp_ref[r], br, preferred_element_type=f32)
        proj = term if proj is None else proj + term
    proj = jnp.maximum(proj + bp_ref[...], 0.0)                # (C, NCOMP)

    # mask halo garbage + place back into the (C, N) padded layout.
    o_ref[...] = jnp.dot(proj, place_ref[...], preferred_element_type=f32)


def _block_kernel(x_ref, place_ref, pool_ref, bcast_ref,
                  w1_ref, b1_ref, w2_ref, b2_ref,
                  wse1_ref, bse1_ref, wse2_ref, bse2_ref,
                  o_ref, act_ref):
    f32 = jnp.float32
    i = pl.program_id(0)

    @pl.when(i == 0)
    def _():
        act_ref[...] = x_ref[...]

    x = act_ref[...]                                           # (C, N) zero halo
    place = place_ref[...]

    # conv1 + ReLU
    h1 = _conv3x3_taps(x, lambda t: w1_ref[0, t], 1) + b1_ref[0]
    h1 = jnp.maximum(h1, 0.0)
    h1f = jnp.dot(h1, place, preferred_element_type=f32)       # (C, N) zero halo
    # conv2 (no activation before SE/residual)
    h2 = _conv3x3_taps(h1f, lambda t: w2_ref[0, t], 1) + b2_ref[0]
    h2f = jnp.dot(h2, place, preferred_element_type=f32)       # (C, N) zero halo

    # Squeeze & Excitation
    pooled = jnp.dot(h2f, pool_ref[...], preferred_element_type=f32)   # (C, B)
    z = jnp.maximum(
        jnp.dot(wse1_ref[0], pooled, preferred_element_type=f32) + bse1_ref[0], 0.0)
    gate = jax.nn.sigmoid(
        jnp.dot(wse2_ref[0], z, preferred_element_type=f32) + bse2_ref[0])  # (C, B)
    gatef = jnp.dot(gate, bcast_ref[...], preferred_element_type=f32)       # (C, N)

    out = jnp.maximum(x + h2f * gatef, 0.0)                    # residual add + ReLU
    act_ref[...] = out
    o_ref[...] = out


def _head_kernel(x_ref, pool_ref, w1_ref, b1_ref, w2_ref, b2_ref,
                 w3_ref, b3_ref, o_ref):
    f32 = jnp.float32
    pooled = jnp.dot(x_ref[...], pool_ref[...], preferred_element_type=f32)  # (C, B)
    y = jnp.maximum(
        jnp.dot(w1_ref[...], pooled, preferred_element_type=f32) + b1_ref[...], 0.0)
    y = jnp.maximum(
        jnp.dot(w2_ref[...], y, preferred_element_type=f32) + b2_ref[...], 0.0)
    o_ref[...] = jnp.dot(w3_ref[...], y, preferred_element_type=f32) + b3_ref[...]


# ------------------------------ pallas_call wrappers -------------------------

def run_stem(cols1, p, c):
    args = (cols1, p["stem_w1"], p["stem_b1"], p["stem_w2"], p["stem_b2"],
            c["g2"], c["scat"], p["aspp_w"], p["aspp_b"],
            p["aspp_proj_w"], p["aspp_proj_b"], c["place"])
    return pl.pallas_call(
        _stem_kernel,
        out_shape=jax.ShapeDtypeStruct((C, N), jnp.float32),
        grid=(1,),
        in_specs=[_fixed(a.shape) for a in args],
        out_specs=_fixed((C, N)),
    )(*args)


def run_blocks(a0, p, c):
    fixed_args = (a0, c["place"], c["pool"], c["bcast"])
    blk_args = (p["blk_w1"], p["blk_b1"], p["blk_w2"], p["blk_b2"],
                p["blk_se1_w"], p["blk_se1_b"], p["blk_se2_w"], p["blk_se2_b"])
    in_specs = ([_fixed(a.shape) for a in fixed_args]
                + [_perblock(a.shape) for a in blk_args])
    return pl.pallas_call(
        _block_kernel,
        out_shape=jax.ShapeDtypeStruct((C, N), jnp.float32),
        grid=(NB,),
        in_specs=in_specs,
        out_specs=_fixed((C, N)),
        scratch_shapes=[pltpu.VMEM((C, N), jnp.float32)],
        compiler_params=pltpu.CompilerParams(dimension_semantics=("arbitrary",)),
    )(*fixed_args, *blk_args)


def run_head(a, p, c):
    args = (a, c["pool"], p["head_w1"], p["head_b1"], p["head_w2"], p["head_b2"],
            p["head_w3"], p["head_b3"])
    return pl.pallas_call(
        _head_kernel,
        out_shape=jax.ShapeDtypeStruct((NUM_CLASSES, B), jnp.float32),
        grid=(1,),
        in_specs=[_fixed(a_.shape) for a_ in args],
        out_specs=_fixed((NUM_CLASSES, B)),
    )(*args)


# ------------------------- constant layout matrices --------------------------

def build_constants():
    # Place: (NCOMP, N) -- masks halo garbage and re-embeds the computed middle
    # slice back into the padded layout.
    place = np.zeros((NCOMP, N), np.float32)
    pool = np.zeros((N, B), np.float32)      # mean over the 64 valid positions / batch
    bcast = np.zeros((B, N), np.float32)     # per-batch broadcast of the SE gate
    for q in range(N):
        b, l = divmod(q, LP)
        r, cc = divmod(l, WP)
        valid = (PAD <= r < PAD + H) and (PAD <= cc < PAD + W)
        bcast[b, q] = 1.0
        if valid:
            pool[q, b] = 1.0 / (H * W)
            place[q - S0, q] = 1.0
    # Scat: compact 8x8 (M2) -> padded frame (N)
    scat = np.zeros((M2, N), np.float32)
    for b in range(B):
        for h in range(H):
            for w in range(W):
                scat[b * H * W + h * W + w,
                     b * LP + (h + PAD) * WP + (w + PAD)] = 1.0
    # G2: per-tap stride-2 gather, compact 16x16 (M1) -> compact 8x8 (M2)
    g2 = np.zeros((9, M1, M2), np.float32)
    for t, (di, dj) in enumerate(TAPS):
        for b in range(B):
            for h2 in range(H):
                for w2 in range(W):
                    hi, wi = 2 * h2 + di - 1, 2 * w2 + dj - 1
                    if 0 <= hi < H1 and 0 <= wi < H1:
                        g2[t, b * H1 * H1 + hi * H1 + wi,
                           b * H * W + h2 * W + w2] = 1.0
    return {"place": jnp.asarray(place), "pool": jnp.asarray(pool),
            "bcast": jnp.asarray(bcast), "scat": jnp.asarray(scat),
            "g2": jnp.asarray(g2)}


# --------------------------- parameters (synthetic) ---------------------------

def init_params(key):
    ks = iter(jax.random.split(key, 32))

    def nrm(k, shape, fan_in):
        return jax.random.normal(k, shape, jnp.float32) * (2.0 / fan_in) ** 0.5

    z = lambda *s: jnp.zeros(s, jnp.float32)
    p = {}
    # stem: two stride-2 3x3 convs + ASPP (d=1,2,4) + 1x1 projection
    p["stem_w1"] = nrm(next(ks), (C, 9), 9 * CIN)
    p["stem_b1"] = z(C, 1)
    p["stem_w2"] = nrm(next(ks), (9, C, C), 9 * C)          # per-tap (Cout, Cin)
    p["stem_b2"] = z(C, 1)
    p["aspp_w"] = nrm(next(ks), (3, 9, C, C), 9 * C)
    p["aspp_b"] = z(3, C, 1)
    p["aspp_proj_w"] = nrm(next(ks), (3, C, C), 3 * C)      # per-branch 1x1 slices
    p["aspp_proj_b"] = z(C, 1)
    # SE residual blocks (stacked over NB for weight streaming)
    p["blk_w1"] = nrm(next(ks), (NB, 9, C, C), 9 * C)
    p["blk_b1"] = z(NB, C, 1)
    p["blk_w2"] = nrm(next(ks), (NB, 9, C, C), 9 * C)
    p["blk_b2"] = z(NB, C, 1)
    se1 = nrm(next(ks), (NB, SE_H, C), C)
    se2 = nrm(next(ks), (NB, C, SE_H), SE_H)
    # zero-pad SE FCs to (C, C): padded rows give relu(0)=0, padded cols see zeros.
    p["blk_se1_w"] = jnp.zeros((NB, C, C), jnp.float32).at[:, :SE_H, :].set(se1)
    p["blk_se1_b"] = z(NB, C, 1)
    p["blk_se2_w"] = jnp.zeros((NB, C, C), jnp.float32).at[:, :, :SE_H].set(se2)
    p["blk_se2_b"] = z(NB, C, 1)
    # head
    p["head_w1"] = nrm(next(ks), (32, C), C)
    p["head_b1"] = z(32, 1)
    p["head_w2"] = nrm(next(ks), (16, 32), 32)
    p["head_b2"] = z(16, 1)
    p["head_w3"] = nrm(next(ks), (NUM_CLASSES, 16), 16)
    p["head_b3"] = z(NUM_CLASSES, 1)
    return p


# ----------------------------------- forward ---------------------------------

def attentive_nf_resnet_forward(x_nchw, params, consts):
    x = x_nchw.astype(jnp.float32)
    # 9-tap window extraction for the first stride-2 conv only (tiny, 1 channel).
    xp = jnp.pad(x, ((0, 0), (0, 0), (1, 1), (1, 1)))
    taps = [xp[:, 0, di:di + 2 * H1 - 1:2, dj:dj + 2 * H1 - 1:2]
            for (di, dj) in TAPS]
    cols1 = jnp.stack(taps, axis=0).reshape(9, M1)            # (9, B*16*16)

    a = run_stem(cols1, params, consts)       # (C, N)  fused stem + ASPP
    a = run_blocks(a, params, consts)         # (C, N)  4 fused SE-res blocks, 1 call
    logits_cb = run_head(a, params, consts)   # (num_classes, B) fused pool + head
    return logits_cb.T                        # (B, num_classes)


# ------------------------------------- main -----------------------------------

if __name__ == "__main__":
    key = jax.random.PRNGKey(0)
    kx, kp = jax.random.split(key)
    x = jax.random.normal(kx, (B, CIN, HIN, HIN), jnp.float32)
    params = init_params(kp)
    consts = build_constants()

    fwd = jax.jit(attentive_nf_resnet_forward)
    out = fwd(x, params, consts)
    jax.block_until_ready(out)
    assert out.shape == (B, NUM_CLASSES), out.shape
    assert bool(jnp.all(jnp.isfinite(out)))
    print("KERNEL_OK")
</pallas_src>

<mosaic_0001>
module attributes {stable_mosaic.version = 11 : i64} {
  func.func @_stem_kernel(%arg0: i32, %arg1: memref<9x512xf32, #tpu.memory_space<vmem>>, %arg2: memref<8x9xf32, #tpu.memory_space<vmem>>, %arg3: memref<8x1xf32, #tpu.memory_space<vmem>>, %arg4: memref<9x8x8xf32, #tpu.memory_space<vmem>>, %arg5: memref<8x1xf32, #tpu.memory_space<vmem>>, %arg6: memref<9x512x128xf32, #tpu.memory_space<vmem>>, %arg7: memref<128x512xf32, #tpu.memory_space<vmem>>, %arg8: memref<3x9x8x8xf32, #tpu.memory_space<vmem>>, %arg9: memref<3x8x1xf32, #tpu.memory_space<vmem>>, %arg10: memref<3x8x8xf32, #tpu.memory_space<vmem>>, %arg11: memref<8x1xf32, #tpu.memory_space<vmem>>, %arg12: memref<376x512xf32, #tpu.memory_space<vmem>>, %arg13: memref<8x512xf32, #tpu.memory_space<vmem>>) attributes {dimension_semantics = [#tpu.dimension_semantics<arbitrary>], iteration_bounds = array<i64: 1>, scalar_prefetch = 0 : i64, scratch_operands = 0 : i64, tpu.core_type = #tpu.core_type<tc>, window_params = [{pipeline_mode = #tpu.pipeline_mode<synchronous>, transform_indices = @transform_0, window_bounds = array<i64: 9, 512>}, {pipeline_mode = #tpu.pipeline_mode<synchronous>, transform_indices = @transform_1, window_bounds = array<i64: 8, 9>}, {pipeline_mode = #tpu.pipeline_mode<synchronous>, transform_indices = @transform_2, window_bounds = array<i64: 8, 1>}, {pipeline_mode = #tpu.pipeline_mode<synchronous>, transform_indices = @transform_3, window_bounds = array<i64: 9, 8, 8>}, {pipeline_mode = #tpu.pipeline_mode<synchronous>, transform_indices = @transform_4, window_bounds = array<i64: 8, 1>}, {pipeline_mode = #tpu.pipeline_mode<synchronous>, transform_indices = @transform_5, window_bounds = array<i64: 9, 512, 128>}, {pipeline_mode = #tpu.pipeline_mode<synchronous>, transform_indices = @transform_6, window_bounds = array<i64: 128, 512>}, {pipeline_mode = #tpu.pipeline_mode<synchronous>, transform_indices = @transform_7, window_bounds = array<i64: 3, 9, 8, 8>}, {pipeline_mode = #tpu.pipeline_mode<synchronous>, transform_indices = @transform_8, window_bounds = array<i64: 3, 8, 1>}, {pipeline_mode = #tpu.pipeline_mode<synchronous>, transform_indices = @transform_9, window_bounds = array<i64: 3, 8, 8>}, {pipeline_mode = #tpu.pipeline_mode<synchronous>, transform_indices = @transform_10, window_bounds = array<i64: 8, 1>}, {pipeline_mode = #tpu.pipeline_mode<synchronous>, transform_indices = @transform_11, window_bounds = array<i64: 376, 512>}, {pipeline_mode = #tpu.pipeline_mode<synchronous>, transform_indices = @transform_12, window_bounds = array<i64: 8, 512>}]} {
    %c0 = arith.constant 0 : index
    %c0_0 = arith.constant 0 : index
    %0 = vector.load %arg2[%c0, %c0_0] : memref<8x9xf32, #tpu.memory_space<vmem>>, vector<8x9xf32>
    %c0_1 = arith.constant 0 : index
    %c0_2 = arith.constant 0 : index
    %1 = vector.load %arg1[%c0_1, %c0_2] : memref<9x512xf32, #tpu.memory_space<vmem>>, vector<9x512xf32>
    %cst = arith.constant dense<0.000000e+00> : vector<8x512xf32>
    %2 = tpu.matmul %0, %1, %cst {dimension_numbers = #tpu.dot_dimension_numbers<[1], [0], [0], [1], [0, 0, 1, 1], [], []>} : vector<8x9xf32>, vector<9x512xf32>, vector<8x512xf32> -> vector<8x512xf32>
    %c0_3 = arith.constant 0 : index
    %c0_4 = arith.constant 0 : index
    %3 = vector.load %arg3[%c0_3, %c0_4] : memref<8x1xf32, #tpu.memory_space<vmem>>, vector<8x1xf32>
    %4 = vector.broadcast %3 : vector<8x1xf32> to vector<8x512xf32>
    %5 = arith.addf %2, %4 : vector<8x512xf32>
    %cst_5 = arith.constant 0.000000e+00 : f32
    %6 = vector.broadcast %cst_5 : f32 to vector<8x512xf32>
    %7 = arith.maximumf %5, %6 : vector<8x512xf32>
    %c0_6 = arith.constant 0 : index
    %c0_7 = arith.constant 0 : index
    %c0_8 = arith.constant 0 : index
    %8 = vector.load %arg6[%c0_6, %c0_7, %c0_8] : memref<9x512x128xf32, #tpu.memory_space<vmem>>, vector<1x512x128xf32>
    %9 = vector.shape_cast %8 : vector<1x512x128xf32> to vector<512x128xf32>
    %cst_9 = arith.constant dense<0.000000e+00> : vector<8x128xf32>
    %10 = tpu.matmul %7, %9, %cst_9 {dimension_numbers = #tpu.dot_dimension_numbers<[1], [0], [0], [1], [0, 0, 1, 1], [], []>} : vector<8x512xf32>, vector<512x128xf32>, vector<8x128xf32> -> vector<8x128xf32>
    %c0_10 = arith.constant 0 : index
    %c0_11 = arith.constant 0 : index
    %c0_12 = arith.constant 0 : index
    %11 = vector.load %arg4[%c0_10, %c0_11, %c0_12] : memref<9x8x8xf32, #tpu.memory_space<vmem>>, vector<1x8x8xf32>
    %12 = vector.shape_cast %11 : vector<1x8x8xf32> to vector<8x8xf32>
    %cst_13 = arith.constant dense<0.000000e+00> : vector<8x128xf32>
    %13 = tpu.matmul %12, %10, %cst_13 {dimension_numbers = #tpu.dot_dimension_numbers<[1], [0], [0], [1], [0, 0, 1, 1], [], []>} : vector<8x8xf32>, vector<8x128xf32>, vector<8x128xf32> -> vector<8x128xf32>
    %c1 = arith.constant 1 : index
    %c0_14 = arith.constant 0 : index
    %c0_15 = arith.constant 0 : index
    %14 = vector.load %arg6[%c1, %c0_14, %c0_15] : memref<9x512x128xf32, #tpu.memory_space<vmem>>, vector<1x512x128xf32>
    %15 = vector.shape_cast %14 : vector<1x512x128xf32> to vector<512x128xf32>
    %cst_16 = arith.constant dense<0.000000e+00> : vector<8x128xf32>
    %16 = tpu.matmul %7, %15, %cst_16 {dimension_numbers = #tpu.dot_dimension_numbers<[1], [0], [0], [1], [0, 0, 1, 1], [], []>} : vector<8x512xf32>, vector<512x128xf32>, vector<8x128xf32> -> vector<8x128xf32>
    %c1_17 = arith.constant 1 : index
    %c0_18 = arith.constant 0 : index
    %c0_19 = arith.constant 0 : index
    %17 = vector.load %arg4[%c1_17, %c0_18, %c0_19] : memref<9x8x8xf32, #tpu.memory_space<vmem>>, vector<1x8x8xf32>
    %18 = vector.shape_cast %17 : vector<1x8x8xf32> to vector<8x8xf32>
    %cst_20 = arith.constant dense<0.000000e+00> : vector<8x128xf32>
    %19 = tpu.matmul %18, %16, %cst_20 {dimension_numbers = #tpu.dot_dimension_numbers<[1], [0], [0], [1], [0, 0, 1, 1], [], []>} : vector<8x8xf32>, vector<8x128xf32>, vector<8x128xf32> -> vector<8x128xf32>
    %20 = arith.addf %13, %19 : vector<8x128xf32>
    %c2 = arith.constant 2 : index
    %c0_21 = arith.constant 0 : index
    %c0_22 = arith.constant 0 : index
    %21 = vector.load %arg6[%c2, %c0_21, %c0_22] : memref<9x512x128xf32, #tpu.memory_space<vmem>>, vector<1x512x128xf32>
    %22 = vector.shape_cast %21 : vector<1x512x128xf32> to vector<512x128xf32>
    %cst_23 = arith.constant dense<0.000000e+00> : vector<8x128xf32>
    %23 = tpu.matmul %7, %22, %cst_23 {dimension_numbers = #tpu.dot_dimension_numbers<[1], [0], [0], [1], [0, 0, 1, 1], [], []>} : vector<8x512xf32>, vector<512x128xf32>, vector<8x128xf32> -> vector<8x128xf32>
    %c2_24 = arith.constant 2 : index
    %c0_25 = arith.constant 0 : index
    %c0_26 = arith.constant 0 : index
    %24 = vector.load %arg4[%c2_24, %c0_25, %c0_26] : memref<9x8x8xf32, #tpu.memory_space<vmem>>, vector<1x8x8xf32>
    %25 = vector.shape_cast %24 : vector<1x8x8xf32> to vector<8x8xf32>
    %cst_27 = arith.constant dense<0.000000e+00> : vector<8x128xf32>
    %26 = tpu.matmul %25, %23, %cst_27 {dimension_numbers = #tpu.dot_dimension_numbers<[1], [0], [0], [1], [0, 0, 1, 1], [], []>} : vector<8x8xf32>, vector<8x128xf32>, vector<8x128xf32> -> vector<8x128xf32>
    %27 = arith.addf %20, %26 : vector<8x128xf32>
    %c3 = arith.constant 3 : index
    %c0_28 = arith.constant 0 : index
    %c0_29 = arith.constant 0 : index
    %28 = vector.load %arg6[%c3, %c0_28, %c0_29] : memref<9x512x128xf32, #tpu.memory_space<vmem>>, vector<1x512x128xf32>
    %29 = vector.shape_cast %28 : vector<1x512x128xf32> to vector<512x128xf32>
    %cst_30 = arith.constant dense<0.000000e+00> : vector<8x128xf32>
    %30 = tpu.matmul %7, %29, %cst_30 {dimension_numbers = #tpu.dot_dimension_numbers<[1], [0], [0], [1], [0, 0, 1, 1], [], []>} : vector<8x512xf32>, vector<512x128xf32>, vector<8x128xf32> -> vector<8x128xf32>
    %c3_31 = arith.constant 3 : index
    %c0_32 = arith.constant 0 : index
    %c0_33 = arith.constant 0 : index
    %31 = vector.load %arg4[%c3_31, %c0_32, %c0_33] : memref<9x8x8xf32, #tpu.memory_space<vmem>>, vector<1x8x8xf32>
    %32 = vector.shape_cast %31 : vector<1x8x8xf32> to vector<8x8xf32>
    %cst_34 = arith.constant dense<0.000000e+00> : vector<8x128xf32>
    %33 = tpu.matmul %32, %30, %cst_34 {dimension_numbers = #tpu.dot_dimension_numbers<[1], [0], [0], [1], [0, 0, 1, 1], [], []>} : vector<8x8xf32>, vector<8x128xf32>, vector<8x128xf32> -> vector<8x128xf32>
    %34 = arith.addf %27, %33 : vector<8x128xf32>
    %c4 = arith.constant 4 : index
    %c0_35 = arith.constant 0 : index
    %c0_36 = arith.constant 0 : index
    %35 = vector.load %arg6[%c4, %c0_35, %c0_36] : memref<9x512x128xf32, #tpu.memory_space<vmem>>, vector<1x512x128xf32>
    %36 = vector.shape_cast %35 : vector<1x512x128xf32> to vector<512x128xf32>
    %cst_37 = arith.constant dense<0.000000e+00> : vector<8x128xf32>
    %37 = tpu.matmul %7, %36, %cst_37 {dimension_numbers = #tpu.dot_dimension_numbers<[1], [0], [0], [1], [0, 0, 1, 1], [], []>} : vector<8x512xf32>, vector<512x128xf32>, vector<8x128xf32> -> vector<8x128xf32>
    %c4_38 = arith.constant 4 : index
    %c0_39 = arith.constant 0 : index
    %c0_40 = arith.constant 0 : index
    %38 = vector.load %arg4[%c4_38, %c0_39, %c0_40] : memref<9x8x8xf32, #tpu.memory_space<vmem>>, vector<1x8x8xf32>
    %39 = vector.shape_cast %38 : vector<1x8x8xf32> to vector<8x8xf32>
    %cst_41 = arith.constant dense<0.000000e+00> : vector<8x128xf32>
    %40 = tpu.matmul %39, %37, %cst_41 {dimension_numbers = #tpu.dot_dimension_numbers<[1], [0], [0], [1], [0, 0, 1, 1], [], []>} : vector<8x8xf32>, vector<8x128xf32>, vector<8x128xf32> -> vector<8x128xf32>
    %41 = arith.addf %34, %40 : vector<8x128xf32>
    %c5 = arith.constant 5 : index
    %c0_42 = arith.constant 0 : index
    %c0_43 = arith.constant 0 : index
    %42 = vector.load %arg6[%c5, %c0_42, %c0_43] : memref<9x512x128xf32, #tpu.memory_space<vmem>>, vector<1x512x128xf32>
    %43 = vector.shape_cast %42 : vector<1x512x128xf32> to vector<512x128xf32>
    %cst_44 = arith.constant dense<0.000000e+00> : vector<8x128xf32>
    %44 = tpu.matmul %7, %43, %cst_44 {dimension_numbers = #tpu.dot_dimension_numbers<[1], [0], [0], [1], [0, 0, 1, 1], [], []>} : vector<8x512xf32>, vector<512x128xf32>, vector<8x128xf32> -> vector<8x128xf32>
    %c5_45 = arith.constant 5 : index
    %c0_46 = arith.constant 0 : index
    %c0_47 = arith.constant 0 : index
    %45 = vector.load %arg4[%c5_45, %c0_46, %c0_47] : memref<9x8x8xf32, #tpu.memory_space<vmem>>, vector<1x8x8xf32>
    %46 = vector.shape_cast %45 : vector<1x8x8xf32> to vector<8x8xf32>
    %cst_48 = arith.constant dense<0.000000e+00> : vector<8x128xf32>
    %47 = tpu.matmul %46, %44, %cst_48 {dimension_numbers = #tpu.dot_dimension_numbers<[1], [0], [0], [1], [0, 0, 1, 1], [], []>} : vector<8x8xf32>, vector<8x128xf32>, vector<8x128xf32> -> vector<8x128xf32>
    %48 = arith.addf %41, %47 : vector<8x128xf32>
    %c6 = arith.constant 6 : index
    %c0_49 = arith.constant 0 : index
    %c0_50 = arith.constant 0 : index
    %49 = vector.load %arg6[%c6, %c0_49, %c0_50] : memref<9x512x128xf32, #tpu.memory_space<vmem>>, vector<1x512x128xf32>
    %50 = vector.shape_cast %49 : vector<1x512x128xf32> to vector<512x128xf32>
    %cst_51 = arith.constant dense<0.000000e+00> : vector<8x128xf32>
    %51 = tpu.matmul %7, %50, %cst_51 {dimension_numbers = #tpu.dot_dimension_numbers<[1], [0], [0], [1], [0, 0, 1, 1], [], []>} : vector<8x512xf32>, vector<512x128xf32>, vector<8x128xf32> -> vector<8x128xf32>
    %c6_52 = arith.constant 6 : index
    %c0_53 = arith.constant 0 : index
    %c0_54 = arith.constant 0 : index
    %52 = vector.load %arg4[%c6_52, %c0_53, %c0_54] : memref<9x8x8xf32, #tpu.memory_space<vmem>>, vector<1x8x8xf32>
    %53 = vector.shape_cast %52 : vector<1x8x8xf32> to vector<8x8xf32>
    %cst_55 = arith.constant dense<0.000000e+00> : vector<8x128xf32>
    %54 = tpu.matmul %53, %51, %cst_55 {dimension_numbers = #tpu.dot_dimension_numbers<[1], [0], [0], [1], [0, 0, 1, 1], [], []>} : vector<8x8xf32>, vector<8x128xf32>, vector<8x128xf32> -> vector<8x128xf32>
    %55 = arith.addf %48, %54 : vector<8x128xf32>
    %c7 = arith.constant 7 : index
    %c0_56 = arith.constant 0 : index
    %c0_57 = arith.constant 0 : index
    %56 = vector.load %arg6[%c7, %c0_56, %c0_57] : memref<9x512x128xf32, #tpu.memory_space<vmem>>, vector<1x512x128xf32>
    %57 = vector.shape_cast %56 : vector<1x512x128xf32> to vector<512x128xf32>
    %cst_58 = arith.constant dense<0.000000e+00> : vector<8x128xf32>
    %58 = tpu.matmul %7, %57, %cst_58 {dimension_numbers = #tpu.dot_dimension_numbers<[1], [0], [0], [1], [0, 0, 1, 1], [], []>} : vector<8x512xf32>, vector<512x128xf32>, vector<8x128xf32> -> vector<8x128xf32>
    %c7_59 = arith.constant 7 : index
    %c0_60 = arith.constant 0 : index
    %c0_61 = arith.constant 0 : index
    %59 = vector.load %arg4[%c7_59, %c0_60, %c0_61] : memref<9x8x8xf32, #tpu.memory_space<vmem>>, vector<1x8x8xf32>
    %60 = vector.shape_cast %59 : vector<1x8x8xf32> to vector<8x8xf32>
    %cst_62 = arith.constant dense<0.000000e+00> : vector<8x128xf32>
    %61 = tpu.matmul %60, %58, %cst_62 {dimension_numbers = #tpu.dot_dimension_numbers<[1], [0], [0], [1], [0, 0, 1, 1], [], []>} : vector<8x8xf32>, vector<8x128xf32>, vector<8x128xf32> -> vector<8x128xf32>
    %62 = arith.addf %55, %61 : vector<8x128xf32>
    %c8 = arith.constant 8 : index
    %c0_63 = arith.constant 0 : index
    %c0_64 = arith.constant 0 : index
    %63 = vector.load %arg6[%c8, %c0_63, %c0_64] : memref<9x512x128xf32, #tpu.memory_space<vmem>>, vector<1x512x128xf32>
    %64 = vector.shape_cast %63 : vector<1x512x128xf32> to vector<512x128xf32>
    %cst_65 = arith.constant dense<0.000000e+00> : vector<8x128xf32>
    %65 = tpu.matmul %7, %64, %cst_65 {dimension_numbers = #tpu.dot_dimension_numbers<[1], [0], [0], [1], [0, 0, 1, 1], [], []>} : vector<8x512xf32>, vector<512x128xf32>, vector<8x128xf32> -> vector<8x128xf32>
    %c8_66 = arith.constant 8 : index
    %c0_67 = arith.constant 0 : index
    %c0_68 = arith.constant 0 : index
    %66 = vector.load %arg4[%c8_66, %c0_67, %c0_68] : memref<9x8x8xf32, #tpu.memory_space<vmem>>, vector<1x8x8xf32>
    %67 = vector.shape_cast %66 : vector<1x8x8xf32> to vector<8x8xf32>
    %cst_69 = arith.constant dense<0.000000e+00> : vector<8x128xf32>
    %68 = tpu.matmul %67, %65, %cst_69 {dimension_numbers = #tpu.dot_dimension_numbers<[1], [0], [0], [1], [0, 0, 1, 1], [], []>} : vector<8x8xf32>, vector<8x128xf32>, vector<8x128xf32> -> vector<8x128xf32>
    %69 = arith.addf %62, %68 : vector<8x128xf32>
    %c0_70 = arith.constant 0 : index
    %c0_71 = arith.constant 0 : index
    %70 = vector.load %arg5[%c0_70, %c0_71] : memref<8x1xf32, #tpu.memory_space<vmem>>, vector<8x1xf32>
    %71 = vector.broadcast %70 : vector<8x1xf32> to vector<8x128xf32>
    %72 = arith.addf %69, %71 : vector<8x128xf32>
    %cst_72 = arith.constant 0.000000e+00 : f32
    %73 = vector.broadcast %cst_72 : f32 to vector<8x128xf32>
    %74 = arith.maximumf %72, %73 : vector<8x128xf32>
    %c0_73 = arith.constant 0 : index
    %c0_74 = arith.constant 0 : index
    %75 = vector.load %arg7[%c0_73, %c0_74] : memref<128x512xf32, #tpu.memory_space<vmem>>, vector<128x512xf32>
    %cst_75 = arith.constant dense<0.000000e+00> : vector<8x512xf32>
    %76 = tpu.matmul %74, %75, %cst_75 {dimension_numbers = #tpu.dot_dimension_numbers<[1], [0], [0], [1], [0, 0, 1, 1], [], []>} : vector<8x128xf32>, vector<128x512xf32>, vector<8x512xf32> -> vector<8x512xf32>
    %77 = vector.extract_strided_slice %76 {offsets = [0, 51], sizes = [8, 376], strides = [1, 1]} : vector<8x512xf32> to vector<8x376xf32>
    %c0_76 = arith.constant 0 : index
    %c0_77 = arith.constant 0 : index
    %c0_78 = arith.constant 0 : index
    %c0_79 = arith.constant 0 : index
    %78 = vector.load %arg8[%c0_76, %c0_77, %c0_78, %c0_79] : memref<3x9x8x8xf32, #tpu.memory_space<vmem>>, vector<1x1x8x8xf32>
    %79 = vector.shape_cast %78 : vector<1x1x8x8xf32> to vector<8x8xf32>
    %cst_80 = arith.constant dense<0.000000e+00> : vector<8x376xf32>
    %80 = tpu.matmul %79, %77, %cst_80 {dimension_numbers = #tpu.dot_dimension_numbers<[1], [0], [0], [1], [0, 0, 1, 1], [], []>} : vector<8x8xf32>, vector<8x376xf32>, vector<8x376xf32> -> vector<8x376xf32>
    %81 = vector.extract_strided_slice %76 {offsets = [0, 52], sizes = [8, 376], strides = [1, 1]} : vector<8x512xf32> to vector<8x376xf32>
    %c0_81 = arith.constant 0 : index
    %c1_82 = arith.constant 1 : index
    %c0_83 = arith.constant 0 : index
    %c0_84 = arith.constant 0 : index
    %82 = vector.load %arg8[%c0_81, %c1_82, %c0_83, %c0_84] : memref<3x9x8x8xf32, #tpu.memory_space<vmem>>, vector<1x1x8x8xf32>
    %83 = vector.shape_cast %82 : vector<1x1x8x8xf32> to vector<8x8xf32>
    %cst_85 = arith.constant dense<0.000000e+00> : vector<8x376xf32>
    %84 = tpu.matmul %83, %81, %cst_85 {dimension_numbers = #tpu.dot_dimension_numbers<[1], [0], [0], [1], [0, 0, 1, 1], [], []>} : vector<8x8xf32>, vector<8x376xf32>, vector<8x376xf32> -> vector<8x376xf32>
    %85 = arith.addf %80, %84 : vector<8x376xf32>
    %86 = vector.extract_strided_slice %76 {offsets = [0, 53], sizes = [8, 376], strides = [1, 1]} : vector<8x512xf32> to vector<8x376xf32>
    %c0_86 = arith.constant 0 : index
    %c2_87 = arith.constant 2 : index
    %c0_88 = arith.constant 0 : index
    %c0_89 = arith.constant 0 : index
    %87 = vector.load %arg8[%c0_86, %c2_87, %c0_88, %c0_89] : memref<3x9x8x8xf32, #tpu.memory_space<vmem>>, vector<1x1x8x8xf32>
    %88 = vector.shape_cast %87 : vector<1x1x8x8xf32> to vector<8x8xf32>
    %cst_90 = arith.constant dense<0.000000e+00> : vector<8x376xf32>
    %89 = tpu.matmul %88, %86, %cst_90 {dimension_numbers = #tpu.dot_dimension_numbers<[1], [0], [0], [1], [0, 0, 1, 1], [], []>} : vector<8x8xf32>, vector<8x376xf32>, vector<8x376xf32> -> vector<8x376xf32>
    %90 = arith.addf %85, %89 : vector<8x376xf32>
    %91 = vector.extract_strided_slice %76 {offsets = [0, 67], sizes = [8, 376], strides = [1, 1]} : vector<8x512xf32> to vector<8x376xf32>
    %c0_91 = arith.constant 0 : index
    %c3_92 = arith.constant 3 : index
    %c0_93 = arith.constant 0 : index
    %c0_94 = arith.constant 0 : index
    %92 = vector.load %arg8[%c0_91, %c3_92, %c0_93, %c0_94] : memref<3x9x8x8xf32, #tpu.memory_space<vmem>>, vector<1x1x8x8xf32>
    %93 = vector.shape_cast %92 : vector<1x1x8x8xf32> to vector<8x8xf32>
    %cst_95 = arith.constant dense<0.000000e+00> : vector<8x376xf32>
    %94 = tpu.matmul %93, %91, %cst_95 {dimension_numbers = #tpu.dot_dimension_numbers<[1], [0], [0], [1], [0, 0, 1, 1], [], []>} : vector<8x8xf32>, vector<8x376xf32>, vector<8x376xf32> -> vector<8x376xf32>
    %95 = arith.addf %90, %94 : vector<8x376xf32>
    %96 = vector.extract_strided_slice %76 {offsets = [0, 68], sizes = [8, 376], strides = [1, 1]} : vector<8x512xf32> to vector<8x376xf32>
    %c0_96 = arith.constant 0 : index
    %c4_97 = arith.constant 4 : index
    %c0_98 = arith.constant 0 : index
    %c0_99 = arith.constant 0 : index
    %97 = vector.load %arg8[%c0_96, %c4_97, %c0_98, %c0_99] : memref<3x9x8x8xf32, #tpu.memory_space<vmem>>, vector<1x1x8x8xf32>
    %98 = vector.shape_cast %97 : vector<1x1x8x8xf32> to vector<8x8xf32>
    %cst_100 = arith.constant dense<0.000000e+00> : vector<8x376xf32>
    %99 = tpu.matmul %98, %96, %cst_100 {dimension_numbers = #tpu.dot_dimension_numbers<[1], [0], [0], [1], [0, 0, 1, 1], [], []>} : vector<8x8xf32>, vector<8x376xf32>, vector<8x376xf32> -> vector<8x376xf32>
    %100 = arith.addf %95, %99 : vector<8x376xf32>
    %101 = vector.extract_strided_slice %76 {offsets = [0, 69], sizes = [8, 376], strides = [1, 1]} : vector<8x512xf32> to vector<8x376xf32>
    %c0_101 = arith.constant 0 : index
    %c5_102 = arith.constant 5 : index
    %c0_103 = arith.constant 0 : index
    %c0_104 = arith.constant 0 : index
    %102 = vector.load %arg8[%c0_101, %c5_102, %c0_103, %c0_104] : memref<3x9x8x8xf32, #tpu.memory_space<vmem>>, vector<1x1x8x8xf32>
    %103 = vector.shape_cast %102 : vector<1x1x8x8xf32> to vector<8x8xf32>
    %cst_105 = arith.constant dense<0.000000e+00> : vector<8x376xf32>
    %104 = tpu.matmul %103, %101, %cst_105 {dimension_numbers = #tpu.dot_dimension_numbers<[1], [0], [0], [1], [0, 0, 1, 1], [], []>} : vector<8x8xf32>, vector<8x376xf32>, vector<8x376xf32> -> vector<8x376xf32>
    %105 = arith.addf %100, %104 : vector<8x376xf32>
    %106 = vector.extract_strided_slice %76 {offsets = [0, 83], sizes = [8, 376], strides = [1, 1]} : vector<8x512xf32> to vector<8x376xf32>
    %c0_106 = arith.constant 0 : index
    %c6_107 = arith.constant 6 : index
    %c0_108 = arith.constant 0 : index
    %c0_109 = arith.constant 0 : index
    %107 = vector.load %arg8[%c0_106, %c6_107, %c0_108, %c0_109] : memref<3x9x8x8xf32, #tpu.memory_space<vmem>>, vector<1x1x8x8xf32>
    %108 = vector.shape_cast %107 : vector<1x1x8x8xf32> to vector<8x8xf32>
    %cst_110 = arith.constant dense<0.000000e+00> : vector<8x376xf32>
    %109 = tpu.matmul %108, %106, %cst_110 {dimension_numbers = #tpu.dot_dimension_numbers<[1], [0], [0], [1], [0, 0, 1, 1], [], []>} : vector<8x8xf32>, vector<8x376xf32>, vector<8x376xf32> -> vector<8x376xf32>
    %110 = arith.addf %105, %109 : vector<8x376xf32>
    %111 = vector.extract_strided_slice %76 {offsets = [0, 84], sizes = [8, 376], strides = [1, 1]} : vector<8x512xf32> to vector<8x376xf32>
    %c0_111 = arith.constant 0 : index
    %c7_112 = arith.constant 7 : index
    %c0_113 = arith.constant 0 : index
    %c0_114 = arith.constant 0 : index
    %112 = vector.load %arg8[%c0_111, %c7_112, %c0_113, %c0_114] : memref<3x9x8x8xf32, #tpu.memory_space<vmem>>, vector<1x1x8x8xf32>
    %113 = vector.shape_cast %112 : vector<1x1x8x8xf32> to vector<8x8xf32>
    %cst_115 = arith.constant dense<0.000000e+00> : vector<8x376xf32>
    %114 = tpu.matmul %113, %111, %cst_115 {dimension_numbers = #tpu.dot_dimension_numbers<[1], [0], [0], [1], [0, 0, 1, 1], [], []>} : vector<8x8xf32>, vector<8x376xf32>, vector<8x376xf32> -> vector<8x376xf32>
    %115 = arith.addf %110, %114 : vector<8x376xf32>
    %116 = vector.extract_strided_slice %76 {offsets = [0, 85], sizes = [8, 376], strides = [1, 1]} : vector<8x512xf32> to vector<8x376xf32>
    %c0_116 = arith.constant 0 : index
    %c8_117 = arith.constant 8 : index
    %c0_118 = arith.constant 0 : index
    %c0_119 = arith.constant 0 : index
    %117 = vector.load %arg8[%c0_116, %c8_117, %c0_118, %c0_119] : memref<3x9x8x8xf32, #tpu.memory_space<vmem>>, vector<1x1x8x8xf32>
    %118 = vector.shape_cast %117 : vector<1x1x8x8xf32> to vector<8x8xf32>
    %cst_120 = arith.constant dense<0.000000e+00> : vector<8x376xf32>
    %119 = tpu.matmul %118, %116, %cst_120 {dimension_numbers = #tpu.dot_dimension_numbers<[1], [0], [0], [1], [0, 0, 1, 1], [], []>} : vector<8x8xf32>, vector<8x376xf32>, vector<8x376xf32> -> vector<8x376xf32>
    %120 = arith.addf %115, %119 : vector<8x376xf32>
    %c0_121 = arith.constant 0 : index
    %c0_122 = arith.constant 0 : index
    %c0_123 = arith.constant 0 : index
    %121 = vector.load %arg9[%c0_121, %c0_122, %c0_123] : memref<3x8x1xf32, #tpu.memory_space<vmem>>, vector<1x8x1xf32>
    %122 = vector.shape_cast %121 : vector<1x8x1xf32> to vector<8x1xf32>
    %123 = vector.broadcast %122 : vector<8x1xf32> to vector<8x376xf32>
    %124 = arith.addf %120, %123 : vector<8x376xf32>
    %cst_124 = arith.constant 0.000000e+00 : f32
    %125 = vector.broadcast %cst_124 : f32 to vector<8x376xf32>
    %126 = arith.maximumf %124, %125 : vector<8x376xf32>
    %c0_125 = arith.constant 0 : index
    %c0_126 = arith.constant 0 : index
    %c0_127 = arith.constant 0 : index
    %127 = vector.load %arg10[%c0_125, %c0_126, %c0_127] : memref<3x8x8xf32, #tpu.memory_space<vmem>>, vector<1x8x8xf32>
    %128 = vector.shape_cast %127 : vector<1x8x8xf32> to vector<8x8xf32>
    %cst_128 = arith.constant dense<0.000000e+00> : vector<8x376xf32>
    %129 = tpu.matmul %128, %126, %cst_128 {dimension_numbers = #tpu.dot_dimension_numbers<[1], [0], [0], [1], [0, 0, 1, 1], [], []>} : vector<8x8xf32>, vector<8x376xf32>, vector<8x376xf32> -> vector<8x376xf32>
    %130 = vector.extract_strided_slice %76 {offsets = [0, 34], sizes = [8, 376], strides = [1, 1]} : vector<8x512xf32> to vector<8x376xf32>
    %c1_129 = arith.constant 1 : index
    %c0_130 = arith.constant 0 : index
    %c0_131 = arith.constant 0 : index
    %c0_132 = arith.constant 0 : index
    %131 = vector.load %arg8[%c1_129, %c0_130, %c0_131, %c0_132] : memref<3x9x8x8xf32, #tpu.memory_space<vmem>>, vector<1x1x8x8xf32>
    %132 = vector.shape_cast %131 : vector<1x1x8x8xf32> to vector<8x8xf32>
    %cst_133 = arith.constant dense<0.000000e+00> : vector<8x376xf32>
    %133 = tpu.matmul %132, %130, %cst_133 {dimension_numbers = #tpu.dot_dimension_numbers<[1], [0], [0], [1], [0, 0, 1, 1], [], []>} : vector<8x8xf32>, vector<8x376xf32>, vector<8x376xf32> -> vector<8x376xf32>
    %134 = vector.extract_strided_slice %76 {offsets = [0, 36], sizes = [8, 376], strides = [1, 1]} : vector<8x512xf32> to vector<8x376xf32>
    %c1_134 = arith.constant 1 : index
    %c1_135 = arith.constant 1 : index
    %c0_136 = arith.constant 0 : index
    %c0_137 = arith.constant 0 : index
    %135 = vector.load %arg8[%c1_134, %c1_135, %c0_136, %c0_137] : memref<3x9x8x8xf32, #tpu.memory_space<vmem>>, vector<1x1x8x8xf32>
    %136 = vector.shape_cast %135 : vector<1x1x8x8xf32> to vector<8x8xf32>
    %cst_138 = arith.constant dense<0.000000e+00> : vector<8x376xf32>
    %137 = tpu.matmul %136, %134, %cst_138 {dimension_numbers = #tpu.dot_dimension_numbers<[1], [0], [0], [1], [0, 0, 1, 1], [], []>} : vector<8x8xf32>, vector<8x376xf32>, vector<8x376xf32> -> vector<8x376xf32>
    %138 = arith.addf %133, %137 : vector<8x376xf32>
    %139 = vector.extract_strided_slice %76 {offsets = [0, 38], sizes = [8, 376], strides = [1, 1]} : vector<8x512xf32> to vector<8x376xf32>
    %c1_139 = arith.constant 1 : index
    %c2_140 = arith.constant 2 : index
    %c0_141 = arith.constant 0 : index
    %c0_142 = arith.constant 0 : index
    %140 = vector.load %arg8[%c1_139, %c2_140, %c0_141, %c0_142] : memref<3x9x8x8xf32, #tpu.memory_space<vmem>>, vector<1x1x8x8xf32>
    %141 = vector.shape_cast %140 : vector<1x1x8x8xf32> to vector<8x8xf32>
    %cst_143 = arith.constant dense<0.000000e+00> : vector<8x376xf32>
    %142 = tpu.matmul %141, %139, %cst_143 {dimension_numbers = #tpu.dot_dimension_numbers<[1], [0], [0], [1], [0, 0, 1, 1], [], []>} : vector<8x8xf32>, vector<8x376xf32>, vector<8x376xf32> -> vector<8x376xf32>
    %143 = arith.addf %138, %142 : vector<8x376xf32>
    %144 = vector.extract_strided_slice %76 {offsets = [0, 66], sizes = [8, 376], strides = [1, 1]} : vector<8x512xf32> to vector<8x376xf32>
    %c1_144 = arith.constant 1 : index
    %c3_145 = arith.constant 3 : index
    %c0_146 = arith.constant 0 : index
    %c0_147 = arith.constant 0 : index
    %145 = vector.load %arg8[%c1_144, %c3_145, %c0_146, %c0_147] : memref<3x9x8x8xf32, #tpu.memory_space<vmem>>, vector<1x1x8x8xf32>
    %146 = vector.shape_cast %145 : vector<1x1x8x8xf32> to vector<8x8xf32>
    %cst_148 = arith.constant dense<0.000000e+00> : vector<8x376xf32>
    %147 = tpu.matmul %146, %144, %cst_148 {dimension_numbers = #tpu.dot_dimension_numbers<[1], [0], [0], [1], [0, 0, 1, 1], [], []>} : vector<8x8xf32>, vector<8x376xf32>, vector<8x376xf32> -> vector<8x376xf32>
    %148 = arith.addf %143, %147 : vector<8x376xf32>
    %149 = vector.extract_strided_slice %76 {offsets = [0, 68], sizes = [8, 376], strides = [1, 1]} : vector<8x512xf32> to vector<8x376xf32>
    %c1_149 = arith.constant 1 : index
    %c4_150 = arith.constant 4 : index
    %c0_151 = arith.constant 0 : index
    %c0_152 = arith.constant 0 : index
    %150 = vector.load %arg8[%c1_149, %c4_150, %c0_151, %c0_152] : memref<3x9x8x8xf32, #tpu.memory_space<vmem>>, vector<1x1x8x8xf32>
    %151 = vector.shape_cast %150 : vector<1x1x8x8xf32> to vector<8x8xf32>
    %cst_153 = arith.constant dense<0.000000e+00> : vector<8x376xf32>
    %152 = tpu.matmul %151, %149, %cst_153 {dimension_numbers = #tpu.dot_dimension_numbers<[1], [0], [0], [1], [0, 0, 1, 1], [], []>} : vector<8x8xf32>, vector<8x376xf32>, vector<8x376xf32> -> vector<8x376xf32>
    %153 = arith.addf %148, %152 : vector<8x376xf32>
    %154 = vector.extract_strided_slice %76 {offsets = [0, 70], sizes = [8, 376], strides = [1, 1]} : vector<8x512xf32> to vector<8x376xf32>
    %c1_154 = arith.constant 1 : index
    %c5_155 = arith.constant 5 : index
    %c0_156 = arith.constant 0 : index
    %c0_157 = arith.constant 0 : index
    %155 = vector.load %arg8[%c1_154, %c5_155, %c0_156, %c0_157] : memref<3x9x8x8xf32, #tpu.memory_space<vmem>>, vector<1x1x8x8xf32>
    %156 = vector.shape_cast %155 : vector<1x1x8x8xf32> to vector<8x8xf32>
    %cst_158 = arith.constant dense<0.000000e+00> : vector<8x376xf32>
    %157 = tpu.matmul %156, %154, %cst_158 {dimension_numbers = #tpu.dot_dimension_numbers<[1], [0], [0], [1], [0, 0, 1, 1], [], []>} : vector<8x8xf32>, vector<8x376xf32>, vector<8x376xf32> -> vector<8x376xf32>
    %158 = arith.addf %153, %157 : vector<8x376xf32>
    %159 = vector.extract_strided_slice %76 {offsets = [0, 98], sizes = [8, 376], strides = [1, 1]} : vector<8x512xf32> to vector<8x376xf32>
    %c1_159 = arith.constant 1 : index
    %c6_160 = arith.constant 6 : index
    %c0_161 = arith.constant 0 : index
    %c0_162 = arith.constant 0 : index
    %160 = vector.load %arg8[%c1_159, %c6_160, %c0_161, %c0_162] : memref<3x9x8x8xf32, #tpu.memory_space<vmem>>, vector<1x1x8x8xf32>
    %161 = vector.shape_cast %160 : vector<1x1x8x8xf32> to vector<8x8xf32>
    %cst_163 = arith.constant dense<0.000000e+00> : vector<8x376xf32>
    %162 = tpu.matmul %161, %159, %cst_163 {dimension_numbers = #tpu.dot_dimension_numbers<[1], [0], [0], [1], [0, 0, 1, 1], [], []>} : vector<8x8xf32>, vector<8x376xf32>, vector<8x376xf32> -> vector<8x376xf32>
    %163 = arith.addf %158, %162 : vector<8x376xf32>
    %164 = vector.extract_strided_slice %76 {offsets = [0, 100], sizes = [8, 376], strides = [1, 1]} : vector<8x512xf32> to vector<8x376xf32>
    %c1_164 = arith.constant 1 : index
    %c7_165 = arith.constant 7 : index
    %c0_166 = arith.constant 0 : index
    %c0_167 = arith.constant 0 : index
    %165 = vector.load %arg8[%c1_164, %c7_165, %c0_166, %c0_167] : memref<3x9x8x8xf32, #tpu.memory_space<vmem>>, vector<1x1x8x8xf32>
    %166 = vector.shape_cast %165 : vector<1x1x8x8xf32> to vector<8x8xf32>
    %cst_168 = arith.constant dense<0.000000e+00> : vector<8x376xf32>
    %167 = tpu.matmul %166, %164, %cst_168 {dimension_numbers = #tpu.dot_dimension_numbers<[1], [0], [0], [1], [0, 0, 1, 1], [], []>} : vector<8x8xf32>, vector<8x376xf32>, vector<8x376xf32> -> vector<8x376xf32>
    %168 = arith.addf %163, %167 : vector<8x376xf32>
    %169 = vector.extract_strided_slice %76 {offsets = [0, 102], sizes = [8, 376], strides = [1, 1]} : vector<8x512xf32> to vector<8x376xf32>
    %c1_169 = arith.constant 1 : index
    %c8_170 = arith.constant 8 : index
    %c0_171 = arith.constant 0 : index
    %c0_172 = arith.constant 0 : index
    %170 = vector.load %arg8[%c1_169, %c8_170, %c0_171, %c0_172] : memref<3x9x8x8xf32, #tpu.memory_space<vmem>>, vector<1x1x8x8xf32>
    %171 = vector.shape_cast %170 : vector<1x1x8x8xf32> to vector<8x8xf32>
    %cst_173 = arith.constant dense<0.000000e+00> : vector<8x376xf32>
    %172 = tpu.matmul %171, %169, %cst_173 {dimension_numbers = #tpu.dot_dimension_numbers<[1], [0], [0], [1], [0, 0, 1, 1], [], []>} : vector<8x8xf32>, vector<8x376xf32>, vector<8x376xf32> -> vector<8x376xf32>
    %173 = arith.addf %168, %172 : vector<8x376xf32>
    %c1_174 = arith.constant 1 : index
    %c0_175 = arith.constant 0 : index
    %c0_176 = arith.constant 0 : index
    %174 = vector.load %arg9[%c1_174, %c0_175, %c0_176] : memref<3x8x1xf32, #tpu.memory_space<vmem>>, vector<1x8x1xf32>
    %175 = vector.shape_cast %174 : vector<1x8x1xf32> to vector<8x1xf32>
    %176 = vector.broadcast %175 : vector<8x1xf32> to vector<8x376xf32>
    %177 = arith.addf %173, %176 : vector<8x376xf32>
    %cst_177 = arith.constant 0.000000e+00 : f32
    %178 = vector.broadcast %cst_177 : f32 to vector<8x376xf32>
    %179 = arith.maximumf %177, %178 : vector<8x376xf32>
    %c1_178 = arith.constant 1 : index
    %c0_179 = arith.constant 0 : index
    %c0_180 = arith.constant 0 : index
    %180 = vector.load %arg10[%c1_178, %c0_179, %c0_180] : memref<3x8x8xf32, #tpu.memory_space<vmem>>, vector<1x8x8xf32>
    %181 = vector.shape_cast %180 : vector<1x8x8xf32> to vector<8x8xf32>
    %cst_181 = arith.constant dense<0.000000e+00> : vector<8x376xf32>
    %182 = tpu.matmul %181, %179, %cst_181 {dimension_numbers = #tpu.dot_dimension_numbers<[1], [0], [0], [1], [0, 0, 1, 1], [], []>} : vector<8x8xf32>, vector<8x376xf32>, vector<8x376xf32> -> vector<8x376xf32>
    %183 = arith.addf %129, %182 : vector<8x376xf32>
    %184 = vector.extract_strided_slice %76 {offsets = [0, 0], sizes = [8, 376], strides = [1, 1]} : vector<8x512xf32> to vector<8x376xf32>
    %c2_182 = arith.constant 2 : index
    %c0_183 = arith.constant 0 : index
    %c0_184 = arith.constant 0 : index
    %c0_185 = arith.constant 0 : index
    %185 = vector.load %arg8[%c2_182, %c0_183, %c0_184, %c0_185] : memref<3x9x8x8xf32, #tpu.memory_space<vmem>>, vector<1x1x8x8xf32>
    %186 = vector.shape_cast %185 : vector<1x1x8x8xf32> to vector<8x8xf32>
    %cst_186 = arith.constant dense<0.000000e+00> : vector<8x376xf32>
    %187 = tpu.matmul %186, %184, %cst_186 {dimension_numbers = #tpu.dot_dimension_numbers<[1], [0], [0], [1], [0, 0, 1, 1], [], []>} : vector<8x8xf32>, vector<8x376xf32>, vector<8x376xf32> -> vector<8x376xf32>
    %188 = vector.extract_strided_slice %76 {offsets = [0, 4], sizes = [8, 376], strides = [1, 1]} : vector<8x512xf32> to vector<8x376xf32>
    %c2_187 = arith.constant 2 : index
    %c1_188 = arith.constant 1 : index
    %c0_189 = arith.constant 0 : index
    %c0_190 = arith.constant 0 : index
    %189 = vector.load %arg8[%c2_187, %c1_188, %c0_189, %c0_190] : memref<3x9x8x8xf32, #tpu.memory_space<vmem>>, vector<1x1x8x8xf32>
    %190 = vector.shape_cast %189 : vector<1x1x8x8xf32> to vector<8x8xf32>
    %cst_191 = arith.constant dense<0.000000e+00> : vector<8x376xf32>
    %191 = tpu.matmul %190, %188, %cst_191 {dimension_numbers = #tpu.dot_dimension_numbers<[1], [0], [0], [1], [0, 0, 1, 1], [], []>} : vector<8x8xf32>, vector<8x376xf32>, vector<8x376xf32> -> vector<8x376xf32>
    %192 = arith.addf %187, %191 : vector<8x376xf32>
    %193 = vector.extract_strided_slice %76 {offsets = [0, 8], sizes = [8, 376], strides = [1, 1]} : vector<8x512xf32> to vector<8x376xf32>
    %c2_192 = arith.constant 2 : index
    %c2_193 = arith.constant 2 : index
    %c0_194 = arith.constant 0 : index
    %c0_195 = arith.constant 0 : index
    %194 = vector.load %arg8[%c2_192, %c2_193, %c0_194, %c0_195] : memref<3x9x8x8xf32, #tpu.memory_space<vmem>>, vector<1x1x8x8xf32>
    %195 = vector.shape_cast %194 : vector<1x1x8x8xf32> to vector<8x8xf32>
    %cst_196 = arith.constant dense<0.000000e+00> : vector<8x376xf32>
    %196 = tpu.matmul %195, %193, %cst_196 {dimension_numbers = #tpu.dot_dimension_numbers<[1], [0], [0], [1], [0, 0, 1, 1], [], []>} : vector<8x8xf32>, vector<8x376xf32>, vector<8x376xf32> -> vector<8x376xf32>
    %197 = arith.addf %192, %196 : vector<8x376xf32>
    %198 = vector.extract_strided_slice %76 {offsets = [0, 64], sizes = [8, 376], strides = [1, 1]} : vector<8x512xf32> to vector<8x376xf32>
    %c2_197 = arith.constant 2 : index
    %c3_198 = arith.constant 3 : index
    %c0_199 = arith.constant 0 : index
    %c0_200 = arith.constant 0 : index
    %199 = vector.load %arg8[%c2_197, %c3_198, %c0_199, %c0_200] : memref<3x9x8x8xf32, #tpu.memory_space<vmem>>, vector<1x1x8x8xf32>
    %200 = vector.shape_cast %199 : vector<1x1x8x8xf32> to vector<8x8xf32>
    %cst_201 = arith.constant dense<0.000000e+00> : vector<8x376xf32>
    %201 = tpu.matmul %200, %198, %cst_201 {dimension_numbers = #tpu.dot_dimension_numbers<[1], [0], [0], [1], [0, 0, 1, 1], [], []>} : vector<8x8xf32>, vector<8x376xf32>, vector<8x376xf32> -> vector<8x376xf32>
    %202 = arith.addf %197, %201 : vector<8x376xf32>
    %203 = vector.extract_strided_slice %76 {offsets = [0, 68], sizes = [8, 376], strides = [1, 1]} : vector<8x512xf32> to vector<8x376xf32>
    %c2_202 = arith.constant 2 : index
    %c4_203 = arith.constant 4 : index
    %c0_204 = arith.constant 0 : index
    %c0_205 = arith.constant 0 : index
    %204 = vector.load %arg8[%c2_202, %c4_203, %c0_204, %c0_205] : memref<3x9x8x8xf32, #tpu.memory_space<vmem>>, vector<1x1x8x8xf32>
    %205 = vector.shape_cast %204 : vector<1x1x8x8xf32> to vector<8x8xf32>
    %cst_206 = arith.constant dense<0.000000e+00> : vector<8x376xf32>
    %206 = tpu.matmul %205, %203, %cst_206 {dimension_numbers = #tpu.dot_dimension_numbers<[1], [0], [0], [1], [0, 0, 1, 1], [], []>} : vector<8x8xf32>, vector<8x376xf32>, vector<8x376xf32> -> vector<8x376xf32>
    %207 = arith.addf %202, %206 : vector<8x376xf32>
    %208 = vector.extract_strided_slice %76 {offsets = [0, 72], sizes = [8, 376], strides = [1, 1]} : vector<8x512xf32> to vector<8x376xf32>
    %c2_207 = arith.constant 2 : index
    %c5_208 = arith.constant 5 : index
    %c0_209 = arith.constant 0 : index
    %c0_210 = arith.constant 0 : index
    %209 = vector.load %arg8[%c2_207, %c5_208, %c0_209, %c0_210] : memref<3x9x8x8xf32, #tpu.memory_space<vmem>>, vector<1x1x8x8xf32>
    %210 = vector.shape_cast %209 : vector<1x1x8x8xf32> to vector<8x8xf32>
    %cst_211 = arith.constant dense<0.000000e+00> : vector<8x376xf32>
    %211 = tpu.matmul %210, %208, %cst_211 {dimension_numbers = #tpu.dot_dimension_numbers<[1], [0], [0], [1], [0, 0, 1, 1], [], []>} : vector<8x8xf32>, vector<8x376xf32>, vector<8x376xf32> -> vector<8x376xf32>
    %212 = arith.addf %207, %211 : vector<8x376xf32>
    %213 = vector.extract_strided_slice %76 {offsets = [0, 128], sizes = [8, 376], strides = [1, 1]} : vector<8x512xf32> to vector<8x376xf32>
    %c2_212 = arith.constant 2 : index
    %c6_213 = arith.constant 6 : index
    %c0_214 = arith.constant 0 : index
    %c0_215 = arith.constant 0 : index
    %214 = vector.load %arg8[%c2_212, %c6_213, %c0_214, %c0_215] : memref<3x9x8x8xf32, #tpu.memory_space<vmem>>, vector<1x1x8x8xf32>
    %215 = vector.shape_cast %214 : vector<1x1x8x8xf32> to vector<8x8xf32>
    %cst_216 = arith.constant dense<0.000000e+00> : vector<8x376xf32>
    %216 = tpu.matmul %215, %213, %cst_216 {dimension_numbers = #tpu.dot_dimension_numbers<[1], [0], [0], [1], [0, 0, 1, 1], [], []>} : vector<8x8xf32>, vector<8x376xf32>, vector<8x376xf32> -> vector<8x376xf32>
    %217 = arith.addf %212, %216 : vector<8x376xf32>
    %218 = vector.extract_strided_slice %76 {offsets = [0, 132], sizes = [8, 376], strides = [1, 1]} : vector<8x512xf32> to vector<8x376xf32>
    %c2_217 = arith.constant 2 : index
    %c7_218 = arith.constant 7 : index
    %c0_219 = arith.constant 0 : index
    %c0_220 = arith.constant 0 : index
    %219 = vector.load %arg8[%c2_217, %c7_218, %c0_219, %c0_220] : memref<3x9x8x8xf32, #tpu.memory_space<vmem>>, vector<1x1x8x8xf32>
    %220 = vector.shape_cast %219 : vector<1x1x8x8xf32> to vector<8x8xf32>
    %cst_221 = arith.constant dense<0.000000e+00> : vector<8x376xf32>
    %221 = tpu.matmul %220, %218, %cst_221 {dimension_numbers = #tpu.dot_dimension_numbers<[1], [0], [0], [1], [0, 0, 1, 1], [], []>} : vector<8x8xf32>, vector<8x376xf32>, vector<8x376xf32> -> vector<8x376xf32>
    %222 = arith.addf %217, %221 : vector<8x376xf32>
    %223 = vector.extract_strided_slice %76 {offsets = [0, 136], sizes = [8, 376], strides = [1, 1]} : vector<8x512xf32> to vector<8x376xf32>
    %c2_222 = arith.constant 2 : index
    %c8_223 = arith.constant 8 : index
    %c0_224 = arith.constant 0 : index
    %c0_225 = arith.constant 0 : index
    %224 = vector.load %arg8[%c2_222, %c8_223, %c0_224, %c0_225] : memref<3x9x8x8xf32, #tpu.memory_space<vmem>>, vector<1x1x8x8xf32>
    %225 = vector.shape_cast %224 : vector<1x1x8x8xf32> to vector<8x8xf32>
    %cst_226 = arith.constant dense<0.000000e+00> : vector<8x376xf32>
    %226 = tpu.matmul %225, %223, %cst_226 {dimension_numbers = #tpu.dot_dimension_numbers<[1], [0], [0], [1], [0, 0, 1, 1], [], []>} : vector<8x8xf32>, vector<8x376xf32>, vector<8x376xf32> -> vector<8x376xf32>
    %227 = arith.addf %222, %226 : vector<8x376xf32>
    %c2_227 = arith.constant 2 : index
    %c0_228 = arith.constant 0 : index
    %c0_229 = arith.constant 0 : index
    %228 = vector.load %arg9[%c2_227, %c0_228, %c0_229] : memref<3x8x1xf32, #tpu.memory_space<vmem>>, vector<1x8x1xf32>
    %229 = vector.shape_cast %228 : vector<1x8x1xf32> to vector<8x1xf32>
    %230 = vector.broadcast %229 : vector<8x1xf32> to vector<8x376xf32>
    %231 = arith.addf %227, %230 : vector<8x376xf32>
    %cst_230 = arith.constant 0.000000e+00 : f32
    %232 = vector.broadcast %cst_230 : f32 to vector<8x376xf32>
    %233 = arith.maximumf %231, %232 : vector<8x376xf32>
    %c2_231 = arith.constant 2 : index
    %c0_232 = arith.constant 0 : index
    %c0_233 = arith.constant 0 : index
    %234 = vector.load %arg10[%c2_231, %c0_232, %c0_233] : memref<3x8x8xf32, #tpu.memory_space<vmem>>, vector<1x8x8xf32>
    %235 = vector.shape_cast %234 : vector<1x8x8xf32> to vector<8x8xf32>
    %cst_234 = arith.constant dense<0.000000e+00> : vector<8x376xf32>
    %236 = tpu.matmul %235, %233, %cst_234 {dimension_numbers = #tpu.dot_dimension_numbers<[1], [0], [0], [1], [0, 0, 1, 1], [], []>} : vector<8x8xf32>, vector<8x376xf32>, vector<8x376xf32> -> vector<8x376xf32>
    %237 = arith.addf %183, %236 : vector<8x376xf32>
    %c0_235 = arith.constant 0 : index
    %c0_236 = arith.constant 0 : index
    %238 = vector.load %arg11[%c0_235, %c0_236] : memref<8x1xf32, #tpu.memory_space<vmem>>, vector<8x1xf32>
    %239 = vector.broadcast %238 : vector<8x1xf32> to vector<8x376xf32>
    %240 = arith.addf %237, %239 : vector<8x376xf32>
    %cst_237 = arith.constant 0.000000e+00 : f32
    %241 = vector.broadcast %cst_237 : f32 to vector<8x376xf32>
    %242 = arith.maximumf %240, %241 : vector<8x376xf32>
    %c0_238 = arith.constant 0 : index
    %c0_239 = arith.constant 0 : index
    %243 = vector.load %arg12[%c0_238, %c0_239] : memref<376x512xf32, #tpu.memory_space<vmem>>, vector<376x512xf32>
    %cst_240 = arith.constant dense<0.000000e+00> : vector<8x512xf32>
    %244 = tpu.matmul %242, %243, %cst_240 {dimension_numbers = #tpu.dot_dimension_numbers<[1], [0], [0], [1], [0, 0, 1, 1], [], []>} : vector<8x376xf32>, vector<376x512xf32>, vector<8x512xf32> -> vector<8x512xf32>
    %c0_241 = arith.constant 0 : index
    %c0_242 = arith.constant 0 : index
    %245 = vector.load %arg13[%c0_241, %c0_242] : memref<8x512xf32, #tpu.memory_space<vmem>>, vector<8x512xf32>
    tpu.vector_store %arg13[%c0_241, %c0_242], %244 {strides = array<i32>} : memref<8x512xf32, #tpu.memory_space<vmem>>, vector<8x512xf32>,
    return
  }
  func.func @transform_0(%arg0: i32) -> (i32, i32) {
    %c0_i32 = arith.constant 0 : i32
    %c0_i32_0 = arith.constant 0 : i32
    %c0_i32_1 = arith.constant 0 : i32
    return %c0_i32, %c0_i32_0 : i32, i32
  }
  func.func @transform_1(%arg0: i32) -> (i32, i32) {
    %c0_i32 = arith.constant 0 : i32
    %c0_i32_0 = arith.constant 0 : i32
    %c0_i32_1 = arith.constant 0 : i32
    return %c0_i32, %c0_i32_0 : i32, i32
  }
  func.func @transform_2(%arg0: i32) -> (i32, i32) {
    %c0_i32 = arith.constant 0 : i32
    %c0_i32_0 = arith.constant 0 : i32
    %c0_i32_1 = arith.constant 0 : i32
    return %c0_i32, %c0_i32_0 : i32, i32
  }
  func.func @transform_3(%arg0: i32) -> (i32, i32, i32) {
    %c0_i32 = arith.constant 0 : i32
    %c0_i32_0 = arith.constant 0 : i32
    %c0_i32_1 = arith.constant 0 : i32
    %c0_i32_2 = arith.constant 0 : i32
    return %c0_i32, %c0_i32_0, %c0_i32_1 : i32, i32, i32
  }
  func.func @transform_4(%arg0: i32) -> (i32, i32) {
    %c0_i32 = arith.constant 0 : i32
    %c0_i32_0 = arith.constant 0 : i32
    %c0_i32_1 = arith.constant 0 : i32
    return %c0_i32, %c0_i32_0 : i32, i32
  }
  func.func @transform_5(%arg0: i32) -> (i32, i32, i32) {
    %c0_i32 = arith.constant 0 : i32
    %c0_i32_0 = arith.constant 0 : i32
    %c0_i32_1 = arith.constant 0 : i32
    %c0_i32_2 = arith.constant 0 : i32
    return %c0_i32, %c0_i32_0, %c0_i32_1 : i32, i32, i32
  }
  func.func @transform_6(%arg0: i32) -> (i32, i32) {
    %c0_i32 = arith.constant 0 : i32
    %c0_i32_0 = arith.constant 0 : i32
    %c0_i32_1 = arith.constant 0 : i32
    return %c0_i32, %c0_i32_0 : i32, i32
  }
  func.func @transform_7(%arg0: i32) -> (i32, i32, i32, i32) {
    %c0_i32 = arith.constant 0 : i32
    %c0_i32_0 = arith.constant 0 : i32
    %c0_i32_1 = arith.constant 0 : i32
    %c0_i32_2 = arith.constant 0 : i32
    %c0_i32_3 = arith.constant 0 : i32
    return %c0_i32, %c0_i32_0, %c0_i32_1, %c0_i32_2 : i32, i32, i32, i32
  }
  func.func @transform_8(%arg0: i32) -> (i32, i32, i32) {
    %c0_i32 = arith.constant 0 : i32
    %c0_i32_0 = arith.constant 0 : i32
    %c0_i32_1 = arith.constant 0 : i32
    %c0_i32_2 = arith.constant 0 : i32
    return %c0_i32, %c0_i32_0, %c0_i32_1 : i32, i32, i32
  }
  func.func @transform_9(%arg0: i32) -> (i32, i32, i32) {
    %c0_i32 = arith.constant 0 : i32
    %c0_i32_0 = arith.constant 0 : i32
    %c0_i32_1 = arith.constant 0 : i32
    %c0_i32_2 = arith.constant 0 : i32
    return %c0_i32, %c0_i32_0, %c0_i32_1 : i32, i32, i32
  }
  func.func @transform_10(%arg0: i32) -> (i32, i32) {
    %c0_i32 = arith.constant 0 : i32
    %c0_i32_0 = arith.constant 0 : i32
    %c0_i32_1 = arith.constant 0 : i32
    return %c0_i32, %c0_i32_0 : i32, i32
  }
  func.func @transform_11(%arg0: i32) -> (i32, i32) {
    %c0_i32 = arith.constant 0 : i32
    %c0_i32_0 = arith.constant 0 : i32
    %c0_i32_1 = arith.constant 0 : i32
    return %c0_i32, %c0_i32_0 : i32, i32
  }
  func.func @transform_12(%arg0: i32) -> (i32, i32) {
    %c0_i32 = arith.constant 0 : i32
    %c0_i32_0 = arith.constant 0 : i32
    %c0_i32_1 = arith.constant 0 : i32
    return %c0_i32, %c0_i32_0 : i32, i32
  }
}

module attributes {stable_mosaic.version = 11 : i64} {
  func.func @_block_kernel(%arg0: i32, %arg1: memref<8x512xf32, #tpu.memory_space<vmem>>, %arg2: memref<376x512xf32, #tpu.memory_space<vmem>>, %arg3: memref<512x2xf32, #tpu.memory_space<vmem>>, %arg4: memref<2x512xf32, #tpu.memory_space<vmem>>, %arg5: memref<1x9x8x8xf32, #tpu.memory_space<vmem>>, %arg6: memref<1x8x1xf32, #tpu.memory_space<vmem>>, %arg7: memref<1x9x8x8xf32, #tpu.memory_space<vmem>>, %arg8: memref<1x8x1xf32, #tpu.memory_space<vmem>>, %arg9: memref<1x8x8xf32, #tpu.memory_space<vmem>>, %arg10: memref<1x8x1xf32, #tpu.memory_space<vmem>>, %arg11: memref<1x8x8xf32, #tpu.memory_space<vmem>>, %arg12: memref<1x8x1xf32, #tpu.memory_space<vmem>>, %arg13: memref<8x512xf32, #tpu.memory_space<vmem>>, %arg14: memref<8x512xf32, #tpu.memory_space<vmem>>) attributes {dimension_semantics = [#tpu.dimension_semantics<arbitrary>], iteration_bounds = array<i64: 4>, scalar_prefetch = 0 : i64, scratch_operands = 1 : i64, tpu.core_type = #tpu.core_type<tc>, window_params = [{pipeline_mode = #tpu.pipeline_mode<synchronous>, transform_indices = @transform_0, window_bounds = array<i64: 8, 512>}, {pipeline_mode = #tpu.pipeline_mode<synchronous>, transform_indices = @transform_1, window_bounds = array<i64: 376, 512>}, {pipeline_mode = #tpu.pipeline_mode<synchronous>, transform_indices = @transform_2, window_bounds = array<i64: 512, 2>}, {pipeline_mode = #tpu.pipeline_mode<synchronous>, transform_indices = @transform_3, window_bounds = array<i64: 2, 512>}, {transform_indices = @transform_4, window_bounds = array<i64: 1, 9, 8, 8>}, {transform_indices = @transform_5, window_bounds = array<i64: 1, 8, 1>}, {transform_indices = @transform_6, window_bounds = array<i64: 1, 9, 8, 8>}, {transform_indices = @transform_7, window_bounds = array<i64: 1, 8, 1>}, {transform_indices = @transform_8, window_bounds = array<i64: 1, 8, 8>}, {transform_indices = @transform_9, window_bounds = array<i64: 1, 8, 1>}, {transform_indices = @transform_10, window_bounds = array<i64: 1, 8, 8>}, {transform_indices = @transform_11, window_bounds = array<i64: 1, 8, 1>}, {pipeline_mode = #tpu.pipeline_mode<synchronous>, transform_indices = @transform_12, window_bounds = array<i64: 8, 512>}]} {
    %c0_i32 = arith.constant 0 : i32
    %0 = arith.cmpi eq, %arg0, %c0_i32 : i32
    %1 = arith.extui %0 : i1 to i32
    %c0_i32_0 = arith.constant 0 : i32
    %2 = arith.cmpi ne, %1, %c0_i32_0 : i32
    scf.if %2 {
      %c0_121 = arith.constant 0 : index
      %c0_122 = arith.constant 0 : index
      %136 = vector.load %arg1[%c0_121, %c0_122] : memref<8x512xf32, #tpu.memory_space<vmem>>, vector<8x512xf32>
      %c0_123 = arith.constant 0 : index
      %c0_124 = arith.constant 0 : index
      %137 = vector.load %arg14[%c0_123, %c0_124] : memref<8x512xf32, #tpu.memory_space<vmem>>, vector<8x512xf32>
      tpu.vector_store %arg14[%c0_123, %c0_124], %136 {strides = array<i32>} : memref<8x512xf32, #tpu.memory_space<vmem>>, vector<8x512xf32>,
    } else {
    }
    %c0 = arith.constant 0 : index
    %c0_1 = arith.constant 0 : index
    %3 = vector.load %arg14[%c0, %c0_1] : memref<8x512xf32, #tpu.memory_space<vmem>>, vector<8x512xf32>
    %c0_2 = arith.constant 0 : index
    %c0_3 = arith.constant 0 : index
    %4 = vector.load %arg2[%c0_2, %c0_3] : memref<376x512xf32, #tpu.memory_space<vmem>>, vector<376x512xf32>
    %5 = vector.extract_strided_slice %3 {offsets = [0, 51], sizes = [8, 376], strides = [1, 1]} : vector<8x512xf32> to vector<8x376xf32>
    %c0_4 = arith.constant 0 : index
    %c0_5 = arith.constant 0 : index
    %c0_6 = arith.constant 0 : index
    %c0_7 = arith.constant 0 : index
    %6 = vector.load %arg5[%c0_4, %c0_5, %c0_6, %c0_7] : memref<1x9x8x8xf32, #tpu.memory_space<vmem>>, vector<1x1x8x8xf32>
    %7 = vector.shape_cast %6 : vector<1x1x8x8xf32> to vector<8x8xf32>
    %cst = arith.constant dense<0.000000e+00> : vector<8x376xf32>
    %8 = tpu.matmul %7, %5, %cst {dimension_numbers = #tpu.dot_dimension_numbers<[1], [0], [0], [1], [0, 0, 1, 1], [], []>} : vector<8x8xf32>, vector<8x376xf32>, vector<8x376xf32> -> vector<8x376xf32>
    %9 = vector.extract_strided_slice %3 {offsets = [0, 52], sizes = [8, 376], strides = [1, 1]} : vector<8x512xf32> to vector<8x376xf32>
    %c0_8 = arith.constant 0 : index
    %c1 = arith.constant 1 : index
    %c0_9 = arith.constant 0 : index
    %c0_10 = arith.constant 0 : index
    %10 = vector.load %arg5[%c0_8, %c1, %c0_9, %c0_10] : memref<1x9x8x8xf32, #tpu.memory_space<vmem>>, vector<1x1x8x8xf32>
    %11 = vector.shape_cast %10 : vector<1x1x8x8xf32> to vector<8x8xf32>
    %cst_11 = arith.constant dense<0.000000e+00> : vector<8x376xf32>
    %12 = tpu.matmul %11, %9, %cst_11 {dimension_numbers = #tpu.dot_dimension_numbers<[1], [0], [0], [1], [0, 0, 1, 1], [], []>} : vector<8x8xf32>, vector<8x376xf32>, vector<8x376xf32> -> vector<8x376xf32>
    %13 = arith.addf %8, %12 : vector<8x376xf32>
    %14 = vector.extract_strided_slice %3 {offsets = [0, 53], sizes = [8, 376], strides = [1, 1]} : vector<8x512xf32> to vector<8x376xf32>
    %c0_12 = arith.constant 0 : index
    %c2 = arith.constant 2 : index
    %c0_13 = arith.constant 0 : index
    %c0_14 = arith.constant 0 : index
    %15 = vector.load %arg5[%c0_12, %c2, %c0_13, %c0_14] : memref<1x9x8x8xf32, #tpu.memory_space<vmem>>, vector<1x1x8x8xf32>
    %16 = vector.shape_cast %15 : vector<1x1x8x8xf32> to vector<8x8xf32>
    %cst_15 = arith.constant dense<0.000000e+00> : vector<8x376xf32>
    %17 = tpu.matmul %16, %14, %cst_15 {dimension_numbers = #tpu.dot_dimension_numbers<[1], [0], [0], [1], [0, 0, 1, 1], [], []>} : vector<8x8xf32>, vector<8x376xf32>, vector<8x376xf32> -> vector<8x376xf32>
    %18 = arith.addf %13, %17 : vector<8x376xf32>
    %19 = vector.extract_strided_slice %3 {offsets = [0, 67], sizes = [8, 376], strides = [1, 1]} : vector<8x512xf32> to vector<8x376xf32>
    %c0_16 = arith.constant 0 : index
    %c3 = arith.constant 3 : index
    %c0_17 = arith.constant 0 : index
    %c0_18 = arith.constant 0 : index
    %20 = vector.load %arg5[%c0_16, %c3, %c0_17, %c0_18] : memref<1x9x8x8xf32, #tpu.memory_space<vmem>>, vector<1x1x8x8xf32>
    %21 = vector.shape_cast %20 : vector<1x1x8x8xf32> to vector<8x8xf32>
    %cst_19 = arith.constant dense<0.000000e+00> : vector<8x376xf32>
    %22 = tpu.matmul %21, %19, %cst_19 {dimension_numbers = #tpu.dot_dimension_numbers<[1], [0], [0], [1], [0, 0, 1, 1], [], []>} : vector<8x8xf32>, vector<8x376xf32>, vector<8x376xf32> -> vector<8x376xf32>
    %23 = arith.addf %18, %22 : vector<8x376xf32>
    %24 = vector.extract_strided_slice %3 {offsets = [0, 68], sizes = [8, 376], strides = [1, 1]} : vector<8x512xf32> to vector<8x376xf32>
    %c0_20 = arith.constant 0 : index
    %c4 = arith.constant 4 : index
    %c0_21 = arith.constant 0 : index
    %c0_22 = arith.constant 0 : index
    %25 = vector.load %arg5[%c0_20, %c4, %c0_21, %c0_22] : memref<1x9x8x8xf32, #tpu.memory_space<vmem>>, vector<1x1x8x8xf32>
    %26 = vector.shape_cast %25 : vector<1x1x8x8xf32> to vector<8x8xf32>
    %cst_23 = arith.constant dense<0.000000e+00> : vector<8x376xf32>
    %27 = tpu.matmul %26, %24, %cst_23 {dimension_numbers = #tpu.dot_dimension_numbers<[1], [0], [0], [1], [0, 0, 1, 1], [], []>} : vector<8x8xf32>, vector<8x376xf32>, vector<8x376xf32> -> vector<8x376xf32>
    %28 = arith.addf %23, %27 : vector<8x376xf32>
    %29 = vector.extract_strided_slice %3 {offsets = [0, 69], sizes = [8, 376], strides = [1, 1]} : vector<8x512xf32> to vector<8x376xf32>
    %c0_24 = arith.constant 0 : index
    %c5 = arith.constant 5 : index
    %c0_25 = arith.constant 0 : index
    %c0_26 = arith.constant 0 : index
    %30 = vector.load %arg5[%c0_24, %c5, %c0_25, %c0_26] : memref<1x9x8x8xf32, #tpu.memory_space<vmem>>, vector<1x1x8x8xf32>
    %31 = vector.shape_cast %30 : vector<1x1x8x8xf32> to vector<8x8xf32>
    %cst_27 = arith.constant dense<0.000000e+00> : vector<8x376xf32>
    %32 = tpu.matmul %31, %29, %cst_27 {dimension_numbers = #tpu.dot_dimension_numbers<[1], [0], [0], [1], [0, 0, 1, 1], [], []>} : vector<8x8xf32>, vector<8x376xf32>, vector<8x376xf32> -> vector<8x376xf32>
    %33 = arith.addf %28, %32 : vector<8x376xf32>
    %34 = vector.extract_strided_slice %3 {offsets = [0, 83], sizes = [8, 376], strides = [1, 1]} : vector<8x512xf32> to vector<8x376xf32>
    %c0_28 = arith.constant 0 : index
    %c6 = arith.constant 6 : index
    %c0_29 = arith.constant 0 : index
    %c0_30 = arith.constant 0 : index
    %35 = vector.load %arg5[%c0_28, %c6, %c0_29, %c0_30] : memref<1x9x8x8xf32, #tpu.memory_space<vmem>>, vector<1x1x8x8xf32>
    %36 = vector.shape_cast %35 : vector<1x1x8x8xf32> to vector<8x8xf32>
    %cst_31 = arith.constant dense<0.000000e+00> : vector<8x376xf32>
    %37 = tpu.matmul %36, %34, %cst_31 {dimension_numbers = #tpu.dot_dimension_numbers<[1], [0], [0], [1], [0, 0, 1, 1], [], []>} : vector<8x8xf32>, vector<8x376xf32>, vector<8x376xf32> -> vector<8x376xf32>
    %38 = arith.addf %33, %37 : vector<8x376xf32>
    %39 = vector.extract_strided_slice %3 {offsets = [0, 84], sizes = [8, 376], strides = [1, 1]} : vector<8x512xf32> to vector<8x376xf32>
    %c0_32 = arith.constant 0 : index
    %c7 = arith.constant 7 : index
    %c0_33 = arith.constant 0 : index
    %c0_34 = arith.constant 0 : index
    %40 = vector.load %arg5[%c0_32, %c7, %c0_33, %c0_34] : memref<1x9x8x8xf32, #tpu.memory_space<vmem>>, vector<1x1x8x8xf32>
    %41 = vector.shape_cast %40 : vector<1x1x8x8xf32> to vector<8x8xf32>
    %cst_35 = arith.constant dense<0.000000e+00> : vector<8x376xf32>
    %42 = tpu.matmul %41, %39, %cst_35 {dimension_numbers = #tpu.dot_dimension_numbers<[1], [0], [0], [1], [0, 0, 1, 1], [], []>} : vector<8x8xf32>, vector<8x376xf32>, vector<8x376xf32> -> vector<8x376xf32>
    %43 = arith.addf %38, %42 : vector<8x376xf32>
    %44 = vector.extract_strided_slice %3 {offsets = [0, 85], sizes = [8, 376], strides = [1, 1]} : vector<8x512xf32> to vector<8x376xf32>
    %c0_36 = arith.constant 0 : index
    %c8 = arith.constant 8 : index
    %c0_37 = arith.constant 0 : index
    %c0_38 = arith.constant 0 : index
    %45 = vector.load %arg5[%c0_36, %c8, %c0_37, %c0_38] : memref<1x9x8x8xf32, #tpu.memory_space<vmem>>, vector<1x1x8x8xf32>
    %46 = vector.shape_cast %45 : vector<1x1x8x8xf32> to vector<8x8xf32>
    %cst_39 = arith.constant dense<0.000000e+00> : vector<8x376xf32>
    %47 = tpu.matmul %46, %44, %cst_39 {dimension_numbers = #tpu.dot_dimension_numbers<[1], [0], [0], [1], [0, 0, 1, 1], [], []>} : vector<8x8xf32>, vector<8x376xf32>, vector<8x376xf32> -> vector<8x376xf32>
    %48 = arith.addf %43, %47 : vector<8x376xf32>
    %c0_40 = arith.constant 0 : index
    %c0_41 = arith.constant 0 : index
    %c0_42 = arith.constant 0 : index
    %49 = vector.load %arg6[%c0_40, %c0_41, %c0_42] : memref<1x8x1xf32, #tpu.memory_space<vmem>>, vector<1x8x1xf32>
    %50 = vector.shape_cast %49 : vector<1x8x1xf32> to vector<8x1xf32>
    %51 = vector.broadcast %50 : vector<8x1xf32> to vector<8x376xf32>
    %52 = arith.addf %48, %51 : vector<8x376xf32>
    %cst_43 = arith.constant 0.000000e+00 : f32
    %53 = vector.broadcast %cst_43 : f32 to vector<8x376xf32>
    %54 = arith.maximumf %52, %53 : vector<8x376xf32>
    %cst_44 = arith.constant dense<0.000000e+00> : vector<8x512xf32>
    %55 = tpu.matmul %54, %4, %cst_44 {dimension_numbers = #tpu.dot_dimension_numbers<[1], [0], [0], [1], [0, 0, 1, 1], [], []>} : vector<8x376xf32>, vector<376x512xf32>, vector<8x512xf32> -> vector<8x512xf32>
    %56 = vector.extract_strided_slice %55 {offsets = [0, 51], sizes = [8, 376], strides = [1, 1]} : vector<8x512xf32> to vector<8x376xf32>
    %c0_45 = arith.constant 0 : index
    %c0_46 = arith.constant 0 : index
    %c0_47 = arith.constant 0 : index
    %c0_48 = arith.constant 0 : index
    %57 = vector.load %arg7[%c0_45, %c0_46, %c0_47, %c0_48] : memref<1x9x8x8xf32, #tpu.memory_space<vmem>>, vector<1x1x8x8xf32>
    %58 = vector.shape_cast %57 : vector<1x1x8x8xf32> to vector<8x8xf32>
    %cst_49 = arith.constant dense<0.000000e+00> : vector<8x376xf32>
    %59 = tpu.matmul %58, %56, %cst_49 {dimension_numbers = #tpu.dot_dimension_numbers<[1], [0], [0], [1], [0, 0, 1, 1], [], []>} : vector<8x8xf32>, vector<8x376xf32>, vector<8x376xf32> -> vector<8x376xf32>
    %60 = vector.extract_strided_slice %55 {offsets = [0, 52], sizes = [8, 376], strides = [1, 1]} : vector<8x512xf32> to vector<8x376xf32>
    %c0_50 = arith.constant 0 : index
    %c1_51 = arith.constant 1 : index
    %c0_52 = arith.constant 0 : index
    %c0_53 = arith.constant 0 : index
    %61 = vector.load %arg7[%c0_50, %c1_51, %c0_52, %c0_53] : memref<1x9x8x8xf32, #tpu.memory_space<vmem>>, vector<1x1x8x8xf32>
    %62 = vector.shape_cast %61 : vector<1x1x8x8xf32> to vector<8x8xf32>
    %cst_54 = arith.constant dense<0.000000e+00> : vector<8x376xf32>
    %63 = tpu.matmul %62, %60, %cst_54 {dimension_numbers = #tpu.dot_dimension_numbers<[1], [0], [0], [1], [0, 0, 1, 1], [], []>} : vector<8x8xf32>, vector<8x376xf32>, vector<8x376xf32> -> vector<8x376xf32>
    %64 = arith.addf %59, %63 : vector<8x376xf32>
    %65 = vector.extract_strided_slice %55 {offsets = [0, 53], sizes = [8, 376], strides = [1, 1]} : vector<8x512xf32> to vector<8x376xf32>
    %c0_55 = arith.constant 0 : index
    %c2_56 = arith.constant 2 : index
    %c0_57 = arith.constant 0 : index
    %c0_58 = arith.constant 0 : index
    %66 = vector.load %arg7[%c0_55, %c2_56, %c0_57, %c0_58] : memref<1x9x8x8xf32, #tpu.memory_space<vmem>>, vector<1x1x8x8xf32>
    %67 = vector.shape_cast %66 : vector<1x1x8x8xf32> to vector<8x8xf32>
    %cst_59 = arith.constant dense<0.000000e+00> : vector<8x376xf32>
    %68 = tpu.matmul %67, %65, %cst_59 {dimension_numbers = #tpu.dot_dimension_numbers<[1], [0], [0], [1], [0, 0, 1, 1], [], []>} : vector<8x8xf32>, vector<8x376xf32>, vector<8x376xf32> -> vector<8x376xf32>
    %69 = arith.addf %64, %68 : vector<8x376xf32>
    %70 = vector.extract_strided_slice %55 {offsets = [0, 67], sizes = [8, 376], strides = [1, 1]} : vector<8x512xf32> to vector<8x376xf32>
    %c0_60 = arith.constant 0 : index
    %c3_61 = arith.constant 3 : index
    %c0_62 = arith.constant 0 : index
    %c0_63 = arith.constant 0 : index
    %71 = vector.load %arg7[%c0_60, %c3_61, %c0_62, %c0_63] : memref<1x9x8x8xf32, #tpu.memory_space<vmem>>, vector<1x1x8x8xf32>
    %72 = vector.shape_cast %71 : vector<1x1x8x8xf32> to vector<8x8xf32>
    %cst_64 = arith.constant dense<0.000000e+00> : vector<8x376xf32>
    %73 = tpu.matmul %72, %70, %cst_64 {dimension_numbers = #tpu.dot_dimension_numbers<[1], [0], [0], [1], [0, 0, 1, 1], [], []>} : vector<8x8xf32>, vector<8x376xf32>, vector<8x376xf32> -> vector<8x376xf32>
    %74 = arith.addf %69, %73 : vector<8x376xf32>
    %75 = vector.extract_strided_slice %55 {offsets = [0, 68], sizes = [8, 376], strides = [1, 1]} : vector<8x512xf32> to vector<8x376xf32>
    %c0_65 = arith.constant 0 : index
    %c4_66 = arith.constant 4 : index
    %c0_67 = arith.constant 0 : index
    %c0_68 = arith.constant 0 : index
    %76 = vector.load %arg7[%c0_65, %c4_66, %c0_67, %c0_68] : memref<1x9x8x8xf32, #tpu.memory_space<vmem>>, vector<1x1x8x8xf32>
    %77 = vector.shape_cast %76 : vector<1x1x8x8xf32> to vector<8x8xf32>
    %cst_69 = arith.constant dense<0.000000e+00> : vector<8x376xf32>
    %78 = tpu.matmul %77, %75, %cst_69 {dimension_numbers = #tpu.dot_dimension_numbers<[1], [0], [0], [1], [0, 0, 1, 1], [], []>} : vector<8x8xf32>, vector<8x376xf32>, vector<8x376xf32> -> vector<8x376xf32>
    %79 = arith.addf %74, %78 : vector<8x376xf32>
    %80 = vector.extract_strided_slice %55 {offsets = [0, 69], sizes = [8, 376], strides = [1, 1]} : vector<8x512xf32> to vector<8x376xf32>
    %c0_70 = arith.constant 0 : index
    %c5_71 = arith.constant 5 : index
    %c0_72 = arith.constant 0 : index
    %c0_73 = arith.constant 0 : index
    %81 = vector.load %arg7[%c0_70, %c5_71, %c0_72, %c0_73] : memref<1x9x8x8xf32, #tpu.memory_space<vmem>>, vector<1x1x8x8xf32>
    %82 = vector.shape_cast %81 : vector<1x1x8x8xf32> to vector<8x8xf32>
    %cst_74 = arith.constant dense<0.000000e+00> : vector<8x376xf32>
    %83 = tpu.matmul %82, %80, %cst_74 {dimension_numbers = #tpu.dot_dimension_numbers<[1], [0], [0], [1], [0, 0, 1, 1], [], []>} : vector<8x8xf32>, vector<8x376xf32>, vector<8x376xf32> -> vector<8x376xf32>
    %84 = arith.addf %79, %83 : vector<8x376xf32>
    %85 = vector.extract_strided_slice %55 {offsets = [0, 83], sizes = [8, 376], strides = [1, 1]} : vector<8x512xf32> to vector<8x376xf32>
    %c0_75 = arith.constant 0 : index
    %c6_76 = arith.constant 6 : index
    %c0_77 = arith.constant 0 : index
    %c0_78 = arith.constant 0 : index
    %86 = vector.load %arg7[%c0_75, %c6_76, %c0_77, %c0_78] : memref<1x9x8x8xf32, #tpu.memory_space<vmem>>, vector<1x1x8x8xf32>
    %87 = vector.shape_cast %86 : vector<1x1x8x8xf32> to vector<8x8xf32>
    %cst_79 = arith.constant dense<0.000000e+00> : vector<8x376xf32>
    %88 = tpu.matmul %87, %85, %cst_79 {dimension_numbers = #tpu.dot_dimension_numbers<[1], [0], [0], [1], [0, 0, 1, 1], [], []>} : vector<8x8xf32>, vector<8x376xf32>, vector<8x376xf32> -> vector<8x376xf32>
    %89 = arith.addf %84, %88 : vector<8x376xf32>
    %90 = vector.extract_strided_slice %55 {offsets = [0, 84], sizes = [8, 376], strides = [1, 1]} : vector<8x512xf32> to vector<8x376xf32>
    %c0_80 = arith.constant 0 : index
    %c7_81 = arith.constant 7 : index
    %c0_82 = arith.constant 0 : index
    %c0_83 = arith.constant 0 : index
    %91 = vector.load %arg7[%c0_80, %c7_81, %c0_82, %c0_83] : memref<1x9x8x8xf32, #tpu.memory_space<vmem>>, vector<1x1x8x8xf32>
    %92 = vector.shape_cast %91 : vector<1x1x8x8xf32> to vector<8x8xf32>
    %cst_84 = arith.constant dense<0.000000e+00> : vector<8x376xf32>
    %93 = tpu.matmul %92, %90, %cst_84 {dimension_numbers = #tpu.dot_dimension_numbers<[1], [0], [0], [1], [0, 0, 1, 1], [], []>} : vector<8x8xf32>, vector<8x376xf32>, vector<8x376xf32> -> vector<8x376xf32>
    %94 = arith.addf %89, %93 : vector<8x376xf32>
    %95 = vector.extract_strided_slice %55 {offsets = [0, 85], sizes = [8, 376], strides = [1, 1]} : vector<8x512xf32> to vector<8x376xf32>
    %c0_85 = arith.constant 0 : index
    %c8_86 = arith.constant 8 : index
    %c0_87 = arith.constant 0 : index
    %c0_88 = arith.constant 0 : index
    %96 = vector.load %arg7[%c0_85, %c8_86, %c0_87, %c0_88] : memref<1x9x8x8xf32, #tpu.memory_space<vmem>>, vector<1x1x8x8xf32>
    %97 = vector.shape_cast %96 : vector<1x1x8x8xf32> to vector<8x8xf32>
    %cst_89 = arith.constant dense<0.000000e+00> : vector<8x376xf32>
    %98 = tpu.matmul %97, %95, %cst_89 {dimension_numbers = #tpu.dot_dimension_numbers<[1], [0], [0], [1], [0, 0, 1, 1], [], []>} : vector<8x8xf32>, vector<8x376xf32>, vector<8x376xf32> -> vector<8x376xf32>
    %99 = arith.addf %94, %98 : vector<8x376xf32>
    %c0_90 = arith.constant 0 : index
    %c0_91 = arith.constant 0 : index
    %c0_92 = arith.constant 0 : index
    %100 = vector.load %arg8[%c0_90, %c0_91, %c0_92] : memref<1x8x1xf32, #tpu.memory_space<vmem>>, vector<1x8x1xf32>
    %101 = vector.shape_cast %100 : vector<1x8x1xf32> to vector<8x1xf32>
    %102 = vector.broadcast %101 : vector<8x1xf32> to vector<8x376xf32>
    %103 = arith.addf %99, %102 : vector<8x376xf32>
    %cst_93 = arith.constant dense<0.000000e+00> : vector<8x512xf32>
    %104 = tpu.matmul %103, %4, %cst_93 {dimension_numbers = #tpu.dot_dimension_numbers<[1], [0], [0], [1], [0, 0, 1, 1], [], []>} : vector<8x376xf32>, vector<376x512xf32>, vector<8x512xf32> -> vector<8x512xf32>
    %c0_94 = arith.constant 0 : index
    %c0_95 = arith.constant 0 : index
    %105 = vector.load %arg3[%c0_94, %c0_95] : memref<512x2xf32, #tpu.memory_space<vmem>>, vector<512x2xf32>
    %cst_96 = arith.constant dense<0.000000e+00> : vector<8x2xf32>
    %106 = tpu.matmul %104, %105, %cst_96 {dimension_numbers = #tpu.dot_dimension_numbers<[1], [0], [0], [1], [0, 0, 1, 1], [], []>} : vector<8x512xf32>, vector<512x2xf32>, vector<8x2xf32> -> vector<8x2xf32>
    %c0_97 = arith.constant 0 : index
    %c0_98 = arith.constant 0 : index
    %c0_99 = arith.constant 0 : index
    %107 = vector.load %arg9[%c0_97, %c0_98, %c0_99] : memref<1x8x8xf32, #tpu.memory_space<vmem>>, vector<1x8x8xf32>
    %108 = vector.shape_cast %107 : vector<1x8x8xf32> to vector<8x8xf32>
    %cst_100 = arith.constant dense<0.000000e+00> : vector<8x2xf32>
    %109 = tpu.matmul %108, %106, %cst_100 {dimension_numbers = #tpu.dot_dimension_numbers<[1], [0], [0], [1], [0, 0, 1, 1], [], []>} : vector<8x8xf32>, vector<8x2xf32>, vector<8x2xf32> -> vector<8x2xf32>
    %c0_101 = arith.constant 0 : index
    %c0_102 = arith.constant 0 : index
    %c0_103 = arith.constant 0 : index
    %110 = vector.load %arg10[%c0_101, %c0_102, %c0_103] : memref<1x8x1xf32, #tpu.memory_space<vmem>>, vector<1x8x1xf32>
    %111 = vector.shape_cast %110 : vector<1x8x1xf32> to vector<8x1xf32>
    %112 = vector.broadcast %111 : vector<8x1xf32> to vector<8x2xf32>
    %113 = arith.addf %109, %112 : vector<8x2xf32>
    %cst_104 = arith.constant 0.000000e+00 : f32
    %114 = vector.broadcast %cst_104 : f32 to vector<8x2xf32>
    %115 = arith.maximumf %113, %114 : vector<8x2xf32>
    %c0_105 = arith.constant 0 : index
    %c0_106 = arith.constant 0 : index
    %c0_107 = arith.constant 0 : index
    %116 = vector.load %arg11[%c0_105, %c0_106, %c0_107] : memref<1x8x8xf32, #tpu.memory_space<vmem>>, vector<1x8x8xf32>
    %117 = vector.shape_cast %116 : vector<1x8x8xf32> to vector<8x8xf32>
    %cst_108 = arith.constant dense<0.000000e+00> : vector<8x2xf32>
    %118 = tpu.matmul %117, %115, %cst_108 {dimension_numbers = #tpu.dot_dimension_numbers<[1], [0], [0], [1], [0, 0, 1, 1], [], []>} : vector<8x8xf32>, vector<8x2xf32>, vector<8x2xf32> -> vector<8x2xf32>
    %c0_109 = arith.constant 0 : index
    %c0_110 = arith.constant 0 : index
    %c0_111 = arith.constant 0 : index
    %119 = vector.load %arg12[%c0_109, %c0_110, %c0_111] : memref<1x8x1xf32, #tpu.memory_space<vmem>>, vector<1x8x1xf32>
    %120 = vector.shape_cast %119 : vector<1x8x1xf32> to vector<8x1xf32>
    %121 = vector.broadcast %120 : vector<8x1xf32> to vector<8x2xf32>
    %122 = arith.addf %118, %121 : vector<8x2xf32>
    %123 = arith.negf %122 : vector<8x2xf32>
    %124 = math.exp %123 : vector<8x2xf32>
    %cst_112 = arith.constant 1.000000e+00 : f32
    %125 = vector.broadcast %cst_112 : f32 to vector<8x2xf32>
    %126 = arith.addf %125, %124 : vector<8x2xf32>
    %127 = arith.divf %125, %126 : vector<8x2xf32>
    %c0_113 = arith.constant 0 : index
    %c0_114 = arith.constant 0 : index
    %128 = vector.load %arg4[%c0_113, %c0_114] : memref<2x512xf32, #tpu.memory_space<vmem>>, vector<2x512xf32>
    %cst_115 = arith.constant dense<0.000000e+00> : vector<8x512xf32>
    %129 = tpu.matmul %127, %128, %cst_115 {dimension_numbers = #tpu.dot_dimension_numbers<[1], [0], [0], [1], [0, 0, 1, 1], [], []>} : vector<8x2xf32>, vector<2x512xf32>, vector<8x512xf32> -> vector<8x512xf32>
    %130 = arith.mulf %104, %129 : vector<8x512xf32>
    %131 = arith.addf %3, %130 : vector<8x512xf32>
    %cst_116 = arith.constant 0.000000e+00 : f32
    %132 = vector.broadcast %cst_116 : f32 to vector<8x512xf32>
    %133 = arith.maximumf %131, %132 : vector<8x512xf32>
    %c0_117 = arith.constant 0 : index
    %c0_118 = arith.constant 0 : index
    %134 = vector.load %arg14[%c0_117, %c0_118] : memref<8x512xf32, #tpu.memory_space<vmem>>, vector<8x512xf32>
    tpu.vector_store %arg14[%c0_117, %c0_118], %133 {strides = array<i32>} : memref<8x512xf32, #tpu.memory_space<vmem>>, vector<8x512xf32>,
    %c0_119 = arith.constant 0 : index
    %c0_120 = arith.constant 0 : index
    %135 = vector.load %arg13[%c0_119, %c0_120] : memref<8x512xf32, #tpu.memory_space<vmem>>, vector<8x512xf32>
    tpu.vector_store %arg13[%c0_119, %c0_120], %133 {strides = array<i32>} : memref<8x512xf32, #tpu.memory_space<vmem>>, vector<8x512xf32>,
    return
  }
  func.func @transform_0(%arg0: i32) -> (i32, i32) {
    %c0_i32 = arith.constant 0 : i32
    %c0_i32_0 = arith.constant 0 : i32
    %c0_i32_1 = arith.constant 0 : i32
    return %c0_i32, %c0_i32_0 : i32, i32
  }
  func.func @transform_1(%arg0: i32) -> (i32, i32) {
    %c0_i32 = arith.constant 0 : i32
    %c0_i32_0 = arith.constant 0 : i32
    %c0_i32_1 = arith.constant 0 : i32
    return %c0_i32, %c0_i32_0 : i32, i32
  }
  func.func @transform_2(%arg0: i32) -> (i32, i32) {
    %c0_i32 = arith.constant 0 : i32
    %c0_i32_0 = arith.constant 0 : i32
    %c0_i32_1 = arith.constant 0 : i32
    return %c0_i32, %c0_i32_0 : i32, i32
  }
  func.func @transform_3(%arg0: i32) -> (i32, i32) {
    %c0_i32 = arith.constant 0 : i32
    %c0_i32_0 = arith.constant 0 : i32
    %c0_i32_1 = arith.constant 0 : i32
    return %c0_i32, %c0_i32_0 : i32, i32
  }
  func.func @transform_4(%arg0: i32) -> (i32, i32, i32, i32) {
    %c0_i32 = arith.constant 0 : i32
    %c0_i32_0 = arith.constant 0 : i32
    %c0_i32_1 = arith.constant 0 : i32
    %c0_i32_2 = arith.constant 0 : i32
    return %arg0, %c0_i32, %c0_i32_0, %c0_i32_1 : i32, i32, i32, i32
  }
  func.func @transform_5(%arg0: i32) -> (i32, i32, i32) {
    %c0_i32 = arith.constant 0 : i32
    %c0_i32_0 = arith.constant 0 : i32
    %c0_i32_1 = arith.constant 0 : i32
    return %arg0, %c0_i32, %c0_i32_0 : i32, i32, i32
  }
  func.func @transform_6(%arg0: i32) -> (i32, i32, i32, i32) {
    %c0_i32 = arith.constant 0 : i32
    %c0_i32_0 = arith.constant 0 : i32
    %c0_i32_1 = arith.constant 0 : i32
    %c0_i32_2 = arith.constant 0 : i32
    return %arg0, %c0_i32, %c0_i32_0, %c0_i32_1 : i32, i32, i32, i32
  }
  func.func @transform_7(%arg0: i32) -> (i32, i32, i32) {
    %c0_i32 = arith.constant 0 : i32
    %c0_i32_0 = arith.constant 0 : i32
    %c0_i32_1 = arith.constant 0 : i32
    return %arg0, %c0_i32, %c0_i32_0 : i32, i32, i32
  }
  func.func @transform_8(%arg0: i32) -> (i32, i32, i32) {
    %c0_i32 = arith.constant 0 : i32
    %c0_i32_0 = arith.constant 0 : i32
    %c0_i32_1 = arith.constant 0 : i32
    return %arg0, %c0_i32, %c0_i32_0 : i32, i32, i32
  }
  func.func @transform_9(%arg0: i32) -> (i32, i32, i32) {
    %c0_i32 = arith.constant 0 : i32
    %c0_i32_0 = arith.constant 0 : i32
    %c0_i32_1 = arith.constant 0 : i32
    return %arg0, %c0_i32, %c0_i32_0 : i32, i32, i32
  }
  func.func @transform_10(%arg0: i32) -> (i32, i32, i32) {
    %c0_i32 = arith.constant 0 : i32
    %c0_i32_0 = arith.constant 0 : i32
    %c0_i32_1 = arith.constant 0 : i32
    return %arg0, %c0_i32, %c0_i32_0 : i32, i32, i32
  }
  func.func @transform_11(%arg0: i32) -> (i32, i32, i32) {
    %c0_i32 = arith.constant 0 : i32
    %c0_i32_0 = arith.constant 0 : i32
    %c0_i32_1 = arith.constant 0 : i32
    return %arg0, %c0_i32, %c0_i32_0 : i32, i32, i32
  }
  func.func @transform_12(%arg0: i32) -> (i32, i32) {
    %c0_i32 = arith.constant 0 : i32
    %c0_i32_0 = arith.constant 0 : i32
    %c0_i32_1 = arith.constant 0 : i32
    return %c0_i32, %c0_i32_0 : i32, i32
  }
}

module attributes {stable_mosaic.version = 11 : i64} {
  func.func @_head_kernel(%arg0: i32, %arg1: memref<8x512xf32, #tpu.memory_space<vmem>>, %arg2: memref<512x2xf32, #tpu.memory_space<vmem>>, %arg3: memref<32x8xf32, #tpu.memory_space<vmem>>, %arg4: memref<32x1xf32, #tpu.memory_space<vmem>>, %arg5: memref<16x32xf32, #tpu.memory_space<vmem>>, %arg6: memref<16x1xf32, #tpu.memory_space<vmem>>, %arg7: memref<5x16xf32, #tpu.memory_space<vmem>>, %arg8: memref<5x1xf32, #tpu.memory_space<vmem>>, %arg9: memref<5x2xf32, #tpu.memory_space<vmem>>) attributes {dimension_semantics = [#tpu.dimension_semantics<arbitrary>], iteration_bounds = array<i64: 1>, scalar_prefetch = 0 : i64, scratch_operands = 0 : i64, tpu.core_type = #tpu.core_type<tc>, window_params = [{pipeline_mode = #tpu.pipeline_mode<synchronous>, transform_indices = @transform_0, window_bounds = array<i64: 8, 512>}, {pipeline_mode = #tpu.pipeline_mode<synchronous>, transform_indices = @transform_1, window_bounds = array<i64: 512, 2>}, {pipeline_mode = #tpu.pipeline_mode<synchronous>, transform_indices = @transform_2, window_bounds = array<i64: 32, 8>}, {pipeline_mode = #tpu.pipeline_mode<synchronous>, transform_indices = @transform_3, window_bounds = array<i64: 32, 1>}, {pipeline_mode = #tpu.pipeline_mode<synchronous>, transform_indices = @transform_4, window_bounds = array<i64: 16, 32>}, {pipeline_mode = #tpu.pipeline_mode<synchronous>, transform_indices = @transform_5, window_bounds = array<i64: 16, 1>}, {pipeline_mode = #tpu.pipeline_mode<synchronous>, transform_indices = @transform_6, window_bounds = array<i64: 5, 16>}, {pipeline_mode = #tpu.pipeline_mode<synchronous>, transform_indices = @transform_7, window_bounds = array<i64: 5, 1>}, {pipeline_mode = #tpu.pipeline_mode<synchronous>, transform_indices = @transform_8, window_bounds = array<i64: 5, 2>}]} {
    %c0 = arith.constant 0 : index
    %c0_0 = arith.constant 0 : index
    %0 = vector.load %arg1[%c0, %c0_0] : memref<8x512xf32, #tpu.memory_space<vmem>>, vector<8x512xf32>
    %c0_1 = arith.constant 0 : index
    %c0_2 = arith.constant 0 : index
    %1 = vector.load %arg2[%c0_1, %c0_2] : memref<512x2xf32, #tpu.memory_space<vmem>>, vector<512x2xf32>
    %cst = arith.constant dense<0.000000e+00> : vector<8x2xf32>
    %2 = tpu.matmul %0, %1, %cst {dimension_numbers = #tpu.dot_dimension_numbers<[1], [0], [0], [1], [0, 0, 1, 1], [], []>} : vector<8x512xf32>, vector<512x2xf32>, vector<8x2xf32> -> vector<8x2xf32>
    %c0_3 = arith.constant 0 : index
    %c0_4 = arith.constant 0 : index
    %3 = vector.load %arg3[%c0_3, %c0_4] : memref<32x8xf32, #tpu.memory_space<vmem>>, vector<32x8xf32>
    %cst_5 = arith.constant dense<0.000000e+00> : vector<32x2xf32>
    %4 = tpu.matmul %3, %2, %cst_5 {dimension_numbers = #tpu.dot_dimension_numbers<[1], [0], [0], [1], [0, 0, 1, 1], [], []>} : vector<32x8xf32>, vector<8x2xf32>, vector<32x2xf32> -> vector<32x2xf32>
    %c0_6 = arith.constant 0 : index
    %c0_7 = arith.constant 0 : index
    %5 = vector.load %arg4[%c0_6, %c0_7] : memref<32x1xf32, #tpu.memory_space<vmem>>, vector<32x1xf32>
    %6 = vector.broadcast %5 : vector<32x1xf32> to vector<32x2xf32>
    %7 = arith.addf %4, %6 : vector<32x2xf32>
    %cst_8 = arith.constant 0.000000e+00 : f32
    %8 = vector.broadcast %cst_8 : f32 to vector<32x2xf32>
    %9 = arith.maximumf %7, %8 : vector<32x2xf32>
    %c0_9 = arith.constant 0 : index
    %c0_10 = arith.constant 0 : index
    %10 = vector.load %arg5[%c0_9, %c0_10] : memref<16x32xf32, #tpu.memory_space<vmem>>, vector<16x32xf32>
    %cst_11 = arith.constant dense<0.000000e+00> : vector<16x2xf32>
    %11 = tpu.matmul %10, %9, %cst_11 {dimension_numbers = #tpu.dot_dimension_numbers<[1], [0], [0], [1], [0, 0, 1, 1], [], []>} : vector<16x32xf32>, vector<32x2xf32>, vector<16x2xf32> -> vector<16x2xf32>
    %c0_12 = arith.constant 0 : index
    %c0_13 = arith.constant 0 : index
    %12 = vector.load %arg6[%c0_12, %c0_13] : memref<16x1xf32, #tpu.memory_space<vmem>>, vector<16x1xf32>
    %13 = vector.broadcast %12 : vector<16x1xf32> to vector<16x2xf32>
    %14 = arith.addf %11, %13 : vector<16x2xf32>
    %cst_14 = arith.constant 0.000000e+00 : f32
    %15 = vector.broadcast %cst_14 : f32 to vector<16x2xf32>
    %16 = arith.maximumf %14, %15 : vector<16x2xf32>
    %c0_15 = arith.constant 0 : index
    %c0_16 = arith.constant 0 : index
    %17 = vector.load %arg7[%c0_15, %c0_16] : memref<5x16xf32, #tpu.memory_space<vmem>>, vector<5x16xf32>
    %cst_17 = arith.constant dense<0.000000e+00> : vector<5x2xf32>
    %18 = tpu.matmul %17, %16, %cst_17 {dimension_numbers = #tpu.dot_dimension_numbers<[1], [0], [0], [1], [0, 0, 1, 1], [], []>} : vector<5x16xf32>, vector<16x2xf32>, vector<5x2xf32> -> vector<5x2xf32>
    %c0_18 = arith.constant 0 : index
    %c0_19 = arith.constant 0 : index
    %19 = vector.load %arg8[%c0_18, %c0_19] : memref<5x1xf32, #tpu.memory_space<vmem>>, vector<5x1xf32>
    %20 = vector.broadcast %19 : vector<5x1xf32> to vector<5x2xf32>
    %21 = arith.addf %18, %20 : vector<5x2xf32>
    %c0_20 = arith.constant 0 : index
    %c0_21 = arith.constant 0 : index
    %22 = vector.load %arg9[%c0_20, %c0_21] : memref<5x2xf32, #tpu.memory_space<vmem>>, vector<5x2xf32>
    tpu.vector_store %arg9[%c0_20, %c0_21], %21 {strides = array<i32>} : memref<5x2xf32, #tpu.memory_space<vmem>>, vector<5x2xf32>,
    return
  }
  func.func @transform_0(%arg0: i32) -> (i32, i32) {
    %c0_i32 = arith.constant 0 : i32
    %c0_i32_0 = arith.constant 0 : i32
    %c0_i32_1 = arith.constant 0 : i32
    return %c0_i32, %c0_i32_0 : i32, i32
  }
  func.func @transform_1(%arg0: i32) -> (i32, i32) {
    %c0_i32 = arith.constant 0 : i32
    %c0_i32_0 = arith.constant 0 : i32
    %c0_i32_1 = arith.constant 0 : i32
    return %c0_i32, %c0_i32_0 : i32, i32
  }
  func.func @transform_2(%arg0: i32) -> (i32, i32) {
    %c0_i32 = arith.constant 0 : i32
    %c0_i32_0 = arith.constant 0 : i32
    %c0_i32_1 = arith.constant 0 : i32
    return %c0_i32, %c0_i32_0 : i32, i32
  }
  func.func @transform_3(%arg0: i32) -> (i32, i32) {
    %c0_i32 = arith.constant 0 : i32
    %c0_i32_0 = arith.constant 0 : i32
    %c0_i32_1 = arith.constant 0 : i32
    return %c0_i32, %c0_i32_0 : i32, i32
  }
  func.func @transform_4(%arg0: i32) -> (i32, i32) {
    %c0_i32 = arith.constant 0 : i32
    %c0_i32_0 = arith.constant 0 : i32
    %c0_i32_1 = arith.constant 0 : i32
    return %c0_i32, %c0_i32_0 : i32, i32
  }
  func.func @transform_5(%arg0: i32) -> (i32, i32) {
    %c0_i32 = arith.constant 0 : i32
    %c0_i32_0 = arith.constant 0 : i32
    %c0_i32_1 = arith.constant 0 : i32
    return %c0_i32, %c0_i32_0 : i32, i32
  }
  func.func @transform_6(%arg0: i32) -> (i32, i32) {
    %c0_i32 = arith.constant 0 : i32
    %c0_i32_0 = arith.constant 0 : i32
    %c0_i32_1 = arith.constant 0 : i32
    return %c0_i32, %c0_i32_0 : i32, i32
  }
  func.func @transform_7(%arg0: i32) -> (i32, i32) {
    %c0_i32 = arith.constant 0 : i32
    %c0_i32_0 = arith.constant 0 : i32
    %c0_i32_1 = arith.constant 0 : i32
    return %c0_i32, %c0_i32_0 : i32, i32
  }
  func.func @transform_8(%arg0: i32) -> (i32, i32) {
    %c0_i32 = arith.constant 0 : i32
    %c0_i32_0 = arith.constant 0 : i32
    %c0_i32_1 = arith.constant 0 : i32
    return %c0_i32, %c0_i32_0 : i32, i32
  }
}

</mosaic_0001>

<llo_original>
// kernel: attentive_nf_resnet_forward.5
$region0: #{attentive_nf_resnet_forward.5}
  #allocation0 [shape = 'u32[]', space=smem, size = 0x4, offset = 0x4, fixed_abs, tag = 'smem constant byte address 0x4 - core index']
  #allocation1 [shape = 'u32[72,128]{1,0:T(1,128)}', space=vmem, size = 0x9000, scoped, tag = 'internal scratch']
  %s0 = inlined_call_operand.vmem [shape: f32[8,512], index: 0, kind: input, shape index: {}]
  %s1 = inlined_call_operand.vmem [shape: f32[512,2], index: 1, kind: input, shape index: {}]
  %s2 = inlined_call_operand.vmem [shape: f32[32,8], index: 2, kind: input, shape index: {}]
  %s3 = inlined_call_operand.vmem [shape: f32[32,1], index: 3, kind: input, shape index: {}]
  %s4 = inlined_call_operand.hbm [shape: f32[16,32], index: 4, kind: input, shape index: {}]
  %s5 = inlined_call_operand.vmem [shape: f32[16,1], index: 5, kind: input, shape index: {}]
  %s6 = inlined_call_operand.hbm [shape: f32[5,16], index: 6, kind: input, shape index: {}]
  %s7 = inlined_call_operand.vmem [shape: f32[5,1], index: 7, kind: input, shape index: {}]
  %s8 = inlined_call_operand.vmem [shape: f32[5,2], index: 8, kind: output, shape index: {}]
  %s9 = sld [smem:[#allocation0]]
  $region50: #{attentive_nf_resnet_forward.5} parent=0
    _
  %s11 = ssub.s32 1, %s9
  %s12 = scalar_select 0, %s11, %s9
  $region1: #{attentive_nf_resnet_forward.5} parent=0
    #allocation2 [shape = 'u8[8192]{0}', space=vmem, size = 0x2000, scoped, tag = 'input window, operand 4, single buffered']
    #allocation3 [shape = 's32[1]{0}', space=sflag, size = 0x4, scoped, tag = 'scoped memory for attentive_nf_resnet_forward.5']
    #allocation4 [shape = 'u8[4096]{0}', space=vmem, size = 0x1000, scoped, tag = 'input window, operand 6, single buffered']
    #allocation5 [shape = 's32[1]{0}', space=sflag, size = 0x4, scoped, tag = 'scoped memory for attentive_nf_resnet_forward.5']
    %13 = vsyncpa [#allocation3], 0
    %14 = vsyncpa [#allocation5], 0
    // Predicated region
    $region2: #{attentive_nf_resnet_forward.5} parent=1 // pred_check
      _
    $region3: #{attentive_nf_resnet_forward.5} parent=1 // pred_check_branch
      %16 = sbr.rel (0) target = $region5
    $region4: #{attentive_nf_resnet_forward.5} parent=1 // pred_region
      _
    $region5: #{attentive_nf_resnet_forward.5} parent=1 // pred_fallthru
      _
    // Predicated region
    $region6: #{attentive_nf_resnet_forward.5} parent=1 // pred_check
      _
    $region7: #{attentive_nf_resnet_forward.5} parent=1 // pred_check_branch
      %18 = sbr.rel (0) target = $region9
    $region8: #{attentive_nf_resnet_forward.5} parent=1 // pred_region
      _
    $region9: #{attentive_nf_resnet_forward.5} parent=1 // pred_fallthru
      _
    // Predicated region
    $region10: #{attentive_nf_resnet_forward.5} parent=1 // pred_check
      _
    $region11: #{attentive_nf_resnet_forward.5} parent=1 // pred_check_branch
      %20 = sbr.rel (0) target = $region13
    $region12: #{attentive_nf_resnet_forward.5} parent=1 // pred_region
      _
    $region13: #{attentive_nf_resnet_forward.5} parent=1 // pred_fallthru
      _
    // Predicated region
    $region14: #{attentive_nf_resnet_forward.5} parent=1 // pred_check
      _
    $region15: #{attentive_nf_resnet_forward.5} parent=1 // pred_check_branch
      %22 = sbr.rel (0) target = $region17
    $region16: #{attentive_nf_resnet_forward.5} parent=1 // pred_region
      _
    $region17: #{attentive_nf_resnet_forward.5} parent=1 // pred_fallthru
      _
    // Predicated region
    $region18: #{attentive_nf_resnet_forward.5} parent=1 // pred_check
      _
    $region19: #{attentive_nf_resnet_forward.5} parent=1 // pred_check_branch
      %24 = sbr.rel (0) target = $region21
    $region20: #{attentive_nf_resnet_forward.5} parent=1 // pred_region
      %26 = vsyncadd [#allocation3], 0
      %s27 = sshll.u32 %s4, 4
      %s28 = int_to_ptr.hbm [resolvable:$true] %s27
      %s29 = sshll.u32 [#allocation2], 4
      %s30 = int_to_ptr.vmem [resolvable:$true] %s29
      %35 = dma.hbm_to_vmem [thread:$0]  %s28, 256, %s30, [#allocation3], 128, 128, 8
    $region21: #{attentive_nf_resnet_forward.5} parent=1 // pred_fallthru
      _
    // Predicated region
    $region22: #{attentive_nf_resnet_forward.5} parent=1 // pred_check
      _
    $region23: #{attentive_nf_resnet_forward.5} parent=1 // pred_check_branch
      %37 = sbr.rel (0) target = $region25
    $region24: #{attentive_nf_resnet_forward.5} parent=1 // pred_region
      _
    $region25: #{attentive_nf_resnet_forward.5} parent=1 // pred_fallthru
      _
    // Predicated region
    $region26: #{attentive_nf_resnet_forward.5} parent=1 // pred_check
      _
    $region27: #{attentive_nf_resnet_forward.5} parent=1 // pred_check_branch
      %39 = sbr.rel (0) target = $region29
    $region28: #{attentive_nf_resnet_forward.5} parent=1 // pred_region
      %41 = vsyncadd [#allocation5], 0
      %s43 = sshll.u32 %s6, 4
      %s44 = int_to_ptr.hbm [resolvable:$true] %s43
      %s45 = sshll.u32 [#allocation4], 4
      %s46 = int_to_ptr.vmem [resolvable:$true] %s45
      %48 = dma.hbm_to_vmem [thread:$0]  %s44, 128, %s46, [#allocation5]
    $region29: #{attentive_nf_resnet_forward.5} parent=1 // pred_fallthru
      _
    // Predicated region
    $region30: #{attentive_nf_resnet_forward.5} parent=1 // pred_check
      _
    $region31: #{attentive_nf_resnet_forward.5} parent=1 // pred_check_branch
      %50 = sbr.rel (0) target = $region33
    $region32: #{attentive_nf_resnet_forward.5} parent=1 // pred_region
      _
    $region33: #{attentive_nf_resnet_forward.5} parent=1 // pred_fallthru
      _
    // Predicated region
    $region34: #{attentive_nf_resnet_forward.5} parent=1 // pred_check
      _
    $region35: #{attentive_nf_resnet_forward.5} parent=1 // pred_check_branch
      %52 = sbr.rel (0) target = $region37
    $region36: #{attentive_nf_resnet_forward.5} parent=1 // pred_region
      %54 = dma.done [#allocation3], 256
    $region37: #{attentive_nf_resnet_forward.5} parent=1 // pred_fallthru
      _
    // Predicated region
    $region38: #{attentive_nf_resnet_forward.5} parent=1 // pred_check
      _
    $region39: #{attentive_nf_resnet_forward.5} parent=1 // pred_check_branch
      %56 = sbr.rel (0) target = $region41
    $region40: #{attentive_nf_resnet_forward.5} parent=1 // pred_region
      %58 = dma.done [#allocation5], 128
    $region41: #{attentive_nf_resnet_forward.5} parent=1 // pred_fallthru
      _
    %v59 = vld [vmem:[%s0] sm:$0xff]
    %v60 = vld [vmem:[%s0 + $0x8] sm:$0xff]
    %v61 = vld [vmem:[%s0 + $0x10] sm:$0xff]
    %v62 = vld [vmem:[%s0 + $0x18] sm:$0xff]
    %v63 = vld [vmem:[%s1] sm:$0xff]
    %v64 = vld [vmem:[%s1 + $0x8] sm:$0xff]
    %v65 = vld [vmem:[%s1 + $0x10] sm:$0xff]
    %v66 = vld [vmem:[%s1 + $0x18] sm:$0xff]
    %v67 = vld [vmem:[%s1 + $0x20] sm:$0xff]
    %v68 = vld [vmem:[%s1 + $0x28] sm:$0xff]
    %v69 = vld [vmem:[%s1 + $0x30] sm:$0xff]
    %v70 = vld [vmem:[%s1 + $0x38] sm:$0xff]
    %v71 = vld [vmem:[%s1 + $0x40] sm:$0xff]
    %v72 = vld [vmem:[%s1 + $0x48] sm:$0xff]
    %v73 = vld [vmem:[%s1 + $0x50] sm:$0xff]
    %v74 = vld [vmem:[%s1 + $0x58] sm:$0xff]
    %v75 = vld [vmem:[%s1 + $0x60] sm:$0xff]
    %v76 = vld [vmem:[%s1 + $0x68] sm:$0xff]
    %v77 = vld [vmem:[%s1 + $0x70] sm:$0xff]
    %v78 = vld [vmem:[%s1 + $0x78] sm:$0xff]
    %v79 = vld [vmem:[%s1 + $0x80] sm:$0xff]
    %v80 = vld [vmem:[%s1 + $0x88] sm:$0xff]
    %v81 = vld [vmem:[%s1 + $0x90] sm:$0xff]
    %v82 = vld [vmem:[%s1 + $0x98] sm:$0xff]
    %v83 = vld [vmem:[%s1 + $0xa0] sm:$0xff]
    %v84 = vld [vmem:[%s1 + $0xa8] sm:$0xff]
    %v85 = vld [vmem:[%s1 + $0xb0] sm:$0xff]
    %v86 = vld [vmem:[%s1 + $0xb8] sm:$0xff]
    %v87 = vld [vmem:[%s1 + $0xc0] sm:$0xff]
    %v88 = vld [vmem:[%s1 + $0xc8] sm:$0xff]
    %v89 = vld [vmem:[%s1 + $0xd0] sm:$0xff]
    %v90 = vld [vmem:[%s1 + $0xd8] sm:$0xff]
    %v91 = vld [vmem:[%s1 + $0xe0] sm:$0xff]
    %v92 = vld [vmem:[%s1 + $0xe8] sm:$0xff]
    %v93 = vld [vmem:[%s1 + $0xf0] sm:$0xff]
    %v94 = vld [vmem:[%s1 + $0xf8] sm:$0xff]
    %v95 = vld [vmem:[%s1 + $0x100] sm:$0xff]
    %v96 = vld [vmem:[%s1 + $0x108] sm:$0xff]
    %v97 = vld [vmem:[%s1 + $0x110] sm:$0xff]
    %v98 = vld [vmem:[%s1 + $0x118] sm:$0xff]
    %v99 = vld [vmem:[%s1 + $0x120] sm:$0xff]
    %v100 = vld [vmem:[%s1 + $0x128] sm:$0xff]
    %v101 = vld [vmem:[%s1 + $0x130] sm:$0xff]
    %v102 = vld [vmem:[%s1 + $0x138] sm:$0xff]
    %v103 = vld [vmem:[%s1 + $0x140] sm:$0xff]
    %v104 = vld [vmem:[%s1 + $0x148] sm:$0xff]
    %v105 = vld [vmem:[%s1 + $0x150] sm:$0xff]
    %v106 = vld [vmem:[%s1 + $0x158] sm:$0xff]
    %v107 = vld [vmem:[%s1 + $0x160] sm:$0xff]
    %v108 = vld [vmem:[%s1 + $0x168] sm:$0xff]
    %v109 = vld [vmem:[%s1 + $0x170] sm:$0xff]
    %v110 = vld [vmem:[%s1 + $0x178] sm:$0xff]
    %v111 = vld [vmem:[%s1 + $0x180] sm:$0xff]
    %v112 = vld [vmem:[%s1 + $0x188] sm:$0xff]
    %v113 = vld [vmem:[%s1 + $0x190] sm:$0xff]
    %v114 = vld [vmem:[%s1 + $0x198] sm:$0xff]
    %v115 = vld [vmem:[%s1 + $0x1a0] sm:$0xff]
    %v116 = vld [vmem:[%s1 + $0x1a8] sm:$0xff]
    %v117 = vld [vmem:[%s1 + $0x1b0] sm:$0xff]
    %v118 = vld [vmem:[%s1 + $0x1b8] sm:$0xff]
    %v119 = vld [vmem:[%s1 + $0x1c0] sm:$0xff]
    %v120 = vld [vmem:[%s1 + $0x1c8] sm:$0xff]
    %v121 = vld [vmem:[%s1 + $0x1d0] sm:$0xff]
    %v122 = vld [vmem:[%s1 + $0x1d8] sm:$0xff]
    %v123 = vld [vmem:[%s1 + $0x1e0] sm:$0xff]
    %v124 = vld [vmem:[%s1 + $0x1e8] sm:$0xff]
    %v125 = vld [vmem:[%s1 + $0x1f0] sm:$0xff]
    %v126 = vld [vmem:[%s1 + $0x1f8] sm:$0xff]
    %127 = vmatpush.msra.mxu0 %v78
    %128 = vmatpush.msra.mxu0 %v77
    %129 = vmatpush.msra.mxu0 %v76
    %130 = vmatpush.msra.mxu0 %v75
    %131 = vmatpush.msra.mxu0 %v74
    %132 = vmatpush.msra.mxu0 %v73
    %133 = vmatpush.msra.mxu0 %v72
    %134 = vmatpush.msra.mxu0 %v71
    %135 = vmatpush.msra.mxu0 %v70
    %136 = vmatpush.msra.mxu0 %v69
    %137 = vmatpush.msra.mxu0 %v68
    %138 = vmatpush.msra.mxu0 %v67
    %139 = vmatpush.msra.mxu0 %v66
    %140 = vmatpush.msra.mxu0 %v65
    %141 = vmatpush.msra.mxu0 %v64
    %142 = vmatpush.msra.mxu0 %v63
    %143 = vmatmul.f32.gmra.mxu0 %v59
    %v144 = vpop.f32.mrf.mxu0
    %v145 = vadd.f32 0.0, %v144
    %146 = vdwg.mxu0
    %147 = vmatpush.msra.mxu0 %v94
    %148 = vmatpush.msra.mxu0 %v93
    %149 = vmatpush.msra.mxu0 %v92
    %150 = vmatpush.msra.mxu0 %v91
    %151 = vmatpush.msra.mxu0 %v90
    %152 = vmatpush.msra.mxu0 %v89
    %153 = vmatpush.msra.mxu0 %v88
    %154 = vmatpush.msra.mxu0 %v87
    %155 = vmatpush.msra.mxu0 %v86
    %156 = vmatpush.msra.mxu0 %v85
    %157 = vmatpush.msra.mxu0 %v84
    %158 = vmatpush.msra.mxu0 %v83
    %159 = vmatpush.msra.mxu0 %v82
    %160 = vmatpush.msra.mxu0 %v81
    %161 = vmatpush.msra.mxu0 %v80
    %162 = vmatpush.msra.mxu0 %v79
    %163 = vmatmul.f32.gmra.mxu0 %v60
    %v164 = vpop.f32.mrf.mxu0
    %v165 = vadd.f32 %v145, %v164
    %166 = vdwg.mxu0
    %167 = vmatpush.msra.mxu0 %v110
    %168 = vmatpush.msra.mxu0 %v109
    %169 = vmatpush.msra.mxu0 %v108
    %170 = vmatpush.msra.mxu0 %v107
    %171 = vmatpush.msra.mxu0 %v106
    %172 = vmatpush.msra.mxu0 %v105
    %173 = vmatpush.msra.mxu0 %v104
    %174 = vmatpush.msra.mxu0 %v103
    %175 = vmatpush.msra.mxu0 %v102
    %176 = vmatpush.msra.mxu0 %v101
    %177 = vmatpush.msra.mxu0 %v100
    %178 = vmatpush.msra.mxu0 %v99
    %179 = vmatpush.msra.mxu0 %v98
    %180 = vmatpush.msra.mxu0 %v97
    %181 = vmatpush.msra.mxu0 %v96
    %182 = vmatpush.msra.mxu0 %v95
    %183 = vmatmul.f32.gmra.mxu0 %v61
    %v184 = vpop.f32.mrf.mxu0
    %v185 = vadd.f32 %v165, %v184
    %186 = vdwg.mxu0
    %187 = vmatpush.msra.mxu0 %v126
    %188 = vmatpush.msra.mxu0 %v125
    %189 = vmatpush.msra.mxu0 %v124
    %190 = vmatpush.msra.mxu0 %v123
    %191 = vmatpush.msra.mxu0 %v122
    %192 = vmatpush.msra.mxu0 %v121
    %193 = vmatpush.msra.mxu0 %v120
    %194 = vmatpush.msra.mxu0 %v119
    %195 = vmatpush.msra.mxu0 %v118
    %196 = vmatpush.msra.mxu0 %v117
    %197 = vmatpush.msra.mxu0 %v116
    %198 = vmatpush.msra.mxu0 %v115
    %199 = vmatpush.msra.mxu0 %v114
    %200 = vmatpush.msra.mxu0 %v113
    %201 = vmatpush.msra.mxu0 %v112
    %202 = vmatpush.msra.mxu0 %v111
    %203 = vmatmul.f32.gmra.mxu0 %v62
    %v204 = vpop.f32.mrf.mxu0
    %v205 = vadd.f32 %v185, %v204
    %206 = vdwg.mxu0
    %v207 = vld [vmem:[%s2] sm:$0xff]
    %v208 = vld [vmem:[%s2 + $0x8] sm:$0xff]
    %v209 = vld [vmem:[%s2 + $0x10] sm:$0xff]
    %v210 = vld [vmem:[%s2 + $0x18] sm:$0xff]
    %v211 = vld [vmem:[%s3] sm:$0xff]
    %v212 = vld [vmem:[%s3 + $0x8] sm:$0xff]
    %v213 = vld [vmem:[%s3 + $0x10] sm:$0xff]
    %v214 = vld [vmem:[%s3 + $0x18] sm:$0xff]
    %216 = vset.pattern.permute.xlu0 0
    %217 = vperm.xlu0 %216, %v211
    %v218 = vpop.permute.xlu0 %217
    %221 = vset.pattern.permute.xlu0 0
    %222 = vperm.xlu0 %221, %v212
    %v223 = vpop.permute.xlu0 %222
    %226 = vset.pattern.permute.xlu0 0
    %227 = vperm.xlu0 %226, %v213
    %v228 = vpop.permute.xlu0 %227
    %231 = vset.pattern.permute.xlu0 0
    %232 = vperm.xlu0 %231, %v214
    %v233 = vpop.permute.xlu0 %232
    %vm235 = vcmask 64512
    %v237 = vsel %vm235, %v207, 0
    %v240 = vsel %vm235, %v208, 0
    %v243 = vsel %vm235, %v209, 0
    %v246 = vsel %vm235, %v210, 0
    %248 = vmatpush.msra.mxu0 0.0
    %249 = vmatpush.msra.mxu0 0.0
    %250 = vmatpush.msra.mxu0 0.0
    %251 = vmatpush.msra.mxu0 0.0
    %252 = vmatpush.msra.mxu0 0.0
    %253 = vmatpush.msra.mxu0 0.0
    %254 = vmatpush.msra.mxu0 0.0
    %255 = vmatpush.msra.mxu0 0.0
    %256 = vmatpush.msra.mxu0 0.0
    %257 = vmatpush.msra.mxu0 0.0
    %258 = vmatpush.msra.mxu0 0.0
    %259 = vmatpush.msra.mxu0 0.0
    %260 = vmatpush.msra.mxu0 0.0
    %261 = vmatpush.msra.mxu0 0.0
    %262 = vmatpush.msra.mxu0 0.0
    %263 = vmatpush.msra.mxu0 %v205
    %264 = vmatmul.f32.gmra.mxu0 %v237
    %v265 = vpop.f32.mrf.mxu0
    %v266 = vadd.f32 %v218, %v265
    %267 = vmatmul.f32.gmra.mxu0 %v240
    %v268 = vpop.f32.mrf.mxu0
    %v269 = vadd.f32 %v223, %v268
    %270 = vmatmul.f32.gmra.mxu0 %v243
    %v271 = vpop.f32.mrf.mxu0
    %v272 = vadd.f32 %v228, %v271
    %273 = vmatmul.f32.gmra.mxu0 %v246
    %v274 = vpop.f32.mrf.mxu0
    %v275 = vadd.f32 %v233, %v274
    %276 = vdwg.mxu0
    %v277 = vmax.f32 %v266, 0.0
    %v278 = vmax.f32 %v269, 0.0
    %v279 = vmax.f32 %v272, 0.0
    %v280 = vmax.f32 %v275, 0.0
    %v281 = vld [vmem:[#allocation2] sm:$0xff]
    %v282 = vld [vmem:[#allocation2 + $0x8] sm:$0xff]
    %v283 = vld [vmem:[%s5] sm:$0xff]
    %v284 = vld [vmem:[%s5 + $0x8] sm:$0xff]
    %286 = vset.pattern.permute.xlu0 0
    %287 = vperm.xlu0 %286, %v283
    %v288 = vpop.permute.xlu0 %287
    %291 = vset.pattern.permute.xlu0 0
    %292 = vperm.xlu0 %291, %v284
    %v293 = vpop.permute.xlu0 %292
    %vm295 = vcmask 261120
    %v297 = vsel %vm295, %v281, 0
    %v300 = vsel %vm295, %v282, 0
    %302 = vmatpush.msra.mxu0 0.0
    %303 = vmatpush.msra.mxu0 0.0
    %304 = vmatpush.msra.mxu0 0.0
    %305 = vmatpush.msra.mxu0 0.0
    %306 = vmatpush.msra.mxu0 0.0
    %307 = vmatpush.msra.mxu0 0.0
    %308 = vmatpush.msra.mxu0 0.0
    %309 = vmatpush.msra.mxu0 0.0
    %310 = vmatpush.msra.mxu0 0.0
    %311 = vmatpush.msra.mxu0 0.0
    %312 = vmatpush.msra.mxu0 0.0
    %313 = vmatpush.msra.mxu0 0.0
    %314 = vmatpush.msra.mxu0 %v280
    %315 = vmatpush.msra.mxu0 %v279
    %316 = vmatpush.msra.mxu0 %v278
    %317 = vmatpush.msra.mxu0 %v277
    %318 = vmatmul.f32.gmra.mxu0 %v297
    %v319 = vpop.f32.mrf.mxu0
    %v320 = vadd.f32 %v288, %v319
    %321 = vmatmul.f32.gmra.mxu0 %v300
    %v322 = vpop.f32.mrf.mxu0
    %v323 = vadd.f32 %v293, %v322
    %324 = vdwg.mxu0
    %v325 = vmax.f32 %v320, 0.0
    %v326 = vmax.f32 %v323, 0.0
    %v327 = vld [vmem:[#allocation4] sm:$0x1f]
    %v328 = vld [vmem:[%s7] sm:$0x1f]
    %330 = vset.pattern.permute.xlu0 0
    %331 = vperm.xlu0 %330, %v328
    %v332 = vpop.permute.xlu0 %331
    %vm334 = vcmask 130048
    %v336 = vsel %vm334, %v327, 0
    %338 = vmatpush.msra.mxu0 0.0
    %339 = vmatpush.msra.mxu0 0.0
    %340 = vmatpush.msra.mxu0 0.0
    %341 = vmatpush.msra.mxu0 0.0
    %342 = vmatpush.msra.mxu0 0.0
    %343 = vmatpush.msra.mxu0 0.0
    %344 = vmatpush.msra.mxu0 0.0
    %345 = vmatpush.msra.mxu0 0.0
    %346 = vmatpush.msra.mxu0 0.0
    %347 = vmatpush.msra.mxu0 0.0
    %348 = vmatpush.msra.mxu0 0.0
    %349 = vmatpush.msra.mxu0 0.0
    %350 = vmatpush.msra.mxu0 0.0
    %351 = vmatpush.msra.mxu0 0.0
    %352 = vmatpush.msra.mxu0 %v326
    %353 = vmatpush.msra.mxu0 %v325
    %354 = vmatmul.f32.gmra.mxu0 %v336
    %v355 = vpop.f32.mrf.mxu0
    %v356 = vadd.f32 %v332, %v355
    %357 = vdwg.mxu0
    %vm358 = vcmask 12288
    %359 = vst.msk [vmem:[%s8] sm:$0x1f] %vm358, %v356
    // Predicated region
    $region42: #{attentive_nf_resnet_forward.5} parent=1 // pred_check
      _
    $region43: #{attentive_nf_resnet_forward.5} parent=1 // pred_check_branch
      %361 = sbr.rel (0) target = $region45
    $region44: #{attentive_nf_resnet_forward.5} parent=1 // pred_region
      _
    $region45: #{attentive_nf_resnet_forward.5} parent=1 // pred_fallthru
      _
    // Predicated region
    $region46: #{attentive_nf_resnet_forward.5} parent=1 // pred_check
      _
    $region47: #{attentive_nf_resnet_forward.5} parent=1 // pred_check_branch
      %363 = sbr.rel (0) target = $region49
    $region48: #{attentive_nf_resnet_forward.5} parent=1 // pred_region
      _
    $region49: #{attentive_nf_resnet_forward.5} parent=1 // pred_fallthru
      _
    %364 = vsyncpa [#allocation3], 1
    %365 = vsyncpa [#allocation5], 1

// kernel: attentive_nf_resnet_forward.4
$region0: #{attentive_nf_resnet_forward.4}
  #allocation0 [shape = 'u32[]', space=smem, size = 0x4, offset = 0x4, fixed_abs, tag = 'smem constant byte address 0x4 - core index']
  #allocation1 [shape = 'u32[72,128]{1,0:T(1,128)}', space=vmem, size = 0x9000, scoped, tag = 'internal scratch']
  #allocation2 [shape = 'f32[8,512]{1,0:T(8,128)}', space=vmem, size = 0x4000, scoped, tag = 'scratch operand']
  %s0 = inlined_call_operand.vmem [shape: f32[8,512], index: 0, kind: input, shape index: {}]
  %s1 = inlined_call_operand.hbm [shape: f32[376,512], index: 1, kind: input, shape index: {}]
  %s2 = inlined_call_operand.vmem [shape: f32[512,2], index: 2, kind: input, shape index: {}]
  %s3 = inlined_call_operand.hbm [shape: f32[2,512], index: 3, kind: input, shape index: {}]
  %s4 = inlined_call_operand.vmem [shape: f32[4,9,8,8], index: 4, kind: input, shape index: {}]
  %s5 = inlined_call_operand.vmem [shape: f32[4,8,1], index: 5, kind: input, shape index: {}]
  %s6 = inlined_call_operand.vmem [shape: f32[4,9,8,8], index: 6, kind: input, shape index: {}]
  %s7 = inlined_call_operand.vmem [shape: f32[4,8,1], index: 7, kind: input, shape index: {}]
  %s8 = inlined_call_operand.hbm [shape: f32[4,8,8], index: 8, kind: input, shape index: {}]
  %s9 = inlined_call_operand.vmem [shape: f32[4,8,1], index: 9, kind: input, shape index: {}]
  %s10 = inlined_call_operand.hbm [shape: f32[4,8,8], index: 10, kind: input, shape index: {}]
  %s11 = inlined_call_operand.vmem [shape: f32[4,8,1], index: 11, kind: input, shape index: {}]
  %s12 = inlined_call_operand.vmem [shape: f32[8,512], index: 12, kind: output, shape index: {}]
  %s13 = sld [smem:[#allocation0]]
  $region101: #{attentive_nf_resnet_forward.4} parent=0
    _
  %s15 = ssub.s32 1, %s13
  %s16 = scalar_select 0, %s15, %s13
  $region1: #{attentive_nf_resnet_forward.4} parent=0
    #allocation3 [shape = 'u8[770048]{0}', space=vmem, size = 0xbc000, scoped, tag = 'input window, operand 1, single buffered']
    #allocation4 [shape = 's32[2]{0}', space=sflag, size = 0x8, scoped, tag = 'scoped memory for attentive_nf_resnet_forward.4']
    #allocation5 [shape = 'u8[4096]{0}', space=vmem, size = 0x1000, scoped, tag = 'input window, operand 3, single buffered']
    #allocation6 [shape = 's32[1]{0}', space=sflag, size = 0x4, scoped, tag = 'scoped memory for attentive_nf_resnet_forward.4']
    #allocation7 [shape = 'u8[8192]{0}', space=vmem, size = 0x2000, scoped, tag = 'input window, operand 8']
    #allocation8 [shape = 'u8[8192]{0}', space=vmem, size = 0x2000, scoped, tag = 'input window, operand 10']
    %17 = vsyncpa [#allocation4], 0
    %18 = vsyncpa [#allocation6], 0
    loop: start=0, step=1, limit=6
    $region2: #{attentive_nf_resnet_forward.4} parent=1 // loop_pre_header
      _
    $region3: #{attentive_nf_resnet_forward.4} parent=1 // loop_header
      %s20 = sphi 0, %s24
      %p21 = scmp.ge.s32.totalorder %s20, 6
      %s28 = sphi 0, %s28
      %s30 = sphi 0, %s28
      %s31 = sphi 0, %s30
      %s45 = sphi 0, %s31
      %s49 = sphi 0, %s49
      %s51 = sphi 0, %s49
      %s52 = sphi 0, %s51
      %s66 = sphi 0, %s52
      %s70 = sphi 0, %s70
      %s72 = sphi 0, %s70
      %s73 = sphi 0, %s72
      %s87 = sphi 0, %s73
      %s91 = sphi 0, %s91
      %s93 = sphi 0, %s91
      %s94 = sphi 0, %s93
      %s108 = sphi 0, %s94
      %s114 = sphi 0, %s116
      %s117 = sphi 0, %s114
      %s118 = sphi 0, %s117
      %s134 = sphi 0, %s118
      %s140 = sphi 0, %s142
      %s143 = sphi 0, %s140
      %s144 = sphi 0, %s143
      %s160 = sphi 0, %s144
      %s166 = sphi 0, %s168
      %s169 = sphi 0, %s166
      %s170 = sphi 0, %s169
      %s186 = sphi 0, %s170
      %s192 = sphi 0, %s194
      %s195 = sphi 0, %s192
      %s196 = sphi 0, %s195
      %s212 = sphi 0, %s196
      %s218 = sphi 0, %s220
      %s221 = sphi 0, %s218
      %s222 = sphi 0, %s221
      %s238 = sphi 0, %s222
      %s244 = sphi 0, %s246
      %s247 = sphi 0, %s244
      %s248 = sphi 0, %s247
      %s264 = sphi 0, %s248
      %s270 = sphi 0, %s272
      %s273 = sphi 0, %s270
      %s274 = sphi 0, %s273
      %s290 = sphi 0, %s274
      %s296 = sphi 0, %s298
      %s299 = sphi 0, %s296
      %s300 = sphi 0, %s299
      %s316 = sphi 0, %s300
      %s320 = sphi 0, %s320
      %s322 = sphi 0, %s320
      %s323 = sphi 0, %s322
      %s337 = sphi 0, %s323
    $region4: #{attentive_nf_resnet_forward.4} parent=1 // loop_header_branch
      %23 = sbr.rel (%p21) target = $region8
    $region5: #{attentive_nf_resnet_forward.4} parent=1 // loop_body
      %s25 = ssub.s32 %s20, 1
      %s26 = ssub.s32 %s20, 2
      %s27 = sadd.s32 %s20, 1
      %s29 = sadd.s32 %s28, 1
      %p32 = scmp.eq.s32.totalorder %s20, 3
      %p33 = scmp.ne.s32.totalorder %s28, %s30
      %p34 = scmp.eq.s32.totalorder %s20, 0
      %p35 = por %p33, %p34
      %p36 = scmp.ne.s32.totalorder %s28, %s30
      %p37 = scmp.eq.s32.totalorder %s25, 3
      %p38 = por %p36, %p37
      %p39 = scmp.ne.s32.totalorder %s30, %s31
      %p40 = scmp.eq.s32.totalorder %s25, 0
      %p41 = por %p39, %p40
      %p42 = scmp.ne.s32.totalorder %s30, %s31
      %p43 = scmp.eq.s32.totalorder %s26, 3
      %p44 = por %p42, %p43
      %p46 = scmp.ne.s32.totalorder %s31, %s45
      %p47 = scmp.eq.s32.totalorder %s26, 0
      %p48 = por %p46, %p47
      %s50 = sadd.s32 %s49, 1
      %p53 = scmp.eq.s32.totalorder %s20, 3
      %p54 = scmp.ne.s32.totalorder %s49, %s51
      %p55 = scmp.eq.s32.totalorder %s20, 0
      %p56 = por %p54, %p55
      %p57 = scmp.ne.s32.totalorder %s49, %s51
      %p58 = scmp.eq.s32.totalorder %s25, 3
      %p59 = por %p57, %p58
      %p60 = scmp.ne.s32.totalorder %s51, %s52
      %p61 = scmp.eq.s32.totalorder %s25, 0
      %p62 = por %p60, %p61
      %p63 = scmp.ne.s32.totalorder %s51, %s52
      %p64 = scmp.eq.s32.totalorder %s26, 3
      %p65 = por %p63, %p64
      %p67 = scmp.ne.s32.totalorder %s52, %s66
      %p68 = scmp.eq.s32.totalorder %s26, 0
      %p69 = por %p67, %p68
      %s71 = sadd.s32 %s70, 1
      %p74 = scmp.eq.s32.totalorder %s20, 3
      %p75 = scmp.ne.s32.totalorder %s70, %s72
      %p76 = scmp.eq.s32.totalorder %s20, 0
      %p77 = por %p75, %p76
      %p78 = scmp.ne.s32.totalorder %s70, %s72
      %p79 = scmp.eq.s32.totalorder %s25, 3
      %p80 = por %p78, %p79
      %p81 = scmp.ne.s32.totalorder %s72, %s73
      %p82 = scmp.eq.s32.totalorder %s25, 0
      %p83 = por %p81, %p82
      %p84 = scmp.ne.s32.totalorder %s72, %s73
      %p85 = scmp.eq.s32.totalorder %s26, 3
      %p86 = por %p84, %p85
      %p88 = scmp.ne.s32.totalorder %s73, %s87
      %p89 = scmp.eq.s32.totalorder %s26, 0
      %p90 = por %p88, %p89
      %s92 = sadd.s32 %s91, 1
      %p95 = scmp.eq.s32.totalorder %s20, 3
      %p96 = scmp.ne.s32.totalorder %s91, %s93
      %p97 = scmp.eq.s32.totalorder %s20, 0
      %p98 = por %p96, %p97
      %p99 = scmp.ne.s32.totalorder %s91, %s93
      %p100 = scmp.eq.s32.totalorder %s25, 3
      %p101 = por %p99, %p100
      %p102 = scmp.ne.s32.totalorder %s93, %s94
      %p103 = scmp.eq.s32.totalorder %s25, 0
      %p104 = por %p102, %p103
      %p105 = scmp.ne.s32.totalorder %s93, %s94
      %p106 = scmp.eq.s32.totalorder %s26, 3
      %p107 = por %p105, %p106
      %p109 = scmp.ne.s32.totalorder %s94, %s108
      %p110 = scmp.eq.s32.totalorder %s26, 0
      %p111 = por %p109, %p110
      %s112 = ssub.s32 %s20, %s27
      %p113 = scmp.eq.s32.totalorder %s112, 0
      %s115 = sadd.s32 %s114, 1
      %s116 = scalar_select %p113, %s114, %s115
      %p119 = pneg %p113
      %p120 = scmp.eq.s32.totalorder %s20, 3
      %p121 = por %p119, %p120
      %p122 = scmp.ne.s32.totalorder %s114, %s117
      %p123 = scmp.eq.s32.totalorder %s20, 0
      %p124 = por %p122, %p123
      %p125 = scmp.ne.s32.totalorder %s114, %s117
      %p126 = scmp.eq.s32.totalorder %s25, 3
      %p127 = por %p125, %p126
      %p128 = scmp.ne.s32.totalorder %s117, %s118
      %p129 = scmp.eq.s32.totalorder %s25, 0
      %p130 = por %p128, %p129
      %p131 = scmp.ne.s32.totalorder %s117, %s118
      %p132 = scmp.eq.s32.totalorder %s26, 3
      %p133 = por %p131, %p132
      %p135 = scmp.ne.s32.totalorder %s118, %s134
      %p136 = scmp.eq.s32.totalorder %s26, 0
      %p137 = por %p135, %p136
      %s138 = ssub.s32 %s20, %s27
      %p139 = scmp.eq.s32.totalorder %s138, 0
      %s141 = sadd.s32 %s140, 1
      %s142 = scalar_select %p139, %s140, %s141
      %p145 = pneg %p139
      %p146 = scmp.eq.s32.totalorder %s20, 3
      %p147 = por %p145, %p146
      %p148 = scmp.ne.s32.totalorder %s140, %s143
      %p149 = scmp.eq.s32.totalorder %s20, 0
      %p150 = por %p148, %p149
      %p151 = scmp.ne.s32.totalorder %s140, %s143
      %p152 = scmp.eq.s32.totalorder %s25, 3
      %p153 = por %p151, %p152
      %p154 = scmp.ne.s32.totalorder %s143, %s144
      %p155 = scmp.eq.s32.totalorder %s25, 0
      %p156 = por %p154, %p155
      %p157 = scmp.ne.s32.totalorder %s143, %s144
      %p158 = scmp.eq.s32.totalorder %s26, 3
      %p159 = por %p157, %p158
      %p161 = scmp.ne.s32.totalorder %s144, %s160
      %p162 = scmp.eq.s32.totalorder %s26, 0
      %p163 = por %p161, %p162
      %s164 = ssub.s32 %s20, %s27
      %p165 = scmp.eq.s32.totalorder %s164, 0
      %s167 = sadd.s32 %s166, 1
      %s168 = scalar_select %p165, %s166, %s167
      %p171 = pneg %p165
      %p172 = scmp.eq.s32.totalorder %s20, 3
      %p173 = por %p171, %p172
      %p174 = scmp.ne.s32.totalorder %s166, %s169
      %p175 = scmp.eq.s32.totalorder %s20, 0
      %p176 = por %p174, %p175
      %p177 = scmp.ne.s32.totalorder %s166, %s169
      %p178 = scmp.eq.s32.totalorder %s25, 3
      %p179 = por %p177, %p178
      %p180 = scmp.ne.s32.totalorder %s169, %s170
      %p181 = scmp.eq.s32.totalorder %s25, 0
      %p182 = por %p180, %p181
      %p183 = scmp.ne.s32.totalorder %s169, %s170
      %p184 = scmp.eq.s32.totalorder %s26, 3
      %p185 = por %p183, %p184
      %p187 = scmp.ne.s32.totalorder %s170, %s186
      %p188 = scmp.eq.s32.totalorder %s26, 0
      %p189 = por %p187, %p188
      %s190 = ssub.s32 %s20, %s27
      %p191 = scmp.eq.s32.totalorder %s190, 0
      %s193 = sadd.s32 %s192, 1
      %s194 = scalar_select %p191, %s192, %s193
      %p197 = pneg %p191
      %p198 = scmp.eq.s32.totalorder %s20, 3
      %p199 = por %p197, %p198
      %p200 = scmp.ne.s32.totalorder %s192, %s195
      %p201 = scmp.eq.s32.totalorder %s20, 0
      %p202 = por %p200, %p201
      %p203 = scmp.ne.s32.totalorder %s192, %s195
      %p204 = scmp.eq.s32.totalorder %s25, 3
      %p205 = por %p203, %p204
      %p206 = scmp.ne.s32.totalorder %s195, %s196
      %p207 = scmp.eq.s32.totalorder %s25, 0
      %p208 = por %p206, %p207
      %p209 = scmp.ne.s32.totalorder %s195, %s196
      %p210 = scmp.eq.s32.totalorder %s26, 3
      %p211 = por %p209, %p210
      %p213 = scmp.ne.s32.totalorder %s196, %s212
      %p214 = scmp.eq.s32.totalorder %s26, 0
      %p215 = por %p213, %p214
      %s216 = ssub.s32 %s20, %s27
      %p217 = scmp.eq.s32.totalorder %s216, 0
      %s219 = sadd.s32 %s218, 1
      %s220 = scalar_select %p217, %s218, %s219
      %p223 = pneg %p217
      %p224 = scmp.eq.s32.totalorder %s20, 3
      %p225 = por %p223, %p224
      %p226 = scmp.ne.s32.totalorder %s218, %s221
      %p227 = scmp.eq.s32.totalorder %s20, 0
      %p228 = por %p226, %p227
      %p229 = scmp.ne.s32.totalorder %s218, %s221
      %p230 = scmp.eq.s32.totalorder %s25, 3
      %p231 = por %p229, %p230
      %p232 = scmp.ne.s32.totalorder %s221, %s222
      %p233 = scmp.eq.s32.totalorder %s25, 0
      %p234 = por %p232, %p233
      %p235 = scmp.ne.s32.totalorder %s221, %s222
      %p236 = scmp.eq.s32.totalorder %s26, 3
      %p237 = por %p235, %p236
      %p239 = scmp.ne.s32.totalorder %s222, %s238
      %p240 = scmp.eq.s32.totalorder %s26, 0
      %p241 = por %p239, %p240
      %s242 = ssub.s32 %s20, %s27
      %p243 = scmp.eq.s32.totalorder %s242, 0
      %s245 = sadd.s32 %s244, 1
      %s246 = scalar_select %p243, %s244, %s245
      %p249 = pneg %p243
      %p250 = scmp.eq.s32.totalorder %s20, 3
      %p251 = por %p249, %p250
      %p252 = scmp.ne.s32.totalorder %s244, %s247
      %p253 = scmp.eq.s32.totalorder %s20, 0
      %p254 = por %p252, %p253
      %p255 = scmp.ne.s32.totalorder %s244, %s247
      %p256 = scmp.eq.s32.totalorder %s25, 3
      %p257 = por %p255, %p256
      %p258 = scmp.ne.s32.totalorder %s247, %s248
      %p259 = scmp.eq.s32.totalorder %s25, 0
      %p260 = por %p258, %p259
      %p261 = scmp.ne.s32.totalorder %s247, %s248
      %p262 = scmp.eq.s32.totalorder %s26, 3
      %p263 = por %p261, %p262
      %p265 = scmp.ne.s32.totalorder %s248, %s264
      %p266 = scmp.eq.s32.totalorder %s26, 0
      %p267 = por %p265, %p266
      %s268 = ssub.s32 %s20, %s27
      %p269 = scmp.eq.s32.totalorder %s268, 0
      %s271 = sadd.s32 %s270, 1
      %s272 = scalar_select %p269, %s270, %s271
      %p275 = pneg %p269
      %p276 = scmp.eq.s32.totalorder %s20, 3
      %p277 = por %p275, %p276
      %p278 = scmp.ne.s32.totalorder %s270, %s273
      %p279 = scmp.eq.s32.totalorder %s20, 0
      %p280 = por %p278, %p279
      %p281 = scmp.ne.s32.totalorder %s270, %s273
      %p282 = scmp.eq.s32.totalorder %s25, 3
      %p283 = por %p281, %p282
      %p284 = scmp.ne.s32.totalorder %s273, %s274
      %p285 = scmp.eq.s32.totalorder %s25, 0
      %p286 = por %p284, %p285
      %p287 = scmp.ne.s32.totalorder %s273, %s274
      %p288 = scmp.eq.s32.totalorder %s26, 3
      %p289 = por %p287, %p288
      %p291 = scmp.ne.s32.totalorder %s274, %s290
      %p292 = scmp.eq.s32.totalorder %s26, 0
      %p293 = por %p291, %p292
      %s294 = ssub.s32 %s20, %s27
      %p295 = scmp.eq.s32.totalorder %s294, 0
      %s297 = sadd.s32 %s296, 1
      %s298 = scalar_select %p295, %s296, %s297
      %p301 = pneg %p295
      %p302 = scmp.eq.s32.totalorder %s20, 3
      %p303 = por %p301, %p302
      %p304 = scmp.ne.s32.totalorder %s296, %s299
      %p305 = scmp.eq.s32.totalorder %s20, 0
      %p306 = por %p304, %p305
      %p307 = scmp.ne.s32.totalorder %s296, %s299
      %p308 = scmp.eq.s32.totalorder %s25, 3
      %p309 = por %p307, %p308
      %p310 = scmp.ne.s32.totalorder %s299, %s300
      %p311 = scmp.eq.s32.totalorder %s25, 0
      %p312 = por %p310, %p311
      %p313 = scmp.ne.s32.totalorder %s299, %s300
      %p314 = scmp.eq.s32.totalorder %s26, 3
      %p315 = por %p313, %p314
      %p317 = scmp.ne.s32.totalorder %s300, %s316
      %p318 = scmp.eq.s32.totalorder %s26, 0
      %p319 = por %p317, %p318
      %s321 = sadd.s32 %s320, 1
      %p324 = scmp.eq.s32.totalorder %s20, 3
      %p325 = scmp.ne.s32.totalorder %s320, %s322
      %p326 = scmp.eq.s32.totalorder %s20, 0
      %p327 = por %p325, %p326
      %p328 = scmp.ne.s32.totalorder %s320, %s322
      %p329 = scmp.eq.s32.totalorder %s25, 3
      %p330 = por %p328, %p329
      %p331 = scmp.ne.s32.totalorder %s322, %s323
      %p332 = scmp.eq.s32.totalorder %s25, 0
      %p333 = por %p331, %p332
      %p334 = scmp.ne.s32.totalorder %s322, %s323
      %p335 = scmp.eq.s32.totalorder %s26, 3
      %p336 = por %p334, %p335
      %p338 = scmp.ne.s32.totalorder %s323, %s337
      %p339 = scmp.eq.s32.totalorder %s26, 0
      %p340 = por %p338, %p339
      %p341 = scmp.le.s32.totalorder 1, %s20
      %p342 = scmp.lt.s32.totalorder %s20, 5
      %p343 = pnand %p341, %p342
      %p344 = pneg %p343
      // Predicated region
      $region9: #{attentive_nf_resnet_forward.4} parent=5 // pred_check
        _
      $region10: #{attentive_nf_resnet_forward.4} parent=5 // pred_check_branch
        %346 = sbr.rel (%p343) target = $region12
      $region11: #{attentive_nf_resnet_forward.4} parent=5 // pred_region
        %s347 = ssub.s32 %s20, 1
        // Predicated region
        $region13: #{attentive_nf_resnet_forward.4} parent=11 // pred_check
          %p348 = pneg %p41
        $region14: #{attentive_nf_resnet_forward.4} parent=11 // pred_check_branch
          %350 = sbr.rel (%p348) target = $region16
        $region15: #{attentive_nf_resnet_forward.4} parent=11 // pred_region
          _
        $region16: #{attentive_nf_resnet_forward.4} parent=11 // pred_fallthru
          _
        // Predicated region
        $region17: #{attentive_nf_resnet_forward.4} parent=11 // pred_check
          %p351 = pneg %p62
        $region18: #{attentive_nf_resnet_forward.4} parent=11 // pred_check_branch
          %353 = sbr.rel (%p351) target = $region20
        $region19: #{attentive_nf_resnet_forward.4} parent=11 // pred_region
          %355 = vsyncadd [#allocation4], 0
          %s356 = sshll.u32 %s1, 4
          %s357 = int_to_ptr.hbm [resolvable:$true] %s356
          %s358 = sshll.u32 [#allocation3], 4
          %s359 = int_to_ptr.vmem [resolvable:$true] %s358
          %364 = dma.hbm_to_vmem [thread:$0]  %s357, 24064, %s359, [#allocation4], 512, 512, 32
        $region20: #{attentive_nf_resnet_forward.4} parent=11 // pred_fallthru
          _
        // Predicated region
        $region21: #{attentive_nf_resnet_forward.4} parent=11 // pred_check
          %p365 = pneg %p83
        $region22: #{attentive_nf_resnet_forward.4} parent=11 // pred_check_branch
          %367 = sbr.rel (%p365) target = $region24
        $region23: #{attentive_nf_resnet_forward.4} parent=11 // pred_region
          _
        $region24: #{attentive_nf_resnet_forward.4} parent=11 // pred_fallthru
          _
        // Predicated region
        $region25: #{attentive_nf_resnet_forward.4} parent=11 // pred_check
          %p368 = pneg %p104
        $region26: #{attentive_nf_resnet_forward.4} parent=11 // pred_check_branch
          %370 = sbr.rel (%p368) target = $region28
        $region27: #{attentive_nf_resnet_forward.4} parent=11 // pred_region
          %372 = vsyncadd [#allocation6], 0
          %s374 = sshll.u32 %s3, 4
          %s375 = int_to_ptr.hbm [resolvable:$true] %s374
          %s376 = sshll.u32 [#allocation5], 4
          %s377 = int_to_ptr.vmem [resolvable:$true] %s376
          %379 = dma.hbm_to_vmem [thread:$0]  %s375, 128, %s377, [#allocation6]
        $region28: #{attentive_nf_resnet_forward.4} parent=11 // pred_fallthru
          _
      $region12: #{attentive_nf_resnet_forward.4} parent=5 // pred_fallthru
        _
      %p380 = scmp.lt.s32.totalorder %s20, 4
      // Predicated region
      $region29: #{attentive_nf_resnet_forward.4} parent=5 // pred_check
        %p381 = pneg %p380
      $region30: #{attentive_nf_resnet_forward.4} parent=5 // pred_check_branch
        %383 = sbr.rel (%p381) target = $region32
      $region31: #{attentive_nf_resnet_forward.4} parent=5 // pred_region
        // Predicated region
        $region33: #{attentive_nf_resnet_forward.4} parent=31 // pred_check
          %p384 = pneg %p124
        $region34: #{attentive_nf_resnet_forward.4} parent=31 // pred_check_branch
          %386 = sbr.rel (%p384) target = $region36
        $region35: #{attentive_nf_resnet_forward.4} parent=31 // pred_region
          %p387 = scmp.lt.s32.totalorder %s20, 3
          %s388 = scalar_select %p387, %s20, 3
          %s389 = smul.addr %s388, 9
          %s390 = smul.addr %s389, 8
          %s391 = scalar_lea.vmem %s4, %s390
        $region36: #{attentive_nf_resnet_forward.4} parent=31 // pred_fallthru
          _
        // Predicated region
        $region37: #{attentive_nf_resnet_forward.4} parent=31 // pred_check
          %p392 = pneg %p150
        $region38: #{attentive_nf_resnet_forward.4} parent=31 // pred_check_branch
          %394 = sbr.rel (%p392) target = $region40
        $region39: #{attentive_nf_resnet_forward.4} parent=31 // pred_region
          %p395 = scmp.lt.s32.totalorder %s20, 3
          %s396 = scalar_select %p395, %s20, 3
          %s397 = smul.addr %s396, 8
          %s398 = scalar_lea.vmem %s5, %s397
        $region40: #{attentive_nf_resnet_forward.4} parent=31 // pred_fallthru
          _
        // Predicated region
        $region41: #{attentive_nf_resnet_forward.4} parent=31 // pred_check
          %p399 = pneg %p176
        $region42: #{attentive_nf_resnet_forward.4} parent=31 // pred_check_branch
          %401 = sbr.rel (%p399) target = $region44
        $region43: #{attentive_nf_resnet_forward.4} parent=31 // pred_region
          %p402 = scmp.lt.s32.totalorder %s20, 3
          %s403 = scalar_select %p402, %s20, 3
          %s404 = smul.addr %s403, 9
          %s405 = smul.addr %s404, 8
          %s406 = scalar_lea.vmem %s6, %s405
        $region44: #{attentive_nf_resnet_forward.4} parent=31 // pred_fallthru
          _
        // Predicated region
        $region45: #{attentive_nf_resnet_forward.4} parent=31 // pred_check
          %p407 = pneg %p202
        $region46: #{attentive_nf_resnet_forward.4} parent=31 // pred_check_branch
          %409 = sbr.rel (%p407) target = $region48
        $region47: #{attentive_nf_resnet_forward.4} parent=31 // pred_region
          %p410 = scmp.lt.s32.totalorder %s20, 3
          %s411 = scalar_select %p410, %s20, 3
          %s412 = smul.addr %s411, 8
          %s413 = scalar_lea.vmem %s7, %s412
        $region48: #{attentive_nf_resnet_forward.4} parent=31 // pred_fallthru
          _
        // Predicated region
        $region49: #{attentive_nf_resnet_forward.4} parent=31 // pred_check
          %p414 = pneg %p228
        $region50: #{attentive_nf_resnet_forward.4} parent=31 // pred_check_branch
          %416 = sbr.rel (%p414) target = $region52
        $region51: #{attentive_nf_resnet_forward.4} parent=31 // pred_region
          %s417 = sand.u32 %s20, 1
          %s418 = scalar_lea.sflag [#allocation4], %s417
          %s419 = sand.u32 %s218, 1
          %s420 = smul.addr %s419, 8
          %s421 = scalar_lea.vmem [#allocation7], %s420
          %423 = vsyncadd %s418, 0
          %s424 = smul.addr %s20, 8
          %s425 = scalar_lea.hbm %s8, %s424
          %s427 = sshll.u32 %s425, 4
          %s428 = int_to_ptr.hbm [resolvable:$true] %s427
          %s429 = sshll.u32 %s421, 4
          %s430 = int_to_ptr.vmem [resolvable:$true] %s429
          %432 = dma.hbm_to_vmem [thread:$0]  %s428, 128, %s430, %s418
        $region52: #{attentive_nf_resnet_forward.4} parent=31 // pred_fallthru
          _
        // Predicated region
        $region53: #{attentive_nf_resnet_forward.4} parent=31 // pred_check
          %p433 = pneg %p254
        $region54: #{attentive_nf_resnet_forward.4} parent=31 // pred_check_branch
          %435 = sbr.rel (%p433) target = $region56
        $region55: #{attentive_nf_resnet_forward.4} parent=31 // pred_region
          %p436 = scmp.lt.s32.totalorder %s20, 3
          %s437 = scalar_select %p436, %s20, 3
          %s438 = smul.addr %s437, 8
          %s439 = scalar_lea.vmem %s9, %s438
        $region56: #{attentive_nf_resnet_forward.4} parent=31 // pred_fallthru
          _
        // Predicated region
        $region57: #{attentive_nf_resnet_forward.4} parent=31 // pred_check
          %p440 = pneg %p280
        $region58: #{attentive_nf_resnet_forward.4} parent=31 // pred_check_branch
          %442 = sbr.rel (%p440) target = $region60
        $region59: #{attentive_nf_resnet_forward.4} parent=31 // pred_region
          %s443 = sand.u32 %s20, 1
          %s444 = scalar_lea.sflag [#allocation4], %s443
          %s445 = sand.u32 %s270, 1
          %s446 = smul.addr %s445, 8
          %s447 = scalar_lea.vmem [#allocation8], %s446
          %449 = vsyncadd %s444, 0
          %s450 = smul.addr %s20, 8
          %s451 = scalar_lea.hbm %s10, %s450
          %s453 = sshll.u32 %s451, 4
          %s454 = int_to_ptr.hbm [resolvable:$true] %s453
          %s455 = sshll.u32 %s447, 4
          %s456 = int_to_ptr.vmem [resolvable:$true] %s455
          %458 = dma.hbm_to_vmem [thread:$0]  %s454, 128, %s456, %s444
        $region60: #{attentive_nf_resnet_forward.4} parent=31 // pred_fallthru
          _
        // Predicated region
        $region61: #{attentive_nf_resnet_forward.4} parent=31 // pred_check
          %p459 = pneg %p306
        $region62: #{attentive_nf_resnet_forward.4} parent=31 // pred_check_branch
          %461 = sbr.rel (%p459) target = $region64
        $region63: #{attentive_nf_resnet_forward.4} parent=31 // pred_region
          %p462 = scmp.lt.s32.totalorder %s20, 3
          %s463 = scalar_select %p462, %s20, 3
          %s464 = smul.addr %s463, 8
          %s465 = scalar_lea.vmem %s11, %s464
        $region64: #{attentive_nf_resnet_forward.4} parent=31 // pred_fallthru
          _
      $region32: #{attentive_nf_resnet_forward.4} parent=5 // pred_fallthru
        _
      %p466 = scmp.le.s32.totalorder 1, %s20
      %p467 = scmp.lt.s32.totalorder %s20, 5
      %p468 = pnand %p466, %p467
      %p469 = pneg %p468
      // Predicated region
      $region65: #{attentive_nf_resnet_forward.4} parent=5 // pred_check
        _
      $region66: #{attentive_nf_resnet_forward.4} parent=5 // pred_check_branch
        %471 = sbr.rel (%p468) target = $region68
      $region67: #{attentive_nf_resnet_forward.4} parent=5 // pred_region
        %s472 = ssub.s32 %s20, 1
        // Predicated region
        $region69: #{attentive_nf_resnet_forward.4} parent=67 // pred_check
          %p473 = pneg %p62
        $region70: #{attentive_nf_resnet_forward.4} parent=67 // pred_check_branch
          %475 = sbr.rel (%p473) target = $region72
        $region71: #{attentive_nf_resnet_forward.4} parent=67 // pred_region
          %477 = dma.done [#allocation4], 24064
        $region72: #{attentive_nf_resnet_forward.4} parent=67 // pred_fallthru
          _
        // Predicated region
        $region73: #{attentive_nf_resnet_forward.4} parent=67 // pred_check
          %p478 = pneg %p104
        $region74: #{attentive_nf_resnet_forward.4} parent=67 // pred_check_branch
          %480 = sbr.rel (%p478) target = $region76
        $region75: #{attentive_nf_resnet_forward.4} parent=67 // pred_region
          %482 = dma.done [#allocation6], 128
        $region76: #{attentive_nf_resnet_forward.4} parent=67 // pred_fallthru
          _
        %s483 = sand.u32 %s25, 1
        %s484 = scalar_lea.sflag [#allocation4], %s483
        %s485 = sand.u32 %s221, 1
        %s486 = smul.addr %s485, 8
        %s487 = scalar_lea.vmem [#allocation7], %s486
        // Predicated region
        $region77: #{attentive_nf_resnet_forward.4} parent=67 // pred_check
          %p488 = pneg %p234
        $region78: #{attentive_nf_resnet_forward.4} parent=67 // pred_check_branch
          %490 = sbr.rel (%p488) target = $region80
        $region79: #{attentive_nf_resnet_forward.4} parent=67 // pred_region
          %492 = dma.done %s484, 128
        $region80: #{attentive_nf_resnet_forward.4} parent=67 // pred_fallthru
          _
        %s493 = sand.u32 %s25, 1
        %s494 = scalar_lea.sflag [#allocation4], %s493
        %s495 = sand.u32 %s273, 1
        %s496 = smul.addr %s495, 8
        %s497 = scalar_lea.vmem [#allocation8], %s496
        // Predicated region
        $region81: #{attentive_nf_resnet_forward.4} parent=67 // pred_check
          %p498 = pneg %p286
        $region82: #{attentive_nf_resnet_forward.4} parent=67 // pred_check_branch
          %500 = sbr.rel (%p498) target = $region84
        $region83: #{attentive_nf_resnet_forward.4} parent=67 // pred_region
          %502 = dma.done %s494, 128
        $region84: #{attentive_nf_resnet_forward.4} parent=67 // pred_fallthru
          _
        %p503 = pneg %p41
        %p504 = pneg %p38
        %p505 = pneg %p62
        %p506 = pneg %p59
        %p507 = pneg %p83
        %p508 = pneg %p80
        %p509 = pneg %p104
        %p510 = pneg %p101
        %p511 = scmp.lt.s32.totalorder %s25, 3
        %s512 = scalar_select %p511, %s25, 3
        %s513 = smul.addr %s512, 9
        %s514 = smul.addr %s513, 8
        %s515 = scalar_lea.vmem %s4, %s514
        %p516 = pneg %p130
        %p517 = pneg %p127
        %p518 = scmp.lt.s32.totalorder %s25, 3
        %s519 = scalar_select %p518, %s25, 3
        %s520 = smul.addr %s519, 8
        %s521 = scalar_lea.vmem %s5, %s520
        %p522 = pneg %p156
        %p523 = pneg %p153
        %p524 = scmp.lt.s32.totalorder %s25, 3
        %s525 = scalar_select %p524, %s25, 3
        %s526 = smul.addr %s525, 9
        %s527 = smul.addr %s526, 8
        %s528 = scalar_lea.vmem %s6, %s527
        %p529 = pneg %p182
        %p530 = pneg %p179
        %p531 = scmp.lt.s32.totalorder %s25, 3
        %s532 = scalar_select %p531, %s25, 3
        %s533 = smul.addr %s532, 8
        %s534 = scalar_lea.vmem %s7, %s533
        %p535 = pneg %p208
        %p536 = pneg %p205
        %s537 = sand.u32 %s25, 1
        %s538 = scalar_lea.sflag [#allocation4], %s537
        %s539 = sand.u32 %s221, 1
        %s540 = smul.addr %s539, 8
        %s541 = scalar_lea.vmem [#allocation7], %s540
        %p542 = pneg %p234
        %p543 = pneg %p231
        %p544 = scmp.lt.s32.totalorder %s25, 3
        %s545 = scalar_select %p544, %s25, 3
        %s546 = smul.addr %s545, 8
        %s547 = scalar_lea.vmem %s9, %s546
        %p548 = pneg %p260
        %p549 = pneg %p257
        %s550 = sand.u32 %s25, 1
        %s551 = scalar_lea.sflag [#allocation4], %s550
        %s552 = sand.u32 %s273, 1
        %s553 = smul.addr %s552, 8
        %s554 = scalar_lea.vmem [#allocation8], %s553
        %p555 = pneg %p286
        %p556 = pneg %p283
        %p557 = scmp.lt.s32.totalorder %s25, 3
        %s558 = scalar_select %p557, %s25, 3
        %s559 = smul.addr %s558, 8
        %s560 = scalar_lea.vmem %s11, %s559
        %p561 = pneg %p312
        %p562 = pneg %p309
        %p563 = pneg %p333
        %p564 = pneg %p330
        %p565 = scmp.lt.s32.totalorder %s25, 3
        %s566 = scalar_select %p565, %s25, 3
        %s567 = smul.addr %s566, 9
        %s568 = smul.addr %s567, 8
        %s569 = scalar_lea.vmem %s4, %s568
        %p570 = scmp.lt.s32.totalorder %s25, 3
        %s571 = scalar_select %p570, %s25, 3
        %s572 = smul.addr %s571, 8
        %s573 = scalar_lea.vmem %s5, %s572
        %p574 = scmp.lt.s32.totalorder %s25, 3
        %s575 = scalar_select %p574, %s25, 3
        %s576 = smul.addr %s575, 9
        %s577 = smul.addr %s576, 8
        %s578 = scalar_lea.vmem %s6, %s577
        %p579 = scmp.lt.s32.totalorder %s25, 3
        %s580 = scalar_select %p579, %s25, 3
        %s581 = smul.addr %s580, 8
        %s582 = scalar_lea.vmem %s7, %s581
        %p583 = scmp.lt.s32.totalorder %s25, 3
        %s584 = scalar_select %p583, %s25, 3
        %s585 = smul.addr %s584, 8
        %s586 = scalar_lea.vmem %s9, %s585
        %p587 = scmp.lt.s32.totalorder %s25, 3
        %s588 = scalar_select %p587, %s25, 3
        %s589 = smul.addr %s588, 8
        %s590 = scalar_lea.vmem %s11, %s589
        %p591 = scmp.eq.s32.totalorder %s25, 0
        // Predicated region
        $region85: #{attentive_nf_resnet_forward.4} parent=67 // pred_check
          %p592 = pneg %p591
        $region86: #{attentive_nf_resnet_forward.4} parent=67 // pred_check_branch
          %594 = sbr.rel (%p592) target = $region88
        $region87: #{attentive_nf_resnet_forward.4} parent=67 // pred_region
          %v595 = vld [vmem:[%s0] sm:$0xff]
          %v596 = vld [vmem:[%s0 + $0x8] sm:$0xff]
          %v597 = vld [vmem:[%s0 + $0x10] sm:$0xff]
          %v598 = vld [vmem:[%s0 + $0x18] sm:$0xff]
          %599 = vst [vmem:[#allocation2] sm:$0xff] %v595
          %600 = vst [vmem:[#allocation2 + $0x8] sm:$0xff] %v596
          %601 = vst [vmem:[#allocation2 + $0x10] sm:$0xff] %v597
          %602 = vst [vmem:[#allocation2 + $0x18] sm:$0xff] %v598
        $region88: #{attentive_nf_resnet_forward.4} parent=67 // pred_fallthru
          _
        %v603 = vld [vmem:[#allocation2] sm:$0xff]
        %v604 = vld [vmem:[#allocation2 + $0x8] sm:$0xff]
        %v605 = vld [vmem:[#allocation2 + $0x10] sm:$0xff]
        %v606 = vld [vmem:[#allocation2 + $0x18] sm:$0xff]
        %v607 = vld [vmem:[#allocation3] sm:$0xff]
        %v608 = vld [vmem:[#allocation3 + $0x8] sm:$0xff]
        %v609 = vld [vmem:[#allocation3 + $0x10] sm:$0xff]
        %v610 = vld [vmem:[#allocation3 + $0x18] sm:$0xff]
        %v611 = vld [vmem:[#allocation3 + $0x20] sm:$0xff]
        %v612 = vld [vmem:[#allocation3 + $0x28] sm:$0xff]
        %v613 = vld [vmem:[#allocation3 + $0x30] sm:$0xff]
        %v614 = vld [vmem:[#allocation3 + $0x38] sm:$0xff]
        %v615 = vld [vmem:[#allocation3 + $0x40] sm:$0xff]
        %v616 = vld [vmem:[#allocation3 + $0x48] sm:$0xff]
        %v617 = vld [vmem:[#allocation3 + $0x50] sm:$0xff]
        %v618 = vld [vmem:[#allocation3 + $0x58] sm:$0xff]
        %v619 = vld [vmem:[#allocation3 + $0x60] sm:$0xff]
        %v620 = vld [vmem:[#allocation3 + $0x68] sm:$0xff]
        %v621 = vld [vmem:[#allocation3 + $0x70] sm:$0xff]
        %v622 = vld [vmem:[#allocation3 + $0x78] sm:$0xff]
        %v623 = vld [vmem:[#allocation3 + $0x80] sm:$0xff]
        %v624 = vld [vmem:[#allocation3 + $0x88] sm:$0xff]
        %v625 = vld [vmem:[#allocation3 + $0x90] sm:$0xff]
        %v626 = vld [vmem:[#allocation3 + $0x98] sm:$0xff]
        %v627 = vld [vmem:[#allocation3 + $0xa0] sm:$0xff]
        %v628 = vld [vmem:[#allocation3 + $0xa8] sm:$0xff]
        %v629 = vld [vmem:[#allocation3 + $0xb0] sm:$0xff]
        %v630 = vld [vmem:[#allocation3 + $0xb8] sm:$0xff]
        %v631 = vld [vmem:[#allocation3 + $0xc0] sm:$0xff]
        %v632 = vld [vmem:[#allocation3 + $0xc8] sm:$0xff]
        %v633 = vld [vmem:[#allocation3 + $0xd0] sm:$0xff]
        %v634 = vld [vmem:[#allocation3 + $0xd8] sm:$0xff]
        %v635 = vld [vmem:[#allocation3 + $0xe0] sm:$0xff]
        %v636 = vld [vmem:[#allocation3 + $0xe8] sm:$0xff]
        %v637 = vld [vmem:[#allocation3 + $0xf0] sm:$0xff]
        %v638 = vld [vmem:[#allocation3 + $0xf8] sm:$0xff]
        %v639 = vld [vmem:[#allocation3 + $0x100] sm:$0xff]
        %v640 = vld [vmem:[#allocation3 + $0x108] sm:$0xff]
        %v641 = vld [vmem:[#allocation3 + $0x110] sm:$0xff]
        %v642 = vld [vmem:[#allocation3 + $0x118] sm:$0xff]
        %v643 = vld [vmem:[#allocation3 + $0x120] sm:$0xff]
        %v644 = vld [vmem:[#allocation3 + $0x128] sm:$0xff]
        %v645 = vld [vmem:[#allocation3 + $0x130] sm:$0xff]
        %v646 = vld [vmem:[#allocation3 + $0x138] sm:$0xff]
        %v647 = vld [vmem:[#allocation3 + $0x140] sm:$0xff]
        %v648 = vld [vmem:[#allocation3 + $0x148] sm:$0xff]
        %v649 = vld [vmem:[#allocation3 + $0x150] sm:$0xff]
        %v650 = vld [vmem:[#allocation3 + $0x158] sm:$0xff]
        %v651 = vld [vmem:[#allocation3 + $0x160] sm:$0xff]
        %v652 = vld [vmem:[#allocation3 + $0x168] sm:$0xff]
        %v653 = vld [vmem:[#allocation3 + $0x170] sm:$0xff]
        %v654 = vld [vmem:[#allocation3 + $0x178] sm:$0xff]
        %v655 = vld [vmem:[#allocation3 + $0x180] sm:$0xff]
        %v656 = vld [vmem:[#allocation3 + $0x188] sm:$0xff]
        %v657 = vld [vmem:[#allocation3 + $0x190] sm:$0xff]
        %v658 = vld [vmem:[#allocation3 + $0x198] sm:$0xff]
        %v659 = vld [vmem:[#allocation3 + $0x1a0] sm:$0xff]
        %v660 = vld [vmem:[#allocation3 + $0x1a8] sm:$0xff]
        %v661 = vld [vmem:[#allocation3 + $0x1b0] sm:$0xff]
        %v662 = vld [vmem:[#allocation3 + $0x1b8] sm:$0xff]
        %v663 = vld [vmem:[#allocation3 + $0x1c0] sm:$0xff]
        %v664 = vld [vmem:[#allocation3 + $0x1c8] sm:$0xff]
        %v665 = vld [vmem:[#allocation3 + $0x1d0] sm:$0xff]
        %v666 = vld [vmem:[#allocation3 + $0x1d8] sm:$0xff]
        %v667 = vld [vmem:[#allocation3 + $0x1e0] sm:$0xff]
        %v668 = vld [vmem:[#allocation3 + $0x1e8] sm:$0xff]
        %v669 = vld [vmem:[#allocation3 + $0x1f0] sm:$0xff]
        %v670 = vld [vmem:[#allocation3 + $0x1f8] sm:$0xff]
        %v671 = vld [vmem:[#allocation3 + $0x200] sm:$0xff]
        %v672 = vld [vmem:[#allocation3 + $0x208] sm:$0xff]
        %v673 = vld [vmem:[#allocation3 + $0x210] sm:$0xff]
        %v674 = vld [vmem:[#allocation3 + $0x218] sm:$0xff]
        %v675 = vld [vmem:[#allocation3 + $0x220] sm:$0xff]
        %v676 = vld [vmem:[#allocation3 + $0x228] sm:$0xff]
        %v677 = vld [vmem:[#allocation3 + $0x230] sm:$0xff]
        %v678 = vld [vmem:[#allocation3 + $0x238] sm:$0xff]
        %v679 = vld [vmem:[#allocation3 + $0x240] sm:$0xff]
        %v680 = vld [vmem:[#allocation3 + $0x248] sm:$0xff]
        %v681 = vld [vmem:[#allocation3 + $0x250] sm:$0xff]
        %v682 = vld [vmem:[#allocation3 + $0x258] sm:$0xff]
        %v683 = vld [vmem:[#allocation3 + $0x260] sm:$0xff]
        %v684 = vld [vmem:[#allocation3 + $0x268] sm:$0xff]
        %v685 = vld [vmem:[#allocation3 + $0x270] sm:$0xff]
        %v686 = vld [vmem:[#allocation3 + $0x278] sm:$0xff]
        %v687 = vld [vmem:[#allocation3 + $0x280] sm:$0xff]
        %v688 = vld [vmem:[#allocation3 + $0x288] sm:$0xff]
        %v689 = vld [vmem:[#allocation3 + $0x290] sm:$0xff]
        %v690 = vld [vmem:[#allocation3 + $0x298] sm:$0xff]
        %v691 = vld [vmem:[#allocation3 + $0x2a0] sm:$0xff]
        %v692 = vld [vmem:[#allocation3 + $0x2a8] sm:$0xff]
        %v693 = vld [vmem:[#allocation3 + $0x2b0] sm:$0xff]
        %v694 = vld [vmem:[#allocation3 + $0x2b8] sm:$0xff]
        %v695 = vld [vmem:[#allocation3 + $0x2c0] sm:$0xff]
        %v696 = vld [vmem:[#allocation3 + $0x2c8] sm:$0xff]
        %v697 = vld [vmem:[#allocation3 + $0x2d0] sm:$0xff]
        %v698 = vld [vmem:[#allocation3 + $0x2d8] sm:$0xff]
        %v699 = vld [vmem:[#allocation3 + $0x2e0] sm:$0xff]
        %v700 = vld [vmem:[#allocation3 + $0x2e8] sm:$0xff]
        %v701 = vld [vmem:[#allocation3 + $0x2f0] sm:$0xff]
        %v702 = vld [vmem:[#allocation3 + $0x2f8] sm:$0xff]
        %v703 = vld [vmem:[#allocation3 + $0x300] sm:$0xff]
        %v704 = vld [vmem:[#allocation3 + $0x308] sm:$0xff]
        %v705 = vld [vmem:[#allocation3 + $0x310] sm:$0xff]
        %v706 = vld [vmem:[#allocation3 + $0x318] sm:$0xff]
        %v707 = vld [vmem:[#allocation3 + $0x320] sm:$0xff]
        %v708 = vld [vmem:[#allocation3 + $0x328] sm:$0xff]
        %v709 = vld [vmem:[#allocation3 + $0x330] sm:$0xff]
        %v710 = vld [vmem:[#allocation3 + $0x338] sm:$0xff]
        %v711 = vld [vmem:[#allocation3 + $0x340] sm:$0xff]
        %v712 = vld [vmem:[#allocation3 + $0x348] sm:$0xff]
        %v713 = vld [vmem:[#allocation3 + $0x350] sm:$0xff]
        %v714 = vld [vmem:[#allocation3 + $0x358] sm:$0xff]
        %v715 = vld [vmem:[#allocation3 + $0x360] sm:$0xff]
        %v716 = vld [vmem:[#allocation3 + $0x368] sm:$0xff]
        %v717 = vld [vmem:[#allocation3 + $0x370] sm:$0xff]
        %v718 = vld [vmem:[#allocation3 + $0x378] sm:$0xff]
        %v719 = vld [vmem:[#allocation3 + $0x380] sm:$0xff]
        %v720 = vld [vmem:[#allocation3 + $0x388] sm:$0xff]
        %v721 = vld [vmem:[#allocation3 + $0x390] sm:$0xff]
        %v722 = vld [vmem:[#allocation3 + $0x398] sm:$0xff]
        %v723 = vld [vmem:[#allocation3 + $0x3a0] sm:$0xff]
        %v724 = vld [vmem:[#allocation3 + $0x3a8] sm:$0xff]
        %v725 = vld [vmem:[#allocation3 + $0x3b0] sm:$0xff]
        %v726 = vld [vmem:[#allocation3 + $0x3b8] sm:$0xff]
        %v727 = vld [vmem:[#allocation3 + $0x3c0] sm:$0xff]
        %v728 = vld [vmem:[#allocation3 + $0x3c8] sm:$0xff]
        %v729 = vld [vmem:[#allocation3 + $0x3d0] sm:$0xff]
        %v730 = vld [vmem:[#allocation3 + $0x3d8] sm:$0xff]
        %v731 = vld [vmem:[#allocation3 + $0x3e0] sm:$0xff]
        %v732 = vld [vmem:[#allocation3 + $0x3e8] sm:$0xff]
        %v733 = vld [vmem:[#allocation3 + $0x3f0] sm:$0xff]
        %v734 = vld [vmem:[#allocation3 + $0x3f8] sm:$0xff]
        %v735 = vld [vmem:[#allocation3 + $0x400] sm:$0xff]
        %v736 = vld [vmem:[#allocation3 + $0x408] sm:$0xff]
        %v737 = vld [vmem:[#allocation3 + $0x410] sm:$0xff]
        %v738 = vld [vmem:[#allocation3 + $0x418] sm:$0xff]
        %v739 = vld [vmem:[#allocation3 + $0x420] sm:$0xff]
        %v740 = vld [vmem:[#allocation3 + $0x428] sm:$0xff]
        %v741 = vld [vmem:[#allocation3 + $0x430] sm:$0xff]
        %v742 = vld [vmem:[#allocation3 + $0x438] sm:$0xff]
        %v743 = vld [vmem:[#allocation3 + $0x440] sm:$0xff]
        %v744 = vld [vmem:[#allocation3 + $0x448] sm:$0xff]
        %v745 = vld [vmem:[#allocation3 + $0x450] sm:$0xff]
        %v746 = vld [vmem:[#allocation3 + $0x458] sm:$0xff]
        %v747 = vld [vmem:[#allocation3 + $0x460] sm:$0xff]
        %v748 = vld [vmem:[#allocation3 + $0x468] sm:$0xff]
        %v749 = vld [vmem:[#allocation3 + $0x470] sm:$0xff]
        %v750 = vld [vmem:[#allocation3 + $0x478] sm:$0xff]
        %v751 = vld [vmem:[#allocation3 + $0x480] sm:$0xff]
        %v752 = vld [vmem:[#allocation3 + $0x488] sm:$0xff]
        %v753 = vld [vmem:[#allocation3 + $0x490] sm:$0xff]
        %v754 = vld [vmem:[#allocation3 + $0x498] sm:$0xff]
        %v755 = vld [vmem:[#allocation3 + $0x4a0] sm:$0xff]
        %v756 = vld [vmem:[#allocation3 + $0x4a8] sm:$0xff]
        %v757 = vld [vmem:[#allocation3 + $0x4b0] sm:$0xff]
        %v758 = vld [vmem:[#allocation3 + $0x4b8] sm:$0xff]
        %v759 = vld [vmem:[#allocation3 + $0x4c0] sm:$0xff]
        %v760 = vld [vmem:[#allocation3 + $0x4c8] sm:$0xff]
        %v761 = vld [vmem:[#allocation3 + $0x4d0] sm:$0xff]
        %v762 = vld [vmem:[#allocation3 + $0x4d8] sm:$0xff]
        %v763 = vld [vmem:[#allocation3 + $0x4e0] sm:$0xff]
        %v764 = vld [vmem:[#allocation3 + $0x4e8] sm:$0xff]
        %v765 = vld [vmem:[#allocation3 + $0x4f0] sm:$0xff]
        %v766 = vld [vmem:[#allocation3 + $0x4f8] sm:$0xff]
        %v767 = vld [vmem:[#allocation3 + $0x500] sm:$0xff]
        %v768 = vld [vmem:[#allocation3 + $0x508] sm:$0xff]
        %v769 = vld [vmem:[#allocation3 + $0x510] sm:$0xff]
        %v770 = vld [vmem:[#allocation3 + $0x518] sm:$0xff]
        %v771 = vld [vmem:[#allocation3 + $0x520] sm:$0xff]
        %v772 = vld [vmem:[#allocation3 + $0x528] sm:$0xff]
        %v773 = vld [vmem:[#allocation3 + $0x530] sm:$0xff]
        %v774 = vld [vmem:[#allocation3 + $0x538] sm:$0xff]
        %v775 = vld [vmem:[#allocation3 + $0x540] sm:$0xff]
        %v776 = vld [vmem:[#allocation3 + $0x548] sm:$0xff]
        %v777 = vld [vmem:[#allocation3 + $0x550] sm:$0xff]
        %v778 = vld [vmem:[#allocation3 + $0x558] sm:$0xff]
        %v779 = vld [vmem:[#allocation3 + $0x560] sm:$0xff]
        %v780 = vld [vmem:[#allocation3 + $0x568] sm:$0xff]
        %v781 = vld [vmem:[#allocation3 + $0x570] sm:$0xff]
        %v782 = vld [vmem:[#allocation3 + $0x578] sm:$0xff]
        %v783 = vld [vmem:[#allocation3 + $0x580] sm:$0xff]
        %v784 = vld [vmem:[#allocation3 + $0x588] sm:$0xff]
        %v785 = vld [vmem:[#allocation3 + $0x590] sm:$0xff]
        %v786 = vld [vmem:[#allocation3 + $0x598] sm:$0xff]
        %v787 = vld [vmem:[#allocation3 + $0x5a0] sm:$0xff]
        %v788 = vld [vmem:[#allocation3 + $0x5a8] sm:$0xff]
        %v789 = vld [vmem:[#allocation3 + $0x5b0] sm:$0xff]
        %v790 = vld [vmem:[#allocation3 + $0x5b8] sm:$0xff]
        %v791 = vld [vmem:[#allocation3 + $0x5c0] sm:$0xff]
        %v792 = vld [vmem:[#allocation3 + $0x5c8] sm:$0xff]
        %v793 = vld [vmem:[#allocation3 + $0x5d0] sm:$0xff]
        %v794 = vld [vmem:[#allocation3 + $0x5d8] sm:$0xff]
        %v795 = vld [vmem:[%s569] sm:$0xff]
        %s796 = scalar_lea.vmem %s569, 8
        %v797 = vld [vmem:[%s796] sm:$0xff]
        %802 = vrot.lane.b32.xlu0 %v603, 76
        %v803 = vpop.permute.xlu0 %802
        %804 = vrot.lane.b32.xlu0 %v604, 76
        %v805 = vpop.permute.xlu0 %804
        %806 = vrot.lane.b32.xlu0 %v605, 76
        %v807 = vpop.permute.xlu0 %806
        %808 = vrot.lane.b32.xlu0 %v606, 76
        %v809 = vpop.permute.xlu0 %808
        %vm810 = vcmask 621568
        %v811 = vsel %vm810, %v803, %v805
        %v812 = vsel %vm810, %v805, %v807
        %v813 = vsel %vm810, %v807, %v809
        %vm817 = vcmask 64512
        %v819 = vsel %vm817, %v797, 0
        %821 = vmatpush.msra.mxu0 0.0
        %822 = vmatpush.msra.mxu0 0.0
        %823 = vmatpush.msra.mxu0 0.0
        %824 = vmatpush.msra.mxu0 0.0
        %825 = vmatpush.msra.mxu0 0.0
        %826 = vmatpush.msra.mxu0 0.0
        %827 = vmatpush.msra.mxu0 0.0
        %828 = vmatpush.msra.mxu0 0.0
        %829 = vmatpush.msra.mxu0 0.0
        %830 = vmatpush.msra.mxu0 0.0
        %831 = vmatpush.msra.mxu0 0.0
        %832 = vmatpush.msra.mxu0 0.0
        %833 = vmatpush.msra.mxu0 0.0
        %834 = vmatpush.msra.mxu0 0.0
        %835 = vmatpush.msra.mxu0 0.0
        %836 = vmatpush.msra.mxu0 %v811
        %837 = vmatmul.f32.gmra.mxu0 %v819
        %v838 = vpop.f32.mrf.mxu0
        %v839 = vadd.f32 0.0, %v838
        %840 = vdwg.mxu0
        %841 = vmatpush.msra.mxu0 0.0
        %842 = vmatpush.msra.mxu0 0.0
        %843 = vmatpush.msra.mxu0 0.0
        %844 = vmatpush.msra.mxu0 0.0
        %845 = vmatpush.msra.mxu0 0.0
        %846 = vmatpush.msra.mxu0 0.0
        %847 = vmatpush.msra.mxu0 0.0
        %848 = vmatpush.msra.mxu0 0.0
        %849 = vmatpush.msra.mxu0 0.0
        %850 = vmatpush.msra.mxu0 0.0
        %851 = vmatpush.msra.mxu0 0.0
        %852 = vmatpush.msra.mxu0 0.0
        %853 = vmatpush.msra.mxu0 0.0
        %854 = vmatpush.msra.mxu0 0.0
        %855 = vmatpush.msra.mxu0 0.0
        %856 = vmatpush.msra.mxu0 %v812
        %857 = vmatmul.f32.gmra.mxu0 %v819
        %v858 = vpop.f32.mrf.mxu0
        %v859 = vadd.f32 0.0, %v858
        %860 = vdwg.mxu0
        %861 = vmatpush.msra.mxu0 0.0
        %862 = vmatpush.msra.mxu0 0.0
        %863 = vmatpush.msra.mxu0 0.0
        %864 = vmatpush.msra.mxu0 0.0
        %865 = vmatpush.msra.mxu0 0.0
        %866 = vmatpush.msra.mxu0 0.0
        %867 = vmatpush.msra.mxu0 0.0
        %868 = vmatpush.msra.mxu0 0.0
        %869 = vmatpush.msra.mxu0 0.0
        %870 = vmatpush.msra.mxu0 0.0
        %871 = vmatpush.msra.mxu0 0.0
        %872 = vmatpush.msra.mxu0 0.0
        %873 = vmatpush.msra.mxu0 0.0
        %874 = vmatpush.msra.mxu0 0.0
        %875 = vmatpush.msra.mxu0 0.0
        %876 = vmatpush.msra.mxu0 %v813
        %877 = vmatmul.f32.gmra.mxu0 %v819
        %v878 = vpop.f32.mrf.mxu0
        %v879 = vadd.f32 0.0, %v878
        %880 = vdwg.mxu0
        %881 = vrot.lane.b32.xlu0 %v603, 77
        %v882 = vpop.permute.xlu0 %881
        %883 = vrot.lane.b32.xlu0 %v604, 77
        %v884 = vpop.permute.xlu0 %883
        %885 = vrot.lane.b32.xlu0 %v605, 77
        %v886 = vpop.permute.xlu0 %885
        %887 = vrot.lane.b32.xlu0 %v606, 77
        %v888 = vpop.permute.xlu0 %887
        %vm889 = vcmask 629760
        %v890 = vsel %vm889, %v882, %v884
        %v891 = vsel %vm889, %v884, %v886
        %v892 = vsel %vm889, %v886, %v888
        %v897 = vsel %vm817, %v795, 0
        %899 = vmatpush.msra.mxu0 0.0
        %900 = vmatpush.msra.mxu0 0.0
        %901 = vmatpush.msra.mxu0 0.0
        %902 = vmatpush.msra.mxu0 0.0
        %903 = vmatpush.msra.mxu0 0.0
        %904 = vmatpush.msra.mxu0 0.0
        %905 = vmatpush.msra.mxu0 0.0
        %906 = vmatpush.msra.mxu0 0.0
        %907 = vmatpush.msra.mxu0 0.0
        %908 = vmatpush.msra.mxu0 0.0
        %909 = vmatpush.msra.mxu0 0.0
        %910 = vmatpush.msra.mxu0 0.0
        %911 = vmatpush.msra.mxu0 0.0
        %912 = vmatpush.msra.mxu0 0.0
        %913 = vmatpush.msra.mxu0 0.0
        %914 = vmatpush.msra.mxu0 %v890
        %915 = vmatmul.f32.gmra.mxu0 %v897
        %v916 = vpop.f32.mrf.mxu0
        %v917 = vadd.f32 %v839, %v916
        %918 = vdwg.mxu0
        %919 = vmatpush.msra.mxu0 0.0
        %920 = vmatpush.msra.mxu0 0.0
        %921 = vmatpush.msra.mxu0 0.0
        %922 = vmatpush.msra.mxu0 0.0
        %923 = vmatpush.msra.mxu0 0.0
        %924 = vmatpush.msra.mxu0 0.0
        %925 = vmatpush.msra.mxu0 0.0
        %926 = vmatpush.msra.mxu0 0.0
        %927 = vmatpush.msra.mxu0 0.0
        %928 = vmatpush.msra.mxu0 0.0
        %929 = vmatpush.msra.mxu0 0.0
        %930 = vmatpush.msra.mxu0 0.0
        %931 = vmatpush.msra.mxu0 0.0
        %932 = vmatpush.msra.mxu0 0.0
        %933 = vmatpush.msra.mxu0 0.0
        %934 = vmatpush.msra.mxu0 %v891
        %935 = vmatmul.f32.gmra.mxu0 %v897
        %v936 = vpop.f32.mrf.mxu0
        %v937 = vadd.f32 %v859, %v936
        %938 = vdwg.mxu0
        %939 = vmatpush.msra.mxu0 0.0
        %940 = vmatpush.msra.mxu0 0.0
        %941 = vmatpush.msra.mxu0 0.0
        %942 = vmatpush.msra.mxu0 0.0
        %943 = vmatpush.msra.mxu0 0.0
        %944 = vmatpush.msra.mxu0 0.0
        %945 = vmatpush.msra.mxu0 0.0
        %946 = vmatpush.msra.mxu0 0.0
        %947 = vmatpush.msra.mxu0 0.0
        %948 = vmatpush.msra.mxu0 0.0
        %949 = vmatpush.msra.mxu0 0.0
        %950 = vmatpush.msra.mxu0 0.0
        %951 = vmatpush.msra.mxu0 0.0
        %952 = vmatpush.msra.mxu0 0.0
        %953 = vmatpush.msra.mxu0 0.0
        %954 = vmatpush.msra.mxu0 %v892
        %955 = vmatmul.f32.gmra.mxu0 %v897
        %v956 = vpop.f32.mrf.mxu0
        %v957 = vadd.f32 %v879, %v956
        %958 = vdwg.mxu0
        %s959 = scalar_lea.vmem %s569, 16
        %v960 = vld [vmem:[%s959] sm:$0xff]
        %961 = vrot.lane.b32.xlu0 %v603, 75
        %v962 = vpop.permute.xlu0 %961
        %963 = vrot.lane.b32.xlu0 %v604, 75
        %v964 = vpop.permute.xlu0 %963
        %965 = vrot.lane.b32.xlu0 %v605, 75
        %v966 = vpop.permute.xlu0 %965
        %967 = vrot.lane.b32.xlu0 %v606, 75
        %v968 = vpop.permute.xlu0 %967
        %vm969 = vcmask 613376
        %v970 = vsel %vm969, %v962, %v964
        %v971 = vsel %vm969, %v964, %v966
        %v972 = vsel %vm969, %v966, %v968
        %v977 = vsel %vm817, %v960, 0
        %979 = vmatpush.msra.mxu0 0.0
        %980 = vmatpush.msra.mxu0 0.0
        %981 = vmatpush.msra.mxu0 0.0
        %982 = vmatpush.msra.mxu0 0.0
        %983 = vmatpush.msra.mxu0 0.0
        %984 = vmatpush.msra.mxu0 0.0
        %985 = vmatpush.msra.mxu0 0.0
        %986 = vmatpush.msra.mxu0 0.0
        %987 = vmatpush.msra.mxu0 0.0
        %988 = vmatpush.msra.mxu0 0.0
        %989 = vmatpush.msra.mxu0 0.0
        %990 = vmatpush.msra.mxu0 0.0
        %991 = vmatpush.msra.mxu0 0.0
        %992 = vmatpush.msra.mxu0 0.0
        %993 = vmatpush.msra.mxu0 0.0
        %994 = vmatpush.msra.mxu0 %v970
        %995 = vmatmul.f32.gmra.mxu0 %v977
        %v996 = vpop.f32.mrf.mxu0
        %v997 = vadd.f32 0.0, %v996
        %998 = vdwg.mxu0
        %999 = vmatpush.msra.mxu0 0.0
        %1000 = vmatpush.msra.mxu0 0.0
        %1001 = vmatpush.msra.mxu0 0.0
        %1002 = vmatpush.msra.mxu0 0.0
        %1003 = vmatpush.msra.mxu0 0.0
        %1004 = vmatpush.msra.mxu0 0.0
        %1005 = vmatpush.msra.mxu0 0.0
        %1006 = vmatpush.msra.mxu0 0.0
        %1007 = vmatpush.msra.mxu0 0.0
        %1008 = vmatpush.msra.mxu0 0.0
        %1009 = vmatpush.msra.mxu0 0.0
        %1010 = vmatpush.msra.mxu0 0.0
        %1011 = vmatpush.msra.mxu0 0.0
        %1012 = vmatpush.msra.mxu0 0.0
        %1013 = vmatpush.msra.mxu0 0.0
        %1014 = vmatpush.msra.mxu0 %v971
        %1015 = vmatmul.f32.gmra.mxu0 %v977
        %v1016 = vpop.f32.mrf.mxu0
        %v1017 = vadd.f32 0.0, %v1016
        %1018 = vdwg.mxu0
        %1019 = vmatpush.msra.mxu0 0.0
        %1020 = vmatpush.msra.mxu0 0.0
        %1021 = vmatpush.msra.mxu0 0.0
        %1022 = vmatpush.msra.mxu0 0.0
        %1023 = vmatpush.msra.mxu0 0.0
        %1024 = vmatpush.msra.mxu0 0.0
        %1025 = vmatpush.msra.mxu0 0.0
        %1026 = vmatpush.msra.mxu0 0.0
        %1027 = vmatpush.msra.mxu0 0.0
        %1028 = vmatpush.msra.mxu0 0.0
        %1029 = vmatpush.msra.mxu0 0.0
        %1030 = vmatpush.msra.mxu0 0.0
        %1031 = vmatpush.msra.mxu0 0.0
        %1032 = vmatpush.msra.mxu0 0.0
        %1033 = vmatpush.msra.mxu0 0.0
        %1034 = vmatpush.msra.mxu0 %v972
        %1035 = vmatmul.f32.gmra.mxu0 %v977
        %v1036 = vpop.f32.mrf.mxu0
        %v1037 = vadd.f32 0.0, %v1036
        %1038 = vdwg.mxu0
        %v1039 = vadd.f32 %v917, %v997
        %v1040 = vadd.f32 %v937, %v1017
        %v1041 = vadd.f32 %v957, %v1037
        %s1042 = scalar_lea.vmem %s569, 24
        %v1043 = vld [vmem:[%s1042] sm:$0xff]
        %1044 = vrot.lane.b32.xlu0 %v603, 61
        %v1045 = vpop.permute.xlu0 %1044
        %1046 = vrot.lane.b32.xlu0 %v604, 61
        %v1047 = vpop.permute.xlu0 %1046
        %1048 = vrot.lane.b32.xlu0 %v605, 61
        %v1049 = vpop.permute.xlu0 %1048
        %1050 = vrot.lane.b32.xlu0 %v606, 61
        %v1051 = vpop.permute.xlu0 %1050
        %vm1052 = vcmask 498688
        %v1053 = vsel %vm1052, %v1045, %v1047
        %v1054 = vsel %vm1052, %v1047, %v1049
        %v1055 = vsel %vm1052, %v1049, %v1051
        %v1060 = vsel %vm817, %v1043, 0
        %1062 = vmatpush.msra.mxu0 0.0
        %1063 = vmatpush.msra.mxu0 0.0
        %1064 = vmatpush.msra.mxu0 0.0
        %1065 = vmatpush.msra.mxu0 0.0
        %1066 = vmatpush.msra.mxu0 0.0
        %1067 = vmatpush.msra.mxu0 0.0
        %1068 = vmatpush.msra.mxu0 0.0
        %1069 = vmatpush.msra.mxu0 0.0
        %1070 = vmatpush.msra.mxu0 0.0
        %1071 = vmatpush.msra.mxu0 0.0
        %1072 = vmatpush.msra.mxu0 0.0
        %1073 = vmatpush.msra.mxu0 0.0
        %1074 = vmatpush.msra.mxu0 0.0
        %1075 = vmatpush.msra.mxu0 0.0
        %1076 = vmatpush.msra.mxu0 0.0
        %1077 = vmatpush.msra.mxu0 %v1053
        %1078 = vmatmul.f32.gmra.mxu0 %v1060
        %v1079 = vpop.f32.mrf.mxu0
        %v1080 = vadd.f32 0.0, %v1079
        %1081 = vdwg.mxu0
        %1082 = vmatpush.msra.mxu0 0.0
        %1083 = vmatpush.msra.mxu0 0.0
        %1084 = vmatpush.msra.mxu0 0.0
        %1085 = vmatpush.msra.mxu0 0.0
        %1086 = vmatpush.msra.mxu0 0.0
        %1087 = vmatpush.msra.mxu0 0.0
        %1088 = vmatpush.msra.mxu0 0.0
        %1089 = vmatpush.msra.mxu0 0.0
        %1090 = vmatpush.msra.mxu0 0.0
        %1091 = vmatpush.msra.mxu0 0.0
        %1092 = vmatpush.msra.mxu0 0.0
        %1093 = vmatpush.msra.mxu0 0.0
        %1094 = vmatpush.msra.mxu0 0.0
        %1095 = vmatpush.msra.mxu0 0.0
        %1096 = vmatpush.msra.mxu0 0.0
        %1097 = vmatpush.msra.mxu0 %v1054
        %1098 = vmatmul.f32.gmra.mxu0 %v1060
        %v1099 = vpop.f32.mrf.mxu0
        %v1100 = vadd.f32 0.0, %v1099
        %1101 = vdwg.mxu0
        %1102 = vmatpush.msra.mxu0 0.0
        %1103 = vmatpush.msra.mxu0 0.0
        %1104 = vmatpush.msra.mxu0 0.0
        %1105 = vmatpush.msra.mxu0 0.0
        %1106 = vmatpush.msra.mxu0 0.0
        %1107 = vmatpush.msra.mxu0 0.0
        %1108 = vmatpush.msra.mxu0 0.0
        %1109 = vmatpush.msra.mxu0 0.0
        %1110 = vmatpush.msra.mxu0 0.0
        %1111 = vmatpush.msra.mxu0 0.0
        %1112 = vmatpush.msra.mxu0 0.0
        %1113 = vmatpush.msra.mxu0 0.0
        %1114 = vmatpush.msra.mxu0 0.0
        %1115 = vmatpush.msra.mxu0 0.0
        %1116 = vmatpush.msra.mxu0 0.0
        %1117 = vmatpush.msra.mxu0 %v1055
        %1118 = vmatmul.f32.gmra.mxu0 %v1060
        %v1119 = vpop.f32.mrf.mxu0
        %v1120 = vadd.f32 0.0, %v1119
        %1121 = vdwg.mxu0
        %v1122 = vadd.f32 %v1039, %v1080
        %v1123 = vadd.f32 %v1040, %v1100
        %v1124 = vadd.f32 %v1041, %v1120
        %s1125 = scalar_lea.vmem %s569, 32
        %v1126 = vld [vmem:[%s1125] sm:$0xff]
        %1127 = vrot.lane.b32.xlu0 %v603, 60
        %v1128 = vpop.permute.xlu0 %1127
        %1129 = vrot.lane.b32.xlu0 %v604, 60
        %v1130 = vpop.permute.xlu0 %1129
        %1131 = vrot.lane.b32.xlu0 %v605, 60
        %v1132 = vpop.permute.xlu0 %1131
        %1133 = vrot.lane.b32.xlu0 %v606, 60
        %v1134 = vpop.permute.xlu0 %1133
        %vm1135 = vcmask 490496
        %v1136 = vsel %vm1135, %v1128, %v1130
        %v1137 = vsel %vm1135, %v1130, %v1132
        %v1138 = vsel %vm1135, %v1132, %v1134
        %v1143 = vsel %vm817, %v1126, 0
        %1145 = vmatpush.msra.mxu0 0.0
        %1146 = vmatpush.msra.mxu0 0.0
        %1147 = vmatpush.msra.mxu0 0.0
        %1148 = vmatpush.msra.mxu0 0.0
        %1149 = vmatpush.msra.mxu0 0.0
        %1150 = vmatpush.msra.mxu0 0.0
        %1151 = vmatpush.msra.mxu0 0.0
        %1152 = vmatpush.msra.mxu0 0.0
        %1153 = vmatpush.msra.mxu0 0.0
        %1154 = vmatpush.msra.mxu0 0.0
        %1155 = vmatpush.msra.mxu0 0.0
        %1156 = vmatpush.msra.mxu0 0.0
        %1157 = vmatpush.msra.mxu0 0.0
        %1158 = vmatpush.msra.mxu0 0.0
        %1159 = vmatpush.msra.mxu0 0.0
        %1160 = vmatpush.msra.mxu0 %v1136
        %1161 = vmatmul.f32.gmra.mxu0 %v1143
        %v1162 = vpop.f32.mrf.mxu0
        %v1163 = vadd.f32 0.0, %v1162
        %1164 = vdwg.mxu0
        %1165 = vmatpush.msra.mxu0 0.0
        %1166 = vmatpush.msra.mxu0 0.0
        %1167 = vmatpush.msra.mxu0 0.0
        %1168 = vmatpush.msra.mxu0 0.0
        %1169 = vmatpush.msra.mxu0 0.0
        %1170 = vmatpush.msra.mxu0 0.0
        %1171 = vmatpush.msra.mxu0 0.0
        %1172 = vmatpush.msra.mxu0 0.0
        %1173 = vmatpush.msra.mxu0 0.0
        %1174 = vmatpush.msra.mxu0 0.0
        %1175 = vmatpush.msra.mxu0 0.0
        %1176 = vmatpush.msra.mxu0 0.0
        %1177 = vmatpush.msra.mxu0 0.0
        %1178 = vmatpush.msra.mxu0 0.0
        %1179 = vmatpush.msra.mxu0 0.0
        %1180 = vmatpush.msra.mxu0 %v1137
        %1181 = vmatmul.f32.gmra.mxu0 %v1143
        %v1182 = vpop.f32.mrf.mxu0
        %v1183 = vadd.f32 0.0, %v1182
        %1184 = vdwg.mxu0
        %1185 = vmatpush.msra.mxu0 0.0
        %1186 = vmatpush.msra.mxu0 0.0
        %1187 = vmatpush.msra.mxu0 0.0
        %1188 = vmatpush.msra.mxu0 0.0
        %1189 = vmatpush.msra.mxu0 0.0
        %1190 = vmatpush.msra.mxu0 0.0
        %1191 = vmatpush.msra.mxu0 0.0
        %1192 = vmatpush.msra.mxu0 0.0
        %1193 = vmatpush.msra.mxu0 0.0
        %1194 = vmatpush.msra.mxu0 0.0
        %1195 = vmatpush.msra.mxu0 0.0
        %1196 = vmatpush.msra.mxu0 0.0
        %1197 = vmatpush.msra.mxu0 0.0
        %1198 = vmatpush.msra.mxu0 0.0
        %1199 = vmatpush.msra.mxu0 0.0
        %1200 = vmatpush.msra.mxu0 %v1138
        %1201 = vmatmul.f32.gmra.mxu0 %v1143
        %v1202 = vpop.f32.mrf.mxu0
        %v1203 = vadd.f32 0.0, %v1202
        %1204 = vdwg.mxu0
        %v1205 = vadd.f32 %v1122, %v1163
        %v1206 = vadd.f32 %v1123, %v1183
        %v1207 = vadd.f32 %v1124, %v1203
        %s1208 = scalar_lea.vmem %s569, 40
        %v1209 = vld [vmem:[%s1208] sm:$0xff]
        %1210 = vrot.lane.b32.xlu0 %v603, 59
        %v1211 = vpop.permute.xlu0 %1210
        %1212 = vrot.lane.b32.xlu0 %v604, 59
        %v1213 = vpop.permute.xlu0 %1212
        %1214 = vrot.lane.b32.xlu0 %v605, 59
        %v1215 = vpop.permute.xlu0 %1214
        %1216 = vrot.lane.b32.xlu0 %v606, 59
        %v1217 = vpop.permute.xlu0 %1216
        %vm1218 = vcmask 482304
        %v1219 = vsel %vm1218, %v1211, %v1213
        %v1220 = vsel %vm1218, %v1213, %v1215
        %v1221 = vsel %vm1218, %v1215, %v1217
        %v1226 = vsel %vm817, %v1209, 0
        %1228 = vmatpush.msra.mxu0 0.0
        %1229 = vmatpush.msra.mxu0 0.0
        %1230 = vmatpush.msra.mxu0 0.0
        %1231 = vmatpush.msra.mxu0 0.0
        %1232 = vmatpush.msra.mxu0 0.0
        %1233 = vmatpush.msra.mxu0 0.0
        %1234 = vmatpush.msra.mxu0 0.0
        %1235 = vmatpush.msra.mxu0 0.0
        %1236 = vmatpush.msra.mxu0 0.0
        %1237 = vmatpush.msra.mxu0 0.0
        %1238 = vmatpush.msra.mxu0 0.0
        %1239 = vmatpush.msra.mxu0 0.0
        %1240 = vmatpush.msra.mxu0 0.0
        %1241 = vmatpush.msra.mxu0 0.0
        %1242 = vmatpush.msra.mxu0 0.0
        %1243 = vmatpush.msra.mxu0 %v1219
        %1244 = vmatmul.f32.gmra.mxu0 %v1226
        %v1245 = vpop.f32.mrf.mxu0
        %v1246 = vadd.f32 0.0, %v1245
        %1247 = vdwg.mxu0
        %1248 = vmatpush.msra.mxu0 0.0
        %1249 = vmatpush.msra.mxu0 0.0
        %1250 = vmatpush.msra.mxu0 0.0
        %1251 = vmatpush.msra.mxu0 0.0
        %1252 = vmatpush.msra.mxu0 0.0
        %1253 = vmatpush.msra.mxu0 0.0
        %1254 = vmatpush.msra.mxu0 0.0
        %1255 = vmatpush.msra.mxu0 0.0
        %1256 = vmatpush.msra.mxu0 0.0
        %1257 = vmatpush.msra.mxu0 0.0
        %1258 = vmatpush.msra.mxu0 0.0
        %1259 = vmatpush.msra.mxu0 0.0
        %1260 = vmatpush.msra.mxu0 0.0
        %1261 = vmatpush.msra.mxu0 0.0
        %1262 = vmatpush.msra.mxu0 0.0
        %1263 = vmatpush.msra.mxu0 %v1220
        %1264 = vmatmul.f32.gmra.mxu0 %v1226
        %v1265 = vpop.f32.mrf.mxu0
        %v1266 = vadd.f32 0.0, %v1265
        %1267 = vdwg.mxu0
        %1268 = vmatpush.msra.mxu0 0.0
        %1269 = vmatpush.msra.mxu0 0.0
        %1270 = vmatpush.msra.mxu0 0.0
        %1271 = vmatpush.msra.mxu0 0.0
        %1272 = vmatpush.msra.mxu0 0.0
        %1273 = vmatpush.msra.mxu0 0.0
        %1274 = vmatpush.msra.mxu0 0.0
        %1275 = vmatpush.msra.mxu0 0.0
        %1276 = vmatpush.msra.mxu0 0.0
        %1277 = vmatpush.msra.mxu0 0.0
        %1278 = vmatpush.msra.mxu0 0.0
        %1279 = vmatpush.msra.mxu0 0.0
        %1280 = vmatpush.msra.mxu0 0.0
        %1281 = vmatpush.msra.mxu0 0.0
        %1282 = vmatpush.msra.mxu0 0.0
        %1283 = vmatpush.msra.mxu0 %v1221
        %1284 = vmatmul.f32.gmra.mxu0 %v1226
        %v1285 = vpop.f32.mrf.mxu0
        %v1286 = vadd.f32 0.0, %v1285
        %1287 = vdwg.mxu0
        %v1288 = vadd.f32 %v1205, %v1246
        %v1289 = vadd.f32 %v1206, %v1266
        %v1290 = vadd.f32 %v1207, %v1286
        %s1291 = scalar_lea.vmem %s569, 48
        %v1292 = vld [vmem:[%s1291] sm:$0xff]
        %1293 = vrot.lane.b32.xlu0 %v603, 45
        %v1294 = vpop.permute.xlu0 %1293
        %1295 = vrot.lane.b32.xlu0 %v604, 45
        %v1296 = vpop.permute.xlu0 %1295
        %1297 = vrot.lane.b32.xlu0 %v605, 45
        %v1298 = vpop.permute.xlu0 %1297
        %1299 = vrot.lane.b32.xlu0 %v606, 45
        %v1300 = vpop.permute.xlu0 %1299
        %vm1301 = vcmask 367616
        %v1302 = vsel %vm1301, %v1294, %v1296
        %v1303 = vsel %vm1301, %v1296, %v1298
        %v1304 = vsel %vm1301, %v1298, %v1300
        %v1309 = vsel %vm817, %v1292, 0
        %1311 = vmatpush.msra.mxu0 0.0
        %1312 = vmatpush.msra.mxu0 0.0
        %1313 = vmatpush.msra.mxu0 0.0
        %1314 = vmatpush.msra.mxu0 0.0
        %1315 = vmatpush.msra.mxu0 0.0
        %1316 = vmatpush.msra.mxu0 0.0
        %1317 = vmatpush.msra.mxu0 0.0
        %1318 = vmatpush.msra.mxu0 0.0
        %1319 = vmatpush.msra.mxu0 0.0
        %1320 = vmatpush.msra.mxu0 0.0
        %1321 = vmatpush.msra.mxu0 0.0
        %1322 = vmatpush.msra.mxu0 0.0
        %1323 = vmatpush.msra.mxu0 0.0
        %1324 = vmatpush.msra.mxu0 0.0
        %1325 = vmatpush.msra.mxu0 0.0
        %1326 = vmatpush.msra.mxu0 %v1302
        %1327 = vmatmul.f32.gmra.mxu0 %v1309
        %v1328 = vpop.f32.mrf.mxu0
        %v1329 = vadd.f32 0.0, %v1328
        %1330 = vdwg.mxu0
        %1331 = vmatpush.msra.mxu0 0.0
        %1332 = vmatpush.msra.mxu0 0.0
        %1333 = vmatpush.msra.mxu0 0.0
        %1334 = vmatpush.msra.mxu0 0.0
        %1335 = vmatpush.msra.mxu0 0.0
        %1336 = vmatpush.msra.mxu0 0.0
        %1337 = vmatpush.msra.mxu0 0.0
        %1338 = vmatpush.msra.mxu0 0.0
        %1339 = vmatpush.msra.mxu0 0.0
        %1340 = vmatpush.msra.mxu0 0.0
        %1341 = vmatpush.msra.mxu0 0.0
        %1342 = vmatpush.msra.mxu0 0.0
        %1343 = vmatpush.msra.mxu0 0.0
        %1344 = vmatpush.msra.mxu0 0.0
        %1345 = vmatpush.msra.mxu0 0.0
        %1346 = vmatpush.msra.mxu0 %v1303
        %1347 = vmatmul.f32.gmra.mxu0 %v1309
        %v1348 = vpop.f32.mrf.mxu0
        %v1349 = vadd.f32 0.0, %v1348
        %1350 = vdwg.mxu0
        %1351 = vmatpush.msra.mxu0 0.0
        %1352 = vmatpush.msra.mxu0 0.0
        %1353 = vmatpush.msra.mxu0 0.0
        %1354 = vmatpush.msra.mxu0 0.0
        %1355 = vmatpush.msra.mxu0 0.0
        %1356 = vmatpush.msra.mxu0 0.0
        %1357 = vmatpush.msra.mxu0 0.0
        %1358 = vmatpush.msra.mxu0 0.0
        %1359 = vmatpush.msra.mxu0 0.0
        %1360 = vmatpush.msra.mxu0 0.0
        %1361 = vmatpush.msra.mxu0 0.0
        %1362 = vmatpush.msra.mxu0 0.0
        %1363 = vmatpush.msra.mxu0 0.0
        %1364 = vmatpush.msra.mxu0 0.0
        %1365 = vmatpush.msra.mxu0 0.0
        %1366 = vmatpush.msra.mxu0 %v1304
        %1367 = vmatmul.f32.gmra.mxu0 %v1309
        %v1368 = vpop.f32.mrf.mxu0
        %v1369 = vadd.f32 0.0, %v1368
        %1370 = vdwg.mxu0
        %v1371 = vadd.f32 %v1288, %v1329
        %v1372 = vadd.f32 %v1289, %v1349
        %v1373 = vadd.f32 %v1290, %v1369
        %s1374 = scalar_lea.vmem %s569, 56
        %v1375 = vld [vmem:[%s1374] sm:$0xff]
        %1376 = vrot.lane.b32.xlu0 %v603, 44
        %v1377 = vpop.permute.xlu0 %1376
        %1378 = vrot.lane.b32.xlu0 %v604, 44
        %v1379 = vpop.permute.xlu0 %1378
        %1380 = vrot.lane.b32.xlu0 %v605, 44
        %v1381 = vpop.permute.xlu0 %1380
        %1382 = vrot.lane.b32.xlu0 %v606, 44
        %v1383 = vpop.permute.xlu0 %1382
        %vm1384 = vcmask 359424
        %v1385 = vsel %vm1384, %v1377, %v1379
        %v1386 = vsel %vm1384, %v1379, %v1381
        %v1387 = vsel %vm1384, %v1381, %v1383
        %v1392 = vsel %vm817, %v1375, 0
        %1394 = vmatpush.msra.mxu0 0.0
        %1395 = vmatpush.msra.mxu0 0.0
        %1396 = vmatpush.msra.mxu0 0.0
        %1397 = vmatpush.msra.mxu0 0.0
        %1398 = vmatpush.msra.mxu0 0.0
        %1399 = vmatpush.msra.mxu0 0.0
        %1400 = vmatpush.msra.mxu0 0.0
        %1401 = vmatpush.msra.mxu0 0.0
        %1402 = vmatpush.msra.mxu0 0.0
        %1403 = vmatpush.msra.mxu0 0.0
        %1404 = vmatpush.msra.mxu0 0.0
        %1405 = vmatpush.msra.mxu0 0.0
        %1406 = vmatpush.msra.mxu0 0.0
        %1407 = vmatpush.msra.mxu0 0.0
        %1408 = vmatpush.msra.mxu0 0.0
        %1409 = vmatpush.msra.mxu0 %v1385
        %1410 = vmatmul.f32.gmra.mxu0 %v1392
        %v1411 = vpop.f32.mrf.mxu0
        %v1412 = vadd.f32 0.0, %v1411
        %1413 = vdwg.mxu0
        %1414 = vmatpush.msra.mxu0 0.0
        %1415 = vmatpush.msra.mxu0 0.0
        %1416 = vmatpush.msra.mxu0 0.0
        %1417 = vmatpush.msra.mxu0 0.0
        %1418 = vmatpush.msra.mxu0 0.0
        %1419 = vmatpush.msra.mxu0 0.0
        %1420 = vmatpush.msra.mxu0 0.0
        %1421 = vmatpush.msra.mxu0 0.0
        %1422 = vmatpush.msra.mxu0 0.0
        %1423 = vmatpush.msra.mxu0 0.0
        %1424 = vmatpush.msra.mxu0 0.0
        %1425 = vmatpush.msra.mxu0 0.0
        %1426 = vmatpush.msra.mxu0 0.0
        %1427 = vmatpush.msra.mxu0 0.0
        %1428 = vmatpush.msra.mxu0 0.0
        %1429 = vmatpush.msra.mxu0 %v1386
        %1430 = vmatmul.f32.gmra.mxu0 %v1392
        %v1431 = vpop.f32.mrf.mxu0
        %v1432 = vadd.f32 0.0, %v1431
        %1433 = vdwg.mxu0
        %1434 = vmatpush.msra.mxu0 0.0
        %1435 = vmatpush.msra.mxu0 0.0
        %1436 = vmatpush.msra.mxu0 0.0
        %1437 = vmatpush.msra.mxu0 0.0
        %1438 = vmatpush.msra.mxu0 0.0
        %1439 = vmatpush.msra.mxu0 0.0
        %1440 = vmatpush.msra.mxu0 0.0
        %1441 = vmatpush.msra.mxu0 0.0
        %1442 = vmatpush.msra.mxu0 0.0
        %1443 = vmatpush.msra.mxu0 0.0
        %1444 = vmatpush.msra.mxu0 0.0
        %1445 = vmatpush.msra.mxu0 0.0
        %1446 = vmatpush.msra.mxu0 0.0
        %1447 = vmatpush.msra.mxu0 0.0
        %1448 = vmatpush.msra.mxu0 0.0
        %1449 = vmatpush.msra.mxu0 %v1387
        %1450 = vmatmul.f32.gmra.mxu0 %v1392
        %v1451 = vpop.f32.mrf.mxu0
        %v1452 = vadd.f32 0.0, %v1451
        %1453 = vdwg.mxu0
        %v1454 = vadd.f32 %v1371, %v1412
        %v1455 = vadd.f32 %v1372, %v1432
        %v1456 = vadd.f32 %v1373, %v1452
        %s1457 = scalar_lea.vmem %s569, 64
        %v1458 = vld [vmem:[%s1457] sm:$0xff]
        %1459 = vrot.lane.b32.xlu0 %v603, 43
        %v1460 = vpop.permute.xlu0 %1459
        %1461 = vrot.lane.b32.xlu0 %v604, 43
        %v1462 = vpop.permute.xlu0 %1461
        %1463 = vrot.lane.b32.xlu0 %v605, 43
        %v1464 = vpop.permute.xlu0 %1463
        %1465 = vrot.lane.b32.xlu0 %v606, 43
        %v1466 = vpop.permute.xlu0 %1465
        %vm1467 = vcmask 351232
        %v1468 = vsel %vm1467, %v1460, %v1462
        %v1469 = vsel %vm1467, %v1462, %v1464
        %v1470 = vsel %vm1467, %v1464, %v1466
        %v1475 = vsel %vm817, %v1458, 0
        %1477 = vmatpush.msra.mxu0 0.0
        %1478 = vmatpush.msra.mxu0 0.0
        %1479 = vmatpush.msra.mxu0 0.0
        %1480 = vmatpush.msra.mxu0 0.0
        %1481 = vmatpush.msra.mxu0 0.0
        %1482 = vmatpush.msra.mxu0 0.0
        %1483 = vmatpush.msra.mxu0 0.0
        %1484 = vmatpush.msra.mxu0 0.0
        %1485 = vmatpush.msra.mxu0 0.0
        %1486 = vmatpush.msra.mxu0 0.0
        %1487 = vmatpush.msra.mxu0 0.0
        %1488 = vmatpush.msra.mxu0 0.0
        %1489 = vmatpush.msra.mxu0 0.0
        %1490 = vmatpush.msra.mxu0 0.0
        %1491 = vmatpush.msra.mxu0 0.0
        %1492 = vmatpush.msra.mxu0 %v1468
        %1493 = vmatmul.f32.gmra.mxu0 %v1475
        %v1494 = vpop.f32.mrf.mxu0
        %v1495 = vadd.f32 0.0, %v1494
        %1496 = vdwg.mxu0
        %1497 = vmatpush.msra.mxu0 0.0
        %1498 = vmatpush.msra.mxu0 0.0
        %1499 = vmatpush.msra.mxu0 0.0
        %1500 = vmatpush.msra.mxu0 0.0
        %1501 = vmatpush.msra.mxu0 0.0
        %1502 = vmatpush.msra.mxu0 0.0
        %1503 = vmatpush.msra.mxu0 0.0
        %1504 = vmatpush.msra.mxu0 0.0
        %1505 = vmatpush.msra.mxu0 0.0
        %1506 = vmatpush.msra.mxu0 0.0
        %1507 = vmatpush.msra.mxu0 0.0
        %1508 = vmatpush.msra.mxu0 0.0
        %1509 = vmatpush.msra.mxu0 0.0
        %1510 = vmatpush.msra.mxu0 0.0
        %1511 = vmatpush.msra.mxu0 0.0
        %1512 = vmatpush.msra.mxu0 %v1469
        %1513 = vmatmul.f32.gmra.mxu0 %v1475
        %v1514 = vpop.f32.mrf.mxu0
        %v1515 = vadd.f32 0.0, %v1514
        %1516 = vdwg.mxu0
        %1517 = vmatpush.msra.mxu0 0.0
        %1518 = vmatpush.msra.mxu0 0.0
        %1519 = vmatpush.msra.mxu0 0.0
        %1520 = vmatpush.msra.mxu0 0.0
        %1521 = vmatpush.msra.mxu0 0.0
        %1522 = vmatpush.msra.mxu0 0.0
        %1523 = vmatpush.msra.mxu0 0.0
        %1524 = vmatpush.msra.mxu0 0.0
        %1525 = vmatpush.msra.mxu0 0.0
        %1526 = vmatpush.msra.mxu0 0.0
        %1527 = vmatpush.msra.mxu0 0.0
        %1528 = vmatpush.msra.mxu0 0.0
        %1529 = vmatpush.msra.mxu0 0.0
        %1530 = vmatpush.msra.mxu0 0.0
        %1531 = vmatpush.msra.mxu0 0.0
        %1532 = vmatpush.msra.mxu0 %v1470
        %1533 = vmatmul.f32.gmra.mxu0 %v1475
        %v1534 = vpop.f32.mrf.mxu0
        %v1535 = vadd.f32 0.0, %v1534
        %1536 = vdwg.mxu0
        %v1537 = vadd.f32 %v1454, %v1495
        %v1538 = vadd.f32 %v1455, %v1515
        %v1539 = vadd.f32 %v1456, %v1535
        %v1540 = vld [vmem:[%s573] sm:$0xff]
        %1542 = vset.pattern.permute.xlu0 0
        %1543 = vperm.xlu0 %1542, %v1540
        %v1544 = vpop.permute.xlu0 %1543
        %v1546 = vadd.f32 %v1537, %v1544
        %v1547 = vadd.f32 %v1538, %v1544
        %v1548 = vadd.f32 %v1539, %v1544
        %v1549 = vmax.f32 %v1546, 0.0
        %v1550 = vmax.f32 %v1547, 0.0
        %v1551 = vmax.f32 %v1548, 0.0
        %vm1552 = vcmask 982016
        %v1554 = vsel %vm1552, %v1551, 0
        %1556 = vmatpush.msra.mxu0 %v667
        %1557 = vmatpush.msra.mxu0 %v663
        %1558 = vmatpush.msra.mxu0 %v659
        %1559 = vmatpush.msra.mxu0 %v655
        %1560 = vmatpush.msra.mxu0 %v651
        %1561 = vmatpush.msra.mxu0 %v647
        %1562 = vmatpush.msra.mxu0 %v643
        %1563 = vmatpush.msra.mxu0 %v639
        %1564 = vmatpush.msra.mxu0 %v635
        %1565 = vmatpush.msra.mxu0 %v631
        %1566 = vmatpush.msra.mxu0 %v627
        %1567 = vmatpush.msra.mxu0 %v623
        %1568 = vmatpush.msra.mxu0 %v619
        %1569 = vmatpush.msra.mxu0 %v615
        %1570 = vmatpush.msra.mxu0 %v611
        %1571 = vmatpush.msra.mxu0 %v607
        %1572 = vmatmul.f32.gmra.mxu0 %v1549
        %v1573 = vpop.f32.mrf.mxu0
        %v1574 = vadd.f32 0.0, %v1573
        %1575 = vdwg.mxu0
        %1576 = vmatpush.msra.mxu0 %v731
        %1577 = vmatpush.msra.mxu0 %v727
        %1578 = vmatpush.msra.mxu0 %v723
        %1579 = vmatpush.msra.mxu0 %v719
        %1580 = vmatpush.msra.mxu0 %v715
        %1581 = vmatpush.msra.mxu0 %v711
        %1582 = vmatpush.msra.mxu0 %v707
        %1583 = vmatpush.msra.mxu0 %v703
        %1584 = vmatpush.msra.mxu0 %v699
        %1585 = vmatpush.msra.mxu0 %v695
        %1586 = vmatpush.msra.mxu0 %v691
        %1587 = vmatpush.msra.mxu0 %v687
        %1588 = vmatpush.msra.mxu0 %v683
        %1589 = vmatpush.msra.mxu0 %v679
        %1590 = vmatpush.msra.mxu0 %v675
        %1591 = vmatpush.msra.mxu0 %v671
        %1592 = vmatmul.f32.gmra.mxu0 %v1550
        %v1593 = vpop.f32.mrf.mxu0
        %v1594 = vadd.f32 %v1574, %v1593
        %1595 = vdwg.mxu0
        %1596 = vmatpush.msra.mxu0 0.0
        %1597 = vmatpush.msra.mxu0 %v791
        %1598 = vmatpush.msra.mxu0 %v787
        %1599 = vmatpush.msra.mxu0 %v783
        %1600 = vmatpush.msra.mxu0 %v779
        %1601 = vmatpush.msra.mxu0 %v775
        %1602 = vmatpush.msra.mxu0 %v771
        %1603 = vmatpush.msra.mxu0 %v767
        %1604 = vmatpush.msra.mxu0 %v763
        %1605 = vmatpush.msra.mxu0 %v759
        %1606 = vmatpush.msra.mxu0 %v755
        %1607 = vmatpush.msra.mxu0 %v751
        %1608 = vmatpush.msra.mxu0 %v747
        %1609 = vmatpush.msra.mxu0 %v743
        %1610 = vmatpush.msra.mxu0 %v739
        %1611 = vmatpush.msra.mxu0 %v735
        %1612 = vmatmul.f32.gmra.mxu0 %v1554
        %v1613 = vpop.f32.mrf.mxu0
        %v1614 = vadd.f32 %v1594, %v1613
        %1615 = vdwg.mxu0
        %1616 = vmatpush.msra.mxu0 %v668
        %1617 = vmatpush.msra.mxu0 %v664
        %1618 = vmatpush.msra.mxu0 %v660
        %1619 = vmatpush.msra.mxu0 %v656
        %1620 = vmatpush.msra.mxu0 %v652
        %1621 = vmatpush.msra.mxu0 %v648
        %1622 = vmatpush.msra.mxu0 %v644
        %1623 = vmatpush.msra.mxu0 %v640
        %1624 = vmatpush.msra.mxu0 %v636
        %1625 = vmatpush.msra.mxu0 %v632
        %1626 = vmatpush.msra.mxu0 %v628
        %1627 = vmatpush.msra.mxu0 %v624
        %1628 = vmatpush.msra.mxu0 %v620
        %1629 = vmatpush.msra.mxu0 %v616
        %1630 = vmatpush.msra.mxu0 %v612
        %1631 = vmatpush.msra.mxu0 %v608
        %1632 = vmatmul.f32.gmra.mxu0 %v1549
        %v1633 = vpop.f32.mrf.mxu0
        %v1634 = vadd.f32 0.0, %v1633
        %1635 = vdwg.mxu0
        %1636 = vmatpush.msra.mxu0 %v732
        %1637 = vmatpush.msra.mxu0 %v728
        %1638 = vmatpush.msra.mxu0 %v724
        %1639 = vmatpush.msra.mxu0 %v720
        %1640 = vmatpush.msra.mxu0 %v716
        %1641 = vmatpush.msra.mxu0 %v712
        %1642 = vmatpush.msra.mxu0 %v708
        %1643 = vmatpush.msra.mxu0 %v704
        %1644 = vmatpush.msra.mxu0 %v700
        %1645 = vmatpush.msra.mxu0 %v696
        %1646 = vmatpush.msra.mxu0 %v692
        %1647 = vmatpush.msra.mxu0 %v688
        %1648 = vmatpush.msra.mxu0 %v684
        %1649 = vmatpush.msra.mxu0 %v680
        %1650 = vmatpush.msra.mxu0 %v676
        %1651 = vmatpush.msra.mxu0 %v672
        %1652 = vmatmul.f32.gmra.mxu0 %v1550
        %v1653 = vpop.f32.mrf.mxu0
        %v1654 = vadd.f32 %v1634, %v1653
        %1655 = vdwg.mxu0
        %1656 = vmatpush.msra.mxu0 0.0
        %1657 = vmatpush.msra.mxu0 %v792
        %1658 = vmatpush.msra.mxu0 %v788
        %1659 = vmatpush.msra.mxu0 %v784
        %1660 = vmatpush.msra.mxu0 %v780
        %1661 = vmatpush.msra.mxu0 %v776
        %1662 = vmatpush.msra.mxu0 %v772
        %1663 = vmatpush.msra.mxu0 %v768
        %1664 = vmatpush.msra.mxu0 %v764
        %1665 = vmatpush.msra.mxu0 %v760
        %1666 = vmatpush.msra.mxu0 %v756
        %1667 = vmatpush.msra.mxu0 %v752
        %1668 = vmatpush.msra.mxu0 %v748
        %1669 = vmatpush.msra.mxu0 %v744
        %1670 = vmatpush.msra.mxu0 %v740
        %1671 = vmatpush.msra.mxu0 %v736
        %1672 = vmatmul.f32.gmra.mxu0 %v1554
        %v1673 = vpop.f32.mrf.mxu0
        %v1674 = vadd.f32 %v1654, %v1673
        %1675 = vdwg.mxu0
        %1676 = vmatpush.msra.mxu0 %v669
        %1677 = vmatpush.msra.mxu0 %v665
        %1678 = vmatpush.msra.mxu0 %v661
        %1679 = vmatpush.msra.mxu0 %v657
        %1680 = vmatpush.msra.mxu0 %v653
        %1681 = vmatpush.msra.mxu0 %v649
        %1682 = vmatpush.msra.mxu0 %v645
        %1683 = vmatpush.msra.mxu0 %v641
        %1684 = vmatpush.msra.mxu0 %v637
        %1685 = vmatpush.msra.mxu0 %v633
        %1686 = vmatpush.msra.mxu0 %v629
        %1687 = vmatpush.msra.mxu0 %v625
        %1688 = vmatpush.msra.mxu0 %v621
        %1689 = vmatpush.msra.mxu0 %v617
        %1690 = vmatpush.msra.mxu0 %v613
        %1691 = vmatpush.msra.mxu0 %v609
        %1692 = vmatmul.f32.gmra.mxu0 %v1549
        %v1693 = vpop.f32.mrf.mxu0
        %v1694 = vadd.f32 0.0, %v1693
        %1695 = vdwg.mxu0
        %1696 = vmatpush.msra.mxu0 %v733
        %1697 = vmatpush.msra.mxu0 %v729
        %1698 = vmatpush.msra.mxu0 %v725
        %1699 = vmatpush.msra.mxu0 %v721
        %1700 = vmatpush.msra.mxu0 %v717
        %1701 = vmatpush.msra.mxu0 %v713
        %1702 = vmatpush.msra.mxu0 %v709
        %1703 = vmatpush.msra.mxu0 %v705
        %1704 = vmatpush.msra.mxu0 %v701
        %1705 = vmatpush.msra.mxu0 %v697
        %1706 = vmatpush.msra.mxu0 %v693
        %1707 = vmatpush.msra.mxu0 %v689
        %1708 = vmatpush.msra.mxu0 %v685
        %1709 = vmatpush.msra.mxu0 %v681
        %1710 = vmatpush.msra.mxu0 %v677
        %1711 = vmatpush.msra.mxu0 %v673
        %1712 = vmatmul.f32.gmra.mxu0 %v1550
        %v1713 = vpop.f32.mrf.mxu0
        %v1714 = vadd.f32 %v1694, %v1713
        %1715 = vdwg.mxu0
        %1716 = vmatpush.msra.mxu0 0.0
        %1717 = vmatpush.msra.mxu0 %v793
        %1718 = vmatpush.msra.mxu0 %v789
        %1719 = vmatpush.msra.mxu0 %v785
        %1720 = vmatpush.msra.mxu0 %v781
        %1721 = vmatpush.msra.mxu0 %v777
        %1722 = vmatpush.msra.mxu0 %v773
        %1723 = vmatpush.msra.mxu0 %v769
        %1724 = vmatpush.msra.mxu0 %v765
        %1725 = vmatpush.msra.mxu0 %v761
        %1726 = vmatpush.msra.mxu0 %v757
        %1727 = vmatpush.msra.mxu0 %v753
        %1728 = vmatpush.msra.mxu0 %v749
        %1729 = vmatpush.msra.mxu0 %v745
        %1730 = vmatpush.msra.mxu0 %v741
        %1731 = vmatpush.msra.mxu0 %v737
        %1732 = vmatmul.f32.gmra.mxu0 %v1554
        %v1733 = vpop.f32.mrf.mxu0
        %v1734 = vadd.f32 %v1714, %v1733
        %1735 = vdwg.mxu0
        %1736 = vmatpush.msra.mxu0 %v670
        %1737 = vmatpush.msra.mxu0 %v666
        %1738 = vmatpush.msra.mxu0 %v662
        %1739 = vmatpush.msra.mxu0 %v658
        %1740 = vmatpush.msra.mxu0 %v654
        %1741 = vmatpush.msra.mxu0 %v650
        %1742 = vmatpush.msra.mxu0 %v646
        %1743 = vmatpush.msra.mxu0 %v642
        %1744 = vmatpush.msra.mxu0 %v638
        %1745 = vmatpush.msra.mxu0 %v634
        %1746 = vmatpush.msra.mxu0 %v630
        %1747 = vmatpush.msra.mxu0 %v626
        %1748 = vmatpush.msra.mxu0 %v622
        %1749 = vmatpush.msra.mxu0 %v618
        %1750 = vmatpush.msra.mxu0 %v614
        %1751 = vmatpush.msra.mxu0 %v610
        %1752 = vmatmul.f32.gmra.mxu0 %v1549
        %v1753 = vpop.f32.mrf.mxu0
        %v1754 = vadd.f32 0.0, %v1753
        %1755 = vdwg.mxu0
        %1756 = vmatpush.msra.mxu0 %v734
        %1757 = vmatpush.msra.mxu0 %v730
        %1758 = vmatpush.msra.mxu0 %v726
        %1759 = vmatpush.msra.mxu0 %v722
        %1760 = vmatpush.msra.mxu0 %v718
        %1761 = vmatpush.msra.mxu0 %v714
        %1762 = vmatpush.msra.mxu0 %v710
        %1763 = vmatpush.msra.mxu0 %v706
        %1764 = vmatpush.msra.mxu0 %v702
        %1765 = vmatpush.msra.mxu0 %v698
        %1766 = vmatpush.msra.mxu0 %v694
        %1767 = vmatpush.msra.mxu0 %v690
        %1768 = vmatpush.msra.mxu0 %v686
        %1769 = vmatpush.msra.mxu0 %v682
        %1770 = vmatpush.msra.mxu0 %v678
        %1771 = vmatpush.msra.mxu0 %v674
        %1772 = vmatmul.f32.gmra.mxu0 %v1550
        %v1773 = vpop.f32.mrf.mxu0
        %v1774 = vadd.f32 %v1754, %v1773
        %1775 = vdwg.mxu0
        %1776 = vmatpush.msra.mxu0 0.0
        %1777 = vmatpush.msra.mxu0 %v794
        %1778 = vmatpush.msra.mxu0 %v790
        %1779 = vmatpush.msra.mxu0 %v786
        %1780 = vmatpush.msra.mxu0 %v782
        %1781 = vmatpush.msra.mxu0 %v778
        %1782 = vmatpush.msra.mxu0 %v774
        %1783 = vmatpush.msra.mxu0 %v770
        %1784 = vmatpush.msra.mxu0 %v766
        %1785 = vmatpush.msra.mxu0 %v762
        %1786 = vmatpush.msra.mxu0 %v758
        %1787 = vmatpush.msra.mxu0 %v754
        %1788 = vmatpush.msra.mxu0 %v750
        %1789 = vmatpush.msra.mxu0 %v746
        %1790 = vmatpush.msra.mxu0 %v742
        %1791 = vmatpush.msra.mxu0 %v738
        %1792 = vmatmul.f32.gmra.mxu0 %v1554
        %v1793 = vpop.f32.mrf.mxu0
        %v1794 = vadd.f32 %v1774, %v1793
        %1795 = vdwg.mxu0
        %v1796 = vld [vmem:[%s578] sm:$0xff]
        %s1797 = scalar_lea.vmem %s578, 8
        %v1798 = vld [vmem:[%s1797] sm:$0xff]
        %1803 = vrot.lane.b32.xlu0 %v1614, 76
        %v1804 = vpop.permute.xlu0 %1803
        %1805 = vrot.lane.b32.xlu0 %v1674, 76
        %v1806 = vpop.permute.xlu0 %1805
        %1807 = vrot.lane.b32.xlu0 %v1734, 76
        %v1808 = vpop.permute.xlu0 %1807
        %1809 = vrot.lane.b32.xlu0 %v1794, 76
        %v1810 = vpop.permute.xlu0 %1809
        %v1811 = vsel %vm810, %v1804, %v1806
        %v1812 = vsel %vm810, %v1806, %v1808
        %v1813 = vsel %vm810, %v1808, %v1810
        %v1818 = vsel %vm817, %v1798, 0
        %1820 = vmatpush.msra.mxu0 0.0
        %1821 = vmatpush.msra.mxu0 0.0
        %1822 = vmatpush.msra.mxu0 0.0
        %1823 = vmatpush.msra.mxu0 0.0
        %1824 = vmatpush.msra.mxu0 0.0
        %1825 = vmatpush.msra.mxu0 0.0
        %1826 = vmatpush.msra.mxu0 0.0
        %1827 = vmatpush.msra.mxu0 0.0
        %1828 = vmatpush.msra.mxu0 0.0
        %1829 = vmatpush.msra.mxu0 0.0
        %1830 = vmatpush.msra.mxu0 0.0
        %1831 = vmatpush.msra.mxu0 0.0
        %1832 = vmatpush.msra.mxu0 0.0
        %1833 = vmatpush.msra.mxu0 0.0
        %1834 = vmatpush.msra.mxu0 0.0
        %1835 = vmatpush.msra.mxu0 %v1811
        %1836 = vmatmul.f32.gmra.mxu0 %v1818
        %v1837 = vpop.f32.mrf.mxu0
        %v1838 = vadd.f32 0.0, %v1837
        %1839 = vdwg.mxu0
        %1840 = vmatpush.msra.mxu0 0.0
        %1841 = vmatpush.msra.mxu0 0.0
        %1842 = vmatpush.msra.mxu0 0.0
        %1843 = vmatpush.msra.mxu0 0.0
        %1844 = vmatpush.msra.mxu0 0.0
        %1845 = vmatpush.msra.mxu0 0.0
        %1846 = vmatpush.msra.mxu0 0.0
        %1847 = vmatpush.msra.mxu0 0.0
        %1848 = vmatpush.msra.mxu0 0.0
        %1849 = vmatpush.msra.mxu0 0.0
        %1850 = vmatpush.msra.mxu0 0.0
        %1851 = vmatpush.msra.mxu0 0.0
        %1852 = vmatpush.msra.mxu0 0.0
        %1853 = vmatpush.msra.mxu0 0.0
        %1854 = vmatpush.msra.mxu0 0.0
        %1855 = vmatpush.msra.mxu0 %v1812
        %1856 = vmatmul.f32.gmra.mxu0 %v1818
        %v1857 = vpop.f32.mrf.mxu0
        %v1858 = vadd.f32 0.0, %v1857
        %1859 = vdwg.mxu0
        %1860 = vmatpush.msra.mxu0 0.0
        %1861 = vmatpush.msra.mxu0 0.0
        %1862 = vmatpush.msra.mxu0 0.0
        %1863 = vmatpush.msra.mxu0 0.0
        %1864 = vmatpush.msra.mxu0 0.0
        %1865 = vmatpush.msra.mxu0 0.0
        %1866 = vmatpush.msra.mxu0 0.0
        %1867 = vmatpush.msra.mxu0 0.0
        %1868 = vmatpush.msra.mxu0 0.0
        %1869 = vmatpush.msra.mxu0 0.0
        %1870 = vmatpush.msra.mxu0 0.0
        %1871 = vmatpush.msra.mxu0 0.0
        %1872 = vmatpush.msra.mxu0 0.0
        %1873 = vmatpush.msra.mxu0 0.0
        %1874 = vmatpush.msra.mxu0 0.0
        %1875 = vmatpush.msra.mxu0 %v1813
        %1876 = vmatmul.f32.gmra.mxu0 %v1818
        %v1877 = vpop.f32.mrf.mxu0
        %v1878 = vadd.f32 0.0, %v1877
        %1879 = vdwg.mxu0
        %1880 = vrot.lane.b32.xlu0 %v1614, 77
        %v1881 = vpop.permute.xlu0 %1880
        %1882 = vrot.lane.b32.xlu0 %v1674, 77
        %v1883 = vpop.permute.xlu0 %1882
        %1884 = vrot.lane.b32.xlu0 %v1734, 77
        %v1885 = vpop.permute.xlu0 %1884
        %1886 = vrot.lane.b32.xlu0 %v1794, 77
        %v1887 = vpop.permute.xlu0 %1886
        %v1888 = vsel %vm889, %v1881, %v1883
        %v1889 = vsel %vm889, %v1883, %v1885
        %v1890 = vsel %vm889, %v1885, %v1887
        %v1895 = vsel %vm817, %v1796, 0
        %1897 = vmatpush.msra.mxu0 0.0
        %1898 = vmatpush.msra.mxu0 0.0
        %1899 = vmatpush.msra.mxu0 0.0
        %1900 = vmatpush.msra.mxu0 0.0
        %1901 = vmatpush.msra.mxu0 0.0
        %1902 = vmatpush.msra.mxu0 0.0
        %1903 = vmatpush.msra.mxu0 0.0
        %1904 = vmatpush.msra.mxu0 0.0
        %1905 = vmatpush.msra.mxu0 0.0
        %1906 = vmatpush.msra.mxu0 0.0
        %1907 = vmatpush.msra.mxu0 0.0
        %1908 = vmatpush.msra.mxu0 0.0
        %1909 = vmatpush.msra.mxu0 0.0
        %1910 = vmatpush.msra.mxu0 0.0
        %1911 = vmatpush.msra.mxu0 0.0
        %1912 = vmatpush.msra.mxu0 %v1888
        %1913 = vmatmul.f32.gmra.mxu0 %v1895
        %v1914 = vpop.f32.mrf.mxu0
        %v1915 = vadd.f32 %v1838, %v1914
        %1916 = vdwg.mxu0
        %1917 = vmatpush.msra.mxu0 0.0
        %1918 = vmatpush.msra.mxu0 0.0
        %1919 = vmatpush.msra.mxu0 0.0
        %1920 = vmatpush.msra.mxu0 0.0
        %1921 = vmatpush.msra.mxu0 0.0
        %1922 = vmatpush.msra.mxu0 0.0
        %1923 = vmatpush.msra.mxu0 0.0
        %1924 = vmatpush.msra.mxu0 0.0
        %1925 = vmatpush.msra.mxu0 0.0
        %1926 = vmatpush.msra.mxu0 0.0
        %1927 = vmatpush.msra.mxu0 0.0
        %1928 = vmatpush.msra.mxu0 0.0
        %1929 = vmatpush.msra.mxu0 0.0
        %1930 = vmatpush.msra.mxu0 0.0
        %1931 = vmatpush.msra.mxu0 0.0
        %1932 = vmatpush.msra.mxu0 %v1889
        %1933 = vmatmul.f32.gmra.mxu0 %v1895
        %v1934 = vpop.f32.mrf.mxu0
        %v1935 = vadd.f32 %v1858, %v1934
        %1936 = vdwg.mxu0
        %1937 = vmatpush.msra.mxu0 0.0
        %1938 = vmatpush.msra.mxu0 0.0
        %1939 = vmatpush.msra.mxu0 0.0
        %1940 = vmatpush.msra.mxu0 0.0
        %1941 = vmatpush.msra.mxu0 0.0
        %1942 = vmatpush.msra.mxu0 0.0
        %1943 = vmatpush.msra.mxu0 0.0
        %1944 = vmatpush.msra.mxu0 0.0
        %1945 = vmatpush.msra.mxu0 0.0
        %1946 = vmatpush.msra.mxu0 0.0
        %1947 = vmatpush.msra.mxu0 0.0
        %1948 = vmatpush.msra.mxu0 0.0
        %1949 = vmatpush.msra.mxu0 0.0
        %1950 = vmatpush.msra.mxu0 0.0
        %1951 = vmatpush.msra.mxu0 0.0
        %1952 = vmatpush.msra.mxu0 %v1890
        %1953 = vmatmul.f32.gmra.mxu0 %v1895
        %v1954 = vpop.f32.mrf.mxu0
        %v1955 = vadd.f32 %v1878, %v1954
        %1956 = vdwg.mxu0
        %s1957 = scalar_lea.vmem %s578, 16
        %v1958 = vld [vmem:[%s1957] sm:$0xff]
        %1959 = vrot.lane.b32.xlu0 %v1614, 75
        %v1960 = vpop.permute.xlu0 %1959
        %1961 = vrot.lane.b32.xlu0 %v1674, 75
        %v1962 = vpop.permute.xlu0 %1961
        %1963 = vrot.lane.b32.xlu0 %v1734, 75
        %v1964 = vpop.permute.xlu0 %1963
        %1965 = vrot.lane.b32.xlu0 %v1794, 75
        %v1966 = vpop.permute.xlu0 %1965
        %v1967 = vsel %vm969, %v1960, %v1962
        %v1968 = vsel %vm969, %v1962, %v1964
        %v1969 = vsel %vm969, %v1964, %v1966
        %v1974 = vsel %vm817, %v1958, 0
        %1976 = vmatpush.msra.mxu0 0.0
        %1977 = vmatpush.msra.mxu0 0.0
        %1978 = vmatpush.msra.mxu0 0.0
        %1979 = vmatpush.msra.mxu0 0.0
        %1980 = vmatpush.msra.mxu0 0.0
        %1981 = vmatpush.msra.mxu0 0.0
        %1982 = vmatpush.msra.mxu0 0.0
        %1983 = vmatpush.msra.mxu0 0.0
        %1984 = vmatpush.msra.mxu0 0.0
        %1985 = vmatpush.msra.mxu0 0.0
        %1986 = vmatpush.msra.mxu0 0.0
        %1987 = vmatpush.msra.mxu0 0.0
        %1988 = vmatpush.msra.mxu0 0.0
        %1989 = vmatpush.msra.mxu0 0.0
        %1990 = vmatpush.msra.mxu0 0.0
        %1991 = vmatpush.msra.mxu0 %v1967
        %1992 = vmatmul.f32.gmra.mxu0 %v1974
        %v1993 = vpop.f32.mrf.mxu0
        %v1994 = vadd.f32 0.0, %v1993
        %1995 = vdwg.mxu0
        %1996 = vmatpush.msra.mxu0 0.0
        %1997 = vmatpush.msra.mxu0 0.0
        %1998 = vmatpush.msra.mxu0 0.0
        %1999 = vmatpush.msra.mxu0 0.0
        %2000 = vmatpush.msra.mxu0 0.0
        %2001 = vmatpush.msra.mxu0 0.0
        %2002 = vmatpush.msra.mxu0 0.0
        %2003 = vmatpush.msra.mxu0 0.0
        %2004 = vmatpush.msra.mxu0 0.0
        %2005 = vmatpush.msra.mxu0 0.0
        %2006 = vmatpush.msra.mxu0 0.0
        %2007 = vmatpush.msra.mxu0 0.0
        %2008 = vmatpush.msra.mxu0 0.0
        %2009 = vmatpush.msra.mxu0 0.0
        %2010 = vmatpush.msra.mxu0 0.0
        %2011 = vmatpush.msra.mxu0 %v1968
        %2012 = vmatmul.f32.gmra.mxu0 %v1974
        %v2013 = vpop.f32.mrf.mxu0
        %v2014 = vadd.f32 0.0, %v2013
        %2015 = vdwg.mxu0
        %2016 = vmatpush.msra.mxu0 0.0
        %2017 = vmatpush.msra.mxu0 0.0
        %2018 = vmatpush.msra.mxu0 0.0
        %2019 = vmatpush.msra.mxu0 0.0
        %2020 = vmatpush.msra.mxu0 0.0
        %2021 = vmatpush.msra.mxu0 0.0
        %2022 = vmatpush.msra.mxu0 0.0
        %2023 = vmatpush.msra.mxu0 0.0
        %2024 = vmatpush.msra.mxu0 0.0
        %2025 = vmatpush.msra.mxu0 0.0
        %2026 = vmatpush.msra.mxu0 0.0
        %2027 = vmatpush.msra.mxu0 0.0
        %2028 = vmatpush.msra.mxu0 0.0
        %2029 = vmatpush.msra.mxu0 0.0
        %2030 = vmatpush.msra.mxu0 0.0
        %2031 = vmatpush.msra.mxu0 %v1969
        %2032 = vmatmul.f32.gmra.mxu0 %v1974
        %v2033 = vpop.f32.mrf.mxu0
        %v2034 = vadd.f32 0.0, %v2033
        %2035 = vdwg.mxu0
        %v2036 = vadd.f32 %v1915, %v1994
        %v2037 = vadd.f32 %v1935, %v2014
        %v2038 = vadd.f32 %v1955, %v2034
        %s2039 = scalar_lea.vmem %s578, 24
        %v2040 = vld [vmem:[%s2039] sm:$0xff]
        %2041 = vrot.lane.b32.xlu0 %v1614, 61
        %v2042 = vpop.permute.xlu0 %2041
        %2043 = vrot.lane.b32.xlu0 %v1674, 61
        %v2044 = vpop.permute.xlu0 %2043
        %2045 = vrot.lane.b32.xlu0 %v1734, 61
        %v2046 = vpop.permute.xlu0 %2045
        %2047 = vrot.lane.b32.xlu0 %v1794, 61
        %v2048 = vpop.permute.xlu0 %2047
        %v2049 = vsel %vm1052, %v2042, %v2044
        %v2050 = vsel %vm1052, %v2044, %v2046
        %v2051 = vsel %vm1052, %v2046, %v2048
        %v2056 = vsel %vm817, %v2040, 0
        %2058 = vmatpush.msra.mxu0 0.0
        %2059 = vmatpush.msra.mxu0 0.0
        %2060 = vmatpush.msra.mxu0 0.0
        %2061 = vmatpush.msra.mxu0 0.0
        %2062 = vmatpush.msra.mxu0 0.0
        %2063 = vmatpush.msra.mxu0 0.0
        %2064 = vmatpush.msra.mxu0 0.0
        %2065 = vmatpush.msra.mxu0 0.0
        %2066 = vmatpush.msra.mxu0 0.0
        %2067 = vmatpush.msra.mxu0 0.0
        %2068 = vmatpush.msra.mxu0 0.0
        %2069 = vmatpush.msra.mxu0 0.0
        %2070 = vmatpush.msra.mxu0 0.0
        %2071 = vmatpush.msra.mxu0 0.0
        %2072 = vmatpush.msra.mxu0 0.0
        %2073 = vmatpush.msra.mxu0 %v2049
        %2074 = vmatmul.f32.gmra.mxu0 %v2056
        %v2075 = vpop.f32.mrf.mxu0
        %v2076 = vadd.f32 0.0, %v2075
        %2077 = vdwg.mxu0
        %2078 = vmatpush.msra.mxu0 0.0
        %2079 = vmatpush.msra.mxu0 0.0
        %2080 = vmatpush.msra.mxu0 0.0
        %2081 = vmatpush.msra.mxu0 0.0
        %2082 = vmatpush.msra.mxu0 0.0
        %2083 = vmatpush.msra.mxu0 0.0
        %2084 = vmatpush.msra.mxu0 0.0
        %2085 = vmatpush.msra.mxu0 0.0
        %2086 = vmatpush.msra.mxu0 0.0
        %2087 = vmatpush.msra.mxu0 0.0
        %2088 = vmatpush.msra.mxu0 0.0
        %2089 = vmatpush.msra.mxu0 0.0
        %2090 = vmatpush.msra.mxu0 0.0
        %2091 = vmatpush.msra.mxu0 0.0
        %2092 = vmatpush.msra.mxu0 0.0
        %2093 = vmatpush.msra.mxu0 %v2050
        %2094 = vmatmul.f32.gmra.mxu0 %v2056
        %v2095 = vpop.f32.mrf.mxu0
        %v2096 = vadd.f32 0.0, %v2095
        %2097 = vdwg.mxu0
        %2098 = vmatpush.msra.mxu0 0.0
        %2099 = vmatpush.msra.mxu0 0.0
        %2100 = vmatpush.msra.mxu0 0.0
        %2101 = vmatpush.msra.mxu0 0.0
        %2102 = vmatpush.msra.mxu0 0.0
        %2103 = vmatpush.msra.mxu0 0.0
        %2104 = vmatpush.msra.mxu0 0.0
        %2105 = vmatpush.msra.mxu0 0.0
        %2106 = vmatpush.msra.mxu0 0.0
        %2107 = vmatpush.msra.mxu0 0.0
        %2108 = vmatpush.msra.mxu0 0.0
        %2109 = vmatpush.msra.mxu0 0.0
        %2110 = vmatpush.msra.mxu0 0.0
        %2111 = vmatpush.msra.mxu0 0.0
        %2112 = vmatpush.msra.mxu0 0.0
        %2113 = vmatpush.msra.mxu0 %v2051
        %2114 = vmatmul.f32.gmra.mxu0 %v2056
        %v2115 = vpop.f32.mrf.mxu0
        %v2116 = vadd.f32 0.0, %v2115
        %2117 = vdwg.mxu0
        %v2118 = vadd.f32 %v2036, %v2076
        %v2119 = vadd.f32 %v2037, %v2096
        %v2120 = vadd.f32 %v2038, %v2116
        %s2121 = scalar_lea.vmem %s578, 32
        %v2122 = vld [vmem:[%s2121] sm:$0xff]
        %2123 = vrot.lane.b32.xlu0 %v1614, 60
        %v2124 = vpop.permute.xlu0 %2123
        %2125 = vrot.lane.b32.xlu0 %v1674, 60
        %v2126 = vpop.permute.xlu0 %2125
        %2127 = vrot.lane.b32.xlu0 %v1734, 60
        %v2128 = vpop.permute.xlu0 %2127
        %2129 = vrot.lane.b32.xlu0 %v1794, 60
        %v2130 = vpop.permute.xlu0 %2129
        %v2131 = vsel %vm1135, %v2124, %v2126
        %v2132 = vsel %vm1135, %v2126, %v2128
        %v2133 = vsel %vm1135, %v2128, %v2130
        %v2138 = vsel %vm817, %v2122, 0
        %2140 = vmatpush.msra.mxu0 0.0
        %2141 = vmatpush.msra.mxu0 0.0
        %2142 = vmatpush.msra.mxu0 0.0
        %2143 = vmatpush.msra.mxu0 0.0
        %2144 = vmatpush.msra.mxu0 0.0
        %2145 = vmatpush.msra.mxu0 0.0
        %2146 = vmatpush.msra.mxu0 0.0
        %2147 = vmatpush.msra.mxu0 0.0
        %2148 = vmatpush.msra.mxu0 0.0
        %2149 = vmatpush.msra.mxu0 0.0
        %2150 = vmatpush.msra.mxu0 0.0
        %2151 = vmatpush.msra.mxu0 0.0
        %2152 = vmatpush.msra.mxu0 0.0
        %2153 = vmatpush.msra.mxu0 0.0
        %2154 = vmatpush.msra.mxu0 0.0
        %2155 = vmatpush.msra.mxu0 %v2131
        %2156 = vmatmul.f32.gmra.mxu0 %v2138
        %v2157 = vpop.f32.mrf.mxu0
        %v2158 = vadd.f32 0.0, %v2157
        %2159 = vdwg.mxu0
        %2160 = vmatpush.msra.mxu0 0.0
        %2161 = vmatpush.msra.mxu0 0.0
        %2162 = vmatpush.msra.mxu0 0.0
        %2163 = vmatpush.msra.mxu0 0.0
        %2164 = vmatpush.msra.mxu0 0.0
        %2165 = vmatpush.msra.mxu0 0.0
        %2166 = vmatpush.msra.mxu0 0.0
        %2167 = vmatpush.msra.mxu0 0.0
        %2168 = vmatpush.msra.mxu0 0.0
        %2169 = vmatpush.msra.mxu0 0.0
        %2170 = vmatpush.msra.mxu0 0.0
        %2171 = vmatpush.msra.mxu0 0.0
        %2172 = vmatpush.msra.mxu0 0.0
        %2173 = vmatpush.msra.mxu0 0.0
        %2174 = vmatpush.msra.mxu0 0.0
        %2175 = vmatpush.msra.mxu0 %v2132
        %2176 = vmatmul.f32.gmra.mxu0 %v2138
        %v2177 = vpop.f32.mrf.mxu0
        %v2178 = vadd.f32 0.0, %v2177
        %2179 = vdwg.mxu0
        %2180 = vmatpush.msra.mxu0 0.0
        %2181 = vmatpush.msra.mxu0 0.0
        %2182 = vmatpush.msra.mxu0 0.0
        %2183 = vmatpush.msra.mxu0 0.0
        %2184 = vmatpush.msra.mxu0 0.0
        %2185 = vmatpush.msra.mxu0 0.0
        %2186 = vmatpush.msra.mxu0 0.0
        %2187 = vmatpush.msra.mxu0 0.0
        %2188 = vmatpush.msra.mxu0 0.0
        %2189 = vmatpush.msra.mxu0 0.0
        %2190 = vmatpush.msra.mxu0 0.0
        %2191 = vmatpush.msra.mxu0 0.0
        %2192 = vmatpush.msra.mxu0 0.0
        %2193 = vmatpush.msra.mxu0 0.0
        %2194 = vmatpush.msra.mxu0 0.0
        %2195 = vmatpush.msra.mxu0 %v2133
        %2196 = vmatmul.f32.gmra.mxu0 %v2138
        %v2197 = vpop.f32.mrf.mxu0
        %v2198 = vadd.f32 0.0, %v2197
        %2199 = vdwg.mxu0
        %v2200 = vadd.f32 %v2118, %v2158
        %v2201 = vadd.f32 %v2119, %v2178
        %v2202 = vadd.f32 %v2120, %v2198
        %s2203 = scalar_lea.vmem %s578, 40
        %v2204 = vld [vmem:[%s2203] sm:$0xff]
        %2205 = vrot.lane.b32.xlu0 %v1614, 59
        %v2206 = vpop.permute.xlu0 %2205
        %2207 = vrot.lane.b32.xlu0 %v1674, 59
        %v2208 = vpop.permute.xlu0 %2207
        %2209 = vrot.lane.b32.xlu0 %v1734, 59
        %v2210 = vpop.permute.xlu0 %2209
        %2211 = vrot.lane.b32.xlu0 %v1794, 59
        %v2212 = vpop.permute.xlu0 %2211
        %v2213 = vsel %vm1218, %v2206, %v2208
        %v2214 = vsel %vm1218, %v2208, %v2210
        %v2215 = vsel %vm1218, %v2210, %v2212
        %v2220 = vsel %vm817, %v2204, 0
        %2222 = vmatpush.msra.mxu0 0.0
        %2223 = vmatpush.msra.mxu0 0.0
        %2224 = vmatpush.msra.mxu0 0.0
        %2225 = vmatpush.msra.mxu0 0.0
        %2226 = vmatpush.msra.mxu0 0.0
        %2227 = vmatpush.msra.mxu0 0.0
        %2228 = vmatpush.msra.mxu0 0.0
        %2229 = vmatpush.msra.mxu0 0.0
        %2230 = vmatpush.msra.mxu0 0.0
        %2231 = vmatpush.msra.mxu0 0.0
        %2232 = vmatpush.msra.mxu0 0.0
        %2233 = vmatpush.msra.mxu0 0.0
        %2234 = vmatpush.msra.mxu0 0.0
        %2235 = vmatpush.msra.mxu0 0.0
        %2236 = vmatpush.msra.mxu0 0.0
        %2237 = vmatpush.msra.mxu0 %v2213
        %2238 = vmatmul.f32.gmra.mxu0 %v2220
        %v2239 = vpop.f32.mrf.mxu0
        %v2240 = vadd.f32 0.0, %v2239
        %2241 = vdwg.mxu0
        %2242 = vmatpush.msra.mxu0 0.0
        %2243 = vmatpush.msra.mxu0 0.0
        %2244 = vmatpush.msra.mxu0 0.0
        %2245 = vmatpush.msra.mxu0 0.0
        %2246 = vmatpush.msra.mxu0 0.0
        %2247 = vmatpush.msra.mxu0 0.0
        %2248 = vmatpush.msra.mxu0 0.0
        %2249 = vmatpush.msra.mxu0 0.0
        %2250 = vmatpush.msra.mxu0 0.0
        %2251 = vmatpush.msra.mxu0 0.0
        %2252 = vmatpush.msra.mxu0 0.0
        %2253 = vmatpush.msra.mxu0 0.0
        %2254 = vmatpush.msra.mxu0 0.0
        %2255 = vmatpush.msra.mxu0 0.0
        %2256 = vmatpush.msra.mxu0 0.0
        %2257 = vmatpush.msra.mxu0 %v2214
        %2258 = vmatmul.f32.gmra.mxu0 %v2220
        %v2259 = vpop.f32.mrf.mxu0
        %v2260 = vadd.f32 0.0, %v2259
        %2261 = vdwg.mxu0
        %2262 = vmatpush.msra.mxu0 0.0
        %2263 = vmatpush.msra.mxu0 0.0
        %2264 = vmatpush.msra.mxu0 0.0
        %2265 = vmatpush.msra.mxu0 0.0
        %2266 = vmatpush.msra.mxu0 0.0
        %2267 = vmatpush.msra.mxu0 0.0
        %2268 = vmatpush.msra.mxu0 0.0
        %2269 = vmatpush.msra.mxu0 0.0
        %2270 = vmatpush.msra.mxu0 0.0
        %2271 = vmatpush.msra.mxu0 0.0
        %2272 = vmatpush.msra.mxu0 0.0
        %2273 = vmatpush.msra.mxu0 0.0
        %2274 = vmatpush.msra.mxu0 0.0
        %2275 = vmatpush.msra.mxu0 0.0
        %2276 = vmatpush.msra.mxu0 0.0
        %2277 = vmatpush.msra.mxu0 %v2215
        %2278 = vmatmul.f32.gmra.mxu0 %v2220
        %v2279 = vpop.f32.mrf.mxu0
        %v2280 = vadd.f32 0.0, %v2279
        %2281 = vdwg.mxu0
        %v2282 = vadd.f32 %v2200, %v2240
        %v2283 = vadd.f32 %v2201, %v2260
        %v2284 = vadd.f32 %v2202, %v2280
        %s2285 = scalar_lea.vmem %s578, 48
        %v2286 = vld [vmem:[%s2285] sm:$0xff]
        %2287 = vrot.lane.b32.xlu0 %v1614, 45
        %v2288 = vpop.permute.xlu0 %2287
        %2289 = vrot.lane.b32.xlu0 %v1674, 45
        %v2290 = vpop.permute.xlu0 %2289
        %2291 = vrot.lane.b32.xlu0 %v1734, 45
        %v2292 = vpop.permute.xlu0 %2291
        %2293 = vrot.lane.b32.xlu0 %v1794, 45
        %v2294 = vpop.permute.xlu0 %2293
        %v2295 = vsel %vm1301, %v2288, %v2290
        %v2296 = vsel %vm1301, %v2290, %v2292
        %v2297 = vsel %vm1301, %v2292, %v2294
        %v2302 = vsel %vm817, %v2286, 0
        %2304 = vmatpush.msra.mxu0 0.0
        %2305 = vmatpush.msra.mxu0 0.0
        %2306 = vmatpush.msra.mxu0 0.0
        %2307 = vmatpush.msra.mxu0 0.0
        %2308 = vmatpush.msra.mxu0 0.0
        %2309 = vmatpush.msra.mxu0 0.0
        %2310 = vmatpush.msra.mxu0 0.0
        %2311 = vmatpush.msra.mxu0 0.0
        %2312 = vmatpush.msra.mxu0 0.0
        %2313 = vmatpush.msra.mxu0 0.0
        %2314 = vmatpush.msra.mxu0 0.0
        %2315 = vmatpush.msra.mxu0 0.0
        %2316 = vmatpush.msra.mxu0 0.0
        %2317 = vmatpush.msra.mxu0 0.0
        %2318 = vmatpush.msra.mxu0 0.0
        %2319 = vmatpush.msra.mxu0 %v2295
        %2320 = vmatmul.f32.gmra.mxu0 %v2302
        %v2321 = vpop.f32.mrf.mxu0
        %v2322 = vadd.f32 0.0, %v2321
        %2323 = vdwg.mxu0
        %2324 = vmatpush.msra.mxu0 0.0
        %2325 = vmatpush.msra.mxu0 0.0
        %2326 = vmatpush.msra.mxu0 0.0
        %2327 = vmatpush.msra.mxu0 0.0
        %2328 = vmatpush.msra.mxu0 0.0
        %2329 = vmatpush.msra.mxu0 0.0
        %2330 = vmatpush.msra.mxu0 0.0
        %2331 = vmatpush.msra.mxu0 0.0
        %2332 = vmatpush.msra.mxu0 0.0
        %2333 = vmatpush.msra.mxu0 0.0
        %2334 = vmatpush.msra.mxu0 0.0
        %2335 = vmatpush.msra.mxu0 0.0
        %2336 = vmatpush.msra.mxu0 0.0
        %2337 = vmatpush.msra.mxu0 0.0
        %2338 = vmatpush.msra.mxu0 0.0
        %2339 = vmatpush.msra.mxu0 %v2296
        %2340 = vmatmul.f32.gmra.mxu0 %v2302
        %v2341 = vpop.f32.mrf.mxu0
        %v2342 = vadd.f32 0.0, %v2341
        %2343 = vdwg.mxu0
        %2344 = vmatpush.msra.mxu0 0.0
        %2345 = vmatpush.msra.mxu0 0.0
        %2346 = vmatpush.msra.mxu0 0.0
        %2347 = vmatpush.msra.mxu0 0.0
        %2348 = vmatpush.msra.mxu0 0.0
        %2349 = vmatpush.msra.mxu0 0.0
        %2350 = vmatpush.msra.mxu0 0.0
        %2351 = vmatpush.msra.mxu0 0.0
        %2352 = vmatpush.msra.mxu0 0.0
        %2353 = vmatpush.msra.mxu0 0.0
        %2354 = vmatpush.msra.mxu0 0.0
        %2355 = vmatpush.msra.mxu0 0.0
        %2356 = vmatpush.msra.mxu0 0.0
        %2357 = vmatpush.msra.mxu0 0.0
        %2358 = vmatpush.msra.mxu0 0.0
        %2359 = vmatpush.msra.mxu0 %v2297
        %2360 = vmatmul.f32.gmra.mxu0 %v2302
        %v2361 = vpop.f32.mrf.mxu0
        %v2362 = vadd.f32 0.0, %v2361
        %2363 = vdwg.mxu0
        %v2364 = vadd.f32 %v2282, %v2322
        %v2365 = vadd.f32 %v2283, %v2342
        %v2366 = vadd.f32 %v2284, %v2362
        %s2367 = scalar_lea.vmem %s578, 56
        %v2368 = vld [vmem:[%s2367] sm:$0xff]
        %2369 = vrot.lane.b32.xlu0 %v1614, 44
        %v2370 = vpop.permute.xlu0 %2369
        %2371 = vrot.lane.b32.xlu0 %v1674, 44
        %v2372 = vpop.permute.xlu0 %2371
        %2373 = vrot.lane.b32.xlu0 %v1734, 44
        %v2374 = vpop.permute.xlu0 %2373
        %2375 = vrot.lane.b32.xlu0 %v1794, 44
        %v2376 = vpop.permute.xlu0 %2375
        %v2377 = vsel %vm1384, %v2370, %v2372
        %v2378 = vsel %vm1384, %v2372, %v2374
        %v2379 = vsel %vm1384, %v2374, %v2376
        %v2384 = vsel %vm817, %v2368, 0
        %2386 = vmatpush.msra.mxu0 0.0
        %2387 = vmatpush.msra.mxu0 0.0
        %2388 = vmatpush.msra.mxu0 0.0
        %2389 = vmatpush.msra.mxu0 0.0
        %2390 = vmatpush.msra.mxu0 0.0
        %2391 = vmatpush.msra.mxu0 0.0
        %2392 = vmatpush.msra.mxu0 0.0
        %2393 = vmatpush.msra.mxu0 0.0
        %2394 = vmatpush.msra.mxu0 0.0
        %2395 = vmatpush.msra.mxu0 0.0
        %2396 = vmatpush.msra.mxu0 0.0
        %2397 = vmatpush.msra.mxu0 0.0
        %2398 = vmatpush.msra.mxu0 0.0
        %2399 = vmatpush.msra.mxu0 0.0
        %2400 = vmatpush.msra.mxu0 0.0
        %2401 = vmatpush.msra.mxu0 %v2377
        %2402 = vmatmul.f32.gmra.mxu0 %v2384
        %v2403 = vpop.f32.mrf.mxu0
        %v2404 = vadd.f32 0.0, %v2403
        %2405 = vdwg.mxu0
        %2406 = vmatpush.msra.mxu0 0.0
        %2407 = vmatpush.msra.mxu0 0.0
        %2408 = vmatpush.msra.mxu0 0.0
        %2409 = vmatpush.msra.mxu0 0.0
        %2410 = vmatpush.msra.mxu0 0.0
        %2411 = vmatpush.msra.mxu0 0.0
        %2412 = vmatpush.msra.mxu0 0.0
        %2413 = vmatpush.msra.mxu0 0.0
        %2414 = vmatpush.msra.mxu0 0.0
        %2415 = vmatpush.msra.mxu0 0.0
        %2416 = vmatpush.msra.mxu0 0.0
        %2417 = vmatpush.msra.mxu0 0.0
        %2418 = vmatpush.msra.mxu0 0.0
        %2419 = vmatpush.msra.mxu0 0.0
        %2420 = vmatpush.msra.mxu0 0.0
        %2421 = vmatpush.msra.mxu0 %v2378
        %2422 = vmatmul.f32.gmra.mxu0 %v2384
        %v2423 = vpop.f32.mrf.mxu0
        %v2424 = vadd.f32 0.0, %v2423
        %2425 = vdwg.mxu0
        %2426 = vmatpush.msra.mxu0 0.0
        %2427 = vmatpush.msra.mxu0 0.0
        %2428 = vmatpush.msra.mxu0 0.0
        %2429 = vmatpush.msra.mxu0 0.0
        %2430 = vmatpush.msra.mxu0 0.0
        %2431 = vmatpush.msra.mxu0 0.0
        %2432 = vmatpush.msra.mxu0 0.0
        %2433 = vmatpush.msra.mxu0 0.0
        %2434 = vmatpush.msra.mxu0 0.0
        %2435 = vmatpush.msra.mxu0 0.0
        %2436 = vmatpush.msra.mxu0 0.0
        %2437 = vmatpush.msra.mxu0 0.0
        %2438 = vmatpush.msra.mxu0 0.0
        %2439 = vmatpush.msra.mxu0 0.0
        %2440 = vmatpush.msra.mxu0 0.0
        %2441 = vmatpush.msra.mxu0 %v2379
        %2442 = vmatmul.f32.gmra.mxu0 %v2384
        %v2443 = vpop.f32.mrf.mxu0
        %v2444 = vadd.f32 0.0, %v2443
        %2445 = vdwg.mxu0
        %v2446 = vadd.f32 %v2364, %v2404
        %v2447 = vadd.f32 %v2365, %v2424
        %v2448 = vadd.f32 %v2366, %v2444
        %s2449 = scalar_lea.vmem %s578, 64
        %v2450 = vld [vmem:[%s2449] sm:$0xff]
        %2451 = vrot.lane.b32.xlu0 %v1614, 43
        %v2452 = vpop.permute.xlu0 %2451
        %2453 = vrot.lane.b32.xlu0 %v1674, 43
        %v2454 = vpop.permute.xlu0 %2453
        %2455 = vrot.lane.b32.xlu0 %v1734, 43
        %v2456 = vpop.permute.xlu0 %2455
        %2457 = vrot.lane.b32.xlu0 %v1794, 43
        %v2458 = vpop.permute.xlu0 %2457
        %v2459 = vsel %vm1467, %v2452, %v2454
        %v2460 = vsel %vm1467, %v2454, %v2456
        %v2461 = vsel %vm1467, %v2456, %v2458
        %v2466 = vsel %vm817, %v2450, 0
        %2468 = vmatpush.msra.mxu0 0.0
        %2469 = vmatpush.msra.mxu0 0.0
        %2470 = vmatpush.msra.mxu0 0.0
        %2471 = vmatpush.msra.mxu0 0.0
        %2472 = vmatpush.msra.mxu0 0.0
        %2473 = vmatpush.msra.mxu0 0.0
        %2474 = vmatpush.msra.mxu0 0.0
        %2475 = vmatpush.msra.mxu0 0.0
        %2476 = vmatpush.msra.mxu0 0.0
        %2477 = vmatpush.msra.mxu0 0.0
        %2478 = vmatpush.msra.mxu0 0.0
        %2479 = vmatpush.msra.mxu0 0.0
        %2480 = vmatpush.msra.mxu0 0.0
        %2481 = vmatpush.msra.mxu0 0.0
        %2482 = vmatpush.msra.mxu0 0.0
        %2483 = vmatpush.msra.mxu0 %v2459
        %2484 = vmatmul.f32.gmra.mxu0 %v2466
        %v2485 = vpop.f32.mrf.mxu0
        %v2486 = vadd.f32 0.0, %v2485
        %2487 = vdwg.mxu0
        %2488 = vmatpush.msra.mxu0 0.0
        %2489 = vmatpush.msra.mxu0 0.0
        %2490 = vmatpush.msra.mxu0 0.0
        %2491 = vmatpush.msra.mxu0 0.0
        %2492 = vmatpush.msra.mxu0 0.0
        %2493 = vmatpush.msra.mxu0 0.0
        %2494 = vmatpush.msra.mxu0 0.0
        %2495 = vmatpush.msra.mxu0 0.0
        %2496 = vmatpush.msra.mxu0 0.0
        %2497 = vmatpush.msra.mxu0 0.0
        %2498 = vmatpush.msra.mxu0 0.0
        %2499 = vmatpush.msra.mxu0 0.0
        %2500 = vmatpush.msra.mxu0 0.0
        %2501 = vmatpush.msra.mxu0 0.0
        %2502 = vmatpush.msra.mxu0 0.0
        %2503 = vmatpush.msra.mxu0 %v2460
        %2504 = vmatmul.f32.gmra.mxu0 %v2466
        %v2505 = vpop.f32.mrf.mxu0
        %v2506 = vadd.f32 0.0, %v2505
        %2507 = vdwg.mxu0
        %2508 = vmatpush.msra.mxu0 0.0
        %2509 = vmatpush.msra.mxu0 0.0
        %2510 = vmatpush.msra.mxu0 0.0
        %2511 = vmatpush.msra.mxu0 0.0
        %2512 = vmatpush.msra.mxu0 0.0
        %2513 = vmatpush.msra.mxu0 0.0
        %2514 = vmatpush.msra.mxu0 0.0
        %2515 = vmatpush.msra.mxu0 0.0
        %2516 = vmatpush.msra.mxu0 0.0
        %2517 = vmatpush.msra.mxu0 0.0
        %2518 = vmatpush.msra.mxu0 0.0
        %2519 = vmatpush.msra.mxu0 0.0
        %2520 = vmatpush.msra.mxu0 0.0
        %2521 = vmatpush.msra.mxu0 0.0
        %2522 = vmatpush.msra.mxu0 0.0
        %2523 = vmatpush.msra.mxu0 %v2461
        %2524 = vmatmul.f32.gmra.mxu0 %v2466
        %v2525 = vpop.f32.mrf.mxu0
        %v2526 = vadd.f32 0.0, %v2525
        %2527 = vdwg.mxu0
        %v2528 = vadd.f32 %v2446, %v2486
        %v2529 = vadd.f32 %v2447, %v2506
        %v2530 = vadd.f32 %v2448, %v2526
        %v2531 = vld [vmem:[%s582] sm:$0xff]
        %2533 = vset.pattern.permute.xlu0 0
        %2534 = vperm.xlu0 %2533, %v2531
        %v2535 = vpop.permute.xlu0 %2534
        %v2537 = vadd.f32 %v2528, %v2535
        %v2538 = vadd.f32 %v2529, %v2535
        %v2539 = vadd.f32 %v2530, %v2535
        %v2541 = vsel %vm1552, %v2539, 0
        %2543 = vmatpush.msra.mxu0 %v667
        %2544 = vmatpush.msra.mxu0 %v663
        %2545 = vmatpush.msra.mxu0 %v659
        %2546 = vmatpush.msra.mxu0 %v655
        %2547 = vmatpush.msra.mxu0 %v651
        %2548 = vmatpush.msra.mxu0 %v647
        %2549 = vmatpush.msra.mxu0 %v643
        %2550 = vmatpush.msra.mxu0 %v639
        %2551 = vmatpush.msra.mxu0 %v635
        %2552 = vmatpush.msra.mxu0 %v631
        %2553 = vmatpush.msra.mxu0 %v627
        %2554 = vmatpush.msra.mxu0 %v623
        %2555 = vmatpush.msra.mxu0 %v619
        %2556 = vmatpush.msra.mxu0 %v615
        %2557 = vmatpush.msra.mxu0 %v611
        %2558 = vmatpush.msra.mxu0 %v607
        %2559 = vmatmul.f32.gmra.mxu0 %v2537
        %v2560 = vpop.f32.mrf.mxu0
        %v2561 = vadd.f32 0.0, %v2560
        %2562 = vdwg.mxu0
        %2563 = vmatpush.msra.mxu0 %v731
        %2564 = vmatpush.msra.mxu0 %v727
        %2565 = vmatpush.msra.mxu0 %v723
        %2566 = vmatpush.msra.mxu0 %v719
        %2567 = vmatpush.msra.mxu0 %v715
        %2568 = vmatpush.msra.mxu0 %v711
        %2569 = vmatpush.msra.mxu0 %v707
        %2570 = vmatpush.msra.mxu0 %v703
        %2571 = vmatpush.msra.mxu0 %v699
        %2572 = vmatpush.msra.mxu0 %v695
        %2573 = vmatpush.msra.mxu0 %v691
        %2574 = vmatpush.msra.mxu0 %v687
        %2575 = vmatpush.msra.mxu0 %v683
        %2576 = vmatpush.msra.mxu0 %v679
        %2577 = vmatpush.msra.mxu0 %v675
        %2578 = vmatpush.msra.mxu0 %v671
        %2579 = vmatmul.f32.gmra.mxu0 %v2538
        %v2580 = vpop.f32.mrf.mxu0
        %v2581 = vadd.f32 %v2561, %v2580
        %2582 = vdwg.mxu0
        %2583 = vmatpush.msra.mxu0 0.0
        %2584 = vmatpush.msra.mxu0 %v791
        %2585 = vmatpush.msra.mxu0 %v787
        %2586 = vmatpush.msra.mxu0 %v783
        %2587 = vmatpush.msra.mxu0 %v779
        %2588 = vmatpush.msra.mxu0 %v775
        %2589 = vmatpush.msra.mxu0 %v771
        %2590 = vmatpush.msra.mxu0 %v767
        %2591 = vmatpush.msra.mxu0 %v763
        %2592 = vmatpush.msra.mxu0 %v759
        %2593 = vmatpush.msra.mxu0 %v755
        %2594 = vmatpush.msra.mxu0 %v751
        %2595 = vmatpush.msra.mxu0 %v747
        %2596 = vmatpush.msra.mxu0 %v743
        %2597 = vmatpush.msra.mxu0 %v739
        %2598 = vmatpush.msra.mxu0 %v735
        %2599 = vmatmul.f32.gmra.mxu0 %v2541
        %v2600 = vpop.f32.mrf.mxu0
        %v2601 = vadd.f32 %v2581, %v2600
        %2602 = vdwg.mxu0
        %2603 = vmatpush.msra.mxu0 %v668
        %2604 = vmatpush.msra.mxu0 %v664
        %2605 = vmatpush.msra.mxu0 %v660
        %2606 = vmatpush.msra.mxu0 %v656
        %2607 = vmatpush.msra.mxu0 %v652
        %2608 = vmatpush.msra.mxu0 %v648
        %2609 = vmatpush.msra.mxu0 %v644
        %2610 = vmatpush.msra.mxu0 %v640
        %2611 = vmatpush.msra.mxu0 %v636
        %2612 = vmatpush.msra.mxu0 %v632
        %2613 = vmatpush.msra.mxu0 %v628
        %2614 = vmatpush.msra.mxu0 %v624
        %2615 = vmatpush.msra.mxu0 %v620
        %2616 = vmatpush.msra.mxu0 %v616
        %2617 = vmatpush.msra.mxu0 %v612
        %2618 = vmatpush.msra.mxu0 %v608
        %2619 = vmatmul.f32.gmra.mxu0 %v2537
        %v2620 = vpop.f32.mrf.mxu0
        %v2621 = vadd.f32 0.0, %v2620
        %2622 = vdwg.mxu0
        %2623 = vmatpush.msra.mxu0 %v732
        %2624 = vmatpush.msra.mxu0 %v728
        %2625 = vmatpush.msra.mxu0 %v724
        %2626 = vmatpush.msra.mxu0 %v720
        %2627 = vmatpush.msra.mxu0 %v716
        %2628 = vmatpush.msra.mxu0 %v712
        %2629 = vmatpush.msra.mxu0 %v708
        %2630 = vmatpush.msra.mxu0 %v704
        %2631 = vmatpush.msra.mxu0 %v700
        %2632 = vmatpush.msra.mxu0 %v696
        %2633 = vmatpush.msra.mxu0 %v692
        %2634 = vmatpush.msra.mxu0 %v688
        %2635 = vmatpush.msra.mxu0 %v684
        %2636 = vmatpush.msra.mxu0 %v680
        %2637 = vmatpush.msra.mxu0 %v676
        %2638 = vmatpush.msra.mxu0 %v672
        %2639 = vmatmul.f32.gmra.mxu0 %v2538
        %v2640 = vpop.f32.mrf.mxu0
        %v2641 = vadd.f32 %v2621, %v2640
        %2642 = vdwg.mxu0
        %2643 = vmatpush.msra.mxu0 0.0
        %2644 = vmatpush.msra.mxu0 %v792
        %2645 = vmatpush.msra.mxu0 %v788
        %2646 = vmatpush.msra.mxu0 %v784
        %2647 = vmatpush.msra.mxu0 %v780
        %2648 = vmatpush.msra.mxu0 %v776
        %2649 = vmatpush.msra.mxu0 %v772
        %2650 = vmatpush.msra.mxu0 %v768
        %2651 = vmatpush.msra.mxu0 %v764
        %2652 = vmatpush.msra.mxu0 %v760
        %2653 = vmatpush.msra.mxu0 %v756
        %2654 = vmatpush.msra.mxu0 %v752
        %2655 = vmatpush.msra.mxu0 %v748
        %2656 = vmatpush.msra.mxu0 %v744
        %2657 = vmatpush.msra.mxu0 %v740
        %2658 = vmatpush.msra.mxu0 %v736
        %2659 = vmatmul.f32.gmra.mxu0 %v2541
        %v2660 = vpop.f32.mrf.mxu0
        %v2661 = vadd.f32 %v2641, %v2660
        %2662 = vdwg.mxu0
        %2663 = vmatpush.msra.mxu0 %v669
        %2664 = vmatpush.msra.mxu0 %v665
        %2665 = vmatpush.msra.mxu0 %v661
        %2666 = vmatpush.msra.mxu0 %v657
        %2667 = vmatpush.msra.mxu0 %v653
        %2668 = vmatpush.msra.mxu0 %v649
        %2669 = vmatpush.msra.mxu0 %v645
        %2670 = vmatpush.msra.mxu0 %v641
        %2671 = vmatpush.msra.mxu0 %v637
        %2672 = vmatpush.msra.mxu0 %v633
        %2673 = vmatpush.msra.mxu0 %v629
        %2674 = vmatpush.msra.mxu0 %v625
        %2675 = vmatpush.msra.mxu0 %v621
        %2676 = vmatpush.msra.mxu0 %v617
        %2677 = vmatpush.msra.mxu0 %v613
        %2678 = vmatpush.msra.mxu0 %v609
        %2679 = vmatmul.f32.gmra.mxu0 %v2537
        %v2680 = vpop.f32.mrf.mxu0
        %v2681 = vadd.f32 0.0, %v2680
        %2682 = vdwg.mxu0
        %2683 = vmatpush.msra.mxu0 %v733
        %2684 = vmatpush.msra.mxu0 %v729
        %2685 = vmatpush.msra.mxu0 %v725
        %2686 = vmatpush.msra.mxu0 %v721
        %2687 = vmatpush.msra.mxu0 %v717
        %2688 = vmatpush.msra.mxu0 %v713
        %2689 = vmatpush.msra.mxu0 %v709
        %2690 = vmatpush.msra.mxu0 %v705
        %2691 = vmatpush.msra.mxu0 %v701
        %2692 = vmatpush.msra.mxu0 %v697
        %2693 = vmatpush.msra.mxu0 %v693
        %2694 = vmatpush.msra.mxu0 %v689
        %2695 = vmatpush.msra.mxu0 %v685
        %2696 = vmatpush.msra.mxu0 %v681
        %2697 = vmatpush.msra.mxu0 %v677
        %2698 = vmatpush.msra.mxu0 %v673
        %2699 = vmatmul.f32.gmra.mxu0 %v2538
        %v2700 = vpop.f32.mrf.mxu0
        %v2701 = vadd.f32 %v2681, %v2700
        %2702 = vdwg.mxu0
        %2703 = vmatpush.msra.mxu0 0.0
        %2704 = vmatpush.msra.mxu0 %v793
        %2705 = vmatpush.msra.mxu0 %v789
        %2706 = vmatpush.msra.mxu0 %v785
        %2707 = vmatpush.msra.mxu0 %v781
        %2708 = vmatpush.msra.mxu0 %v777
        %2709 = vmatpush.msra.mxu0 %v773
        %2710 = vmatpush.msra.mxu0 %v769
        %2711 = vmatpush.msra.mxu0 %v765
        %2712 = vmatpush.msra.mxu0 %v761
        %2713 = vmatpush.msra.mxu0 %v757
        %2714 = vmatpush.msra.mxu0 %v753
        %2715 = vmatpush.msra.mxu0 %v749
        %2716 = vmatpush.msra.mxu0 %v745
        %2717 = vmatpush.msra.mxu0 %v741
        %2718 = vmatpush.msra.mxu0 %v737
        %2719 = vmatmul.f32.gmra.mxu0 %v2541
        %v2720 = vpop.f32.mrf.mxu0
        %v2721 = vadd.f32 %v2701, %v2720
        %2722 = vdwg.mxu0
        %2723 = vmatpush.msra.mxu0 %v670
        %2724 = vmatpush.msra.mxu0 %v666
        %2725 = vmatpush.msra.mxu0 %v662
        %2726 = vmatpush.msra.mxu0 %v658
        %2727 = vmatpush.msra.mxu0 %v654
        %2728 = vmatpush.msra.mxu0 %v650
        %2729 = vmatpush.msra.mxu0 %v646
        %2730 = vmatpush.msra.mxu0 %v642
        %2731 = vmatpush.msra.mxu0 %v638
        %2732 = vmatpush.msra.mxu0 %v634
        %2733 = vmatpush.msra.mxu0 %v630
        %2734 = vmatpush.msra.mxu0 %v626
        %2735 = vmatpush.msra.mxu0 %v622
        %2736 = vmatpush.msra.mxu0 %v618
        %2737 = vmatpush.msra.mxu0 %v614
        %2738 = vmatpush.msra.mxu0 %v610
        %2739 = vmatmul.f32.gmra.mxu0 %v2537
        %v2740 = vpop.f32.mrf.mxu0
        %v2741 = vadd.f32 0.0, %v2740
        %2742 = vdwg.mxu0
        %2743 = vmatpush.msra.mxu0 %v734
        %2744 = vmatpush.msra.mxu0 %v730
        %2745 = vmatpush.msra.mxu0 %v726
        %2746 = vmatpush.msra.mxu0 %v722
        %2747 = vmatpush.msra.mxu0 %v718
        %2748 = vmatpush.msra.mxu0 %v714
        %2749 = vmatpush.msra.mxu0 %v710
        %2750 = vmatpush.msra.mxu0 %v706
        %2751 = vmatpush.msra.mxu0 %v702
        %2752 = vmatpush.msra.mxu0 %v698
        %2753 = vmatpush.msra.mxu0 %v694
        %2754 = vmatpush.msra.mxu0 %v690
        %2755 = vmatpush.msra.mxu0 %v686
        %2756 = vmatpush.msra.mxu0 %v682
        %2757 = vmatpush.msra.mxu0 %v678
        %2758 = vmatpush.msra.mxu0 %v674
        %2759 = vmatmul.f32.gmra.mxu0 %v2538
        %v2760 = vpop.f32.mrf.mxu0
        %v2761 = vadd.f32 %v2741, %v2760
        %2762 = vdwg.mxu0
        %2763 = vmatpush.msra.mxu0 0.0
        %2764 = vmatpush.msra.mxu0 %v794
        %2765 = vmatpush.msra.mxu0 %v790
        %2766 = vmatpush.msra.mxu0 %v786
        %2767 = vmatpush.msra.mxu0 %v782
        %2768 = vmatpush.msra.mxu0 %v778
        %2769 = vmatpush.msra.mxu0 %v774
        %2770 = vmatpush.msra.mxu0 %v770
        %2771 = vmatpush.msra.mxu0 %v766
        %2772 = vmatpush.msra.mxu0 %v762
        %2773 = vmatpush.msra.mxu0 %v758
        %2774 = vmatpush.msra.mxu0 %v754
        %2775 = vmatpush.msra.mxu0 %v750
        %2776 = vmatpush.msra.mxu0 %v746
        %2777 = vmatpush.msra.mxu0 %v742
        %2778 = vmatpush.msra.mxu0 %v738
        %2779 = vmatmul.f32.gmra.mxu0 %v2541
        %v2780 = vpop.f32.mrf.mxu0
        %v2781 = vadd.f32 %v2761, %v2780
        %2782 = vdwg.mxu0
        %v2783 = vld [vmem:[%s2] sm:$0xff]
        %v2784 = vld [vmem:[%s2 + $0x8] sm:$0xff]
        %v2785 = vld [vmem:[%s2 + $0x10] sm:$0xff]
        %v2786 = vld [vmem:[%s2 + $0x18] sm:$0xff]
        %v2787 = vld [vmem:[%s2 + $0x20] sm:$0xff]
        %v2788 = vld [vmem:[%s2 + $0x28] sm:$0xff]
        %v2789 = vld [vmem:[%s2 + $0x30] sm:$0xff]
        %v2790 = vld [vmem:[%s2 + $0x38] sm:$0xff]
        %v2791 = vld [vmem:[%s2 + $0x40] sm:$0xff]
        %v2792 = vld [vmem:[%s2 + $0x48] sm:$0xff]
        %v2793 = vld [vmem:[%s2 + $0x50] sm:$0xff]
        %v2794 = vld [vmem:[%s2 + $0x58] sm:$0xff]
        %v2795 = vld [vmem:[%s2 + $0x60] sm:$0xff]
        %v2796 = vld [vmem:[%s2 + $0x68] sm:$0xff]
        %v2797 = vld [vmem:[%s2 + $0x70] sm:$0xff]
        %v2798 = vld [vmem:[%s2 + $0x78] sm:$0xff]
        %v2799 = vld [vmem:[%s2 + $0x80] sm:$0xff]
        %v2800 = vld [vmem:[%s2 + $0x88] sm:$0xff]
        %v2801 = vld [vmem:[%s2 + $0x90] sm:$0xff]
        %v2802 = vld [vmem:[%s2 + $0x98] sm:$0xff]
        %v2803 = vld [vmem:[%s2 + $0xa0] sm:$0xff]
        %v2804 = vld [vmem:[%s2 + $0xa8] sm:$0xff]
        %v2805 = vld [vmem:[%s2 + $0xb0] sm:$0xff]
        %v2806 = vld [vmem:[%s2 + $0xb8] sm:$0xff]
        %v2807 = vld [vmem:[%s2 + $0xc0] sm:$0xff]
        %v2808 = vld [vmem:[%s2 + $0xc8] sm:$0xff]
        %v2809 = vld [vmem:[%s2 + $0xd0] sm:$0xff]
        %v2810 = vld [vmem:[%s2 + $0xd8] sm:$0xff]
        %v2811 = vld [vmem:[%s2 + $0xe0] sm:$0xff]
        %v2812 = vld [vmem:[%s2 + $0xe8] sm:$0xff]
        %v2813 = vld [vmem:[%s2 + $0xf0] sm:$0xff]
        %v2814 = vld [vmem:[%s2 + $0xf8] sm:$0xff]
        %v2815 = vld [vmem:[%s2 + $0x100] sm:$0xff]
        %v2816 = vld [vmem:[%s2 + $0x108] sm:$0xff]
        %v2817 = vld [vmem:[%s2 + $0x110] sm:$0xff]
        %v2818 = vld [vmem:[%s2 + $0x118] sm:$0xff]
        %v2819 = vld [vmem:[%s2 + $0x120] sm:$0xff]
        %v2820 = vld [vmem:[%s2 + $0x128] sm:$0xff]
        %v2821 = vld [vmem:[%s2 + $0x130] sm:$0xff]
        %v2822 = vld [vmem:[%s2 + $0x138] sm:$0xff]
        %v2823 = vld [vmem:[%s2 + $0x140] sm:$0xff]
        %v2824 = vld [vmem:[%s2 + $0x148] sm:$0xff]
        %v2825 = vld [vmem:[%s2 + $0x150] sm:$0xff]
        %v2826 = vld [vmem:[%s2 + $0x158] sm:$0xff]
        %v2827 = vld [vmem:[%s2 + $0x160] sm:$0xff]
        %v2828 = vld [vmem:[%s2 + $0x168] sm:$0xff]
        %v2829 = vld [vmem:[%s2 + $0x170] sm:$0xff]
        %v2830 = vld [vmem:[%s2 + $0x178] sm:$0xff]
        %v2831 = vld [vmem:[%s2 + $0x180] sm:$0xff]
        %v2832 = vld [vmem:[%s2 + $0x188] sm:$0xff]
        %v2833 = vld [vmem:[%s2 + $0x190] sm:$0xff]
        %v2834 = vld [vmem:[%s2 + $0x198] sm:$0xff]
        %v2835 = vld [vmem:[%s2 + $0x1a0] sm:$0xff]
        %v2836 = vld [vmem:[%s2 + $0x1a8] sm:$0xff]
        %v2837 = vld [vmem:[%s2 + $0x1b0] sm:$0xff]
        %v2838 = vld [vmem:[%s2 + $0x1b8] sm:$0xff]
        %v2839 = vld [vmem:[%s2 + $0x1c0] sm:$0xff]
        %v2840 = vld [vmem:[%s2 + $0x1c8] sm:$0xff]
        %v2841 = vld [vmem:[%s2 + $0x1d0] sm:$0xff]
        %v2842 = vld [vmem:[%s2 + $0x1d8] sm:$0xff]
        %v2843 = vld [vmem:[%s2 + $0x1e0] sm:$0xff]
        %v2844 = vld [vmem:[%s2 + $0x1e8] sm:$0xff]
        %v2845 = vld [vmem:[%s2 + $0x1f0] sm:$0xff]
        %v2846 = vld [vmem:[%s2 + $0x1f8] sm:$0xff]
        %2847 = vmatpush.msra.mxu0 %v2798
        %2848 = vmatpush.msra.mxu0 %v2797
        %2849 = vmatpush.msra.mxu0 %v2796
        %2850 = vmatpush.msra.mxu0 %v2795
        %2851 = vmatpush.msra.mxu0 %v2794
        %2852 = vmatpush.msra.mxu0 %v2793
        %2853 = vmatpush.msra.mxu0 %v2792
        %2854 = vmatpush.msra.mxu0 %v2791
        %2855 = vmatpush.msra.mxu0 %v2790
        %2856 = vmatpush.msra.mxu0 %v2789
        %2857 = vmatpush.msra.mxu0 %v2788
        %2858 = vmatpush.msra.mxu0 %v2787
        %2859 = vmatpush.msra.mxu0 %v2786
        %2860 = vmatpush.msra.mxu0 %v2785
        %2861 = vmatpush.msra.mxu0 %v2784
        %2862 = vmatpush.msra.mxu0 %v2783
        %2863 = vmatmul.f32.gmra.mxu0 %v2601
        %v2864 = vpop.f32.mrf.mxu0
        %v2865 = vadd.f32 0.0, %v2864
        %2866 = vdwg.mxu0
        %2867 = vmatpush.msra.mxu0 %v2814
        %2868 = vmatpush.msra.mxu0 %v2813
        %2869 = vmatpush.msra.mxu0 %v2812
        %2870 = vmatpush.msra.mxu0 %v2811
        %2871 = vmatpush.msra.mxu0 %v2810
        %2872 = vmatpush.msra.mxu0 %v2809
        %2873 = vmatpush.msra.mxu0 %v2808
        %2874 = vmatpush.msra.mxu0 %v2807
        %2875 = vmatpush.msra.mxu0 %v2806
        %2876 = vmatpush.msra.mxu0 %v2805
        %2877 = vmatpush.msra.mxu0 %v2804
        %2878 = vmatpush.msra.mxu0 %v2803
        %2879 = vmatpush.msra.mxu0 %v2802
        %2880 = vmatpush.msra.mxu0 %v2801
        %2881 = vmatpush.msra.mxu0 %v2800
        %2882 = vmatpush.msra.mxu0 %v2799
        %2883 = vmatmul.f32.gmra.mxu0 %v2661
        %v2884 = vpop.f32.mrf.mxu0
        %v2885 = vadd.f32 %v2865, %v2884
        %2886 = vdwg.mxu0
        %2887 = vmatpush.msra.mxu0 %v2830
        %2888 = vmatpush.msra.mxu0 %v2829
        %2889 = vmatpush.msra.mxu0 %v2828
        %2890 = vmatpush.msra.mxu0 %v2827
        %2891 = vmatpush.msra.mxu0 %v2826
        %2892 = vmatpush.msra.mxu0 %v2825
        %2893 = vmatpush.msra.mxu0 %v2824
        %2894 = vmatpush.msra.mxu0 %v2823
        %2895 = vmatpush.msra.mxu0 %v2822
        %2896 = vmatpush.msra.mxu0 %v2821
        %2897 = vmatpush.msra.mxu0 %v2820
        %2898 = vmatpush.msra.mxu0 %v2819
        %2899 = vmatpush.msra.mxu0 %v2818
        %2900 = vmatpush.msra.mxu0 %v2817
        %2901 = vmatpush.msra.mxu0 %v2816
        %2902 = vmatpush.msra.mxu0 %v2815
        %2903 = vmatmul.f32.gmra.mxu0 %v2721
        %v2904 = vpop.f32.mrf.mxu0
        %v2905 = vadd.f32 %v2885, %v2904
        %2906 = vdwg.mxu0
        %2907 = vmatpush.msra.mxu0 %v2846
        %2908 = vmatpush.msra.mxu0 %v2845
        %2909 = vmatpush.msra.mxu0 %v2844
        %2910 = vmatpush.msra.mxu0 %v2843
        %2911 = vmatpush.msra.mxu0 %v2842
        %2912 = vmatpush.msra.mxu0 %v2841
        %2913 = vmatpush.msra.mxu0 %v2840
        %2914 = vmatpush.msra.mxu0 %v2839
        %2915 = vmatpush.msra.mxu0 %v2838
        %2916 = vmatpush.msra.mxu0 %v2837
        %2917 = vmatpush.msra.mxu0 %v2836
        %2918 = vmatpush.msra.mxu0 %v2835
        %2919 = vmatpush.msra.mxu0 %v2834
        %2920 = vmatpush.msra.mxu0 %v2833
        %2921 = vmatpush.msra.mxu0 %v2832
        %2922 = vmatpush.msra.mxu0 %v2831
        %2923 = vmatmul.f32.gmra.mxu0 %v2781
        %v2924 = vpop.f32.mrf.mxu0
        %v2925 = vadd.f32 %v2905, %v2924
        %2926 = vdwg.mxu0
        %v2927 = vld [vmem:[%s487] sm:$0xff]
        %v2928 = vld [vmem:[%s586] sm:$0xff]
        %2930 = vset.pattern.permute.xlu0 0
        %2931 = vperm.xlu0 %2930, %v2928
        %v2932 = vpop.permute.xlu0 %2931
        %v2935 = vsel %vm817, %v2927, 0
        %2937 = vmatpush.msra.mxu0 0.0
        %2938 = vmatpush.msra.mxu0 0.0
        %2939 = vmatpush.msra.mxu0 0.0
        %2940 = vmatpush.msra.mxu0 0.0
        %2941 = vmatpush.msra.mxu0 0.0
        %2942 = vmatpush.msra.mxu0 0.0
        %2943 = vmatpush.msra.mxu0 0.0
        %2944 = vmatpush.msra.mxu0 0.0
        %2945 = vmatpush.msra.mxu0 0.0
        %2946 = vmatpush.msra.mxu0 0.0
        %2947 = vmatpush.msra.mxu0 0.0
        %2948 = vmatpush.msra.mxu0 0.0
        %2949 = vmatpush.msra.mxu0 0.0
        %2950 = vmatpush.msra.mxu0 0.0
        %2951 = vmatpush.msra.mxu0 0.0
        %2952 = vmatpush.msra.mxu0 %v2925
        %2953 = vmatmul.f32.gmra.mxu0 %v2935
        %v2954 = vpop.f32.mrf.mxu0
        %v2955 = vadd.f32 %v2932, %v2954
        %2956 = vdwg.mxu0
        %v2957 = vmax.f32 %v2955, 0.0
        %v2958 = vld [vmem:[%s497] sm:$0xff]
        %v2959 = vld [vmem:[%s590] sm:$0xff]
        %2961 = vset.pattern.permute.xlu0 0
        %2962 = vperm.xlu0 %2961, %v2959
        %v2963 = vpop.permute.xlu0 %2962
        %v2966 = vsel %vm817, %v2958, 0
        %2968 = vmatpush.msra.mxu0 0.0
        %2969 = vmatpush.msra.mxu0 0.0
        %2970 = vmatpush.msra.mxu0 0.0
        %2971 = vmatpush.msra.mxu0 0.0
        %2972 = vmatpush.msra.mxu0 0.0
        %2973 = vmatpush.msra.mxu0 0.0
        %2974 = vmatpush.msra.mxu0 0.0
        %2975 = vmatpush.msra.mxu0 0.0
        %2976 = vmatpush.msra.mxu0 0.0
        %2977 = vmatpush.msra.mxu0 0.0
        %2978 = vmatpush.msra.mxu0 0.0
        %2979 = vmatpush.msra.mxu0 0.0
        %2980 = vmatpush.msra.mxu0 0.0
        %2981 = vmatpush.msra.mxu0 0.0
        %2982 = vmatpush.msra.mxu0 0.0
        %2983 = vmatpush.msra.mxu0 %v2957
        %2984 = vmatmul.f32.gmra.mxu0 %v2966
        %v2985 = vpop.f32.mrf.mxu0
        %v2986 = vadd.f32 %v2963, %v2985
        %2987 = vdwg.mxu0
        %v2988 = vxor.u32 %v2986, 2147483648
        %v2989 = vmul.f32 %v2988, 1.442695
        %v2990 = vpow.pop %v2989
        %v2991 = vadd.f32 %v2990, 1.0
        %v2992 = vrcp.pop %v2991
        %v2993 = vmul.f32 %v2991, %v2992
        %v2994 = vsub.f32 1.0, %v2993
        %v2995 = vmul.f32 %v2992, %v2994
        %v2996 = vadd.f32 %v2992, %v2995
        %vm2997 = vweird.f32 %v2991
        %vm2998 = vweird.f32 %v2992
        %vm2999 = vmor %vm2997, %vm2998
        %v3000 = vsel %vm2999, %v2992, %v2996
        %v3001 = vand.u32 2147483647, %v2991
        %vm3002 = vcmp.eq.f32.partialorder %v3001, 8.507059e+37
        %v3003 = vand.u32 %v2991, 2147483648
        %v3004 = vor.u32 1.1754944e-38, %v3003
        %v3005 = vsel %vm3002, %v3004, %v3000
        %v3006 = vmul.f32 1.0, %v3005
        %v3007 = vld [vmem:[#allocation5] sm:$0xff]
        %3009 = vst [vmem:[#allocation1] ss:$4 sm:$0xff] %v3007
        %v3010 = vld.sshfl [vmem:[#allocation1] sm:$0xff pattern:$0x73625140]
        %v3011 = vld.sshfl [vmem:[#allocation1 + $0x8] sm:$0xff pattern:$0x73625140]
        %v3012 = vld.sshfl [vmem:[#allocation1 + $0x10] sm:$0xff pattern:$0x73625140]
        %v3013 = vld.sshfl [vmem:[#allocation1 + $0x18] sm:$0xff pattern:$0x73625140]
        %vm3014 = vcmask 15360
        %v3016 = vsel %vm3014, %v3006, 0
        %vm3018 = vcmask 1041408
        %v3019 = vsel %vm3018, %v3010, 0
        %v3021 = vsel %vm3018, %v3011, 0
        %v3023 = vsel %vm3018, %v3012, 0
        %v3025 = vsel %vm3018, %v3013, 0
        %3027 = vmatpush.msra.mxu0 0.0
        %3028 = vmatpush.msra.mxu0 0.0
        %3029 = vmatpush.msra.mxu0 0.0
        %3030 = vmatpush.msra.mxu0 0.0
        %3031 = vmatpush.msra.mxu0 0.0
        %3032 = vmatpush.msra.mxu0 0.0
        %3033 = vmatpush.msra.mxu0 0.0
        %3034 = vmatpush.msra.mxu0 0.0
        %3035 = vmatpush.msra.mxu0 0.0
        %3036 = vmatpush.msra.mxu0 0.0
        %3037 = vmatpush.msra.mxu0 0.0
        %3038 = vmatpush.msra.mxu0 0.0
        %3039 = vmatpush.msra.mxu0 0.0
        %3040 = vmatpush.msra.mxu0 0.0
        %3041 = vmatpush.msra.mxu0 0.0
        %3042 = vmatpush.msra.mxu0 %v3019
        %3043 = vmatmul.f32.gmra.mxu0 %v3016
        %v3044 = vpop.f32.mrf.mxu0
        %v3045 = vadd.f32 0.0, %v3044
        %3046 = vdwg.mxu0
        %3047 = vmatpush.msra.mxu0 0.0
        %3048 = vmatpush.msra.mxu0 0.0
        %3049 = vmatpush.msra.mxu0 0.0
        %3050 = vmatpush.msra.mxu0 0.0
        %3051 = vmatpush.msra.mxu0 0.0
        %3052 = vmatpush.msra.mxu0 0.0
        %3053 = vmatpush.msra.mxu0 0.0
        %3054 = vmatpush.msra.mxu0 0.0
        %3055 = vmatpush.msra.mxu0 0.0
        %3056 = vmatpush.msra.mxu0 0.0
        %3057 = vmatpush.msra.mxu0 0.0
        %3058 = vmatpush.msra.mxu0 0.0
        %3059 = vmatpush.msra.mxu0 0.0
        %3060 = vmatpush.msra.mxu0 0.0
        %3061 = vmatpush.msra.mxu0 0.0
        %3062 = vmatpush.msra.mxu0 %v3021
        %3063 = vmatmul.f32.gmra.mxu0 %v3016
        %v3064 = vpop.f32.mrf.mxu0
        %v3065 = vadd.f32 0.0, %v3064
        %3066 = vdwg.mxu0
        %3067 = vmatpush.msra.mxu0 0.0
        %3068 = vmatpush.msra.mxu0 0.0
        %3069 = vmatpush.msra.mxu0 0.0
        %3070 = vmatpush.msra.mxu0 0.0
        %3071 = vmatpush.msra.mxu0 0.0
        %3072 = vmatpush.msra.mxu0 0.0
        %3073 = vmatpush.msra.mxu0 0.0
        %3074 = vmatpush.msra.mxu0 0.0
        %3075 = vmatpush.msra.mxu0 0.0
        %3076 = vmatpush.msra.mxu0 0.0
        %3077 = vmatpush.msra.mxu0 0.0
        %3078 = vmatpush.msra.mxu0 0.0
        %3079 = vmatpush.msra.mxu0 0.0
        %3080 = vmatpush.msra.mxu0 0.0
        %3081 = vmatpush.msra.mxu0 0.0
        %3082 = vmatpush.msra.mxu0 %v3023
        %3083 = vmatmul.f32.gmra.mxu0 %v3016
        %v3084 = vpop.f32.mrf.mxu0
        %v3085 = vadd.f32 0.0, %v3084
        %3086 = vdwg.mxu0
        %3087 = vmatpush.msra.mxu0 0.0
        %3088 = vmatpush.msra.mxu0 0.0
        %3089 = vmatpush.msra.mxu0 0.0
        %3090 = vmatpush.msra.mxu0 0.0
        %3091 = vmatpush.msra.mxu0 0.0
        %3092 = vmatpush.msra.mxu0 0.0
        %3093 = vmatpush.msra.mxu0 0.0
        %3094 = vmatpush.msra.mxu0 0.0
        %3095 = vmatpush.msra.mxu0 0.0
        %3096 = vmatpush.msra.mxu0 0.0
        %3097 = vmatpush.msra.mxu0 0.0
        %3098 = vmatpush.msra.mxu0 0.0
        %3099 = vmatpush.msra.mxu0 0.0
        %3100 = vmatpush.msra.mxu0 0.0
        %3101 = vmatpush.msra.mxu0 0.0
        %3102 = vmatpush.msra.mxu0 %v3025
        %3103 = vmatmul.f32.gmra.mxu0 %v3016
        %v3104 = vpop.f32.mrf.mxu0
        %v3105 = vadd.f32 0.0, %v3104
        %3106 = vdwg.mxu0
        %v3107 = vmul.f32 %v2601, %v3045
        %v3108 = vmul.f32 %v2661, %v3065
        %v3109 = vmul.f32 %v2721, %v3085
        %v3110 = vmul.f32 %v2781, %v3105
        %v3111 = vadd.f32 %v603, %v3107
        %v3112 = vadd.f32 %v604, %v3108
        %v3113 = vadd.f32 %v605, %v3109
        %v3114 = vadd.f32 %v606, %v3110
        %v3115 = vmax.f32 %v3111, 0.0
        %v3116 = vmax.f32 %v3112, 0.0
        %v3117 = vmax.f32 %v3113, 0.0
        %v3118 = vmax.f32 %v3114, 0.0
        %3119 = vst [vmem:[#allocation2] sm:$0xff] %v3115
        %3120 = vst [vmem:[#allocation2 + $0x8] sm:$0xff] %v3116
        %3121 = vst [vmem:[#allocation2 + $0x10] sm:$0xff] %v3117
        %3122 = vst [vmem:[#allocation2 + $0x18] sm:$0xff] %v3118
        %3123 = vst [vmem:[%s12] sm:$0xff] %v3115
        %3124 = vst [vmem:[%s12 + $0x8] sm:$0xff] %v3116
        %3125 = vst [vmem:[%s12 + $0x10] sm:$0xff] %v3117
        %3126 = vst [vmem:[%s12 + $0x18] sm:$0xff] %v3118
        // Predicated region
        $region89: #{attentive_nf_resnet_forward.4} parent=67 // pred_check
          %p3127 = pneg %p330
        $region90: #{attentive_nf_resnet_forward.4} parent=67 // pred_check_branch
          %3129 = sbr.rel (%p3127) target = $region92
        $region91: #{attentive_nf_resnet_forward.4} parent=67 // pred_region
          _
        $region92: #{attentive_nf_resnet_forward.4} parent=67 // pred_fallthru
          _
        // Predicated region
        $region93: #{attentive_nf_resnet_forward.4} parent=67 // pred_check
          %p3130 = pneg %p330
        $region94: #{attentive_nf_resnet_forward.4} parent=67 // pred_check_branch
          %3132 = sbr.rel (%p3130) target = $region96
        $region95: #{attentive_nf_resnet_forward.4} parent=67 // pred_region
          _
        $region96: #{attentive_nf_resnet_forward.4} parent=67 // pred_fallthru
          _
      $region68: #{attentive_nf_resnet_forward.4} parent=5 // pred_fallthru
        _
      %p3133 = scmp.le.s32.totalorder 2, %s20
      // Predicated region
      $region97: #{attentive_nf_resnet_forward.4} parent=5 // pred_check
        %p3134 = pneg %p3133
      $region98: #{attentive_nf_resnet_forward.4} parent=5 // pred_check_branch
        %3136 = sbr.rel (%p3134) target = $region100
      $region99: #{attentive_nf_resnet_forward.4} parent=5 // pred_region
        %s3137 = ssub.s32 %s20, 2
      $region100: #{attentive_nf_resnet_forward.4} parent=5 // pred_fallthru
        _
    $region6: #{attentive_nf_resnet_forward.4} parent=1 // loop_footer
      %s24 = sadd.s32 1, %s20
    $region7: #{attentive_nf_resnet_forward.4} parent=1 // loop_footer_branch
      %19 = sbr.rel target = $region3
    $region8: #{attentive_nf_resnet_forward.4} parent=1 // loop_exit
      _
    %3138 = vsyncpa [#allocation4], 1
    %s3139 = scalar_lea.sflag [#allocation4], 1
    %3140 = vsyncpa %s3139, 1
    %3141 = vsyncpa [#allocation6], 1

// kernel: attentive_nf_resnet_forward.3
$region0: #{attentive_nf_resnet_forward.3}
  #allocation0 [shape = 'u32[]', space=smem, size = 0x4, offset = 0x4, fixed_abs, tag = 'smem constant byte address 0x4 - core index']
  #allocation1 [shape = 'u32[72,128]{1,0:T(1,128)}', space=vmem, size = 0x9000, scoped, tag = 'internal scratch']
  %s0 = inlined_call_operand.vmem [shape: f32[9,512], index: 0, kind: input, shape index: {}]
  %s1 = inlined_call_operand.hbm [shape: f32[8,9], index: 1, kind: input, shape index: {}]
  %s2 = inlined_call_operand.vmem [shape: f32[8,1], index: 2, kind: input, shape index: {}]
  %s3 = inlined_call_operand.vmem [shape: f32[9,8,8], index: 3, kind: input, shape index: {}]
  %s4 = inlined_call_operand.vmem [shape: f32[8,1], index: 4, kind: input, shape index: {}]
  %s5 = inlined_call_operand.hbm [shape: f32[9,512,128], index: 5, kind: input, shape index: {}]
  %s6 = inlined_call_operand.hbm [shape: f32[128,512], index: 6, kind: input, shape index: {}]
  %s7 = inlined_call_operand.vmem [shape: f32[3,9,8,8], index: 7, kind: input, shape index: {}]
  %s8 = inlined_call_operand.vmem [shape: f32[3,8,1], index: 8, kind: input, shape index: {}]
  %s9 = inlined_call_operand.hbm [shape: f32[3,8,8], index: 9, kind: input, shape index: {}]
  %s10 = inlined_call_operand.vmem [shape: f32[8,1], index: 10, kind: input, shape index: {}]
  %s11 = inlined_call_operand.hbm [shape: f32[376,512], index: 11, kind: input, shape index: {}]
  %s12 = inlined_call_operand.vmem [shape: f32[8,512], index: 12, kind: output, shape index: {}]
  %s13 = sld [smem:[#allocation0]]
  $region78: #{attentive_nf_resnet_forward.3} parent=0
    _
  %s15 = ssub.s32 1, %s13
  %s16 = scalar_select 0, %s15, %s13
  $region1: #{attentive_nf_resnet_forward.3} parent=0
    #allocation2 [shape = 'u8[4096]{0}', space=vmem, size = 0x1000, scoped, tag = 'input window, operand 1, single buffered']
    #allocation3 [shape = 's32[1]{0}', space=sflag, size = 0x4, scoped, tag = 'scoped memory for attentive_nf_resnet_forward.3']
    #allocation4 [shape = 'u8[2359296]{0}', space=vmem, size = 0x240000, scoped, tag = 'input window, operand 5, single buffered']
    #allocation5 [shape = 's32[1]{0}', space=sflag, size = 0x4, scoped, tag = 'scoped memory for attentive_nf_resnet_forward.3']
    #allocation6 [shape = 'u8[262144]{0}', space=vmem, size = 0x40000, scoped, tag = 'input window, operand 6, single buffered']
    #allocation7 [shape = 'u8[12288]{0}', space=vmem, size = 0x3000, scoped, tag = 'input window, operand 9, single buffered']
    #allocation8 [shape = 's32[1]{0}', space=sflag, size = 0x4, scoped, tag = 'scoped memory for attentive_nf_resnet_forward.3']
    #allocation9 [shape = 'u8[770048]{0}', space=vmem, size = 0xbc000, scoped, tag = 'input window, operand 11, single buffered']
    %17 = vsyncpa [#allocation3], 0
    %18 = vsyncpa [#allocation5], 0
    %19 = vsyncpa [#allocation8], 0
    // Predicated region
    $region2: #{attentive_nf_resnet_forward.3} parent=1 // pred_check
      _
    $region3: #{attentive_nf_resnet_forward.3} parent=1 // pred_check_branch
      %21 = sbr.rel (0) target = $region5
    $region4: #{attentive_nf_resnet_forward.3} parent=1 // pred_region
      _
    $region5: #{attentive_nf_resnet_forward.3} parent=1 // pred_fallthru
      _
    // Predicated region
    $region6: #{attentive_nf_resnet_forward.3} parent=1 // pred_check
      _
    $region7: #{attentive_nf_resnet_forward.3} parent=1 // pred_check_branch
      %23 = sbr.rel (0) target = $region9
    $region8: #{attentive_nf_resnet_forward.3} parent=1 // pred_region
      %25 = vsyncadd [#allocation3], 0
      %s27 = sshll.u32 %s1, 4
      %s28 = int_to_ptr.hbm [resolvable:$true] %s27
      %s29 = sshll.u32 [#allocation2], 4
      %s30 = int_to_ptr.vmem [resolvable:$true] %s29
      %32 = dma.hbm_to_vmem [thread:$0]  %s28, 128, %s30, [#allocation3]
    $region9: #{attentive_nf_resnet_forward.3} parent=1 // pred_fallthru
      _
    // Predicated region
    $region10: #{attentive_nf_resnet_forward.3} parent=1 // pred_check
      _
    $region11: #{attentive_nf_resnet_forward.3} parent=1 // pred_check_branch
      %34 = sbr.rel (0) target = $region13
    $region12: #{attentive_nf_resnet_forward.3} parent=1 // pred_region
      _
    $region13: #{attentive_nf_resnet_forward.3} parent=1 // pred_fallthru
      _
    // Predicated region
    $region14: #{attentive_nf_resnet_forward.3} parent=1 // pred_check
      _
    $region15: #{attentive_nf_resnet_forward.3} parent=1 // pred_check_branch
      %36 = sbr.rel (0) target = $region17
    $region16: #{attentive_nf_resnet_forward.3} parent=1 // pred_region
      _
    $region17: #{attentive_nf_resnet_forward.3} parent=1 // pred_fallthru
      _
    // Predicated region
    $region18: #{attentive_nf_resnet_forward.3} parent=1 // pred_check
      _
    $region19: #{attentive_nf_resnet_forward.3} parent=1 // pred_check_branch
      %38 = sbr.rel (0) target = $region21
    $region20: #{attentive_nf_resnet_forward.3} parent=1 // pred_region
      _
    $region21: #{attentive_nf_resnet_forward.3} parent=1 // pred_fallthru
      _
    // Predicated region
    $region22: #{attentive_nf_resnet_forward.3} parent=1 // pred_check
      _
    $region23: #{attentive_nf_resnet_forward.3} parent=1 // pred_check_branch
      %40 = sbr.rel (0) target = $region25
    $region24: #{attentive_nf_resnet_forward.3} parent=1 // pred_region
      %42 = vsyncadd [#allocation5], 0
      %s43 = sshll.u32 %s5, 4
      %s44 = int_to_ptr.hbm [resolvable:$true] %s43
      %s45 = sshll.u32 [#allocation4], 4
      %s46 = int_to_ptr.vmem [resolvable:$true] %s45
      %51 = dma.hbm_to_vmem [thread:$0]  %s44, 73728, %s46, [#allocation5], 128, 128, 8
    $region25: #{attentive_nf_resnet_forward.3} parent=1 // pred_fallthru
      _
    // Predicated region
    $region26: #{attentive_nf_resnet_forward.3} parent=1 // pred_check
      _
    $region27: #{attentive_nf_resnet_forward.3} parent=1 // pred_check_branch
      %53 = sbr.rel (0) target = $region29
    $region28: #{attentive_nf_resnet_forward.3} parent=1 // pred_region
      %55 = vsyncadd [#allocation5], 0
      %s56 = sshll.u32 %s6, 4
      %s57 = int_to_ptr.hbm [resolvable:$true] %s56
      %s58 = sshll.u32 [#allocation6], 4
      %s59 = int_to_ptr.vmem [resolvable:$true] %s58
      %64 = dma.hbm_to_vmem [thread:$0]  %s57, 8192, %s59, [#allocation5], 512, 512, 32
    $region29: #{attentive_nf_resnet_forward.3} parent=1 // pred_fallthru
      _
    // Predicated region
    $region30: #{attentive_nf_resnet_forward.3} parent=1 // pred_check
      _
    $region31: #{attentive_nf_resnet_forward.3} parent=1 // pred_check_branch
      %66 = sbr.rel (0) target = $region33
    $region32: #{attentive_nf_resnet_forward.3} parent=1 // pred_region
      _
    $region33: #{attentive_nf_resnet_forward.3} parent=1 // pred_fallthru
      _
    // Predicated region
    $region34: #{attentive_nf_resnet_forward.3} parent=1 // pred_check
      _
    $region35: #{attentive_nf_resnet_forward.3} parent=1 // pred_check_branch
      %68 = sbr.rel (0) target = $region37
    $region36: #{attentive_nf_resnet_forward.3} parent=1 // pred_region
      _
    $region37: #{attentive_nf_resnet_forward.3} parent=1 // pred_fallthru
      _
    // Predicated region
    $region38: #{attentive_nf_resnet_forward.3} parent=1 // pred_check
      _
    $region39: #{attentive_nf_resnet_forward.3} parent=1 // pred_check_branch
      %70 = sbr.rel (0) target = $region41
    $region40: #{attentive_nf_resnet_forward.3} parent=1 // pred_region
      %72 = vsyncadd [#allocation8], 0
      %s73 = sshll.u32 %s9, 4
      %s74 = int_to_ptr.hbm [resolvable:$true] %s73
      %s75 = sshll.u32 [#allocation7], 4
      %s76 = int_to_ptr.vmem [resolvable:$true] %s75
      %81 = dma.hbm_to_vmem [thread:$0]  %s74, 384, %s76, [#allocation8], 128, 128, 8
    $region41: #{attentive_nf_resnet_forward.3} parent=1 // pred_fallthru
      _
    // Predicated region
    $region42: #{attentive_nf_resnet_forward.3} parent=1 // pred_check
      _
    $region43: #{attentive_nf_resnet_forward.3} parent=1 // pred_check_branch
      %83 = sbr.rel (0) target = $region45
    $region44: #{attentive_nf_resnet_forward.3} parent=1 // pred_region
      _
    $region45: #{attentive_nf_resnet_forward.3} parent=1 // pred_fallthru
      _
    // Predicated region
    $region46: #{attentive_nf_resnet_forward.3} parent=1 // pred_check
      _
    $region47: #{attentive_nf_resnet_forward.3} parent=1 // pred_check_branch
      %85 = sbr.rel (0) target = $region49
    $region48: #{attentive_nf_resnet_forward.3} parent=1 // pred_region
      %87 = vsyncadd [#allocation8], 0
      %s88 = sshll.u32 %s11, 4
      %s89 = int_to_ptr.hbm [resolvable:$true] %s88
      %s90 = sshll.u32 [#allocation9], 4
      %s91 = int_to_ptr.vmem [resolvable:$true] %s90
      %96 = dma.hbm_to_vmem [thread:$0]  %s89, 24064, %s91, [#allocation8], 512, 512, 32
    $region49: #{attentive_nf_resnet_forward.3} parent=1 // pred_fallthru
      _
    // Predicated region
    $region50: #{attentive_nf_resnet_forward.3} parent=1 // pred_check
      _
    $region51: #{attentive_nf_resnet_forward.3} parent=1 // pred_check_branch
      %98 = sbr.rel (0) target = $region53
    $region52: #{attentive_nf_resnet_forward.3} parent=1 // pred_region
      %100 = dma.done [#allocation3], 128
    $region53: #{attentive_nf_resnet_forward.3} parent=1 // pred_fallthru
      _
    // Predicated region
    $region54: #{attentive_nf_resnet_forward.3} parent=1 // pred_check
      _
    $region55: #{attentive_nf_resnet_forward.3} parent=1 // pred_check_branch
      %102 = sbr.rel (0) target = $region57
    $region56: #{attentive_nf_resnet_forward.3} parent=1 // pred_region
      %104 = dma.done [#allocation5], 73728
    $region57: #{attentive_nf_resnet_forward.3} parent=1 // pred_fallthru
      _
    // Predicated region
    $region58: #{attentive_nf_resnet_forward.3} parent=1 // pred_check
      _
    $region59: #{attentive_nf_resnet_forward.3} parent=1 // pred_check_branch
      %106 = sbr.rel (0) target = $region61
    $region60: #{attentive_nf_resnet_forward.3} parent=1 // pred_region
      %108 = dma.done [#allocation5], 8192
    $region61: #{attentive_nf_resnet_forward.3} parent=1 // pred_fallthru
      _
    // Predicated region
    $region62: #{attentive_nf_resnet_forward.3} parent=1 // pred_check
      _
    $region63: #{attentive_nf_resnet_forward.3} parent=1 // pred_check_branch
      %110 = sbr.rel (0) target = $region65
    $region64: #{attentive_nf_resnet_forward.3} parent=1 // pred_region
      %112 = dma.done [#allocation8], 384
    $region65: #{attentive_nf_resnet_forward.3} parent=1 // pred_fallthru
      _
    // Predicated region
    $region66: #{attentive_nf_resnet_forward.3} parent=1 // pred_check
      _
    $region67: #{attentive_nf_resnet_forward.3} parent=1 // pred_check_branch
      %114 = sbr.rel (0) target = $region69
    $region68: #{attentive_nf_resnet_forward.3} parent=1 // pred_region
      %116 = dma.done [#allocation8], 24064
    $region69: #{attentive_nf_resnet_forward.3} parent=1 // pred_fallthru
      _
    %v117 = vld [vmem:[#allocation2] sm:$0xff]
    %v118 = vld [vmem:[%s0] sm:$0xff]
    %v119 = vld [vmem:[%s0 + $0x8] sm:$0xff]
    %v120 = vld [vmem:[%s0 + $0x10] sm:$0xff]
    %v121 = vld [vmem:[%s0 + $0x18] sm:$0xff]
    %v122 = vld [vmem:[%s0 + $0x20] sm:$0x1]
    %v123 = vld [vmem:[%s0 + $0x28] sm:$0x1]
    %v124 = vld [vmem:[%s0 + $0x30] sm:$0x1]
    %v125 = vld [vmem:[%s0 + $0x38] sm:$0x1]
    %v126 = vld [vmem:[%s2] sm:$0xff]
    %128 = vset.pattern.permute.xlu0 0
    %129 = vperm.xlu0 %128, %v126
    %v130 = vpop.permute.xlu0 %129
    %vm132 = vcmask 72704
    %v134 = vsel %vm132, %v117, 0
    %vm136 = vcmask 1040384
    %v138 = vsel %vm136, %v122, 0
    %v141 = vsel %vm136, %v123, 0
    %v144 = vsel %vm136, %v124, 0
    %v147 = vsel %vm136, %v125, 0
    %149 = vmatpush.msra.mxu0 0.0
    %150 = vmatpush.msra.mxu0 0.0
    %151 = vmatpush.msra.mxu0 0.0
    %152 = vmatpush.msra.mxu0 0.0
    %153 = vmatpush.msra.mxu0 0.0
    %154 = vmatpush.msra.mxu0 0.0
    %155 = vmatpush.msra.mxu0 0.0
    %156 = vmatpush.msra.mxu0 0.0
    %157 = vmatpush.msra.mxu0 0.0
    %158 = vmatpush.msra.mxu0 0.0
    %159 = vmatpush.msra.mxu0 0.0
    %160 = vmatpush.msra.mxu0 0.0
    %161 = vmatpush.msra.mxu0 0.0
    %162 = vmatpush.msra.mxu0 0.0
    %163 = vmatpush.msra.mxu0 %v138
    %164 = vmatpush.msra.mxu0 %v118
    %165 = vmatmul.f32.gmra.mxu0 %v134
    %v166 = vpop.f32.mrf.mxu0
    %v167 = vadd.f32 %v130, %v166
    %168 = vdwg.mxu0
    %169 = vmatpush.msra.mxu0 0.0
    %170 = vmatpush.msra.mxu0 0.0
    %171 = vmatpush.msra.mxu0 0.0
    %172 = vmatpush.msra.mxu0 0.0
    %173 = vmatpush.msra.mxu0 0.0
    %174 = vmatpush.msra.mxu0 0.0
    %175 = vmatpush.msra.mxu0 0.0
    %176 = vmatpush.msra.mxu0 0.0
    %177 = vmatpush.msra.mxu0 0.0
    %178 = vmatpush.msra.mxu0 0.0
    %179 = vmatpush.msra.mxu0 0.0
    %180 = vmatpush.msra.mxu0 0.0
    %181 = vmatpush.msra.mxu0 0.0
    %182 = vmatpush.msra.mxu0 0.0
    %183 = vmatpush.msra.mxu0 %v141
    %184 = vmatpush.msra.mxu0 %v119
    %185 = vmatmul.f32.gmra.mxu0 %v134
    %v186 = vpop.f32.mrf.mxu0
    %v187 = vadd.f32 %v130, %v186
    %188 = vdwg.mxu0
    %189 = vmatpush.msra.mxu0 0.0
    %190 = vmatpush.msra.mxu0 0.0
    %191 = vmatpush.msra.mxu0 0.0
    %192 = vmatpush.msra.mxu0 0.0
    %193 = vmatpush.msra.mxu0 0.0
    %194 = vmatpush.msra.mxu0 0.0
    %195 = vmatpush.msra.mxu0 0.0
    %196 = vmatpush.msra.mxu0 0.0
    %197 = vmatpush.msra.mxu0 0.0
    %198 = vmatpush.msra.mxu0 0.0
    %199 = vmatpush.msra.mxu0 0.0
    %200 = vmatpush.msra.mxu0 0.0
    %201 = vmatpush.msra.mxu0 0.0
    %202 = vmatpush.msra.mxu0 0.0
    %203 = vmatpush.msra.mxu0 %v144
    %204 = vmatpush.msra.mxu0 %v120
    %205 = vmatmul.f32.gmra.mxu0 %v134
    %v206 = vpop.f32.mrf.mxu0
    %v207 = vadd.f32 %v130, %v206
    %208 = vdwg.mxu0
    %209 = vmatpush.msra.mxu0 0.0
    %210 = vmatpush.msra.mxu0 0.0
    %211 = vmatpush.msra.mxu0 0.0
    %212 = vmatpush.msra.mxu0 0.0
    %213 = vmatpush.msra.mxu0 0.0
    %214 = vmatpush.msra.mxu0 0.0
    %215 = vmatpush.msra.mxu0 0.0
    %216 = vmatpush.msra.mxu0 0.0
    %217 = vmatpush.msra.mxu0 0.0
    %218 = vmatpush.msra.mxu0 0.0
    %219 = vmatpush.msra.mxu0 0.0
    %220 = vmatpush.msra.mxu0 0.0
    %221 = vmatpush.msra.mxu0 0.0
    %222 = vmatpush.msra.mxu0 0.0
    %223 = vmatpush.msra.mxu0 %v147
    %224 = vmatpush.msra.mxu0 %v121
    %225 = vmatmul.f32.gmra.mxu0 %v134
    %v226 = vpop.f32.mrf.mxu0
    %v227 = vadd.f32 %v130, %v226
    %228 = vdwg.mxu0
    %v229 = vmax.f32 %v167, 0.0
    %v230 = vmax.f32 %v187, 0.0
    %v231 = vmax.f32 %v207, 0.0
    %v232 = vmax.f32 %v227, 0.0
    %v233 = vld [vmem:[#allocation4] sm:$0xff]
    %v234 = vld [vmem:[#allocation4 + $0x8] sm:$0xff]
    %v235 = vld [vmem:[#allocation4 + $0x10] sm:$0xff]
    %v236 = vld [vmem:[#allocation4 + $0x18] sm:$0xff]
    %v237 = vld [vmem:[#allocation4 + $0x20] sm:$0xff]
    %v238 = vld [vmem:[#allocation4 + $0x28] sm:$0xff]
    %v239 = vld [vmem:[#allocation4 + $0x30] sm:$0xff]
    %v240 = vld [vmem:[#allocation4 + $0x38] sm:$0xff]
    %v241 = vld [vmem:[#allocation4 + $0x40] sm:$0xff]
    %v242 = vld [vmem:[#allocation4 + $0x48] sm:$0xff]
    %v243 = vld [vmem:[#allocation4 + $0x50] sm:$0xff]
    %v244 = vld [vmem:[#allocation4 + $0x58] sm:$0xff]
    %v245 = vld [vmem:[#allocation4 + $0x60] sm:$0xff]
    %v246 = vld [vmem:[#allocation4 + $0x68] sm:$0xff]
    %v247 = vld [vmem:[#allocation4 + $0x70] sm:$0xff]
    %v248 = vld [vmem:[#allocation4 + $0x78] sm:$0xff]
    %v249 = vld [vmem:[#allocation4 + $0x80] sm:$0xff]
    %v250 = vld [vmem:[#allocation4 + $0x88] sm:$0xff]
    %v251 = vld [vmem:[#allocation4 + $0x90] sm:$0xff]
    %v252 = vld [vmem:[#allocation4 + $0x98] sm:$0xff]
    %v253 = vld [vmem:[#allocation4 + $0xa0] sm:$0xff]
    %v254 = vld [vmem:[#allocation4 + $0xa8] sm:$0xff]
    %v255 = vld [vmem:[#allocation4 + $0xb0] sm:$0xff]
    %v256 = vld [vmem:[#allocation4 + $0xb8] sm:$0xff]
    %v257 = vld [vmem:[#allocation4 + $0xc0] sm:$0xff]
    %v258 = vld [vmem:[#allocation4 + $0xc8] sm:$0xff]
    %v259 = vld [vmem:[#allocation4 + $0xd0] sm:$0xff]
    %v260 = vld [vmem:[#allocation4 + $0xd8] sm:$0xff]
    %v261 = vld [vmem:[#allocation4 + $0xe0] sm:$0xff]
    %v262 = vld [vmem:[#allocation4 + $0xe8] sm:$0xff]
    %v263 = vld [vmem:[#allocation4 + $0xf0] sm:$0xff]
    %v264 = vld [vmem:[#allocation4 + $0xf8] sm:$0xff]
    %v265 = vld [vmem:[#allocation4 + $0x100] sm:$0xff]
    %v266 = vld [vmem:[#allocation4 + $0x108] sm:$0xff]
    %v267 = vld [vmem:[#allocation4 + $0x110] sm:$0xff]
    %v268 = vld [vmem:[#allocation4 + $0x118] sm:$0xff]
    %v269 = vld [vmem:[#allocation4 + $0x120] sm:$0xff]
    %v270 = vld [vmem:[#allocation4 + $0x128] sm:$0xff]
    %v271 = vld [vmem:[#allocation4 + $0x130] sm:$0xff]
    %v272 = vld [vmem:[#allocation4 + $0x138] sm:$0xff]
    %v273 = vld [vmem:[#allocation4 + $0x140] sm:$0xff]
    %v274 = vld [vmem:[#allocation4 + $0x148] sm:$0xff]
    %v275 = vld [vmem:[#allocation4 + $0x150] sm:$0xff]
    %v276 = vld [vmem:[#allocation4 + $0x158] sm:$0xff]
    %v277 = vld [vmem:[#allocation4 + $0x160] sm:$0xff]
    %v278 = vld [vmem:[#allocation4 + $0x168] sm:$0xff]
    %v279 = vld [vmem:[#allocation4 + $0x170] sm:$0xff]
    %v280 = vld [vmem:[#allocation4 + $0x178] sm:$0xff]
    %v281 = vld [vmem:[#allocation4 + $0x180] sm:$0xff]
    %v282 = vld [vmem:[#allocation4 + $0x188] sm:$0xff]
    %v283 = vld [vmem:[#allocation4 + $0x190] sm:$0xff]
    %v284 = vld [vmem:[#allocation4 + $0x198] sm:$0xff]
    %v285 = vld [vmem:[#allocation4 + $0x1a0] sm:$0xff]
    %v286 = vld [vmem:[#allocation4 + $0x1a8] sm:$0xff]
    %v287 = vld [vmem:[#allocation4 + $0x1b0] sm:$0xff]
    %v288 = vld [vmem:[#allocation4 + $0x1b8] sm:$0xff]
    %v289 = vld [vmem:[#allocation4 + $0x1c0] sm:$0xff]
    %v290 = vld [vmem:[#allocation4 + $0x1c8] sm:$0xff]
    %v291 = vld [vmem:[#allocation4 + $0x1d0] sm:$0xff]
    %v292 = vld [vmem:[#allocation4 + $0x1d8] sm:$0xff]
    %v293 = vld [vmem:[#allocation4 + $0x1e0] sm:$0xff]
    %v294 = vld [vmem:[#allocation4 + $0x1e8] sm:$0xff]
    %v295 = vld [vmem:[#allocation4 + $0x1f0] sm:$0xff]
    %v296 = vld [vmem:[#allocation4 + $0x1f8] sm:$0xff]
    %297 = vmatpush.msra.mxu0 %v248
    %298 = vmatpush.msra.mxu0 %v247
    %299 = vmatpush.msra.mxu0 %v246
    %300 = vmatpush.msra.mxu0 %v245
    %301 = vmatpush.msra.mxu0 %v244
    %302 = vmatpush.msra.mxu0 %v243
    %303 = vmatpush.msra.mxu0 %v242
    %304 = vmatpush.msra.mxu0 %v241
    %305 = vmatpush.msra.mxu0 %v240
    %306 = vmatpush.msra.mxu0 %v239
    %307 = vmatpush.msra.mxu0 %v238
    %308 = vmatpush.msra.mxu0 %v237
    %309 = vmatpush.msra.mxu0 %v236
    %310 = vmatpush.msra.mxu0 %v235
    %311 = vmatpush.msra.mxu0 %v234
    %312 = vmatpush.msra.mxu0 %v233
    %313 = vmatmul.f32.gmra.mxu0 %v229
    %v314 = vpop.f32.mrf.mxu0
    %v315 = vadd.f32 0.0, %v314
    %316 = vdwg.mxu0
    %317 = vmatpush.msra.mxu0 %v264
    %318 = vmatpush.msra.mxu0 %v263
    %319 = vmatpush.msra.mxu0 %v262
    %320 = vmatpush.msra.mxu0 %v261
    %321 = vmatpush.msra.mxu0 %v260
    %322 = vmatpush.msra.mxu0 %v259
    %323 = vmatpush.msra.mxu0 %v258
    %324 = vmatpush.msra.mxu0 %v257
    %325 = vmatpush.msra.mxu0 %v256
    %326 = vmatpush.msra.mxu0 %v255
    %327 = vmatpush.msra.mxu0 %v254
    %328 = vmatpush.msra.mxu0 %v253
    %329 = vmatpush.msra.mxu0 %v252
    %330 = vmatpush.msra.mxu0 %v251
    %331 = vmatpush.msra.mxu0 %v250
    %332 = vmatpush.msra.mxu0 %v249
    %333 = vmatmul.f32.gmra.mxu0 %v230
    %v334 = vpop.f32.mrf.mxu0
    %v335 = vadd.f32 %v315, %v334
    %336 = vdwg.mxu0
    %337 = vmatpush.msra.mxu0 %v280
    %338 = vmatpush.msra.mxu0 %v279
    %339 = vmatpush.msra.mxu0 %v278
    %340 = vmatpush.msra.mxu0 %v277
    %341 = vmatpush.msra.mxu0 %v276
    %342 = vmatpush.msra.mxu0 %v275
    %343 = vmatpush.msra.mxu0 %v274
    %344 = vmatpush.msra.mxu0 %v273
    %345 = vmatpush.msra.mxu0 %v272
    %346 = vmatpush.msra.mxu0 %v271
    %347 = vmatpush.msra.mxu0 %v270
    %348 = vmatpush.msra.mxu0 %v269
    %349 = vmatpush.msra.mxu0 %v268
    %350 = vmatpush.msra.mxu0 %v267
    %351 = vmatpush.msra.mxu0 %v266
    %352 = vmatpush.msra.mxu0 %v265
    %353 = vmatmul.f32.gmra.mxu0 %v231
    %v354 = vpop.f32.mrf.mxu0
    %v355 = vadd.f32 %v335, %v354
    %356 = vdwg.mxu0
    %357 = vmatpush.msra.mxu0 %v296
    %358 = vmatpush.msra.mxu0 %v295
    %359 = vmatpush.msra.mxu0 %v294
    %360 = vmatpush.msra.mxu0 %v293
    %361 = vmatpush.msra.mxu0 %v292
    %362 = vmatpush.msra.mxu0 %v291
    %363 = vmatpush.msra.mxu0 %v290
    %364 = vmatpush.msra.mxu0 %v289
    %365 = vmatpush.msra.mxu0 %v288
    %366 = vmatpush.msra.mxu0 %v287
    %367 = vmatpush.msra.mxu0 %v286
    %368 = vmatpush.msra.mxu0 %v285
    %369 = vmatpush.msra.mxu0 %v284
    %370 = vmatpush.msra.mxu0 %v283
    %371 = vmatpush.msra.mxu0 %v282
    %372 = vmatpush.msra.mxu0 %v281
    %373 = vmatmul.f32.gmra.mxu0 %v232
    %v374 = vpop.f32.mrf.mxu0
    %v375 = vadd.f32 %v355, %v374
    %376 = vdwg.mxu0
    %v377 = vld [vmem:[%s3] sm:$0xff]
    %s378 = scalar_lea.vmem [#allocation4], 512
    %v379 = vld [vmem:[%s378] sm:$0xff]
    %v380 = vld [vmem:[%s378 + $0x8] sm:$0xff]
    %v381 = vld [vmem:[%s378 + $0x10] sm:$0xff]
    %v382 = vld [vmem:[%s378 + $0x18] sm:$0xff]
    %v383 = vld [vmem:[%s378 + $0x20] sm:$0xff]
    %v384 = vld [vmem:[%s378 + $0x28] sm:$0xff]
    %v385 = vld [vmem:[%s378 + $0x30] sm:$0xff]
    %v386 = vld [vmem:[%s378 + $0x38] sm:$0xff]
    %v387 = vld [vmem:[%s378 + $0x40] sm:$0xff]
    %v388 = vld [vmem:[%s378 + $0x48] sm:$0xff]
    %v389 = vld [vmem:[%s378 + $0x50] sm:$0xff]
    %v390 = vld [vmem:[%s378 + $0x58] sm:$0xff]
    %v391 = vld [vmem:[%s378 + $0x60] sm:$0xff]
    %v392 = vld [vmem:[%s378 + $0x68] sm:$0xff]
    %v393 = vld [vmem:[%s378 + $0x70] sm:$0xff]
    %v394 = vld [vmem:[%s378 + $0x78] sm:$0xff]
    %v395 = vld [vmem:[%s378 + $0x80] sm:$0xff]
    %v396 = vld [vmem:[%s378 + $0x88] sm:$0xff]
    %v397 = vld [vmem:[%s378 + $0x90] sm:$0xff]
    %v398 = vld [vmem:[%s378 + $0x98] sm:$0xff]
    %v399 = vld [vmem:[%s378 + $0xa0] sm:$0xff]
    %v400 = vld [vmem:[%s378 + $0xa8] sm:$0xff]
    %v401 = vld [vmem:[%s378 + $0xb0] sm:$0xff]
    %v402 = vld [vmem:[%s378 + $0xb8] sm:$0xff]
    %v403 = vld [vmem:[%s378 + $0xc0] sm:$0xff]
    %v404 = vld [vmem:[%s378 + $0xc8] sm:$0xff]
    %v405 = vld [vmem:[%s378 + $0xd0] sm:$0xff]
    %v406 = vld [vmem:[%s378 + $0xd8] sm:$0xff]
    %v407 = vld [vmem:[%s378 + $0xe0] sm:$0xff]
    %v408 = vld [vmem:[%s378 + $0xe8] sm:$0xff]
    %v409 = vld [vmem:[%s378 + $0xf0] sm:$0xff]
    %v410 = vld [vmem:[%s378 + $0xf8] sm:$0xff]
    %v411 = vld [vmem:[%s378 + $0x100] sm:$0xff]
    %v412 = vld [vmem:[%s378 + $0x108] sm:$0xff]
    %v413 = vld [vmem:[%s378 + $0x110] sm:$0xff]
    %v414 = vld [vmem:[%s378 + $0x118] sm:$0xff]
    %v415 = vld [vmem:[%s378 + $0x120] sm:$0xff]
    %v416 = vld [vmem:[%s378 + $0x128] sm:$0xff]
    %v417 = vld [vmem:[%s378 + $0x130] sm:$0xff]
    %v418 = vld [vmem:[%s378 + $0x138] sm:$0xff]
    %v419 = vld [vmem:[%s378 + $0x140] sm:$0xff]
    %v420 = vld [vmem:[%s378 + $0x148] sm:$0xff]
    %v421 = vld [vmem:[%s378 + $0x150] sm:$0xff]
    %v422 = vld [vmem:[%s378 + $0x158] sm:$0xff]
    %v423 = vld [vmem:[%s378 + $0x160] sm:$0xff]
    %v424 = vld [vmem:[%s378 + $0x168] sm:$0xff]
    %v425 = vld [vmem:[%s378 + $0x170] sm:$0xff]
    %v426 = vld [vmem:[%s378 + $0x178] sm:$0xff]
    %v427 = vld [vmem:[%s378 + $0x180] sm:$0xff]
    %v428 = vld [vmem:[%s378 + $0x188] sm:$0xff]
    %v429 = vld [vmem:[%s378 + $0x190] sm:$0xff]
    %v430 = vld [vmem:[%s378 + $0x198] sm:$0xff]
    %v431 = vld [vmem:[%s378 + $0x1a0] sm:$0xff]
    %v432 = vld [vmem:[%s378 + $0x1a8] sm:$0xff]
    %v433 = vld [vmem:[%s378 + $0x1b0] sm:$0xff]
    %v434 = vld [vmem:[%s378 + $0x1b8] sm:$0xff]
    %v435 = vld [vmem:[%s378 + $0x1c0] sm:$0xff]
    %v436 = vld [vmem:[%s378 + $0x1c8] sm:$0xff]
    %v437 = vld [vmem:[%s378 + $0x1d0] sm:$0xff]
    %v438 = vld [vmem:[%s378 + $0x1d8] sm:$0xff]
    %v439 = vld [vmem:[%s378 + $0x1e0] sm:$0xff]
    %v440 = vld [vmem:[%s378 + $0x1e8] sm:$0xff]
    %v441 = vld [vmem:[%s378 + $0x1f0] sm:$0xff]
    %v442 = vld [vmem:[%s378 + $0x1f8] sm:$0xff]
    %443 = vmatpush.msra.mxu0 %v394
    %444 = vmatpush.msra.mxu0 %v393
    %445 = vmatpush.msra.mxu0 %v392
    %446 = vmatpush.msra.mxu0 %v391
    %447 = vmatpush.msra.mxu0 %v390
    %448 = vmatpush.msra.mxu0 %v389
    %449 = vmatpush.msra.mxu0 %v388
    %450 = vmatpush.msra.mxu0 %v387
    %451 = vmatpush.msra.mxu0 %v386
    %452 = vmatpush.msra.mxu0 %v385
    %453 = vmatpush.msra.mxu0 %v384
    %454 = vmatpush.msra.mxu0 %v383
    %455 = vmatpush.msra.mxu0 %v382
    %456 = vmatpush.msra.mxu0 %v381
    %457 = vmatpush.msra.mxu0 %v380
    %458 = vmatpush.msra.mxu0 %v379
    %459 = vmatmul.f32.gmra.mxu0 %v229
    %v460 = vpop.f32.mrf.mxu0
    %v461 = vadd.f32 0.0, %v460
    %462 = vdwg.mxu0
    %463 = vmatpush.msra.mxu0 %v410
    %464 = vmatpush.msra.mxu0 %v409
    %465 = vmatpush.msra.mxu0 %v408
    %466 = vmatpush.msra.mxu0 %v407
    %467 = vmatpush.msra.mxu0 %v406
    %468 = vmatpush.msra.mxu0 %v405
    %469 = vmatpush.msra.mxu0 %v404
    %470 = vmatpush.msra.mxu0 %v403
    %471 = vmatpush.msra.mxu0 %v402
    %472 = vmatpush.msra.mxu0 %v401
    %473 = vmatpush.msra.mxu0 %v400
    %474 = vmatpush.msra.mxu0 %v399
    %475 = vmatpush.msra.mxu0 %v398
    %476 = vmatpush.msra.mxu0 %v397
    %477 = vmatpush.msra.mxu0 %v396
    %478 = vmatpush.msra.mxu0 %v395
    %479 = vmatmul.f32.gmra.mxu0 %v230
    %v480 = vpop.f32.mrf.mxu0
    %v481 = vadd.f32 %v461, %v480
    %482 = vdwg.mxu0
    %483 = vmatpush.msra.mxu0 %v426
    %484 = vmatpush.msra.mxu0 %v425
    %485 = vmatpush.msra.mxu0 %v424
    %486 = vmatpush.msra.mxu0 %v423
    %487 = vmatpush.msra.mxu0 %v422
    %488 = vmatpush.msra.mxu0 %v421
    %489 = vmatpush.msra.mxu0 %v420
    %490 = vmatpush.msra.mxu0 %v419
    %491 = vmatpush.msra.mxu0 %v418
    %492 = vmatpush.msra.mxu0 %v417
    %493 = vmatpush.msra.mxu0 %v416
    %494 = vmatpush.msra.mxu0 %v415
    %495 = vmatpush.msra.mxu0 %v414
    %496 = vmatpush.msra.mxu0 %v413
    %497 = vmatpush.msra.mxu0 %v412
    %498 = vmatpush.msra.mxu0 %v411
    %499 = vmatmul.f32.gmra.mxu0 %v231
    %v500 = vpop.f32.mrf.mxu0
    %v501 = vadd.f32 %v481, %v500
    %502 = vdwg.mxu0
    %503 = vmatpush.msra.mxu0 %v442
    %504 = vmatpush.msra.mxu0 %v441
    %505 = vmatpush.msra.mxu0 %v440
    %506 = vmatpush.msra.mxu0 %v439
    %507 = vmatpush.msra.mxu0 %v438
    %508 = vmatpush.msra.mxu0 %v437
    %509 = vmatpush.msra.mxu0 %v436
    %510 = vmatpush.msra.mxu0 %v435
    %511 = vmatpush.msra.mxu0 %v434
    %512 = vmatpush.msra.mxu0 %v433
    %513 = vmatpush.msra.mxu0 %v432
    %514 = vmatpush.msra.mxu0 %v431
    %515 = vmatpush.msra.mxu0 %v430
    %516 = vmatpush.msra.mxu0 %v429
    %517 = vmatpush.msra.mxu0 %v428
    %518 = vmatpush.msra.mxu0 %v427
    %519 = vmatmul.f32.gmra.mxu0 %v232
    %v520 = vpop.f32.mrf.mxu0
    %v521 = vadd.f32 %v501, %v520
    %522 = vdwg.mxu0
    %s523 = scalar_lea.vmem %s3, 8
    %v524 = vld [vmem:[%s523] sm:$0xff]
    %vm525 = vcmask 64512
    %v527 = vsel %vm525, %v524, 0
    %529 = vmatpush.msra.mxu0 0.0
    %530 = vmatpush.msra.mxu0 0.0
    %531 = vmatpush.msra.mxu0 0.0
    %532 = vmatpush.msra.mxu0 0.0
    %533 = vmatpush.msra.mxu0 0.0
    %534 = vmatpush.msra.mxu0 0.0
    %535 = vmatpush.msra.mxu0 0.0
    %536 = vmatpush.msra.mxu0 0.0
    %537 = vmatpush.msra.mxu0 0.0
    %538 = vmatpush.msra.mxu0 0.0
    %539 = vmatpush.msra.mxu0 0.0
    %540 = vmatpush.msra.mxu0 0.0
    %541 = vmatpush.msra.mxu0 0.0
    %542 = vmatpush.msra.mxu0 0.0
    %543 = vmatpush.msra.mxu0 0.0
    %544 = vmatpush.msra.mxu0 %v521
    %545 = vmatmul.f32.gmra.mxu0 %v527
    %v546 = vpop.f32.mrf.mxu0
    %v547 = vadd.f32 0.0, %v546
    %548 = vdwg.mxu0
    %v550 = vsel %vm525, %v377, 0
    %552 = vmatpush.msra.mxu0 0.0
    %553 = vmatpush.msra.mxu0 0.0
    %554 = vmatpush.msra.mxu0 0.0
    %555 = vmatpush.msra.mxu0 0.0
    %556 = vmatpush.msra.mxu0 0.0
    %557 = vmatpush.msra.mxu0 0.0
    %558 = vmatpush.msra.mxu0 0.0
    %559 = vmatpush.msra.mxu0 0.0
    %560 = vmatpush.msra.mxu0 0.0
    %561 = vmatpush.msra.mxu0 0.0
    %562 = vmatpush.msra.mxu0 0.0
    %563 = vmatpush.msra.mxu0 0.0
    %564 = vmatpush.msra.mxu0 0.0
    %565 = vmatpush.msra.mxu0 0.0
    %566 = vmatpush.msra.mxu0 0.0
    %567 = vmatpush.msra.mxu0 %v375
    %568 = vmatmul.f32.gmra.mxu0 %v550
    %v569 = vpop.f32.mrf.mxu0
    %v570 = vadd.f32 %v547, %v569
    %571 = vdwg.mxu0
    %s572 = scalar_lea.vmem [#allocation4], 1024
    %v573 = vld [vmem:[%s572] sm:$0xff]
    %v574 = vld [vmem:[%s572 + $0x8] sm:$0xff]
    %v575 = vld [vmem:[%s572 + $0x10] sm:$0xff]
    %v576 = vld [vmem:[%s572 + $0x18] sm:$0xff]
    %v577 = vld [vmem:[%s572 + $0x20] sm:$0xff]
    %v578 = vld [vmem:[%s572 + $0x28] sm:$0xff]
    %v579 = vld [vmem:[%s572 + $0x30] sm:$0xff]
    %v580 = vld [vmem:[%s572 + $0x38] sm:$0xff]
    %v581 = vld [vmem:[%s572 + $0x40] sm:$0xff]
    %v582 = vld [vmem:[%s572 + $0x48] sm:$0xff]
    %v583 = vld [vmem:[%s572 + $0x50] sm:$0xff]
    %v584 = vld [vmem:[%s572 + $0x58] sm:$0xff]
    %v585 = vld [vmem:[%s572 + $0x60] sm:$0xff]
    %v586 = vld [vmem:[%s572 + $0x68] sm:$0xff]
    %v587 = vld [vmem:[%s572 + $0x70] sm:$0xff]
    %v588 = vld [vmem:[%s572 + $0x78] sm:$0xff]
    %v589 = vld [vmem:[%s572 + $0x80] sm:$0xff]
    %v590 = vld [vmem:[%s572 + $0x88] sm:$0xff]
    %v591 = vld [vmem:[%s572 + $0x90] sm:$0xff]
    %v592 = vld [vmem:[%s572 + $0x98] sm:$0xff]
    %v593 = vld [vmem:[%s572 + $0xa0] sm:$0xff]
    %v594 = vld [vmem:[%s572 + $0xa8] sm:$0xff]
    %v595 = vld [vmem:[%s572 + $0xb0] sm:$0xff]
    %v596 = vld [vmem:[%s572 + $0xb8] sm:$0xff]
    %v597 = vld [vmem:[%s572 + $0xc0] sm:$0xff]
    %v598 = vld [vmem:[%s572 + $0xc8] sm:$0xff]
    %v599 = vld [vmem:[%s572 + $0xd0] sm:$0xff]
    %v600 = vld [vmem:[%s572 + $0xd8] sm:$0xff]
    %v601 = vld [vmem:[%s572 + $0xe0] sm:$0xff]
    %v602 = vld [vmem:[%s572 + $0xe8] sm:$0xff]
    %v603 = vld [vmem:[%s572 + $0xf0] sm:$0xff]
    %v604 = vld [vmem:[%s572 + $0xf8] sm:$0xff]
    %v605 = vld [vmem:[%s572 + $0x100] sm:$0xff]
    %v606 = vld [vmem:[%s572 + $0x108] sm:$0xff]
    %v607 = vld [vmem:[%s572 + $0x110] sm:$0xff]
    %v608 = vld [vmem:[%s572 + $0x118] sm:$0xff]
    %v609 = vld [vmem:[%s572 + $0x120] sm:$0xff]
    %v610 = vld [vmem:[%s572 + $0x128] sm:$0xff]
    %v611 = vld [vmem:[%s572 + $0x130] sm:$0xff]
    %v612 = vld [vmem:[%s572 + $0x138] sm:$0xff]
    %v613 = vld [vmem:[%s572 + $0x140] sm:$0xff]
    %v614 = vld [vmem:[%s572 + $0x148] sm:$0xff]
    %v615 = vld [vmem:[%s572 + $0x150] sm:$0xff]
    %v616 = vld [vmem:[%s572 + $0x158] sm:$0xff]
    %v617 = vld [vmem:[%s572 + $0x160] sm:$0xff]
    %v618 = vld [vmem:[%s572 + $0x168] sm:$0xff]
    %v619 = vld [vmem:[%s572 + $0x170] sm:$0xff]
    %v620 = vld [vmem:[%s572 + $0x178] sm:$0xff]
    %v621 = vld [vmem:[%s572 + $0x180] sm:$0xff]
    %v622 = vld [vmem:[%s572 + $0x188] sm:$0xff]
    %v623 = vld [vmem:[%s572 + $0x190] sm:$0xff]
    %v624 = vld [vmem:[%s572 + $0x198] sm:$0xff]
    %v625 = vld [vmem:[%s572 + $0x1a0] sm:$0xff]
    %v626 = vld [vmem:[%s572 + $0x1a8] sm:$0xff]
    %v627 = vld [vmem:[%s572 + $0x1b0] sm:$0xff]
    %v628 = vld [vmem:[%s572 + $0x1b8] sm:$0xff]
    %v629 = vld [vmem:[%s572 + $0x1c0] sm:$0xff]
    %v630 = vld [vmem:[%s572 + $0x1c8] sm:$0xff]
    %v631 = vld [vmem:[%s572 + $0x1d0] sm:$0xff]
    %v632 = vld [vmem:[%s572 + $0x1d8] sm:$0xff]
    %v633 = vld [vmem:[%s572 + $0x1e0] sm:$0xff]
    %v634 = vld [vmem:[%s572 + $0x1e8] sm:$0xff]
    %v635 = vld [vmem:[%s572 + $0x1f0] sm:$0xff]
    %v636 = vld [vmem:[%s572 + $0x1f8] sm:$0xff]
    %637 = vmatpush.msra.mxu0 %v588
    %638 = vmatpush.msra.mxu0 %v587
    %639 = vmatpush.msra.mxu0 %v586
    %640 = vmatpush.msra.mxu0 %v585
    %641 = vmatpush.msra.mxu0 %v584
    %642 = vmatpush.msra.mxu0 %v583
    %643 = vmatpush.msra.mxu0 %v582
    %644 = vmatpush.msra.mxu0 %v581
    %645 = vmatpush.msra.mxu0 %v580
    %646 = vmatpush.msra.mxu0 %v579
    %647 = vmatpush.msra.mxu0 %v578
    %648 = vmatpush.msra.mxu0 %v577
    %649 = vmatpush.msra.mxu0 %v576
    %650 = vmatpush.msra.mxu0 %v575
    %651 = vmatpush.msra.mxu0 %v574
    %652 = vmatpush.msra.mxu0 %v573
    %653 = vmatmul.f32.gmra.mxu0 %v229
    %v654 = vpop.f32.mrf.mxu0
    %v655 = vadd.f32 0.0, %v654
    %656 = vdwg.mxu0
    %657 = vmatpush.msra.mxu0 %v604
    %658 = vmatpush.msra.mxu0 %v603
    %659 = vmatpush.msra.mxu0 %v602
    %660 = vmatpush.msra.mxu0 %v601
    %661 = vmatpush.msra.mxu0 %v600
    %662 = vmatpush.msra.mxu0 %v599
    %663 = vmatpush.msra.mxu0 %v598
    %664 = vmatpush.msra.mxu0 %v597
    %665 = vmatpush.msra.mxu0 %v596
    %666 = vmatpush.msra.mxu0 %v595
    %667 = vmatpush.msra.mxu0 %v594
    %668 = vmatpush.msra.mxu0 %v593
    %669 = vmatpush.msra.mxu0 %v592
    %670 = vmatpush.msra.mxu0 %v591
    %671 = vmatpush.msra.mxu0 %v590
    %672 = vmatpush.msra.mxu0 %v589
    %673 = vmatmul.f32.gmra.mxu0 %v230
    %v674 = vpop.f32.mrf.mxu0
    %v675 = vadd.f32 %v655, %v674
    %676 = vdwg.mxu0
    %677 = vmatpush.msra.mxu0 %v620
    %678 = vmatpush.msra.mxu0 %v619
    %679 = vmatpush.msra.mxu0 %v618
    %680 = vmatpush.msra.mxu0 %v617
    %681 = vmatpush.msra.mxu0 %v616
    %682 = vmatpush.msra.mxu0 %v615
    %683 = vmatpush.msra.mxu0 %v614
    %684 = vmatpush.msra.mxu0 %v613
    %685 = vmatpush.msra.mxu0 %v612
    %686 = vmatpush.msra.mxu0 %v611
    %687 = vmatpush.msra.mxu0 %v610
    %688 = vmatpush.msra.mxu0 %v609
    %689 = vmatpush.msra.mxu0 %v608
    %690 = vmatpush.msra.mxu0 %v607
    %691 = vmatpush.msra.mxu0 %v606
    %692 = vmatpush.msra.mxu0 %v605
    %693 = vmatmul.f32.gmra.mxu0 %v231
    %v694 = vpop.f32.mrf.mxu0
    %v695 = vadd.f32 %v675, %v694
    %696 = vdwg.mxu0
    %697 = vmatpush.msra.mxu0 %v636
    %698 = vmatpush.msra.mxu0 %v635
    %699 = vmatpush.msra.mxu0 %v634
    %700 = vmatpush.msra.mxu0 %v633
    %701 = vmatpush.msra.mxu0 %v632
    %702 = vmatpush.msra.mxu0 %v631
    %703 = vmatpush.msra.mxu0 %v630
    %704 = vmatpush.msra.mxu0 %v629
    %705 = vmatpush.msra.mxu0 %v628
    %706 = vmatpush.msra.mxu0 %v627
    %707 = vmatpush.msra.mxu0 %v626
    %708 = vmatpush.msra.mxu0 %v625
    %709 = vmatpush.msra.mxu0 %v624
    %710 = vmatpush.msra.mxu0 %v623
    %711 = vmatpush.msra.mxu0 %v622
    %712 = vmatpush.msra.mxu0 %v621
    %713 = vmatmul.f32.gmra.mxu0 %v232
    %v714 = vpop.f32.mrf.mxu0
    %v715 = vadd.f32 %v695, %v714
    %716 = vdwg.mxu0
    %s717 = scalar_lea.vmem %s3, 16
    %v718 = vld [vmem:[%s717] sm:$0xff]
    %v720 = vsel %vm525, %v718, 0
    %722 = vmatpush.msra.mxu0 0.0
    %723 = vmatpush.msra.mxu0 0.0
    %724 = vmatpush.msra.mxu0 0.0
    %725 = vmatpush.msra.mxu0 0.0
    %726 = vmatpush.msra.mxu0 0.0
    %727 = vmatpush.msra.mxu0 0.0
    %728 = vmatpush.msra.mxu0 0.0
    %729 = vmatpush.msra.mxu0 0.0
    %730 = vmatpush.msra.mxu0 0.0
    %731 = vmatpush.msra.mxu0 0.0
    %732 = vmatpush.msra.mxu0 0.0
    %733 = vmatpush.msra.mxu0 0.0
    %734 = vmatpush.msra.mxu0 0.0
    %735 = vmatpush.msra.mxu0 0.0
    %736 = vmatpush.msra.mxu0 0.0
    %737 = vmatpush.msra.mxu0 %v715
    %738 = vmatmul.f32.gmra.mxu0 %v720
    %v739 = vpop.f32.mrf.mxu0
    %v740 = vadd.f32 0.0, %v739
    %741 = vdwg.mxu0
    %v742 = vadd.f32 %v570, %v740
    %s743 = scalar_lea.vmem [#allocation4], 1536
    %v744 = vld [vmem:[%s743] sm:$0xff]
    %v745 = vld [vmem:[%s743 + $0x8] sm:$0xff]
    %v746 = vld [vmem:[%s743 + $0x10] sm:$0xff]
    %v747 = vld [vmem:[%s743 + $0x18] sm:$0xff]
    %v748 = vld [vmem:[%s743 + $0x20] sm:$0xff]
    %v749 = vld [vmem:[%s743 + $0x28] sm:$0xff]
    %v750 = vld [vmem:[%s743 + $0x30] sm:$0xff]
    %v751 = vld [vmem:[%s743 + $0x38] sm:$0xff]
    %v752 = vld [vmem:[%s743 + $0x40] sm:$0xff]
    %v753 = vld [vmem:[%s743 + $0x48] sm:$0xff]
    %v754 = vld [vmem:[%s743 + $0x50] sm:$0xff]
    %v755 = vld [vmem:[%s743 + $0x58] sm:$0xff]
    %v756 = vld [vmem:[%s743 + $0x60] sm:$0xff]
    %v757 = vld [vmem:[%s743 + $0x68] sm:$0xff]
    %v758 = vld [vmem:[%s743 + $0x70] sm:$0xff]
    %v759 = vld [vmem:[%s743 + $0x78] sm:$0xff]
    %v760 = vld [vmem:[%s743 + $0x80] sm:$0xff]
    %v761 = vld [vmem:[%s743 + $0x88] sm:$0xff]
    %v762 = vld [vmem:[%s743 + $0x90] sm:$0xff]
    %v763 = vld [vmem:[%s743 + $0x98] sm:$0xff]
    %v764 = vld [vmem:[%s743 + $0xa0] sm:$0xff]
    %v765 = vld [vmem:[%s743 + $0xa8] sm:$0xff]
    %v766 = vld [vmem:[%s743 + $0xb0] sm:$0xff]
    %v767 = vld [vmem:[%s743 + $0xb8] sm:$0xff]
    %v768 = vld [vmem:[%s743 + $0xc0] sm:$0xff]
    %v769 = vld [vmem:[%s743 + $0xc8] sm:$0xff]
    %v770 = vld [vmem:[%s743 + $0xd0] sm:$0xff]
    %v771 = vld [vmem:[%s743 + $0xd8] sm:$0xff]
    %v772 = vld [vmem:[%s743 + $0xe0] sm:$0xff]
    %v773 = vld [vmem:[%s743 + $0xe8] sm:$0xff]
    %v774 = vld [vmem:[%s743 + $0xf0] sm:$0xff]
    %v775 = vld [vmem:[%s743 + $0xf8] sm:$0xff]
    %v776 = vld [vmem:[%s743 + $0x100] sm:$0xff]
    %v777 = vld [vmem:[%s743 + $0x108] sm:$0xff]
    %v778 = vld [vmem:[%s743 + $0x110] sm:$0xff]
    %v779 = vld [vmem:[%s743 + $0x118] sm:$0xff]
    %v780 = vld [vmem:[%s743 + $0x120] sm:$0xff]
    %v781 = vld [vmem:[%s743 + $0x128] sm:$0xff]
    %v782 = vld [vmem:[%s743 + $0x130] sm:$0xff]
    %v783 = vld [vmem:[%s743 + $0x138] sm:$0xff]
    %v784 = vld [vmem:[%s743 + $0x140] sm:$0xff]
    %v785 = vld [vmem:[%s743 + $0x148] sm:$0xff]
    %v786 = vld [vmem:[%s743 + $0x150] sm:$0xff]
    %v787 = vld [vmem:[%s743 + $0x158] sm:$0xff]
    %v788 = vld [vmem:[%s743 + $0x160] sm:$0xff]
    %v789 = vld [vmem:[%s743 + $0x168] sm:$0xff]
    %v790 = vld [vmem:[%s743 + $0x170] sm:$0xff]
    %v791 = vld [vmem:[%s743 + $0x178] sm:$0xff]
    %v792 = vld [vmem:[%s743 + $0x180] sm:$0xff]
    %v793 = vld [vmem:[%s743 + $0x188] sm:$0xff]
    %v794 = vld [vmem:[%s743 + $0x190] sm:$0xff]
    %v795 = vld [vmem:[%s743 + $0x198] sm:$0xff]
    %v796 = vld [vmem:[%s743 + $0x1a0] sm:$0xff]
    %v797 = vld [vmem:[%s743 + $0x1a8] sm:$0xff]
    %v798 = vld [vmem:[%s743 + $0x1b0] sm:$0xff]
    %v799 = vld [vmem:[%s743 + $0x1b8] sm:$0xff]
    %v800 = vld [vmem:[%s743 + $0x1c0] sm:$0xff]
    %v801 = vld [vmem:[%s743 + $0x1c8] sm:$0xff]
    %v802 = vld [vmem:[%s743 + $0x1d0] sm:$0xff]
    %v803 = vld [vmem:[%s743 + $0x1d8] sm:$0xff]
    %v804 = vld [vmem:[%s743 + $0x1e0] sm:$0xff]
    %v805 = vld [vmem:[%s743 + $0x1e8] sm:$0xff]
    %v806 = vld [vmem:[%s743 + $0x1f0] sm:$0xff]
    %v807 = vld [vmem:[%s743 + $0x1f8] sm:$0xff]
    %808 = vmatpush.msra.mxu0 %v759
    %809 = vmatpush.msra.mxu0 %v758
    %810 = vmatpush.msra.mxu0 %v757
    %811 = vmatpush.msra.mxu0 %v756
    %812 = vmatpush.msra.mxu0 %v755
    %813 = vmatpush.msra.mxu0 %v754
    %814 = vmatpush.msra.mxu0 %v753
    %815 = vmatpush.msra.mxu0 %v752
    %816 = vmatpush.msra.mxu0 %v751
    %817 = vmatpush.msra.mxu0 %v750
    %818 = vmatpush.msra.mxu0 %v749
    %819 = vmatpush.msra.mxu0 %v748
    %820 = vmatpush.msra.mxu0 %v747
    %821 = vmatpush.msra.mxu0 %v746
    %822 = vmatpush.msra.mxu0 %v745
    %823 = vmatpush.msra.mxu0 %v744
    %824 = vmatmul.f32.gmra.mxu0 %v229
    %v825 = vpop.f32.mrf.mxu0
    %v826 = vadd.f32 0.0, %v825
    %827 = vdwg.mxu0
    %828 = vmatpush.msra.mxu0 %v775
    %829 = vmatpush.msra.mxu0 %v774
    %830 = vmatpush.msra.mxu0 %v773
    %831 = vmatpush.msra.mxu0 %v772
    %832 = vmatpush.msra.mxu0 %v771
    %833 = vmatpush.msra.mxu0 %v770
    %834 = vmatpush.msra.mxu0 %v769
    %835 = vmatpush.msra.mxu0 %v768
    %836 = vmatpush.msra.mxu0 %v767
    %837 = vmatpush.msra.mxu0 %v766
    %838 = vmatpush.msra.mxu0 %v765
    %839 = vmatpush.msra.mxu0 %v764
    %840 = vmatpush.msra.mxu0 %v763
    %841 = vmatpush.msra.mxu0 %v762
    %842 = vmatpush.msra.mxu0 %v761
    %843 = vmatpush.msra.mxu0 %v760
    %844 = vmatmul.f32.gmra.mxu0 %v230
    %v845 = vpop.f32.mrf.mxu0
    %v846 = vadd.f32 %v826, %v845
    %847 = vdwg.mxu0
    %848 = vmatpush.msra.mxu0 %v791
    %849 = vmatpush.msra.mxu0 %v790
    %850 = vmatpush.msra.mxu0 %v789
    %851 = vmatpush.msra.mxu0 %v788
    %852 = vmatpush.msra.mxu0 %v787
    %853 = vmatpush.msra.mxu0 %v786
    %854 = vmatpush.msra.mxu0 %v785
    %855 = vmatpush.msra.mxu0 %v784
    %856 = vmatpush.msra.mxu0 %v783
    %857 = vmatpush.msra.mxu0 %v782
    %858 = vmatpush.msra.mxu0 %v781
    %859 = vmatpush.msra.mxu0 %v780
    %860 = vmatpush.msra.mxu0 %v779
    %861 = vmatpush.msra.mxu0 %v778
    %862 = vmatpush.msra.mxu0 %v777
    %863 = vmatpush.msra.mxu0 %v776
    %864 = vmatmul.f32.gmra.mxu0 %v231
    %v865 = vpop.f32.mrf.mxu0
    %v866 = vadd.f32 %v846, %v865
    %867 = vdwg.mxu0
    %868 = vmatpush.msra.mxu0 %v807
    %869 = vmatpush.msra.mxu0 %v806
    %870 = vmatpush.msra.mxu0 %v805
    %871 = vmatpush.msra.mxu0 %v804
    %872 = vmatpush.msra.mxu0 %v803
    %873 = vmatpush.msra.mxu0 %v802
    %874 = vmatpush.msra.mxu0 %v801
    %875 = vmatpush.msra.mxu0 %v800
    %876 = vmatpush.msra.mxu0 %v799
    %877 = vmatpush.msra.mxu0 %v798
    %878 = vmatpush.msra.mxu0 %v797
    %879 = vmatpush.msra.mxu0 %v796
    %880 = vmatpush.msra.mxu0 %v795
    %881 = vmatpush.msra.mxu0 %v794
    %882 = vmatpush.msra.mxu0 %v793
    %883 = vmatpush.msra.mxu0 %v792
    %884 = vmatmul.f32.gmra.mxu0 %v232
    %v885 = vpop.f32.mrf.mxu0
    %v886 = vadd.f32 %v866, %v885
    %887 = vdwg.mxu0
    %s888 = scalar_lea.vmem %s3, 24
    %v889 = vld [vmem:[%s888] sm:$0xff]
    %v891 = vsel %vm525, %v889, 0
    %893 = vmatpush.msra.mxu0 0.0
    %894 = vmatpush.msra.mxu0 0.0
    %895 = vmatpush.msra.mxu0 0.0
    %896 = vmatpush.msra.mxu0 0.0
    %897 = vmatpush.msra.mxu0 0.0
    %898 = vmatpush.msra.mxu0 0.0
    %899 = vmatpush.msra.mxu0 0.0
    %900 = vmatpush.msra.mxu0 0.0
    %901 = vmatpush.msra.mxu0 0.0
    %902 = vmatpush.msra.mxu0 0.0
    %903 = vmatpush.msra.mxu0 0.0
    %904 = vmatpush.msra.mxu0 0.0
    %905 = vmatpush.msra.mxu0 0.0
    %906 = vmatpush.msra.mxu0 0.0
    %907 = vmatpush.msra.mxu0 0.0
    %908 = vmatpush.msra.mxu0 %v886
    %909 = vmatmul.f32.gmra.mxu0 %v891
    %v910 = vpop.f32.mrf.mxu0
    %v911 = vadd.f32 0.0, %v910
    %912 = vdwg.mxu0
    %v913 = vadd.f32 %v742, %v911
    %s914 = scalar_lea.vmem [#allocation4], 2048
    %v915 = vld [vmem:[%s914] sm:$0xff]
    %v916 = vld [vmem:[%s914 + $0x8] sm:$0xff]
    %v917 = vld [vmem:[%s914 + $0x10] sm:$0xff]
    %v918 = vld [vmem:[%s914 + $0x18] sm:$0xff]
    %v919 = vld [vmem:[%s914 + $0x20] sm:$0xff]
    %v920 = vld [vmem:[%s914 + $0x28] sm:$0xff]
    %v921 = vld [vmem:[%s914 + $0x30] sm:$0xff]
    %v922 = vld [vmem:[%s914 + $0x38] sm:$0xff]
    %v923 = vld [vmem:[%s914 + $0x40] sm:$0xff]
    %v924 = vld [vmem:[%s914 + $0x48] sm:$0xff]
    %v925 = vld [vmem:[%s914 + $0x50] sm:$0xff]
    %v926 = vld [vmem:[%s914 + $0x58] sm:$0xff]
    %v927 = vld [vmem:[%s914 + $0x60] sm:$0xff]
    %v928 = vld [vmem:[%s914 + $0x68] sm:$0xff]
    %v929 = vld [vmem:[%s914 + $0x70] sm:$0xff]
    %v930 = vld [vmem:[%s914 + $0x78] sm:$0xff]
    %v931 = vld [vmem:[%s914 + $0x80] sm:$0xff]
    %v932 = vld [vmem:[%s914 + $0x88] sm:$0xff]
    %v933 = vld [vmem:[%s914 + $0x90] sm:$0xff]
    %v934 = vld [vmem:[%s914 + $0x98] sm:$0xff]
    %v935 = vld [vmem:[%s914 + $0xa0] sm:$0xff]
    %v936 = vld [vmem:[%s914 + $0xa8] sm:$0xff]
    %v937 = vld [vmem:[%s914 + $0xb0] sm:$0xff]
    %v938 = vld [vmem:[%s914 + $0xb8] sm:$0xff]
    %v939 = vld [vmem:[%s914 + $0xc0] sm:$0xff]
    %v940 = vld [vmem:[%s914 + $0xc8] sm:$0xff]
    %v941 = vld [vmem:[%s914 + $0xd0] sm:$0xff]
    %v942 = vld [vmem:[%s914 + $0xd8] sm:$0xff]
    %v943 = vld [vmem:[%s914 + $0xe0] sm:$0xff]
    %v944 = vld [vmem:[%s914 + $0xe8] sm:$0xff]
    %v945 = vld [vmem:[%s914 + $0xf0] sm:$0xff]
    %v946 = vld [vmem:[%s914 + $0xf8] sm:$0xff]
    %v947 = vld [vmem:[%s914 + $0x100] sm:$0xff]
    %v948 = vld [vmem:[%s914 + $0x108] sm:$0xff]
    %v949 = vld [vmem:[%s914 + $0x110] sm:$0xff]
    %v950 = vld [vmem:[%s914 + $0x118] sm:$0xff]
    %v951 = vld [vmem:[%s914 + $0x120] sm:$0xff]
    %v952 = vld [vmem:[%s914 + $0x128] sm:$0xff]
    %v953 = vld [vmem:[%s914 + $0x130] sm:$0xff]
    %v954 = vld [vmem:[%s914 + $0x138] sm:$0xff]
    %v955 = vld [vmem:[%s914 + $0x140] sm:$0xff]
    %v956 = vld [vmem:[%s914 + $0x148] sm:$0xff]
    %v957 = vld [vmem:[%s914 + $0x150] sm:$0xff]
    %v958 = vld [vmem:[%s914 + $0x158] sm:$0xff]
    %v959 = vld [vmem:[%s914 + $0x160] sm:$0xff]
    %v960 = vld [vmem:[%s914 + $0x168] sm:$0xff]
    %v961 = vld [vmem:[%s914 + $0x170] sm:$0xff]
    %v962 = vld [vmem:[%s914 + $0x178] sm:$0xff]
    %v963 = vld [vmem:[%s914 + $0x180] sm:$0xff]
    %v964 = vld [vmem:[%s914 + $0x188] sm:$0xff]
    %v965 = vld [vmem:[%s914 + $0x190] sm:$0xff]
    %v966 = vld [vmem:[%s914 + $0x198] sm:$0xff]
    %v967 = vld [vmem:[%s914 + $0x1a0] sm:$0xff]
    %v968 = vld [vmem:[%s914 + $0x1a8] sm:$0xff]
    %v969 = vld [vmem:[%s914 + $0x1b0] sm:$0xff]
    %v970 = vld [vmem:[%s914 + $0x1b8] sm:$0xff]
    %v971 = vld [vmem:[%s914 + $0x1c0] sm:$0xff]
    %v972 = vld [vmem:[%s914 + $0x1c8] sm:$0xff]
    %v973 = vld [vmem:[%s914 + $0x1d0] sm:$0xff]
    %v974 = vld [vmem:[%s914 + $0x1d8] sm:$0xff]
    %v975 = vld [vmem:[%s914 + $0x1e0] sm:$0xff]
    %v976 = vld [vmem:[%s914 + $0x1e8] sm:$0xff]
    %v977 = vld [vmem:[%s914 + $0x1f0] sm:$0xff]
    %v978 = vld [vmem:[%s914 + $0x1f8] sm:$0xff]
    %979 = vmatpush.msra.mxu0 %v930
    %980 = vmatpush.msra.mxu0 %v929
    %981 = vmatpush.msra.mxu0 %v928
    %982 = vmatpush.msra.mxu0 %v927
    %983 = vmatpush.msra.mxu0 %v926
    %984 = vmatpush.msra.mxu0 %v925
    %985 = vmatpush.msra.mxu0 %v924
    %986 = vmatpush.msra.mxu0 %v923
    %987 = vmatpush.msra.mxu0 %v922
    %988 = vmatpush.msra.mxu0 %v921
    %989 = vmatpush.msra.mxu0 %v920
    %990 = vmatpush.msra.mxu0 %v919
    %991 = vmatpush.msra.mxu0 %v918
    %992 = vmatpush.msra.mxu0 %v917
    %993 = vmatpush.msra.mxu0 %v916
    %994 = vmatpush.msra.mxu0 %v915
    %995 = vmatmul.f32.gmra.mxu0 %v229
    %v996 = vpop.f32.mrf.mxu0
    %v997 = vadd.f32 0.0, %v996
    %998 = vdwg.mxu0
    %999 = vmatpush.msra.mxu0 %v946
    %1000 = vmatpush.msra.mxu0 %v945
    %1001 = vmatpush.msra.mxu0 %v944
    %1002 = vmatpush.msra.mxu0 %v943
    %1003 = vmatpush.msra.mxu0 %v942
    %1004 = vmatpush.msra.mxu0 %v941
    %1005 = vmatpush.msra.mxu0 %v940
    %1006 = vmatpush.msra.mxu0 %v939
    %1007 = vmatpush.msra.mxu0 %v938
    %1008 = vmatpush.msra.mxu0 %v937
    %1009 = vmatpush.msra.mxu0 %v936
    %1010 = vmatpush.msra.mxu0 %v935
    %1011 = vmatpush.msra.mxu0 %v934
    %1012 = vmatpush.msra.mxu0 %v933
    %1013 = vmatpush.msra.mxu0 %v932
    %1014 = vmatpush.msra.mxu0 %v931
    %1015 = vmatmul.f32.gmra.mxu0 %v230
    %v1016 = vpop.f32.mrf.mxu0
    %v1017 = vadd.f32 %v997, %v1016
    %1018 = vdwg.mxu0
    %1019 = vmatpush.msra.mxu0 %v962
    %1020 = vmatpush.msra.mxu0 %v961
    %1021 = vmatpush.msra.mxu0 %v960
    %1022 = vmatpush.msra.mxu0 %v959
    %1023 = vmatpush.msra.mxu0 %v958
    %1024 = vmatpush.msra.mxu0 %v957
    %1025 = vmatpush.msra.mxu0 %v956
    %1026 = vmatpush.msra.mxu0 %v955
    %1027 = vmatpush.msra.mxu0 %v954
    %1028 = vmatpush.msra.mxu0 %v953
    %1029 = vmatpush.msra.mxu0 %v952
    %1030 = vmatpush.msra.mxu0 %v951
    %1031 = vmatpush.msra.mxu0 %v950
    %1032 = vmatpush.msra.mxu0 %v949
    %1033 = vmatpush.msra.mxu0 %v948
    %1034 = vmatpush.msra.mxu0 %v947
    %1035 = vmatmul.f32.gmra.mxu0 %v231
    %v1036 = vpop.f32.mrf.mxu0
    %v1037 = vadd.f32 %v1017, %v1036
    %1038 = vdwg.mxu0
    %1039 = vmatpush.msra.mxu0 %v978
    %1040 = vmatpush.msra.mxu0 %v977
    %1041 = vmatpush.msra.mxu0 %v976
    %1042 = vmatpush.msra.mxu0 %v975
    %1043 = vmatpush.msra.mxu0 %v974
    %1044 = vmatpush.msra.mxu0 %v973
    %1045 = vmatpush.msra.mxu0 %v972
    %1046 = vmatpush.msra.mxu0 %v971
    %1047 = vmatpush.msra.mxu0 %v970
    %1048 = vmatpush.msra.mxu0 %v969
    %1049 = vmatpush.msra.mxu0 %v968
    %1050 = vmatpush.msra.mxu0 %v967
    %1051 = vmatpush.msra.mxu0 %v966
    %1052 = vmatpush.msra.mxu0 %v965
    %1053 = vmatpush.msra.mxu0 %v964
    %1054 = vmatpush.msra.mxu0 %v963
    %1055 = vmatmul.f32.gmra.mxu0 %v232
    %v1056 = vpop.f32.mrf.mxu0
    %v1057 = vadd.f32 %v1037, %v1056
    %1058 = vdwg.mxu0
    %s1059 = scalar_lea.vmem %s3, 32
    %v1060 = vld [vmem:[%s1059] sm:$0xff]
    %v1062 = vsel %vm525, %v1060, 0
    %1064 = vmatpush.msra.mxu0 0.0
    %1065 = vmatpush.msra.mxu0 0.0
    %1066 = vmatpush.msra.mxu0 0.0
    %1067 = vmatpush.msra.mxu0 0.0
    %1068 = vmatpush.msra.mxu0 0.0
    %1069 = vmatpush.msra.mxu0 0.0
    %1070 = vmatpush.msra.mxu0 0.0
    %1071 = vmatpush.msra.mxu0 0.0
    %1072 = vmatpush.msra.mxu0 0.0
    %1073 = vmatpush.msra.mxu0 0.0
    %1074 = vmatpush.msra.mxu0 0.0
    %1075 = vmatpush.msra.mxu0 0.0
    %1076 = vmatpush.msra.mxu0 0.0
    %1077 = vmatpush.msra.mxu0 0.0
    %1078 = vmatpush.msra.mxu0 0.0
    %1079 = vmatpush.msra.mxu0 %v1057
    %1080 = vmatmul.f32.gmra.mxu0 %v1062
    %v1081 = vpop.f32.mrf.mxu0
    %v1082 = vadd.f32 0.0, %v1081
    %1083 = vdwg.mxu0
    %v1084 = vadd.f32 %v913, %v1082
    %s1085 = scalar_lea.vmem [#allocation4], 2560
    %v1086 = vld [vmem:[%s1085] sm:$0xff]
    %v1087 = vld [vmem:[%s1085 + $0x8] sm:$0xff]
    %v1088 = vld [vmem:[%s1085 + $0x10] sm:$0xff]
    %v1089 = vld [vmem:[%s1085 + $0x18] sm:$0xff]
    %v1090 = vld [vmem:[%s1085 + $0x20] sm:$0xff]
    %v1091 = vld [vmem:[%s1085 + $0x28] sm:$0xff]
    %v1092 = vld [vmem:[%s1085 + $0x30] sm:$0xff]
    %v1093 = vld [vmem:[%s1085 + $0x38] sm:$0xff]
    %v1094 = vld [vmem:[%s1085 + $0x40] sm:$0xff]
    %v1095 = vld [vmem:[%s1085 + $0x48] sm:$0xff]
    %v1096 = vld [vmem:[%s1085 + $0x50] sm:$0xff]
    %v1097 = vld [vmem:[%s1085 + $0x58] sm:$0xff]
    %v1098 = vld [vmem:[%s1085 + $0x60] sm:$0xff]
    %v1099 = vld [vmem:[%s1085 + $0x68] sm:$0xff]
    %v1100 = vld [vmem:[%s1085 + $0x70] sm:$0xff]
    %v1101 = vld [vmem:[%s1085 + $0x78] sm:$0xff]
    %v1102 = vld [vmem:[%s1085 + $0x80] sm:$0xff]
    %v1103 = vld [vmem:[%s1085 + $0x88] sm:$0xff]
    %v1104 = vld [vmem:[%s1085 + $0x90] sm:$0xff]
    %v1105 = vld [vmem:[%s1085 + $0x98] sm:$0xff]
    %v1106 = vld [vmem:[%s1085 + $0xa0] sm:$0xff]
    %v1107 = vld [vmem:[%s1085 + $0xa8] sm:$0xff]
    %v1108 = vld [vmem:[%s1085 + $0xb0] sm:$0xff]
    %v1109 = vld [vmem:[%s1085 + $0xb8] sm:$0xff]
    %v1110 = vld [vmem:[%s1085 + $0xc0] sm:$0xff]
    %v1111 = vld [vmem:[%s1085 + $0xc8] sm:$0xff]
    %v1112 = vld [vmem:[%s1085 + $0xd0] sm:$0xff]
    %v1113 = vld [vmem:[%s1085 + $0xd8] sm:$0xff]
    %v1114 = vld [vmem:[%s1085 + $0xe0] sm:$0xff]
    %v1115 = vld [vmem:[%s1085 + $0xe8] sm:$0xff]
    %v1116 = vld [vmem:[%s1085 + $0xf0] sm:$0xff]
    %v1117 = vld [vmem:[%s1085 + $0xf8] sm:$0xff]
    %v1118 = vld [vmem:[%s1085 + $0x100] sm:$0xff]
    %v1119 = vld [vmem:[%s1085 + $0x108] sm:$0xff]
    %v1120 = vld [vmem:[%s1085 + $0x110] sm:$0xff]
    %v1121 = vld [vmem:[%s1085 + $0x118] sm:$0xff]
    %v1122 = vld [vmem:[%s1085 + $0x120] sm:$0xff]
    %v1123 = vld [vmem:[%s1085 + $0x128] sm:$0xff]
    %v1124 = vld [vmem:[%s1085 + $0x130] sm:$0xff]
    %v1125 = vld [vmem:[%s1085 + $0x138] sm:$0xff]
    %v1126 = vld [vmem:[%s1085 + $0x140] sm:$0xff]
    %v1127 = vld [vmem:[%s1085 + $0x148] sm:$0xff]
    %v1128 = vld [vmem:[%s1085 + $0x150] sm:$0xff]
    %v1129 = vld [vmem:[%s1085 + $0x158] sm:$0xff]
    %v1130 = vld [vmem:[%s1085 + $0x160] sm:$0xff]
    %v1131 = vld [vmem:[%s1085 + $0x168] sm:$0xff]
    %v1132 = vld [vmem:[%s1085 + $0x170] sm:$0xff]
    %v1133 = vld [vmem:[%s1085 + $0x178] sm:$0xff]
    %v1134 = vld [vmem:[%s1085 + $0x180] sm:$0xff]
    %v1135 = vld [vmem:[%s1085 + $0x188] sm:$0xff]
    %v1136 = vld [vmem:[%s1085 + $0x190] sm:$0xff]
    %v1137 = vld [vmem:[%s1085 + $0x198] sm:$0xff]
    %v1138 = vld [vmem:[%s1085 + $0x1a0] sm:$0xff]
    %v1139 = vld [vmem:[%s1085 + $0x1a8] sm:$0xff]
    %v1140 = vld [vmem:[%s1085 + $0x1b0] sm:$0xff]
    %v1141 = vld [vmem:[%s1085 + $0x1b8] sm:$0xff]
    %v1142 = vld [vmem:[%s1085 + $0x1c0] sm:$0xff]
    %v1143 = vld [vmem:[%s1085 + $0x1c8] sm:$0xff]
    %v1144 = vld [vmem:[%s1085 + $0x1d0] sm:$0xff]
    %v1145 = vld [vmem:[%s1085 + $0x1d8] sm:$0xff]
    %v1146 = vld [vmem:[%s1085 + $0x1e0] sm:$0xff]
    %v1147 = vld [vmem:[%s1085 + $0x1e8] sm:$0xff]
    %v1148 = vld [vmem:[%s1085 + $0x1f0] sm:$0xff]
    %v1149 = vld [vmem:[%s1085 + $0x1f8] sm:$0xff]
    %1150 = vmatpush.msra.mxu0 %v1101
    %1151 = vmatpush.msra.mxu0 %v1100
    %1152 = vmatpush.msra.mxu0 %v1099
    %1153 = vmatpush.msra.mxu0 %v1098
    %1154 = vmatpush.msra.mxu0 %v1097
    %1155 = vmatpush.msra.mxu0 %v1096
    %1156 = vmatpush.msra.mxu0 %v1095
    %1157 = vmatpush.msra.mxu0 %v1094
    %1158 = vmatpush.msra.mxu0 %v1093
    %1159 = vmatpush.msra.mxu0 %v1092
    %1160 = vmatpush.msra.mxu0 %v1091
    %1161 = vmatpush.msra.mxu0 %v1090
    %1162 = vmatpush.msra.mxu0 %v1089
    %1163 = vmatpush.msra.mxu0 %v1088
    %1164 = vmatpush.msra.mxu0 %v1087
    %1165 = vmatpush.msra.mxu0 %v1086
    %1166 = vmatmul.f32.gmra.mxu0 %v229
    %v1167 = vpop.f32.mrf.mxu0
    %v1168 = vadd.f32 0.0, %v1167
    %1169 = vdwg.mxu0
    %1170 = vmatpush.msra.mxu0 %v1117
    %1171 = vmatpush.msra.mxu0 %v1116
    %1172 = vmatpush.msra.mxu0 %v1115
    %1173 = vmatpush.msra.mxu0 %v1114
    %1174 = vmatpush.msra.mxu0 %v1113
    %1175 = vmatpush.msra.mxu0 %v1112
    %1176 = vmatpush.msra.mxu0 %v1111
    %1177 = vmatpush.msra.mxu0 %v1110
    %1178 = vmatpush.msra.mxu0 %v1109
    %1179 = vmatpush.msra.mxu0 %v1108
    %1180 = vmatpush.msra.mxu0 %v1107
    %1181 = vmatpush.msra.mxu0 %v1106
    %1182 = vmatpush.msra.mxu0 %v1105
    %1183 = vmatpush.msra.mxu0 %v1104
    %1184 = vmatpush.msra.mxu0 %v1103
    %1185 = vmatpush.msra.mxu0 %v1102
    %1186 = vmatmul.f32.gmra.mxu0 %v230
    %v1187 = vpop.f32.mrf.mxu0
    %v1188 = vadd.f32 %v1168, %v1187
    %1189 = vdwg.mxu0
    %1190 = vmatpush.msra.mxu0 %v1133
    %1191 = vmatpush.msra.mxu0 %v1132
    %1192 = vmatpush.msra.mxu0 %v1131
    %1193 = vmatpush.msra.mxu0 %v1130
    %1194 = vmatpush.msra.mxu0 %v1129
    %1195 = vmatpush.msra.mxu0 %v1128
    %1196 = vmatpush.msra.mxu0 %v1127
    %1197 = vmatpush.msra.mxu0 %v1126
    %1198 = vmatpush.msra.mxu0 %v1125
    %1199 = vmatpush.msra.mxu0 %v1124
    %1200 = vmatpush.msra.mxu0 %v1123
    %1201 = vmatpush.msra.mxu0 %v1122
    %1202 = vmatpush.msra.mxu0 %v1121
    %1203 = vmatpush.msra.mxu0 %v1120
    %1204 = vmatpush.msra.mxu0 %v1119
    %1205 = vmatpush.msra.mxu0 %v1118
    %1206 = vmatmul.f32.gmra.mxu0 %v231
    %v1207 = vpop.f32.mrf.mxu0
    %v1208 = vadd.f32 %v1188, %v1207
    %1209 = vdwg.mxu0
    %1210 = vmatpush.msra.mxu0 %v1149
    %1211 = vmatpush.msra.mxu0 %v1148
    %1212 = vmatpush.msra.mxu0 %v1147
    %1213 = vmatpush.msra.mxu0 %v1146
    %1214 = vmatpush.msra.mxu0 %v1145
    %1215 = vmatpush.msra.mxu0 %v1144
    %1216 = vmatpush.msra.mxu0 %v1143
    %1217 = vmatpush.msra.mxu0 %v1142
    %1218 = vmatpush.msra.mxu0 %v1141
    %1219 = vmatpush.msra.mxu0 %v1140
    %1220 = vmatpush.msra.mxu0 %v1139
    %1221 = vmatpush.msra.mxu0 %v1138
    %1222 = vmatpush.msra.mxu0 %v1137
    %1223 = vmatpush.msra.mxu0 %v1136
    %1224 = vmatpush.msra.mxu0 %v1135
    %1225 = vmatpush.msra.mxu0 %v1134
    %1226 = vmatmul.f32.gmra.mxu0 %v232
    %v1227 = vpop.f32.mrf.mxu0
    %v1228 = vadd.f32 %v1208, %v1227
    %1229 = vdwg.mxu0
    %s1230 = scalar_lea.vmem %s3, 40
    %v1231 = vld [vmem:[%s1230] sm:$0xff]
    %v1233 = vsel %vm525, %v1231, 0
    %1235 = vmatpush.msra.mxu0 0.0
    %1236 = vmatpush.msra.mxu0 0.0
    %1237 = vmatpush.msra.mxu0 0.0
    %1238 = vmatpush.msra.mxu0 0.0
    %1239 = vmatpush.msra.mxu0 0.0
    %1240 = vmatpush.msra.mxu0 0.0
    %1241 = vmatpush.msra.mxu0 0.0
    %1242 = vmatpush.msra.mxu0 0.0
    %1243 = vmatpush.msra.mxu0 0.0
    %1244 = vmatpush.msra.mxu0 0.0
    %1245 = vmatpush.msra.mxu0 0.0
    %1246 = vmatpush.msra.mxu0 0.0
    %1247 = vmatpush.msra.mxu0 0.0
    %1248 = vmatpush.msra.mxu0 0.0
    %1249 = vmatpush.msra.mxu0 0.0
    %1250 = vmatpush.msra.mxu0 %v1228
    %1251 = vmatmul.f32.gmra.mxu0 %v1233
    %v1252 = vpop.f32.mrf.mxu0
    %v1253 = vadd.f32 0.0, %v1252
    %1254 = vdwg.mxu0
    %v1255 = vadd.f32 %v1084, %v1253
    %s1256 = scalar_lea.vmem [#allocation4], 3072
    %v1257 = vld [vmem:[%s1256] sm:$0xff]
    %v1258 = vld [vmem:[%s1256 + $0x8] sm:$0xff]
    %v1259 = vld [vmem:[%s1256 + $0x10] sm:$0xff]
    %v1260 = vld [vmem:[%s1256 + $0x18] sm:$0xff]
    %v1261 = vld [vmem:[%s1256 + $0x20] sm:$0xff]
    %v1262 = vld [vmem:[%s1256 + $0x28] sm:$0xff]
    %v1263 = vld [vmem:[%s1256 + $0x30] sm:$0xff]
    %v1264 = vld [vmem:[%s1256 + $0x38] sm:$0xff]
    %v1265 = vld [vmem:[%s1256 + $0x40] sm:$0xff]
    %v1266 = vld [vmem:[%s1256 + $0x48] sm:$0xff]
    %v1267 = vld [vmem:[%s1256 + $0x50] sm:$0xff]
    %v1268 = vld [vmem:[%s1256 + $0x58] sm:$0xff]
    %v1269 = vld [vmem:[%s1256 + $0x60] sm:$0xff]
    %v1270 = vld [vmem:[%s1256 + $0x68] sm:$0xff]
    %v1271 = vld [vmem:[%s1256 + $0x70] sm:$0xff]
    %v1272 = vld [vmem:[%s1256 + $0x78] sm:$0xff]
    %v1273 = vld [vmem:[%s1256 + $0x80] sm:$0xff]
    %v1274 = vld [vmem:[%s1256 + $0x88] sm:$0xff]
    %v1275 = vld [vmem:[%s1256 + $0x90] sm:$0xff]
    %v1276 = vld [vmem:[%s1256 + $0x98] sm:$0xff]
    %v1277 = vld [vmem:[%s1256 + $0xa0] sm:$0xff]
    %v1278 = vld [vmem:[%s1256 + $0xa8] sm:$0xff]
    %v1279 = vld [vmem:[%s1256 + $0xb0] sm:$0xff]
    %v1280 = vld [vmem:[%s1256 + $0xb8] sm:$0xff]
    %v1281 = vld [vmem:[%s1256 + $0xc0] sm:$0xff]
    %v1282 = vld [vmem:[%s1256 + $0xc8] sm:$0xff]
    %v1283 = vld [vmem:[%s1256 + $0xd0] sm:$0xff]
    %v1284 = vld [vmem:[%s1256 + $0xd8] sm:$0xff]
    %v1285 = vld [vmem:[%s1256 + $0xe0] sm:$0xff]
    %v1286 = vld [vmem:[%s1256 + $0xe8] sm:$0xff]
    %v1287 = vld [vmem:[%s1256 + $0xf0] sm:$0xff]
    %v1288 = vld [vmem:[%s1256 + $0xf8] sm:$0xff]
    %v1289 = vld [vmem:[%s1256 + $0x100] sm:$0xff]
    %v1290 = vld [vmem:[%s1256 + $0x108] sm:$0xff]
    %v1291 = vld [vmem:[%s1256 + $0x110] sm:$0xff]
    %v1292 = vld [vmem:[%s1256 + $0x118] sm:$0xff]
    %v1293 = vld [vmem:[%s1256 + $0x120] sm:$0xff]
    %v1294 = vld [vmem:[%s1256 + $0x128] sm:$0xff]
    %v1295 = vld [vmem:[%s1256 + $0x130] sm:$0xff]
    %v1296 = vld [vmem:[%s1256 + $0x138] sm:$0xff]
    %v1297 = vld [vmem:[%s1256 + $0x140] sm:$0xff]
    %v1298 = vld [vmem:[%s1256 + $0x148] sm:$0xff]
    %v1299 = vld [vmem:[%s1256 + $0x150] sm:$0xff]
    %v1300 = vld [vmem:[%s1256 + $0x158] sm:$0xff]
    %v1301 = vld [vmem:[%s1256 + $0x160] sm:$0xff]
    %v1302 = vld [vmem:[%s1256 + $0x168] sm:$0xff]
    %v1303 = vld [vmem:[%s1256 + $0x170] sm:$0xff]
    %v1304 = vld [vmem:[%s1256 + $0x178] sm:$0xff]
    %v1305 = vld [vmem:[%s1256 + $0x180] sm:$0xff]
    %v1306 = vld [vmem:[%s1256 + $0x188] sm:$0xff]
    %v1307 = vld [vmem:[%s1256 + $0x190] sm:$0xff]
    %v1308 = vld [vmem:[%s1256 + $0x198] sm:$0xff]
    %v1309 = vld [vmem:[%s1256 + $0x1a0] sm:$0xff]
    %v1310 = vld [vmem:[%s1256 + $0x1a8] sm:$0xff]
    %v1311 = vld [vmem:[%s1256 + $0x1b0] sm:$0xff]
    %v1312 = vld [vmem:[%s1256 + $0x1b8] sm:$0xff]
    %v1313 = vld [vmem:[%s1256 + $0x1c0] sm:$0xff]
    %v1314 = vld [vmem:[%s1256 + $0x1c8] sm:$0xff]
    %v1315 = vld [vmem:[%s1256 + $0x1d0] sm:$0xff]
    %v1316 = vld [vmem:[%s1256 + $0x1d8] sm:$0xff]
    %v1317 = vld [vmem:[%s1256 + $0x1e0] sm:$0xff]
    %v1318 = vld [vmem:[%s1256 + $0x1e8] sm:$0xff]
    %v1319 = vld [vmem:[%s1256 + $0x1f0] sm:$0xff]
    %v1320 = vld [vmem:[%s1256 + $0x1f8] sm:$0xff]
    %1321 = vmatpush.msra.mxu0 %v1272
    %1322 = vmatpush.msra.mxu0 %v1271
    %1323 = vmatpush.msra.mxu0 %v1270
    %1324 = vmatpush.msra.mxu0 %v1269
    %1325 = vmatpush.msra.mxu0 %v1268
    %1326 = vmatpush.msra.mxu0 %v1267
    %1327 = vmatpush.msra.mxu0 %v1266
    %1328 = vmatpush.msra.mxu0 %v1265
    %1329 = vmatpush.msra.mxu0 %v1264
    %1330 = vmatpush.msra.mxu0 %v1263
    %1331 = vmatpush.msra.mxu0 %v1262
    %1332 = vmatpush.msra.mxu0 %v1261
    %1333 = vmatpush.msra.mxu0 %v1260
    %1334 = vmatpush.msra.mxu0 %v1259
    %1335 = vmatpush.msra.mxu0 %v1258
    %1336 = vmatpush.msra.mxu0 %v1257
    %1337 = vmatmul.f32.gmra.mxu0 %v229
    %v1338 = vpop.f32.mrf.mxu0
    %v1339 = vadd.f32 0.0, %v1338
    %1340 = vdwg.mxu0
    %1341 = vmatpush.msra.mxu0 %v1288
    %1342 = vmatpush.msra.mxu0 %v1287
    %1343 = vmatpush.msra.mxu0 %v1286
    %1344 = vmatpush.msra.mxu0 %v1285
    %1345 = vmatpush.msra.mxu0 %v1284
    %1346 = vmatpush.msra.mxu0 %v1283
    %1347 = vmatpush.msra.mxu0 %v1282
    %1348 = vmatpush.msra.mxu0 %v1281
    %1349 = vmatpush.msra.mxu0 %v1280
    %1350 = vmatpush.msra.mxu0 %v1279
    %1351 = vmatpush.msra.mxu0 %v1278
    %1352 = vmatpush.msra.mxu0 %v1277
    %1353 = vmatpush.msra.mxu0 %v1276
    %1354 = vmatpush.msra.mxu0 %v1275
    %1355 = vmatpush.msra.mxu0 %v1274
    %1356 = vmatpush.msra.mxu0 %v1273
    %1357 = vmatmul.f32.gmra.mxu0 %v230
    %v1358 = vpop.f32.mrf.mxu0
    %v1359 = vadd.f32 %v1339, %v1358
    %1360 = vdwg.mxu0
    %1361 = vmatpush.msra.mxu0 %v1304
    %1362 = vmatpush.msra.mxu0 %v1303
    %1363 = vmatpush.msra.mxu0 %v1302
    %1364 = vmatpush.msra.mxu0 %v1301
    %1365 = vmatpush.msra.mxu0 %v1300
    %1366 = vmatpush.msra.mxu0 %v1299
    %1367 = vmatpush.msra.mxu0 %v1298
    %1368 = vmatpush.msra.mxu0 %v1297
    %1369 = vmatpush.msra.mxu0 %v1296
    %1370 = vmatpush.msra.mxu0 %v1295
    %1371 = vmatpush.msra.mxu0 %v1294
    %1372 = vmatpush.msra.mxu0 %v1293
    %1373 = vmatpush.msra.mxu0 %v1292
    %1374 = vmatpush.msra.mxu0 %v1291
    %1375 = vmatpush.msra.mxu0 %v1290
    %1376 = vmatpush.msra.mxu0 %v1289
    %1377 = vmatmul.f32.gmra.mxu0 %v231
    %v1378 = vpop.f32.mrf.mxu0
    %v1379 = vadd.f32 %v1359, %v1378
    %1380 = vdwg.mxu0
    %1381 = vmatpush.msra.mxu0 %v1320
    %1382 = vmatpush.msra.mxu0 %v1319
    %1383 = vmatpush.msra.mxu0 %v1318
    %1384 = vmatpush.msra.mxu0 %v1317
    %1385 = vmatpush.msra.mxu0 %v1316
    %1386 = vmatpush.msra.mxu0 %v1315
    %1387 = vmatpush.msra.mxu0 %v1314
    %1388 = vmatpush.msra.mxu0 %v1313
    %1389 = vmatpush.msra.mxu0 %v1312
    %1390 = vmatpush.msra.mxu0 %v1311
    %1391 = vmatpush.msra.mxu0 %v1310
    %1392 = vmatpush.msra.mxu0 %v1309
    %1393 = vmatpush.msra.mxu0 %v1308
    %1394 = vmatpush.msra.mxu0 %v1307
    %1395 = vmatpush.msra.mxu0 %v1306
    %1396 = vmatpush.msra.mxu0 %v1305
    %1397 = vmatmul.f32.gmra.mxu0 %v232
    %v1398 = vpop.f32.mrf.mxu0
    %v1399 = vadd.f32 %v1379, %v1398
    %1400 = vdwg.mxu0
    %s1401 = scalar_lea.vmem %s3, 48
    %v1402 = vld [vmem:[%s1401] sm:$0xff]
    %v1404 = vsel %vm525, %v1402, 0
    %1406 = vmatpush.msra.mxu0 0.0
    %1407 = vmatpush.msra.mxu0 0.0
    %1408 = vmatpush.msra.mxu0 0.0
    %1409 = vmatpush.msra.mxu0 0.0
    %1410 = vmatpush.msra.mxu0 0.0
    %1411 = vmatpush.msra.mxu0 0.0
    %1412 = vmatpush.msra.mxu0 0.0
    %1413 = vmatpush.msra.mxu0 0.0
    %1414 = vmatpush.msra.mxu0 0.0
    %1415 = vmatpush.msra.mxu0 0.0
    %1416 = vmatpush.msra.mxu0 0.0
    %1417 = vmatpush.msra.mxu0 0.0
    %1418 = vmatpush.msra.mxu0 0.0
    %1419 = vmatpush.msra.mxu0 0.0
    %1420 = vmatpush.msra.mxu0 0.0
    %1421 = vmatpush.msra.mxu0 %v1399
    %1422 = vmatmul.f32.gmra.mxu0 %v1404
    %v1423 = vpop.f32.mrf.mxu0
    %v1424 = vadd.f32 0.0, %v1423
    %1425 = vdwg.mxu0
    %v1426 = vadd.f32 %v1255, %v1424
    %s1427 = scalar_lea.vmem [#allocation4], 3584
    %v1428 = vld [vmem:[%s1427] sm:$0xff]
    %v1429 = vld [vmem:[%s1427 + $0x8] sm:$0xff]
    %v1430 = vld [vmem:[%s1427 + $0x10] sm:$0xff]
    %v1431 = vld [vmem:[%s1427 + $0x18] sm:$0xff]
    %v1432 = vld [vmem:[%s1427 + $0x20] sm:$0xff]
    %v1433 = vld [vmem:[%s1427 + $0x28] sm:$0xff]
    %v1434 = vld [vmem:[%s1427 + $0x30] sm:$0xff]
    %v1435 = vld [vmem:[%s1427 + $0x38] sm:$0xff]
    %v1436 = vld [vmem:[%s1427 + $0x40] sm:$0xff]
    %v1437 = vld [vmem:[%s1427 + $0x48] sm:$0xff]
    %v1438 = vld [vmem:[%s1427 + $0x50] sm:$0xff]
    %v1439 = vld [vmem:[%s1427 + $0x58] sm:$0xff]
    %v1440 = vld [vmem:[%s1427 + $0x60] sm:$0xff]
    %v1441 = vld [vmem:[%s1427 + $0x68] sm:$0xff]
    %v1442 = vld [vmem:[%s1427 + $0x70] sm:$0xff]
    %v1443 = vld [vmem:[%s1427 + $0x78] sm:$0xff]
    %v1444 = vld [vmem:[%s1427 + $0x80] sm:$0xff]
    %v1445 = vld [vmem:[%s1427 + $0x88] sm:$0xff]
    %v1446 = vld [vmem:[%s1427 + $0x90] sm:$0xff]
    %v1447 = vld [vmem:[%s1427 + $0x98] sm:$0xff]
    %v1448 = vld [vmem:[%s1427 + $0xa0] sm:$0xff]
    %v1449 = vld [vmem:[%s1427 + $0xa8] sm:$0xff]
    %v1450 = vld [vmem:[%s1427 + $0xb0] sm:$0xff]
    %v1451 = vld [vmem:[%s1427 + $0xb8] sm:$0xff]
    %v1452 = vld [vmem:[%s1427 + $0xc0] sm:$0xff]
    %v1453 = vld [vmem:[%s1427 + $0xc8] sm:$0xff]
    %v1454 = vld [vmem:[%s1427 + $0xd0] sm:$0xff]
    %v1455 = vld [vmem:[%s1427 + $0xd8] sm:$0xff]
    %v1456 = vld [vmem:[%s1427 + $0xe0] sm:$0xff]
    %v1457 = vld [vmem:[%s1427 + $0xe8] sm:$0xff]
    %v1458 = vld [vmem:[%s1427 + $0xf0] sm:$0xff]
    %v1459 = vld [vmem:[%s1427 + $0xf8] sm:$0xff]
    %v1460 = vld [vmem:[%s1427 + $0x100] sm:$0xff]
    %v1461 = vld [vmem:[%s1427 + $0x108] sm:$0xff]
    %v1462 = vld [vmem:[%s1427 + $0x110] sm:$0xff]
    %v1463 = vld [vmem:[%s1427 + $0x118] sm:$0xff]
    %v1464 = vld [vmem:[%s1427 + $0x120] sm:$0xff]
    %v1465 = vld [vmem:[%s1427 + $0x128] sm:$0xff]
    %v1466 = vld [vmem:[%s1427 + $0x130] sm:$0xff]
    %v1467 = vld [vmem:[%s1427 + $0x138] sm:$0xff]
    %v1468 = vld [vmem:[%s1427 + $0x140] sm:$0xff]
    %v1469 = vld [vmem:[%s1427 + $0x148] sm:$0xff]
    %v1470 = vld [vmem:[%s1427 + $0x150] sm:$0xff]
    %v1471 = vld [vmem:[%s1427 + $0x158] sm:$0xff]
    %v1472 = vld [vmem:[%s1427 + $0x160] sm:$0xff]
    %v1473 = vld [vmem:[%s1427 + $0x168] sm:$0xff]
    %v1474 = vld [vmem:[%s1427 + $0x170] sm:$0xff]
    %v1475 = vld [vmem:[%s1427 + $0x178] sm:$0xff]
    %v1476 = vld [vmem:[%s1427 + $0x180] sm:$0xff]
    %v1477 = vld [vmem:[%s1427 + $0x188] sm:$0xff]
    %v1478 = vld [vmem:[%s1427 + $0x190] sm:$0xff]
    %v1479 = vld [vmem:[%s1427 + $0x198] sm:$0xff]
    %v1480 = vld [vmem:[%s1427 + $0x1a0] sm:$0xff]
    %v1481 = vld [vmem:[%s1427 + $0x1a8] sm:$0xff]
    %v1482 = vld [vmem:[%s1427 + $0x1b0] sm:$0xff]
    %v1483 = vld [vmem:[%s1427 + $0x1b8] sm:$0xff]
    %v1484 = vld [vmem:[%s1427 + $0x1c0] sm:$0xff]
    %v1485 = vld [vmem:[%s1427 + $0x1c8] sm:$0xff]
    %v1486 = vld [vmem:[%s1427 + $0x1d0] sm:$0xff]
    %v1487 = vld [vmem:[%s1427 + $0x1d8] sm:$0xff]
    %v1488 = vld [vmem:[%s1427 + $0x1e0] sm:$0xff]
    %v1489 = vld [vmem:[%s1427 + $0x1e8] sm:$0xff]
    %v1490 = vld [vmem:[%s1427 + $0x1f0] sm:$0xff]
    %v1491 = vld [vmem:[%s1427 + $0x1f8] sm:$0xff]
    %1492 = vmatpush.msra.mxu0 %v1443
    %1493 = vmatpush.msra.mxu0 %v1442
    %1494 = vmatpush.msra.mxu0 %v1441
    %1495 = vmatpush.msra.mxu0 %v1440
    %1496 = vmatpush.msra.mxu0 %v1439
    %1497 = vmatpush.msra.mxu0 %v1438
    %1498 = vmatpush.msra.mxu0 %v1437
    %1499 = vmatpush.msra.mxu0 %v1436
    %1500 = vmatpush.msra.mxu0 %v1435
    %1501 = vmatpush.msra.mxu0 %v1434
    %1502 = vmatpush.msra.mxu0 %v1433
    %1503 = vmatpush.msra.mxu0 %v1432
    %1504 = vmatpush.msra.mxu0 %v1431
    %1505 = vmatpush.msra.mxu0 %v1430
    %1506 = vmatpush.msra.mxu0 %v1429
    %1507 = vmatpush.msra.mxu0 %v1428
    %1508 = vmatmul.f32.gmra.mxu0 %v229
    %v1509 = vpop.f32.mrf.mxu0
    %v1510 = vadd.f32 0.0, %v1509
    %1511 = vdwg.mxu0
    %1512 = vmatpush.msra.mxu0 %v1459
    %1513 = vmatpush.msra.mxu0 %v1458
    %1514 = vmatpush.msra.mxu0 %v1457
    %1515 = vmatpush.msra.mxu0 %v1456
    %1516 = vmatpush.msra.mxu0 %v1455
    %1517 = vmatpush.msra.mxu0 %v1454
    %1518 = vmatpush.msra.mxu0 %v1453
    %1519 = vmatpush.msra.mxu0 %v1452
    %1520 = vmatpush.msra.mxu0 %v1451
    %1521 = vmatpush.msra.mxu0 %v1450
    %1522 = vmatpush.msra.mxu0 %v1449
    %1523 = vmatpush.msra.mxu0 %v1448
    %1524 = vmatpush.msra.mxu0 %v1447
    %1525 = vmatpush.msra.mxu0 %v1446
    %1526 = vmatpush.msra.mxu0 %v1445
    %1527 = vmatpush.msra.mxu0 %v1444
    %1528 = vmatmul.f32.gmra.mxu0 %v230
    %v1529 = vpop.f32.mrf.mxu0
    %v1530 = vadd.f32 %v1510, %v1529
    %1531 = vdwg.mxu0
    %1532 = vmatpush.msra.mxu0 %v1475
    %1533 = vmatpush.msra.mxu0 %v1474
    %1534 = vmatpush.msra.mxu0 %v1473
    %1535 = vmatpush.msra.mxu0 %v1472
    %1536 = vmatpush.msra.mxu0 %v1471
    %1537 = vmatpush.msra.mxu0 %v1470
    %1538 = vmatpush.msra.mxu0 %v1469
    %1539 = vmatpush.msra.mxu0 %v1468
    %1540 = vmatpush.msra.mxu0 %v1467
    %1541 = vmatpush.msra.mxu0 %v1466
    %1542 = vmatpush.msra.mxu0 %v1465
    %1543 = vmatpush.msra.mxu0 %v1464
    %1544 = vmatpush.msra.mxu0 %v1463
    %1545 = vmatpush.msra.mxu0 %v1462
    %1546 = vmatpush.msra.mxu0 %v1461
    %1547 = vmatpush.msra.mxu0 %v1460
    %1548 = vmatmul.f32.gmra.mxu0 %v231
    %v1549 = vpop.f32.mrf.mxu0
    %v1550 = vadd.f32 %v1530, %v1549
    %1551 = vdwg.mxu0
    %1552 = vmatpush.msra.mxu0 %v1491
    %1553 = vmatpush.msra.mxu0 %v1490
    %1554 = vmatpush.msra.mxu0 %v1489
    %1555 = vmatpush.msra.mxu0 %v1488
    %1556 = vmatpush.msra.mxu0 %v1487
    %1557 = vmatpush.msra.mxu0 %v1486
    %1558 = vmatpush.msra.mxu0 %v1485
    %1559 = vmatpush.msra.mxu0 %v1484
    %1560 = vmatpush.msra.mxu0 %v1483
    %1561 = vmatpush.msra.mxu0 %v1482
    %1562 = vmatpush.msra.mxu0 %v1481
    %1563 = vmatpush.msra.mxu0 %v1480
    %1564 = vmatpush.msra.mxu0 %v1479
    %1565 = vmatpush.msra.mxu0 %v1478
    %1566 = vmatpush.msra.mxu0 %v1477
    %1567 = vmatpush.msra.mxu0 %v1476
    %1568 = vmatmul.f32.gmra.mxu0 %v232
    %v1569 = vpop.f32.mrf.mxu0
    %v1570 = vadd.f32 %v1550, %v1569
    %1571 = vdwg.mxu0
    %s1572 = scalar_lea.vmem %s3, 56
    %v1573 = vld [vmem:[%s1572] sm:$0xff]
    %v1575 = vsel %vm525, %v1573, 0
    %1577 = vmatpush.msra.mxu0 0.0
    %1578 = vmatpush.msra.mxu0 0.0
    %1579 = vmatpush.msra.mxu0 0.0
    %1580 = vmatpush.msra.mxu0 0.0
    %1581 = vmatpush.msra.mxu0 0.0
    %1582 = vmatpush.msra.mxu0 0.0
    %1583 = vmatpush.msra.mxu0 0.0
    %1584 = vmatpush.msra.mxu0 0.0
    %1585 = vmatpush.msra.mxu0 0.0
    %1586 = vmatpush.msra.mxu0 0.0
    %1587 = vmatpush.msra.mxu0 0.0
    %1588 = vmatpush.msra.mxu0 0.0
    %1589 = vmatpush.msra.mxu0 0.0
    %1590 = vmatpush.msra.mxu0 0.0
    %1591 = vmatpush.msra.mxu0 0.0
    %1592 = vmatpush.msra.mxu0 %v1570
    %1593 = vmatmul.f32.gmra.mxu0 %v1575
    %v1594 = vpop.f32.mrf.mxu0
    %v1595 = vadd.f32 0.0, %v1594
    %1596 = vdwg.mxu0
    %v1597 = vadd.f32 %v1426, %v1595
    %s1598 = scalar_lea.vmem [#allocation4], 4096
    %v1599 = vld [vmem:[%s1598] sm:$0xff]
    %v1600 = vld [vmem:[%s1598 + $0x8] sm:$0xff]
    %v1601 = vld [vmem:[%s1598 + $0x10] sm:$0xff]
    %v1602 = vld [vmem:[%s1598 + $0x18] sm:$0xff]
    %v1603 = vld [vmem:[%s1598 + $0x20] sm:$0xff]
    %v1604 = vld [vmem:[%s1598 + $0x28] sm:$0xff]
    %v1605 = vld [vmem:[%s1598 + $0x30] sm:$0xff]
    %v1606 = vld [vmem:[%s1598 + $0x38] sm:$0xff]
    %v1607 = vld [vmem:[%s1598 + $0x40] sm:$0xff]
    %v1608 = vld [vmem:[%s1598 + $0x48] sm:$0xff]
    %v1609 = vld [vmem:[%s1598 + $0x50] sm:$0xff]
    %v1610 = vld [vmem:[%s1598 + $0x58] sm:$0xff]
    %v1611 = vld [vmem:[%s1598 + $0x60] sm:$0xff]
    %v1612 = vld [vmem:[%s1598 + $0x68] sm:$0xff]
    %v1613 = vld [vmem:[%s1598 + $0x70] sm:$0xff]
    %v1614 = vld [vmem:[%s1598 + $0x78] sm:$0xff]
    %v1615 = vld [vmem:[%s1598 + $0x80] sm:$0xff]
    %v1616 = vld [vmem:[%s1598 + $0x88] sm:$0xff]
    %v1617 = vld [vmem:[%s1598 + $0x90] sm:$0xff]
    %v1618 = vld [vmem:[%s1598 + $0x98] sm:$0xff]
    %v1619 = vld [vmem:[%s1598 + $0xa0] sm:$0xff]
    %v1620 = vld [vmem:[%s1598 + $0xa8] sm:$0xff]
    %v1621 = vld [vmem:[%s1598 + $0xb0] sm:$0xff]
    %v1622 = vld [vmem:[%s1598 + $0xb8] sm:$0xff]
    %v1623 = vld [vmem:[%s1598 + $0xc0] sm:$0xff]
    %v1624 = vld [vmem:[%s1598 + $0xc8] sm:$0xff]
    %v1625 = vld [vmem:[%s1598 + $0xd0] sm:$0xff]
    %v1626 = vld [vmem:[%s1598 + $0xd8] sm:$0xff]
    %v1627 = vld [vmem:[%s1598 + $0xe0] sm:$0xff]
    %v1628 = vld [vmem:[%s1598 + $0xe8] sm:$0xff]
    %v1629 = vld [vmem:[%s1598 + $0xf0] sm:$0xff]
    %v1630 = vld [vmem:[%s1598 + $0xf8] sm:$0xff]
    %v1631 = vld [vmem:[%s1598 + $0x100] sm:$0xff]
    %v1632 = vld [vmem:[%s1598 + $0x108] sm:$0xff]
    %v1633 = vld [vmem:[%s1598 + $0x110] sm:$0xff]
    %v1634 = vld [vmem:[%s1598 + $0x118] sm:$0xff]
    %v1635 = vld [vmem:[%s1598 + $0x120] sm:$0xff]
    %v1636 = vld [vmem:[%s1598 + $0x128] sm:$0xff]
    %v1637 = vld [vmem:[%s1598 + $0x130] sm:$0xff]
    %v1638 = vld [vmem:[%s1598 + $0x138] sm:$0xff]
    %v1639 = vld [vmem:[%s1598 + $0x140] sm:$0xff]
    %v1640 = vld [vmem:[%s1598 + $0x148] sm:$0xff]
    %v1641 = vld [vmem:[%s1598 + $0x150] sm:$0xff]
    %v1642 = vld [vmem:[%s1598 + $0x158] sm:$0xff]
    %v1643 = vld [vmem:[%s1598 + $0x160] sm:$0xff]
    %v1644 = vld [vmem:[%s1598 + $0x168] sm:$0xff]
    %v1645 = vld [vmem:[%s1598 + $0x170] sm:$0xff]
    %v1646 = vld [vmem:[%s1598 + $0x178] sm:$0xff]
    %v1647 = vld [vmem:[%s1598 + $0x180] sm:$0xff]
    %v1648 = vld [vmem:[%s1598 + $0x188] sm:$0xff]
    %v1649 = vld [vmem:[%s1598 + $0x190] sm:$0xff]
    %v1650 = vld [vmem:[%s1598 + $0x198] sm:$0xff]
    %v1651 = vld [vmem:[%s1598 + $0x1a0] sm:$0xff]
    %v1652 = vld [vmem:[%s1598 + $0x1a8] sm:$0xff]
    %v1653 = vld [vmem:[%s1598 + $0x1b0] sm:$0xff]
    %v1654 = vld [vmem:[%s1598 + $0x1b8] sm:$0xff]
    %v1655 = vld [vmem:[%s1598 + $0x1c0] sm:$0xff]
    %v1656 = vld [vmem:[%s1598 + $0x1c8] sm:$0xff]
    %v1657 = vld [vmem:[%s1598 + $0x1d0] sm:$0xff]
    %v1658 = vld [vmem:[%s1598 + $0x1d8] sm:$0xff]
    %v1659 = vld [vmem:[%s1598 + $0x1e0] sm:$0xff]
    %v1660 = vld [vmem:[%s1598 + $0x1e8] sm:$0xff]
    %v1661 = vld [vmem:[%s1598 + $0x1f0] sm:$0xff]
    %v1662 = vld [vmem:[%s1598 + $0x1f8] sm:$0xff]
    %1663 = vmatpush.msra.mxu0 %v1614
    %1664 = vmatpush.msra.mxu0 %v1613
    %1665 = vmatpush.msra.mxu0 %v1612
    %1666 = vmatpush.msra.mxu0 %v1611
    %1667 = vmatpush.msra.mxu0 %v1610
    %1668 = vmatpush.msra.mxu0 %v1609
    %1669 = vmatpush.msra.mxu0 %v1608
    %1670 = vmatpush.msra.mxu0 %v1607
    %1671 = vmatpush.msra.mxu0 %v1606
    %1672 = vmatpush.msra.mxu0 %v1605
    %1673 = vmatpush.msra.mxu0 %v1604
    %1674 = vmatpush.msra.mxu0 %v1603
    %1675 = vmatpush.msra.mxu0 %v1602
    %1676 = vmatpush.msra.mxu0 %v1601
    %1677 = vmatpush.msra.mxu0 %v1600
    %1678 = vmatpush.msra.mxu0 %v1599
    %1679 = vmatmul.f32.gmra.mxu0 %v229
    %v1680 = vpop.f32.mrf.mxu0
    %v1681 = vadd.f32 0.0, %v1680
    %1682 = vdwg.mxu0
    %1683 = vmatpush.msra.mxu0 %v1630
    %1684 = vmatpush.msra.mxu0 %v1629
    %1685 = vmatpush.msra.mxu0 %v1628
    %1686 = vmatpush.msra.mxu0 %v1627
    %1687 = vmatpush.msra.mxu0 %v1626
    %1688 = vmatpush.msra.mxu0 %v1625
    %1689 = vmatpush.msra.mxu0 %v1624
    %1690 = vmatpush.msra.mxu0 %v1623
    %1691 = vmatpush.msra.mxu0 %v1622
    %1692 = vmatpush.msra.mxu0 %v1621
    %1693 = vmatpush.msra.mxu0 %v1620
    %1694 = vmatpush.msra.mxu0 %v1619
    %1695 = vmatpush.msra.mxu0 %v1618
    %1696 = vmatpush.msra.mxu0 %v1617
    %1697 = vmatpush.msra.mxu0 %v1616
    %1698 = vmatpush.msra.mxu0 %v1615
    %1699 = vmatmul.f32.gmra.mxu0 %v230
    %v1700 = vpop.f32.mrf.mxu0
    %v1701 = vadd.f32 %v1681, %v1700
    %1702 = vdwg.mxu0
    %1703 = vmatpush.msra.mxu0 %v1646
    %1704 = vmatpush.msra.mxu0 %v1645
    %1705 = vmatpush.msra.mxu0 %v1644
    %1706 = vmatpush.msra.mxu0 %v1643
    %1707 = vmatpush.msra.mxu0 %v1642
    %1708 = vmatpush.msra.mxu0 %v1641
    %1709 = vmatpush.msra.mxu0 %v1640
    %1710 = vmatpush.msra.mxu0 %v1639
    %1711 = vmatpush.msra.mxu0 %v1638
    %1712 = vmatpush.msra.mxu0 %v1637
    %1713 = vmatpush.msra.mxu0 %v1636
    %1714 = vmatpush.msra.mxu0 %v1635
    %1715 = vmatpush.msra.mxu0 %v1634
    %1716 = vmatpush.msra.mxu0 %v1633
    %1717 = vmatpush.msra.mxu0 %v1632
    %1718 = vmatpush.msra.mxu0 %v1631
    %1719 = vmatmul.f32.gmra.mxu0 %v231
    %v1720 = vpop.f32.mrf.mxu0
    %v1721 = vadd.f32 %v1701, %v1720
    %1722 = vdwg.mxu0
    %1723 = vmatpush.msra.mxu0 %v1662
    %1724 = vmatpush.msra.mxu0 %v1661
    %1725 = vmatpush.msra.mxu0 %v1660
    %1726 = vmatpush.msra.mxu0 %v1659
    %1727 = vmatpush.msra.mxu0 %v1658
    %1728 = vmatpush.msra.mxu0 %v1657
    %1729 = vmatpush.msra.mxu0 %v1656
    %1730 = vmatpush.msra.mxu0 %v1655
    %1731 = vmatpush.msra.mxu0 %v1654
    %1732 = vmatpush.msra.mxu0 %v1653
    %1733 = vmatpush.msra.mxu0 %v1652
    %1734 = vmatpush.msra.mxu0 %v1651
    %1735 = vmatpush.msra.mxu0 %v1650
    %1736 = vmatpush.msra.mxu0 %v1649
    %1737 = vmatpush.msra.mxu0 %v1648
    %1738 = vmatpush.msra.mxu0 %v1647
    %1739 = vmatmul.f32.gmra.mxu0 %v232
    %v1740 = vpop.f32.mrf.mxu0
    %v1741 = vadd.f32 %v1721, %v1740
    %1742 = vdwg.mxu0
    %s1743 = scalar_lea.vmem %s3, 64
    %v1744 = vld [vmem:[%s1743] sm:$0xff]
    %v1746 = vsel %vm525, %v1744, 0
    %1748 = vmatpush.msra.mxu0 0.0
    %1749 = vmatpush.msra.mxu0 0.0
    %1750 = vmatpush.msra.mxu0 0.0
    %1751 = vmatpush.msra.mxu0 0.0
    %1752 = vmatpush.msra.mxu0 0.0
    %1753 = vmatpush.msra.mxu0 0.0
    %1754 = vmatpush.msra.mxu0 0.0
    %1755 = vmatpush.msra.mxu0 0.0
    %1756 = vmatpush.msra.mxu0 0.0
    %1757 = vmatpush.msra.mxu0 0.0
    %1758 = vmatpush.msra.mxu0 0.0
    %1759 = vmatpush.msra.mxu0 0.0
    %1760 = vmatpush.msra.mxu0 0.0
    %1761 = vmatpush.msra.mxu0 0.0
    %1762 = vmatpush.msra.mxu0 0.0
    %1763 = vmatpush.msra.mxu0 %v1741
    %1764 = vmatmul.f32.gmra.mxu0 %v1746
    %v1765 = vpop.f32.mrf.mxu0
    %v1766 = vadd.f32 0.0, %v1765
    %1767 = vdwg.mxu0
    %v1768 = vadd.f32 %v1597, %v1766
    %v1769 = vld [vmem:[%s4] sm:$0xff]
    %1771 = vset.pattern.permute.xlu0 0
    %1772 = vperm.xlu0 %1771, %v1769
    %v1773 = vpop.permute.xlu0 %1772
    %v1775 = vadd.f32 %v1768, %v1773
    %v1776 = vmax.f32 %v1775, 0.0
    %v1777 = vld [vmem:[#allocation6] sm:$0xff]
    %v1778 = vld [vmem:[#allocation6 + $0x8] sm:$0xff]
    %v1779 = vld [vmem:[#allocation6 + $0x10] sm:$0xff]
    %v1780 = vld [vmem:[#allocation6 + $0x18] sm:$0xff]
    %v1781 = vld [vmem:[#allocation6 + $0x20] sm:$0xff]
    %v1782 = vld [vmem:[#allocation6 + $0x28] sm:$0xff]
    %v1783 = vld [vmem:[#allocation6 + $0x30] sm:$0xff]
    %v1784 = vld [vmem:[#allocation6 + $0x38] sm:$0xff]
    %v1785 = vld [vmem:[#allocation6 + $0x40] sm:$0xff]
    %v1786 = vld [vmem:[#allocation6 + $0x48] sm:$0xff]
    %v1787 = vld [vmem:[#allocation6 + $0x50] sm:$0xff]
    %v1788 = vld [vmem:[#allocation6 + $0x58] sm:$0xff]
    %v1789 = vld [vmem:[#allocation6 + $0x60] sm:$0xff]
    %v1790 = vld [vmem:[#allocation6 + $0x68] sm:$0xff]
    %v1791 = vld [vmem:[#allocation6 + $0x70] sm:$0xff]
    %v1792 = vld [vmem:[#allocation6 + $0x78] sm:$0xff]
    %v1793 = vld [vmem:[#allocation6 + $0x80] sm:$0xff]
    %v1794 = vld [vmem:[#allocation6 + $0x88] sm:$0xff]
    %v1795 = vld [vmem:[#allocation6 + $0x90] sm:$0xff]
    %v1796 = vld [vmem:[#allocation6 + $0x98] sm:$0xff]
    %v1797 = vld [vmem:[#allocation6 + $0xa0] sm:$0xff]
    %v1798 = vld [vmem:[#allocation6 + $0xa8] sm:$0xff]
    %v1799 = vld [vmem:[#allocation6 + $0xb0] sm:$0xff]
    %v1800 = vld [vmem:[#allocation6 + $0xb8] sm:$0xff]
    %v1801 = vld [vmem:[#allocation6 + $0xc0] sm:$0xff]
    %v1802 = vld [vmem:[#allocation6 + $0xc8] sm:$0xff]
    %v1803 = vld [vmem:[#allocation6 + $0xd0] sm:$0xff]
    %v1804 = vld [vmem:[#allocation6 + $0xd8] sm:$0xff]
    %v1805 = vld [vmem:[#allocation6 + $0xe0] sm:$0xff]
    %v1806 = vld [vmem:[#allocation6 + $0xe8] sm:$0xff]
    %v1807 = vld [vmem:[#allocation6 + $0xf0] sm:$0xff]
    %v1808 = vld [vmem:[#allocation6 + $0xf8] sm:$0xff]
    %v1809 = vld [vmem:[#allocation6 + $0x100] sm:$0xff]
    %v1810 = vld [vmem:[#allocation6 + $0x108] sm:$0xff]
    %v1811 = vld [vmem:[#allocation6 + $0x110] sm:$0xff]
    %v1812 = vld [vmem:[#allocation6 + $0x118] sm:$0xff]
    %v1813 = vld [vmem:[#allocation6 + $0x120] sm:$0xff]
    %v1814 = vld [vmem:[#allocation6 + $0x128] sm:$0xff]
    %v1815 = vld [vmem:[#allocation6 + $0x130] sm:$0xff]
    %v1816 = vld [vmem:[#allocation6 + $0x138] sm:$0xff]
    %v1817 = vld [vmem:[#allocation6 + $0x140] sm:$0xff]
    %v1818 = vld [vmem:[#allocation6 + $0x148] sm:$0xff]
    %v1819 = vld [vmem:[#allocation6 + $0x150] sm:$0xff]
    %v1820 = vld [vmem:[#allocation6 + $0x158] sm:$0xff]
    %v1821 = vld [vmem:[#allocation6 + $0x160] sm:$0xff]
    %v1822 = vld [vmem:[#allocation6 + $0x168] sm:$0xff]
    %v1823 = vld [vmem:[#allocation6 + $0x170] sm:$0xff]
    %v1824 = vld [vmem:[#allocation6 + $0x178] sm:$0xff]
    %v1825 = vld [vmem:[#allocation6 + $0x180] sm:$0xff]
    %v1826 = vld [vmem:[#allocation6 + $0x188] sm:$0xff]
    %v1827 = vld [vmem:[#allocation6 + $0x190] sm:$0xff]
    %v1828 = vld [vmem:[#allocation6 + $0x198] sm:$0xff]
    %v1829 = vld [vmem:[#allocation6 + $0x1a0] sm:$0xff]
    %v1830 = vld [vmem:[#allocation6 + $0x1a8] sm:$0xff]
    %v1831 = vld [vmem:[#allocation6 + $0x1b0] sm:$0xff]
    %v1832 = vld [vmem:[#allocation6 + $0x1b8] sm:$0xff]
    %v1833 = vld [vmem:[#allocation6 + $0x1c0] sm:$0xff]
    %v1834 = vld [vmem:[#allocation6 + $0x1c8] sm:$0xff]
    %v1835 = vld [vmem:[#allocation6 + $0x1d0] sm:$0xff]
    %v1836 = vld [vmem:[#allocation6 + $0x1d8] sm:$0xff]
    %v1837 = vld [vmem:[#allocation6 + $0x1e0] sm:$0xff]
    %v1838 = vld [vmem:[#allocation6 + $0x1e8] sm:$0xff]
    %v1839 = vld [vmem:[#allocation6 + $0x1f0] sm:$0xff]
    %v1840 = vld [vmem:[#allocation6 + $0x1f8] sm:$0xff]
    %1841 = vmatpush.msra.mxu0 %v1837
    %1842 = vmatpush.msra.mxu0 %v1833
    %1843 = vmatpush.msra.mxu0 %v1829
    %1844 = vmatpush.msra.mxu0 %v1825
    %1845 = vmatpush.msra.mxu0 %v1821
    %1846 = vmatpush.msra.mxu0 %v1817
    %1847 = vmatpush.msra.mxu0 %v1813
    %1848 = vmatpush.msra.mxu0 %v1809
    %1849 = vmatpush.msra.mxu0 %v1805
    %1850 = vmatpush.msra.mxu0 %v1801
    %1851 = vmatpush.msra.mxu0 %v1797
    %1852 = vmatpush.msra.mxu0 %v1793
    %1853 = vmatpush.msra.mxu0 %v1789
    %1854 = vmatpush.msra.mxu0 %v1785
    %1855 = vmatpush.msra.mxu0 %v1781
    %1856 = vmatpush.msra.mxu0 %v1777
    %1857 = vmatmul.f32.gmra.mxu0 %v1776
    %v1858 = vpop.f32.mrf.mxu0
    %v1859 = vadd.f32 0.0, %v1858
    %1860 = vdwg.mxu0
    %1861 = vmatpush.msra.mxu0 %v1838
    %1862 = vmatpush.msra.mxu0 %v1834
    %1863 = vmatpush.msra.mxu0 %v1830
    %1864 = vmatpush.msra.mxu0 %v1826
    %1865 = vmatpush.msra.mxu0 %v1822
    %1866 = vmatpush.msra.mxu0 %v1818
    %1867 = vmatpush.msra.mxu0 %v1814
    %1868 = vmatpush.msra.mxu0 %v1810
    %1869 = vmatpush.msra.mxu0 %v1806
    %1870 = vmatpush.msra.mxu0 %v1802
    %1871 = vmatpush.msra.mxu0 %v1798
    %1872 = vmatpush.msra.mxu0 %v1794
    %1873 = vmatpush.msra.mxu0 %v1790
    %1874 = vmatpush.msra.mxu0 %v1786
    %1875 = vmatpush.msra.mxu0 %v1782
    %1876 = vmatpush.msra.mxu0 %v1778
    %1877 = vmatmul.f32.gmra.mxu0 %v1776
    %v1878 = vpop.f32.mrf.mxu0
    %v1879 = vadd.f32 0.0, %v1878
    %1880 = vdwg.mxu0
    %1881 = vmatpush.msra.mxu0 %v1839
    %1882 = vmatpush.msra.mxu0 %v1835
    %1883 = vmatpush.msra.mxu0 %v1831
    %1884 = vmatpush.msra.mxu0 %v1827
    %1885 = vmatpush.msra.mxu0 %v1823
    %1886 = vmatpush.msra.mxu0 %v1819
    %1887 = vmatpush.msra.mxu0 %v1815
    %1888 = vmatpush.msra.mxu0 %v1811
    %1889 = vmatpush.msra.mxu0 %v1807
    %1890 = vmatpush.msra.mxu0 %v1803
    %1891 = vmatpush.msra.mxu0 %v1799
    %1892 = vmatpush.msra.mxu0 %v1795
    %1893 = vmatpush.msra.mxu0 %v1791
    %1894 = vmatpush.msra.mxu0 %v1787
    %1895 = vmatpush.msra.mxu0 %v1783
    %1896 = vmatpush.msra.mxu0 %v1779
    %1897 = vmatmul.f32.gmra.mxu0 %v1776
    %v1898 = vpop.f32.mrf.mxu0
    %v1899 = vadd.f32 0.0, %v1898
    %1900 = vdwg.mxu0
    %1901 = vmatpush.msra.mxu0 %v1840
    %1902 = vmatpush.msra.mxu0 %v1836
    %1903 = vmatpush.msra.mxu0 %v1832
    %1904 = vmatpush.msra.mxu0 %v1828
    %1905 = vmatpush.msra.mxu0 %v1824
    %1906 = vmatpush.msra.mxu0 %v1820
    %1907 = vmatpush.msra.mxu0 %v1816
    %1908 = vmatpush.msra.mxu0 %v1812
    %1909 = vmatpush.msra.mxu0 %v1808
    %1910 = vmatpush.msra.mxu0 %v1804
    %1911 = vmatpush.msra.mxu0 %v1800
    %1912 = vmatpush.msra.mxu0 %v1796
    %1913 = vmatpush.msra.mxu0 %v1792
    %1914 = vmatpush.msra.mxu0 %v1788
    %1915 = vmatpush.msra.mxu0 %v1784
    %1916 = vmatpush.msra.mxu0 %v1780
    %1917 = vmatmul.f32.gmra.mxu0 %v1776
    %v1918 = vpop.f32.mrf.mxu0
    %v1919 = vadd.f32 0.0, %v1918
    %1920 = vdwg.mxu0
    %v1921 = vld [vmem:[%s7] sm:$0xff]
    %s1922 = scalar_lea.vmem %s7, 8
    %v1923 = vld [vmem:[%s1922] sm:$0xff]
    %1928 = vrot.lane.b32.xlu0 %v1859, 76
    %v1929 = vpop.permute.xlu0 %1928
    %1930 = vrot.lane.b32.xlu0 %v1879, 76
    %v1931 = vpop.permute.xlu0 %1930
    %1932 = vrot.lane.b32.xlu0 %v1899, 76
    %v1933 = vpop.permute.xlu0 %1932
    %1934 = vrot.lane.b32.xlu0 %v1919, 76
    %v1935 = vpop.permute.xlu0 %1934
    %vm1936 = vcmask 621568
    %v1937 = vsel %vm1936, %v1929, %v1931
    %v1938 = vsel %vm1936, %v1931, %v1933
    %v1939 = vsel %vm1936, %v1933, %v1935
    %v1944 = vsel %vm525, %v1923, 0
    %1946 = vmatpush.msra.mxu0 0.0
    %1947 = vmatpush.msra.mxu0 0.0
    %1948 = vmatpush.msra.mxu0 0.0
    %1949 = vmatpush.msra.mxu0 0.0
    %1950 = vmatpush.msra.mxu0 0.0
    %1951 = vmatpush.msra.mxu0 0.0
    %1952 = vmatpush.msra.mxu0 0.0
    %1953 = vmatpush.msra.mxu0 0.0
    %1954 = vmatpush.msra.mxu0 0.0
    %1955 = vmatpush.msra.mxu0 0.0
    %1956 = vmatpush.msra.mxu0 0.0
    %1957 = vmatpush.msra.mxu0 0.0
    %1958 = vmatpush.msra.mxu0 0.0
    %1959 = vmatpush.msra.mxu0 0.0
    %1960 = vmatpush.msra.mxu0 0.0
    %1961 = vmatpush.msra.mxu0 %v1937
    %1962 = vmatmul.f32.gmra.mxu0 %v1944
    %v1963 = vpop.f32.mrf.mxu0
    %v1964 = vadd.f32 0.0, %v1963
    %1965 = vdwg.mxu0
    %1966 = vmatpush.msra.mxu0 0.0
    %1967 = vmatpush.msra.mxu0 0.0
    %1968 = vmatpush.msra.mxu0 0.0
    %1969 = vmatpush.msra.mxu0 0.0
    %1970 = vmatpush.msra.mxu0 0.0
    %1971 = vmatpush.msra.mxu0 0.0
    %1972 = vmatpush.msra.mxu0 0.0
    %1973 = vmatpush.msra.mxu0 0.0
    %1974 = vmatpush.msra.mxu0 0.0
    %1975 = vmatpush.msra.mxu0 0.0
    %1976 = vmatpush.msra.mxu0 0.0
    %1977 = vmatpush.msra.mxu0 0.0
    %1978 = vmatpush.msra.mxu0 0.0
    %1979 = vmatpush.msra.mxu0 0.0
    %1980 = vmatpush.msra.mxu0 0.0
    %1981 = vmatpush.msra.mxu0 %v1938
    %1982 = vmatmul.f32.gmra.mxu0 %v1944
    %v1983 = vpop.f32.mrf.mxu0
    %v1984 = vadd.f32 0.0, %v1983
    %1985 = vdwg.mxu0
    %1986 = vmatpush.msra.mxu0 0.0
    %1987 = vmatpush.msra.mxu0 0.0
    %1988 = vmatpush.msra.mxu0 0.0
    %1989 = vmatpush.msra.mxu0 0.0
    %1990 = vmatpush.msra.mxu0 0.0
    %1991 = vmatpush.msra.mxu0 0.0
    %1992 = vmatpush.msra.mxu0 0.0
    %1993 = vmatpush.msra.mxu0 0.0
    %1994 = vmatpush.msra.mxu0 0.0
    %1995 = vmatpush.msra.mxu0 0.0
    %1996 = vmatpush.msra.mxu0 0.0
    %1997 = vmatpush.msra.mxu0 0.0
    %1998 = vmatpush.msra.mxu0 0.0
    %1999 = vmatpush.msra.mxu0 0.0
    %2000 = vmatpush.msra.mxu0 0.0
    %2001 = vmatpush.msra.mxu0 %v1939
    %2002 = vmatmul.f32.gmra.mxu0 %v1944
    %v2003 = vpop.f32.mrf.mxu0
    %v2004 = vadd.f32 0.0, %v2003
    %2005 = vdwg.mxu0
    %2006 = vrot.lane.b32.xlu0 %v1859, 77
    %v2007 = vpop.permute.xlu0 %2006
    %2008 = vrot.lane.b32.xlu0 %v1879, 77
    %v2009 = vpop.permute.xlu0 %2008
    %2010 = vrot.lane.b32.xlu0 %v1899, 77
    %v2011 = vpop.permute.xlu0 %2010
    %2012 = vrot.lane.b32.xlu0 %v1919, 77
    %v2013 = vpop.permute.xlu0 %2012
    %vm2014 = vcmask 629760
    %v2015 = vsel %vm2014, %v2007, %v2009
    %v2016 = vsel %vm2014, %v2009, %v2011
    %v2017 = vsel %vm2014, %v2011, %v2013
    %v2022 = vsel %vm525, %v1921, 0
    %2024 = vmatpush.msra.mxu0 0.0
    %2025 = vmatpush.msra.mxu0 0.0
    %2026 = vmatpush.msra.mxu0 0.0
    %2027 = vmatpush.msra.mxu0 0.0
    %2028 = vmatpush.msra.mxu0 0.0
    %2029 = vmatpush.msra.mxu0 0.0
    %2030 = vmatpush.msra.mxu0 0.0
    %2031 = vmatpush.msra.mxu0 0.0
    %2032 = vmatpush.msra.mxu0 0.0
    %2033 = vmatpush.msra.mxu0 0.0
    %2034 = vmatpush.msra.mxu0 0.0
    %2035 = vmatpush.msra.mxu0 0.0
    %2036 = vmatpush.msra.mxu0 0.0
    %2037 = vmatpush.msra.mxu0 0.0
    %2038 = vmatpush.msra.mxu0 0.0
    %2039 = vmatpush.msra.mxu0 %v2015
    %2040 = vmatmul.f32.gmra.mxu0 %v2022
    %v2041 = vpop.f32.mrf.mxu0
    %v2042 = vadd.f32 %v1964, %v2041
    %2043 = vdwg.mxu0
    %2044 = vmatpush.msra.mxu0 0.0
    %2045 = vmatpush.msra.mxu0 0.0
    %2046 = vmatpush.msra.mxu0 0.0
    %2047 = vmatpush.msra.mxu0 0.0
    %2048 = vmatpush.msra.mxu0 0.0
    %2049 = vmatpush.msra.mxu0 0.0
    %2050 = vmatpush.msra.mxu0 0.0
    %2051 = vmatpush.msra.mxu0 0.0
    %2052 = vmatpush.msra.mxu0 0.0
    %2053 = vmatpush.msra.mxu0 0.0
    %2054 = vmatpush.msra.mxu0 0.0
    %2055 = vmatpush.msra.mxu0 0.0
    %2056 = vmatpush.msra.mxu0 0.0
    %2057 = vmatpush.msra.mxu0 0.0
    %2058 = vmatpush.msra.mxu0 0.0
    %2059 = vmatpush.msra.mxu0 %v2016
    %2060 = vmatmul.f32.gmra.mxu0 %v2022
    %v2061 = vpop.f32.mrf.mxu0
    %v2062 = vadd.f32 %v1984, %v2061
    %2063 = vdwg.mxu0
    %2064 = vmatpush.msra.mxu0 0.0
    %2065 = vmatpush.msra.mxu0 0.0
    %2066 = vmatpush.msra.mxu0 0.0
    %2067 = vmatpush.msra.mxu0 0.0
    %2068 = vmatpush.msra.mxu0 0.0
    %2069 = vmatpush.msra.mxu0 0.0
    %2070 = vmatpush.msra.mxu0 0.0
    %2071 = vmatpush.msra.mxu0 0.0
    %2072 = vmatpush.msra.mxu0 0.0
    %2073 = vmatpush.msra.mxu0 0.0
    %2074 = vmatpush.msra.mxu0 0.0
    %2075 = vmatpush.msra.mxu0 0.0
    %2076 = vmatpush.msra.mxu0 0.0
    %2077 = vmatpush.msra.mxu0 0.0
    %2078 = vmatpush.msra.mxu0 0.0
    %2079 = vmatpush.msra.mxu0 %v2017
    %2080 = vmatmul.f32.gmra.mxu0 %v2022
    %v2081 = vpop.f32.mrf.mxu0
    %v2082 = vadd.f32 %v2004, %v2081
    %2083 = vdwg.mxu0
    %s2084 = scalar_lea.vmem %s7, 16
    %v2085 = vld [vmem:[%s2084] sm:$0xff]
    %2086 = vrot.lane.b32.xlu0 %v1859, 75
    %v2087 = vpop.permute.xlu0 %2086
    %2088 = vrot.lane.b32.xlu0 %v1879, 75
    %v2089 = vpop.permute.xlu0 %2088
    %2090 = vrot.lane.b32.xlu0 %v1899, 75
    %v2091 = vpop.permute.xlu0 %2090
    %2092 = vrot.lane.b32.xlu0 %v1919, 75
    %v2093 = vpop.permute.xlu0 %2092
    %vm2094 = vcmask 613376
    %v2095 = vsel %vm2094, %v2087, %v2089
    %v2096 = vsel %vm2094, %v2089, %v2091
    %v2097 = vsel %vm2094, %v2091, %v2093
    %v2102 = vsel %vm525, %v2085, 0
    %2104 = vmatpush.msra.mxu0 0.0
    %2105 = vmatpush.msra.mxu0 0.0
    %2106 = vmatpush.msra.mxu0 0.0
    %2107 = vmatpush.msra.mxu0 0.0
    %2108 = vmatpush.msra.mxu0 0.0
    %2109 = vmatpush.msra.mxu0 0.0
    %2110 = vmatpush.msra.mxu0 0.0
    %2111 = vmatpush.msra.mxu0 0.0
    %2112 = vmatpush.msra.mxu0 0.0
    %2113 = vmatpush.msra.mxu0 0.0
    %2114 = vmatpush.msra.mxu0 0.0
    %2115 = vmatpush.msra.mxu0 0.0
    %2116 = vmatpush.msra.mxu0 0.0
    %2117 = vmatpush.msra.mxu0 0.0
    %2118 = vmatpush.msra.mxu0 0.0
    %2119 = vmatpush.msra.mxu0 %v2095
    %2120 = vmatmul.f32.gmra.mxu0 %v2102
    %v2121 = vpop.f32.mrf.mxu0
    %v2122 = vadd.f32 0.0, %v2121
    %2123 = vdwg.mxu0
    %2124 = vmatpush.msra.mxu0 0.0
    %2125 = vmatpush.msra.mxu0 0.0
    %2126 = vmatpush.msra.mxu0 0.0
    %2127 = vmatpush.msra.mxu0 0.0
    %2128 = vmatpush.msra.mxu0 0.0
    %2129 = vmatpush.msra.mxu0 0.0
    %2130 = vmatpush.msra.mxu0 0.0
    %2131 = vmatpush.msra.mxu0 0.0
    %2132 = vmatpush.msra.mxu0 0.0
    %2133 = vmatpush.msra.mxu0 0.0
    %2134 = vmatpush.msra.mxu0 0.0
    %2135 = vmatpush.msra.mxu0 0.0
    %2136 = vmatpush.msra.mxu0 0.0
    %2137 = vmatpush.msra.mxu0 0.0
    %2138 = vmatpush.msra.mxu0 0.0
    %2139 = vmatpush.msra.mxu0 %v2096
    %2140 = vmatmul.f32.gmra.mxu0 %v2102
    %v2141 = vpop.f32.mrf.mxu0
    %v2142 = vadd.f32 0.0, %v2141
    %2143 = vdwg.mxu0
    %2144 = vmatpush.msra.mxu0 0.0
    %2145 = vmatpush.msra.mxu0 0.0
    %2146 = vmatpush.msra.mxu0 0.0
    %2147 = vmatpush.msra.mxu0 0.0
    %2148 = vmatpush.msra.mxu0 0.0
    %2149 = vmatpush.msra.mxu0 0.0
    %2150 = vmatpush.msra.mxu0 0.0
    %2151 = vmatpush.msra.mxu0 0.0
    %2152 = vmatpush.msra.mxu0 0.0
    %2153 = vmatpush.msra.mxu0 0.0
    %2154 = vmatpush.msra.mxu0 0.0
    %2155 = vmatpush.msra.mxu0 0.0
    %2156 = vmatpush.msra.mxu0 0.0
    %2157 = vmatpush.msra.mxu0 0.0
    %2158 = vmatpush.msra.mxu0 0.0
    %2159 = vmatpush.msra.mxu0 %v2097
    %2160 = vmatmul.f32.gmra.mxu0 %v2102
    %v2161 = vpop.f32.mrf.mxu0
    %v2162 = vadd.f32 0.0, %v2161
    %2163 = vdwg.mxu0
    %v2164 = vadd.f32 %v2042, %v2122
    %v2165 = vadd.f32 %v2062, %v2142
    %v2166 = vadd.f32 %v2082, %v2162
    %s2167 = scalar_lea.vmem %s7, 24
    %v2168 = vld [vmem:[%s2167] sm:$0xff]
    %2169 = vrot.lane.b32.xlu0 %v1859, 61
    %v2170 = vpop.permute.xlu0 %2169
    %2171 = vrot.lane.b32.xlu0 %v1879, 61
    %v2172 = vpop.permute.xlu0 %2171
    %2173 = vrot.lane.b32.xlu0 %v1899, 61
    %v2174 = vpop.permute.xlu0 %2173
    %2175 = vrot.lane.b32.xlu0 %v1919, 61
    %v2176 = vpop.permute.xlu0 %2175
    %vm2177 = vcmask 498688
    %v2178 = vsel %vm2177, %v2170, %v2172
    %v2179 = vsel %vm2177, %v2172, %v2174
    %v2180 = vsel %vm2177, %v2174, %v2176
    %v2185 = vsel %vm525, %v2168, 0
    %2187 = vmatpush.msra.mxu0 0.0
    %2188 = vmatpush.msra.mxu0 0.0
    %2189 = vmatpush.msra.mxu0 0.0
    %2190 = vmatpush.msra.mxu0 0.0
    %2191 = vmatpush.msra.mxu0 0.0
    %2192 = vmatpush.msra.mxu0 0.0
    %2193 = vmatpush.msra.mxu0 0.0
    %2194 = vmatpush.msra.mxu0 0.0
    %2195 = vmatpush.msra.mxu0 0.0
    %2196 = vmatpush.msra.mxu0 0.0
    %2197 = vmatpush.msra.mxu0 0.0
    %2198 = vmatpush.msra.mxu0 0.0
    %2199 = vmatpush.msra.mxu0 0.0
    %2200 = vmatpush.msra.mxu0 0.0
    %2201 = vmatpush.msra.mxu0 0.0
    %2202 = vmatpush.msra.mxu0 %v2178
    %2203 = vmatmul.f32.gmra.mxu0 %v2185
    %v2204 = vpop.f32.mrf.mxu0
    %v2205 = vadd.f32 0.0, %v2204
    %2206 = vdwg.mxu0
    %2207 = vmatpush.msra.mxu0 0.0
    %2208 = vmatpush.msra.mxu0 0.0
    %2209 = vmatpush.msra.mxu0 0.0
    %2210 = vmatpush.msra.mxu0 0.0
    %2211 = vmatpush.msra.mxu0 0.0
    %2212 = vmatpush.msra.mxu0 0.0
    %2213 = vmatpush.msra.mxu0 0.0
    %2214 = vmatpush.msra.mxu0 0.0
    %2215 = vmatpush.msra.mxu0 0.0
    %2216 = vmatpush.msra.mxu0 0.0
    %2217 = vmatpush.msra.mxu0 0.0
    %2218 = vmatpush.msra.mxu0 0.0
    %2219 = vmatpush.msra.mxu0 0.0
    %2220 = vmatpush.msra.mxu0 0.0
    %2221 = vmatpush.msra.mxu0 0.0
    %2222 = vmatpush.msra.mxu0 %v2179
    %2223 = vmatmul.f32.gmra.mxu0 %v2185
    %v2224 = vpop.f32.mrf.mxu0
    %v2225 = vadd.f32 0.0, %v2224
    %2226 = vdwg.mxu0
    %2227 = vmatpush.msra.mxu0 0.0
    %2228 = vmatpush.msra.mxu0 0.0
    %2229 = vmatpush.msra.mxu0 0.0
    %2230 = vmatpush.msra.mxu0 0.0
    %2231 = vmatpush.msra.mxu0 0.0
    %2232 = vmatpush.msra.mxu0 0.0
    %2233 = vmatpush.msra.mxu0 0.0
    %2234 = vmatpush.msra.mxu0 0.0
    %2235 = vmatpush.msra.mxu0 0.0
    %2236 = vmatpush.msra.mxu0 0.0
    %2237 = vmatpush.msra.mxu0 0.0
    %2238 = vmatpush.msra.mxu0 0.0
    %2239 = vmatpush.msra.mxu0 0.0
    %2240 = vmatpush.msra.mxu0 0.0
    %2241 = vmatpush.msra.mxu0 0.0
    %2242 = vmatpush.msra.mxu0 %v2180
    %2243 = vmatmul.f32.gmra.mxu0 %v2185
    %v2244 = vpop.f32.mrf.mxu0
    %v2245 = vadd.f32 0.0, %v2244
    %2246 = vdwg.mxu0
    %v2247 = vadd.f32 %v2164, %v2205
    %v2248 = vadd.f32 %v2165, %v2225
    %v2249 = vadd.f32 %v2166, %v2245
    %s2250 = scalar_lea.vmem %s7, 32
    %v2251 = vld [vmem:[%s2250] sm:$0xff]
    %2252 = vrot.lane.b32.xlu0 %v1859, 60
    %v2253 = vpop.permute.xlu0 %2252
    %2254 = vrot.lane.b32.xlu0 %v1879, 60
    %v2255 = vpop.permute.xlu0 %2254
    %2256 = vrot.lane.b32.xlu0 %v1899, 60
    %v2257 = vpop.permute.xlu0 %2256
    %2258 = vrot.lane.b32.xlu0 %v1919, 60
    %v2259 = vpop.permute.xlu0 %2258
    %vm2260 = vcmask 490496
    %v2261 = vsel %vm2260, %v2253, %v2255
    %v2262 = vsel %vm2260, %v2255, %v2257
    %v2263 = vsel %vm2260, %v2257, %v2259
    %v2268 = vsel %vm525, %v2251, 0
    %2270 = vmatpush.msra.mxu0 0.0
    %2271 = vmatpush.msra.mxu0 0.0
    %2272 = vmatpush.msra.mxu0 0.0
    %2273 = vmatpush.msra.mxu0 0.0
    %2274 = vmatpush.msra.mxu0 0.0
    %2275 = vmatpush.msra.mxu0 0.0
    %2276 = vmatpush.msra.mxu0 0.0
    %2277 = vmatpush.msra.mxu0 0.0
    %2278 = vmatpush.msra.mxu0 0.0
    %2279 = vmatpush.msra.mxu0 0.0
    %2280 = vmatpush.msra.mxu0 0.0
    %2281 = vmatpush.msra.mxu0 0.0
    %2282 = vmatpush.msra.mxu0 0.0
    %2283 = vmatpush.msra.mxu0 0.0
    %2284 = vmatpush.msra.mxu0 0.0
    %2285 = vmatpush.msra.mxu0 %v2261
    %2286 = vmatmul.f32.gmra.mxu0 %v2268
    %v2287 = vpop.f32.mrf.mxu0
    %v2288 = vadd.f32 0.0, %v2287
    %2289 = vdwg.mxu0
    %2290 = vmatpush.msra.mxu0 0.0
    %2291 = vmatpush.msra.mxu0 0.0
    %2292 = vmatpush.msra.mxu0 0.0
    %2293 = vmatpush.msra.mxu0 0.0
    %2294 = vmatpush.msra.mxu0 0.0
    %2295 = vmatpush.msra.mxu0 0.0
    %2296 = vmatpush.msra.mxu0 0.0
    %2297 = vmatpush.msra.mxu0 0.0
    %2298 = vmatpush.msra.mxu0 0.0
    %2299 = vmatpush.msra.mxu0 0.0
    %2300 = vmatpush.msra.mxu0 0.0
    %2301 = vmatpush.msra.mxu0 0.0
    %2302 = vmatpush.msra.mxu0 0.0
    %2303 = vmatpush.msra.mxu0 0.0
    %2304 = vmatpush.msra.mxu0 0.0
    %2305 = vmatpush.msra.mxu0 %v2262
    %2306 = vmatmul.f32.gmra.mxu0 %v2268
    %v2307 = vpop.f32.mrf.mxu0
    %v2308 = vadd.f32 0.0, %v2307
    %2309 = vdwg.mxu0
    %2310 = vmatpush.msra.mxu0 0.0
    %2311 = vmatpush.msra.mxu0 0.0
    %2312 = vmatpush.msra.mxu0 0.0
    %2313 = vmatpush.msra.mxu0 0.0
    %2314 = vmatpush.msra.mxu0 0.0
    %2315 = vmatpush.msra.mxu0 0.0
    %2316 = vmatpush.msra.mxu0 0.0
    %2317 = vmatpush.msra.mxu0 0.0
    %2318 = vmatpush.msra.mxu0 0.0
    %2319 = vmatpush.msra.mxu0 0.0
    %2320 = vmatpush.msra.mxu0 0.0
    %2321 = vmatpush.msra.mxu0 0.0
    %2322 = vmatpush.msra.mxu0 0.0
    %2323 = vmatpush.msra.mxu0 0.0
    %2324 = vmatpush.msra.mxu0 0.0
    %2325 = vmatpush.msra.mxu0 %v2263
    %2326 = vmatmul.f32.gmra.mxu0 %v2268
    %v2327 = vpop.f32.mrf.mxu0
    %v2328 = vadd.f32 0.0, %v2327
    %2329 = vdwg.mxu0
    %v2330 = vadd.f32 %v2247, %v2288
    %v2331 = vadd.f32 %v2248, %v2308
    %v2332 = vadd.f32 %v2249, %v2328
    %s2333 = scalar_lea.vmem %s7, 40
    %v2334 = vld [vmem:[%s2333] sm:$0xff]
    %2335 = vrot.lane.b32.xlu0 %v1859, 59
    %v2336 = vpop.permute.xlu0 %2335
    %2337 = vrot.lane.b32.xlu0 %v1879, 59
    %v2338 = vpop.permute.xlu0 %2337
    %2339 = vrot.lane.b32.xlu0 %v1899, 59
    %v2340 = vpop.permute.xlu0 %2339
    %2341 = vrot.lane.b32.xlu0 %v1919, 59
    %v2342 = vpop.permute.xlu0 %2341
    %vm2343 = vcmask 482304
    %v2344 = vsel %vm2343, %v2336, %v2338
    %v2345 = vsel %vm2343, %v2338, %v2340
    %v2346 = vsel %vm2343, %v2340, %v2342
    %v2351 = vsel %vm525, %v2334, 0
    %2353 = vmatpush.msra.mxu0 0.0
    %2354 = vmatpush.msra.mxu0 0.0
    %2355 = vmatpush.msra.mxu0 0.0
    %2356 = vmatpush.msra.mxu0 0.0
    %2357 = vmatpush.msra.mxu0 0.0
    %2358 = vmatpush.msra.mxu0 0.0
    %2359 = vmatpush.msra.mxu0 0.0
    %2360 = vmatpush.msra.mxu0 0.0
    %2361 = vmatpush.msra.mxu0 0.0
    %2362 = vmatpush.msra.mxu0 0.0
    %2363 = vmatpush.msra.mxu0 0.0
    %2364 = vmatpush.msra.mxu0 0.0
    %2365 = vmatpush.msra.mxu0 0.0
    %2366 = vmatpush.msra.mxu0 0.0
    %2367 = vmatpush.msra.mxu0 0.0
    %2368 = vmatpush.msra.mxu0 %v2344
    %2369 = vmatmul.f32.gmra.mxu0 %v2351
    %v2370 = vpop.f32.mrf.mxu0
    %v2371 = vadd.f32 0.0, %v2370
    %2372 = vdwg.mxu0
    %2373 = vmatpush.msra.mxu0 0.0
    %2374 = vmatpush.msra.mxu0 0.0
    %2375 = vmatpush.msra.mxu0 0.0
    %2376 = vmatpush.msra.mxu0 0.0
    %2377 = vmatpush.msra.mxu0 0.0
    %2378 = vmatpush.msra.mxu0 0.0
    %2379 = vmatpush.msra.mxu0 0.0
    %2380 = vmatpush.msra.mxu0 0.0
    %2381 = vmatpush.msra.mxu0 0.0
    %2382 = vmatpush.msra.mxu0 0.0
    %2383 = vmatpush.msra.mxu0 0.0
    %2384 = vmatpush.msra.mxu0 0.0
    %2385 = vmatpush.msra.mxu0 0.0
    %2386 = vmatpush.msra.mxu0 0.0
    %2387 = vmatpush.msra.mxu0 0.0
    %2388 = vmatpush.msra.mxu0 %v2345
    %2389 = vmatmul.f32.gmra.mxu0 %v2351
    %v2390 = vpop.f32.mrf.mxu0
    %v2391 = vadd.f32 0.0, %v2390
    %2392 = vdwg.mxu0
    %2393 = vmatpush.msra.mxu0 0.0
    %2394 = vmatpush.msra.mxu0 0.0
    %2395 = vmatpush.msra.mxu0 0.0
    %2396 = vmatpush.msra.mxu0 0.0
    %2397 = vmatpush.msra.mxu0 0.0
    %2398 = vmatpush.msra.mxu0 0.0
    %2399 = vmatpush.msra.mxu0 0.0
    %2400 = vmatpush.msra.mxu0 0.0
    %2401 = vmatpush.msra.mxu0 0.0
    %2402 = vmatpush.msra.mxu0 0.0
    %2403 = vmatpush.msra.mxu0 0.0
    %2404 = vmatpush.msra.mxu0 0.0
    %2405 = vmatpush.msra.mxu0 0.0
    %2406 = vmatpush.msra.mxu0 0.0
    %2407 = vmatpush.msra.mxu0 0.0
    %2408 = vmatpush.msra.mxu0 %v2346
    %2409 = vmatmul.f32.gmra.mxu0 %v2351
    %v2410 = vpop.f32.mrf.mxu0
    %v2411 = vadd.f32 0.0, %v2410
    %2412 = vdwg.mxu0
    %v2413 = vadd.f32 %v2330, %v2371
    %v2414 = vadd.f32 %v2331, %v2391
    %v2415 = vadd.f32 %v2332, %v2411
    %s2416 = scalar_lea.vmem %s7, 48
    %v2417 = vld [vmem:[%s2416] sm:$0xff]
    %2418 = vrot.lane.b32.xlu0 %v1859, 45
    %v2419 = vpop.permute.xlu0 %2418
    %2420 = vrot.lane.b32.xlu0 %v1879, 45
    %v2421 = vpop.permute.xlu0 %2420
    %2422 = vrot.lane.b32.xlu0 %v1899, 45
    %v2423 = vpop.permute.xlu0 %2422
    %2424 = vrot.lane.b32.xlu0 %v1919, 45
    %v2425 = vpop.permute.xlu0 %2424
    %vm2426 = vcmask 367616
    %v2427 = vsel %vm2426, %v2419, %v2421
    %v2428 = vsel %vm2426, %v2421, %v2423
    %v2429 = vsel %vm2426, %v2423, %v2425
    %v2434 = vsel %vm525, %v2417, 0
    %2436 = vmatpush.msra.mxu0 0.0
    %2437 = vmatpush.msra.mxu0 0.0
    %2438 = vmatpush.msra.mxu0 0.0
    %2439 = vmatpush.msra.mxu0 0.0
    %2440 = vmatpush.msra.mxu0 0.0
    %2441 = vmatpush.msra.mxu0 0.0
    %2442 = vmatpush.msra.mxu0 0.0
    %2443 = vmatpush.msra.mxu0 0.0
    %2444 = vmatpush.msra.mxu0 0.0
    %2445 = vmatpush.msra.mxu0 0.0
    %2446 = vmatpush.msra.mxu0 0.0
    %2447 = vmatpush.msra.mxu0 0.0
    %2448 = vmatpush.msra.mxu0 0.0
    %2449 = vmatpush.msra.mxu0 0.0
    %2450 = vmatpush.msra.mxu0 0.0
    %2451 = vmatpush.msra.mxu0 %v2427
    %2452 = vmatmul.f32.gmra.mxu0 %v2434
    %v2453 = vpop.f32.mrf.mxu0
    %v2454 = vadd.f32 0.0, %v2453
    %2455 = vdwg.mxu0
    %2456 = vmatpush.msra.mxu0 0.0
    %2457 = vmatpush.msra.mxu0 0.0
    %2458 = vmatpush.msra.mxu0 0.0
    %2459 = vmatpush.msra.mxu0 0.0
    %2460 = vmatpush.msra.mxu0 0.0
    %2461 = vmatpush.msra.mxu0 0.0
    %2462 = vmatpush.msra.mxu0 0.0
    %2463 = vmatpush.msra.mxu0 0.0
    %2464 = vmatpush.msra.mxu0 0.0
    %2465 = vmatpush.msra.mxu0 0.0
    %2466 = vmatpush.msra.mxu0 0.0
    %2467 = vmatpush.msra.mxu0 0.0
    %2468 = vmatpush.msra.mxu0 0.0
    %2469 = vmatpush.msra.mxu0 0.0
    %2470 = vmatpush.msra.mxu0 0.0
    %2471 = vmatpush.msra.mxu0 %v2428
    %2472 = vmatmul.f32.gmra.mxu0 %v2434
    %v2473 = vpop.f32.mrf.mxu0
    %v2474 = vadd.f32 0.0, %v2473
    %2475 = vdwg.mxu0
    %2476 = vmatpush.msra.mxu0 0.0
    %2477 = vmatpush.msra.mxu0 0.0
    %2478 = vmatpush.msra.mxu0 0.0
    %2479 = vmatpush.msra.mxu0 0.0
    %2480 = vmatpush.msra.mxu0 0.0
    %2481 = vmatpush.msra.mxu0 0.0
    %2482 = vmatpush.msra.mxu0 0.0
    %2483 = vmatpush.msra.mxu0 0.0
    %2484 = vmatpush.msra.mxu0 0.0
    %2485 = vmatpush.msra.mxu0 0.0
    %2486 = vmatpush.msra.mxu0 0.0
    %2487 = vmatpush.msra.mxu0 0.0
    %2488 = vmatpush.msra.mxu0 0.0
    %2489 = vmatpush.msra.mxu0 0.0
    %2490 = vmatpush.msra.mxu0 0.0
    %2491 = vmatpush.msra.mxu0 %v2429
    %2492 = vmatmul.f32.gmra.mxu0 %v2434
    %v2493 = vpop.f32.mrf.mxu0
    %v2494 = vadd.f32 0.0, %v2493
    %2495 = vdwg.mxu0
    %v2496 = vadd.f32 %v2413, %v2454
    %v2497 = vadd.f32 %v2414, %v2474
    %v2498 = vadd.f32 %v2415, %v2494
    %s2499 = scalar_lea.vmem %s7, 56
    %v2500 = vld [vmem:[%s2499] sm:$0xff]
    %2501 = vrot.lane.b32.xlu0 %v1859, 44
    %v2502 = vpop.permute.xlu0 %2501
    %2503 = vrot.lane.b32.xlu0 %v1879, 44
    %v2504 = vpop.permute.xlu0 %2503
    %2505 = vrot.lane.b32.xlu0 %v1899, 44
    %v2506 = vpop.permute.xlu0 %2505
    %2507 = vrot.lane.b32.xlu0 %v1919, 44
    %v2508 = vpop.permute.xlu0 %2507
    %vm2509 = vcmask 359424
    %v2510 = vsel %vm2509, %v2502, %v2504
    %v2511 = vsel %vm2509, %v2504, %v2506
    %v2512 = vsel %vm2509, %v2506, %v2508
    %v2517 = vsel %vm525, %v2500, 0
    %2519 = vmatpush.msra.mxu0 0.0
    %2520 = vmatpush.msra.mxu0 0.0
    %2521 = vmatpush.msra.mxu0 0.0
    %2522 = vmatpush.msra.mxu0 0.0
    %2523 = vmatpush.msra.mxu0 0.0
    %2524 = vmatpush.msra.mxu0 0.0
    %2525 = vmatpush.msra.mxu0 0.0
    %2526 = vmatpush.msra.mxu0 0.0
    %2527 = vmatpush.msra.mxu0 0.0
    %2528 = vmatpush.msra.mxu0 0.0
    %2529 = vmatpush.msra.mxu0 0.0
    %2530 = vmatpush.msra.mxu0 0.0
    %2531 = vmatpush.msra.mxu0 0.0
    %2532 = vmatpush.msra.mxu0 0.0
    %2533 = vmatpush.msra.mxu0 0.0
    %2534 = vmatpush.msra.mxu0 %v2510
    %2535 = vmatmul.f32.gmra.mxu0 %v2517
    %v2536 = vpop.f32.mrf.mxu0
    %v2537 = vadd.f32 0.0, %v2536
    %2538 = vdwg.mxu0
    %2539 = vmatpush.msra.mxu0 0.0
    %2540 = vmatpush.msra.mxu0 0.0
    %2541 = vmatpush.msra.mxu0 0.0
    %2542 = vmatpush.msra.mxu0 0.0
    %2543 = vmatpush.msra.mxu0 0.0
    %2544 = vmatpush.msra.mxu0 0.0
    %2545 = vmatpush.msra.mxu0 0.0
    %2546 = vmatpush.msra.mxu0 0.0
    %2547 = vmatpush.msra.mxu0 0.0
    %2548 = vmatpush.msra.mxu0 0.0
    %2549 = vmatpush.msra.mxu0 0.0
    %2550 = vmatpush.msra.mxu0 0.0
    %2551 = vmatpush.msra.mxu0 0.0
    %2552 = vmatpush.msra.mxu0 0.0
    %2553 = vmatpush.msra.mxu0 0.0
    %2554 = vmatpush.msra.mxu0 %v2511
    %2555 = vmatmul.f32.gmra.mxu0 %v2517
    %v2556 = vpop.f32.mrf.mxu0
    %v2557 = vadd.f32 0.0, %v2556
    %2558 = vdwg.mxu0
    %2559 = vmatpush.msra.mxu0 0.0
    %2560 = vmatpush.msra.mxu0 0.0
    %2561 = vmatpush.msra.mxu0 0.0
    %2562 = vmatpush.msra.mxu0 0.0
    %2563 = vmatpush.msra.mxu0 0.0
    %2564 = vmatpush.msra.mxu0 0.0
    %2565 = vmatpush.msra.mxu0 0.0
    %2566 = vmatpush.msra.mxu0 0.0
    %2567 = vmatpush.msra.mxu0 0.0
    %2568 = vmatpush.msra.mxu0 0.0
    %2569 = vmatpush.msra.mxu0 0.0
    %2570 = vmatpush.msra.mxu0 0.0
    %2571 = vmatpush.msra.mxu0 0.0
    %2572 = vmatpush.msra.mxu0 0.0
    %2573 = vmatpush.msra.mxu0 0.0
    %2574 = vmatpush.msra.mxu0 %v2512
    %2575 = vmatmul.f32.gmra.mxu0 %v2517
    %v2576 = vpop.f32.mrf.mxu0
    %v2577 = vadd.f32 0.0, %v2576
    %2578 = vdwg.mxu0
    %v2579 = vadd.f32 %v2496, %v2537
    %v2580 = vadd.f32 %v2497, %v2557
    %v2581 = vadd.f32 %v2498, %v2577
    %s2582 = scalar_lea.vmem %s7, 64
    %v2583 = vld [vmem:[%s2582] sm:$0xff]
    %2584 = vrot.lane.b32.xlu0 %v1859, 43
    %v2585 = vpop.permute.xlu0 %2584
    %2586 = vrot.lane.b32.xlu0 %v1879, 43
    %v2587 = vpop.permute.xlu0 %2586
    %2588 = vrot.lane.b32.xlu0 %v1899, 43
    %v2589 = vpop.permute.xlu0 %2588
    %2590 = vrot.lane.b32.xlu0 %v1919, 43
    %v2591 = vpop.permute.xlu0 %2590
    %vm2592 = vcmask 351232
    %v2593 = vsel %vm2592, %v2585, %v2587
    %v2594 = vsel %vm2592, %v2587, %v2589
    %v2595 = vsel %vm2592, %v2589, %v2591
    %v2600 = vsel %vm525, %v2583, 0
    %2602 = vmatpush.msra.mxu0 0.0
    %2603 = vmatpush.msra.mxu0 0.0
    %2604 = vmatpush.msra.mxu0 0.0
    %2605 = vmatpush.msra.mxu0 0.0
    %2606 = vmatpush.msra.mxu0 0.0
    %2607 = vmatpush.msra.mxu0 0.0
    %2608 = vmatpush.msra.mxu0 0.0
    %2609 = vmatpush.msra.mxu0 0.0
    %2610 = vmatpush.msra.mxu0 0.0
    %2611 = vmatpush.msra.mxu0 0.0
    %2612 = vmatpush.msra.mxu0 0.0
    %2613 = vmatpush.msra.mxu0 0.0
    %2614 = vmatpush.msra.mxu0 0.0
    %2615 = vmatpush.msra.mxu0 0.0
    %2616 = vmatpush.msra.mxu0 0.0
    %2617 = vmatpush.msra.mxu0 %v2593
    %2618 = vmatmul.f32.gmra.mxu0 %v2600
    %v2619 = vpop.f32.mrf.mxu0
    %v2620 = vadd.f32 0.0, %v2619
    %2621 = vdwg.mxu0
    %2622 = vmatpush.msra.mxu0 0.0
    %2623 = vmatpush.msra.mxu0 0.0
    %2624 = vmatpush.msra.mxu0 0.0
    %2625 = vmatpush.msra.mxu0 0.0
    %2626 = vmatpush.msra.mxu0 0.0
    %2627 = vmatpush.msra.mxu0 0.0
    %2628 = vmatpush.msra.mxu0 0.0
    %2629 = vmatpush.msra.mxu0 0.0
    %2630 = vmatpush.msra.mxu0 0.0
    %2631 = vmatpush.msra.mxu0 0.0
    %2632 = vmatpush.msra.mxu0 0.0
    %2633 = vmatpush.msra.mxu0 0.0
    %2634 = vmatpush.msra.mxu0 0.0
    %2635 = vmatpush.msra.mxu0 0.0
    %2636 = vmatpush.msra.mxu0 0.0
    %2637 = vmatpush.msra.mxu0 %v2594
    %2638 = vmatmul.f32.gmra.mxu0 %v2600
    %v2639 = vpop.f32.mrf.mxu0
    %v2640 = vadd.f32 0.0, %v2639
    %2641 = vdwg.mxu0
    %2642 = vmatpush.msra.mxu0 0.0
    %2643 = vmatpush.msra.mxu0 0.0
    %2644 = vmatpush.msra.mxu0 0.0
    %2645 = vmatpush.msra.mxu0 0.0
    %2646 = vmatpush.msra.mxu0 0.0
    %2647 = vmatpush.msra.mxu0 0.0
    %2648 = vmatpush.msra.mxu0 0.0
    %2649 = vmatpush.msra.mxu0 0.0
    %2650 = vmatpush.msra.mxu0 0.0
    %2651 = vmatpush.msra.mxu0 0.0
    %2652 = vmatpush.msra.mxu0 0.0
    %2653 = vmatpush.msra.mxu0 0.0
    %2654 = vmatpush.msra.mxu0 0.0
    %2655 = vmatpush.msra.mxu0 0.0
    %2656 = vmatpush.msra.mxu0 0.0
    %2657 = vmatpush.msra.mxu0 %v2595
    %2658 = vmatmul.f32.gmra.mxu0 %v2600
    %v2659 = vpop.f32.mrf.mxu0
    %v2660 = vadd.f32 0.0, %v2659
    %2661 = vdwg.mxu0
    %v2662 = vadd.f32 %v2579, %v2620
    %v2663 = vadd.f32 %v2580, %v2640
    %v2664 = vadd.f32 %v2581, %v2660
    %v2665 = vld [vmem:[%s8] sm:$0xff]
    %2667 = vset.pattern.permute.xlu0 0
    %2668 = vperm.xlu0 %2667, %v2665
    %v2669 = vpop.permute.xlu0 %2668
    %v2671 = vadd.f32 %v2662, %v2669
    %v2672 = vadd.f32 %v2663, %v2669
    %v2673 = vadd.f32 %v2664, %v2669
    %v2674 = vmax.f32 %v2671, 0.0
    %v2675 = vmax.f32 %v2672, 0.0
    %v2676 = vmax.f32 %v2673, 0.0
    %v2677 = vld [vmem:[#allocation7] sm:$0xff]
    %s2678 = scalar_lea.vmem %s7, 72
    %v2679 = vld [vmem:[%s2678] sm:$0xff]
    %s2680 = scalar_lea.vmem %s7, 80
    %v2681 = vld [vmem:[%s2680] sm:$0xff]
    %2682 = vrot.lane.b32.xlu0 %v1859, 92
    %v2683 = vpop.permute.xlu0 %2682
    %2684 = vrot.lane.b32.xlu0 %v1879, 92
    %v2685 = vpop.permute.xlu0 %2684
    %2686 = vrot.lane.b32.xlu0 %v1899, 92
    %v2687 = vpop.permute.xlu0 %2686
    %2688 = vrot.lane.b32.xlu0 %v1919, 92
    %v2689 = vpop.permute.xlu0 %2688
    %vm2690 = vcmask 752640
    %v2691 = vsel %vm2690, %v2683, %v2685
    %v2692 = vsel %vm2690, %v2685, %v2687
    %v2693 = vsel %vm2690, %v2687, %v2689
    %v2698 = vsel %vm525, %v2681, 0
    %2700 = vmatpush.msra.mxu0 0.0
    %2701 = vmatpush.msra.mxu0 0.0
    %2702 = vmatpush.msra.mxu0 0.0
    %2703 = vmatpush.msra.mxu0 0.0
    %2704 = vmatpush.msra.mxu0 0.0
    %2705 = vmatpush.msra.mxu0 0.0
    %2706 = vmatpush.msra.mxu0 0.0
    %2707 = vmatpush.msra.mxu0 0.0
    %2708 = vmatpush.msra.mxu0 0.0
    %2709 = vmatpush.msra.mxu0 0.0
    %2710 = vmatpush.msra.mxu0 0.0
    %2711 = vmatpush.msra.mxu0 0.0
    %2712 = vmatpush.msra.mxu0 0.0
    %2713 = vmatpush.msra.mxu0 0.0
    %2714 = vmatpush.msra.mxu0 0.0
    %2715 = vmatpush.msra.mxu0 %v2691
    %2716 = vmatmul.f32.gmra.mxu0 %v2698
    %v2717 = vpop.f32.mrf.mxu0
    %v2718 = vadd.f32 0.0, %v2717
    %2719 = vdwg.mxu0
    %2720 = vmatpush.msra.mxu0 0.0
    %2721 = vmatpush.msra.mxu0 0.0
    %2722 = vmatpush.msra.mxu0 0.0
    %2723 = vmatpush.msra.mxu0 0.0
    %2724 = vmatpush.msra.mxu0 0.0
    %2725 = vmatpush.msra.mxu0 0.0
    %2726 = vmatpush.msra.mxu0 0.0
    %2727 = vmatpush.msra.mxu0 0.0
    %2728 = vmatpush.msra.mxu0 0.0
    %2729 = vmatpush.msra.mxu0 0.0
    %2730 = vmatpush.msra.mxu0 0.0
    %2731 = vmatpush.msra.mxu0 0.0
    %2732 = vmatpush.msra.mxu0 0.0
    %2733 = vmatpush.msra.mxu0 0.0
    %2734 = vmatpush.msra.mxu0 0.0
    %2735 = vmatpush.msra.mxu0 %v2692
    %2736 = vmatmul.f32.gmra.mxu0 %v2698
    %v2737 = vpop.f32.mrf.mxu0
    %v2738 = vadd.f32 0.0, %v2737
    %2739 = vdwg.mxu0
    %2740 = vmatpush.msra.mxu0 0.0
    %2741 = vmatpush.msra.mxu0 0.0
    %2742 = vmatpush.msra.mxu0 0.0
    %2743 = vmatpush.msra.mxu0 0.0
    %2744 = vmatpush.msra.mxu0 0.0
    %2745 = vmatpush.msra.mxu0 0.0
    %2746 = vmatpush.msra.mxu0 0.0
    %2747 = vmatpush.msra.mxu0 0.0
    %2748 = vmatpush.msra.mxu0 0.0
    %2749 = vmatpush.msra.mxu0 0.0
    %2750 = vmatpush.msra.mxu0 0.0
    %2751 = vmatpush.msra.mxu0 0.0
    %2752 = vmatpush.msra.mxu0 0.0
    %2753 = vmatpush.msra.mxu0 0.0
    %2754 = vmatpush.msra.mxu0 0.0
    %2755 = vmatpush.msra.mxu0 %v2693
    %2756 = vmatmul.f32.gmra.mxu0 %v2698
    %v2757 = vpop.f32.mrf.mxu0
    %v2758 = vadd.f32 0.0, %v2757
    %2759 = vdwg.mxu0
    %2760 = vrot.lane.b32.xlu0 %v1859, 94
    %v2761 = vpop.permute.xlu0 %2760
    %2762 = vrot.lane.b32.xlu0 %v1879, 94
    %v2763 = vpop.permute.xlu0 %2762
    %2764 = vrot.lane.b32.xlu0 %v1899, 94
    %v2765 = vpop.permute.xlu0 %2764
    %2766 = vrot.lane.b32.xlu0 %v1919, 94
    %v2767 = vpop.permute.xlu0 %2766
    %vm2768 = vcmask 769024
    %v2769 = vsel %vm2768, %v2761, %v2763
    %v2770 = vsel %vm2768, %v2763, %v2765
    %v2771 = vsel %vm2768, %v2765, %v2767
    %v2776 = vsel %vm525, %v2679, 0
    %2778 = vmatpush.msra.mxu0 0.0
    %2779 = vmatpush.msra.mxu0 0.0
    %2780 = vmatpush.msra.mxu0 0.0
    %2781 = vmatpush.msra.mxu0 0.0
    %2782 = vmatpush.msra.mxu0 0.0
    %2783 = vmatpush.msra.mxu0 0.0
    %2784 = vmatpush.msra.mxu0 0.0
    %2785 = vmatpush.msra.mxu0 0.0
    %2786 = vmatpush.msra.mxu0 0.0
    %2787 = vmatpush.msra.mxu0 0.0
    %2788 = vmatpush.msra.mxu0 0.0
    %2789 = vmatpush.msra.mxu0 0.0
    %2790 = vmatpush.msra.mxu0 0.0
    %2791 = vmatpush.msra.mxu0 0.0
    %2792 = vmatpush.msra.mxu0 0.0
    %2793 = vmatpush.msra.mxu0 %v2769
    %2794 = vmatmul.f32.gmra.mxu0 %v2776
    %v2795 = vpop.f32.mrf.mxu0
    %v2796 = vadd.f32 %v2718, %v2795
    %2797 = vdwg.mxu0
    %2798 = vmatpush.msra.mxu0 0.0
    %2799 = vmatpush.msra.mxu0 0.0
    %2800 = vmatpush.msra.mxu0 0.0
    %2801 = vmatpush.msra.mxu0 0.0
    %2802 = vmatpush.msra.mxu0 0.0
    %2803 = vmatpush.msra.mxu0 0.0
    %2804 = vmatpush.msra.mxu0 0.0
    %2805 = vmatpush.msra.mxu0 0.0
    %2806 = vmatpush.msra.mxu0 0.0
    %2807 = vmatpush.msra.mxu0 0.0
    %2808 = vmatpush.msra.mxu0 0.0
    %2809 = vmatpush.msra.mxu0 0.0
    %2810 = vmatpush.msra.mxu0 0.0
    %2811 = vmatpush.msra.mxu0 0.0
    %2812 = vmatpush.msra.mxu0 0.0
    %2813 = vmatpush.msra.mxu0 %v2770
    %2814 = vmatmul.f32.gmra.mxu0 %v2776
    %v2815 = vpop.f32.mrf.mxu0
    %v2816 = vadd.f32 %v2738, %v2815
    %2817 = vdwg.mxu0
    %2818 = vmatpush.msra.mxu0 0.0
    %2819 = vmatpush.msra.mxu0 0.0
    %2820 = vmatpush.msra.mxu0 0.0
    %2821 = vmatpush.msra.mxu0 0.0
    %2822 = vmatpush.msra.mxu0 0.0
    %2823 = vmatpush.msra.mxu0 0.0
    %2824 = vmatpush.msra.mxu0 0.0
    %2825 = vmatpush.msra.mxu0 0.0
    %2826 = vmatpush.msra.mxu0 0.0
    %2827 = vmatpush.msra.mxu0 0.0
    %2828 = vmatpush.msra.mxu0 0.0
    %2829 = vmatpush.msra.mxu0 0.0
    %2830 = vmatpush.msra.mxu0 0.0
    %2831 = vmatpush.msra.mxu0 0.0
    %2832 = vmatpush.msra.mxu0 0.0
    %2833 = vmatpush.msra.mxu0 %v2771
    %2834 = vmatmul.f32.gmra.mxu0 %v2776
    %v2835 = vpop.f32.mrf.mxu0
    %v2836 = vadd.f32 %v2758, %v2835
    %2837 = vdwg.mxu0
    %s2838 = scalar_lea.vmem %s7, 88
    %v2839 = vld [vmem:[%s2838] sm:$0xff]
    %2840 = vrot.lane.b32.xlu0 %v1859, 90
    %v2841 = vpop.permute.xlu0 %2840
    %2842 = vrot.lane.b32.xlu0 %v1879, 90
    %v2843 = vpop.permute.xlu0 %2842
    %2844 = vrot.lane.b32.xlu0 %v1899, 90
    %v2845 = vpop.permute.xlu0 %2844
    %2846 = vrot.lane.b32.xlu0 %v1919, 90
    %v2847 = vpop.permute.xlu0 %2846
    %vm2848 = vcmask 736256
    %v2849 = vsel %vm2848, %v2841, %v2843
    %v2850 = vsel %vm2848, %v2843, %v2845
    %v2851 = vsel %vm2848, %v2845, %v2847
    %v2856 = vsel %vm525, %v2839, 0
    %2858 = vmatpush.msra.mxu0 0.0
    %2859 = vmatpush.msra.mxu0 0.0
    %2860 = vmatpush.msra.mxu0 0.0
    %2861 = vmatpush.msra.mxu0 0.0
    %2862 = vmatpush.msra.mxu0 0.0
    %2863 = vmatpush.msra.mxu0 0.0
    %2864 = vmatpush.msra.mxu0 0.0
    %2865 = vmatpush.msra.mxu0 0.0
    %2866 = vmatpush.msra.mxu0 0.0
    %2867 = vmatpush.msra.mxu0 0.0
    %2868 = vmatpush.msra.mxu0 0.0
    %2869 = vmatpush.msra.mxu0 0.0
    %2870 = vmatpush.msra.mxu0 0.0
    %2871 = vmatpush.msra.mxu0 0.0
    %2872 = vmatpush.msra.mxu0 0.0
    %2873 = vmatpush.msra.mxu0 %v2849
    %2874 = vmatmul.f32.gmra.mxu0 %v2856
    %v2875 = vpop.f32.mrf.mxu0
    %v2876 = vadd.f32 0.0, %v2875
    %2877 = vdwg.mxu0
    %2878 = vmatpush.msra.mxu0 0.0
    %2879 = vmatpush.msra.mxu0 0.0
    %2880 = vmatpush.msra.mxu0 0.0
    %2881 = vmatpush.msra.mxu0 0.0
    %2882 = vmatpush.msra.mxu0 0.0
    %2883 = vmatpush.msra.mxu0 0.0
    %2884 = vmatpush.msra.mxu0 0.0
    %2885 = vmatpush.msra.mxu0 0.0
    %2886 = vmatpush.msra.mxu0 0.0
    %2887 = vmatpush.msra.mxu0 0.0
    %2888 = vmatpush.msra.mxu0 0.0
    %2889 = vmatpush.msra.mxu0 0.0
    %2890 = vmatpush.msra.mxu0 0.0
    %2891 = vmatpush.msra.mxu0 0.0
    %2892 = vmatpush.msra.mxu0 0.0
    %2893 = vmatpush.msra.mxu0 %v2850
    %2894 = vmatmul.f32.gmra.mxu0 %v2856
    %v2895 = vpop.f32.mrf.mxu0
    %v2896 = vadd.f32 0.0, %v2895
    %2897 = vdwg.mxu0
    %2898 = vmatpush.msra.mxu0 0.0
    %2899 = vmatpush.msra.mxu0 0.0
    %2900 = vmatpush.msra.mxu0 0.0
    %2901 = vmatpush.msra.mxu0 0.0
    %2902 = vmatpush.msra.mxu0 0.0
    %2903 = vmatpush.msra.mxu0 0.0
    %2904 = vmatpush.msra.mxu0 0.0
    %2905 = vmatpush.msra.mxu0 0.0
    %2906 = vmatpush.msra.mxu0 0.0
    %2907 = vmatpush.msra.mxu0 0.0
    %2908 = vmatpush.msra.mxu0 0.0
    %2909 = vmatpush.msra.mxu0 0.0
    %2910 = vmatpush.msra.mxu0 0.0
    %2911 = vmatpush.msra.mxu0 0.0
    %2912 = vmatpush.msra.mxu0 0.0
    %2913 = vmatpush.msra.mxu0 %v2851
    %2914 = vmatmul.f32.gmra.mxu0 %v2856
    %v2915 = vpop.f32.mrf.mxu0
    %v2916 = vadd.f32 0.0, %v2915
    %2917 = vdwg.mxu0
    %v2918 = vadd.f32 %v2796, %v2876
    %v2919 = vadd.f32 %v2816, %v2896
    %v2920 = vadd.f32 %v2836, %v2916
    %s2921 = scalar_lea.vmem %s7, 96
    %v2922 = vld [vmem:[%s2921] sm:$0xff]
    %2923 = vrot.lane.b32.xlu0 %v1859, 62
    %v2924 = vpop.permute.xlu0 %2923
    %2925 = vrot.lane.b32.xlu0 %v1879, 62
    %v2926 = vpop.permute.xlu0 %2925
    %2927 = vrot.lane.b32.xlu0 %v1899, 62
    %v2928 = vpop.permute.xlu0 %2927
    %2929 = vrot.lane.b32.xlu0 %v1919, 62
    %v2930 = vpop.permute.xlu0 %2929
    %vm2931 = vcmask 506880
    %v2932 = vsel %vm2931, %v2924, %v2926
    %v2933 = vsel %vm2931, %v2926, %v2928
    %v2934 = vsel %vm2931, %v2928, %v2930
    %v2939 = vsel %vm525, %v2922, 0
    %2941 = vmatpush.msra.mxu0 0.0
    %2942 = vmatpush.msra.mxu0 0.0
    %2943 = vmatpush.msra.mxu0 0.0
    %2944 = vmatpush.msra.mxu0 0.0
    %2945 = vmatpush.msra.mxu0 0.0
    %2946 = vmatpush.msra.mxu0 0.0
    %2947 = vmatpush.msra.mxu0 0.0
    %2948 = vmatpush.msra.mxu0 0.0
    %2949 = vmatpush.msra.mxu0 0.0
    %2950 = vmatpush.msra.mxu0 0.0
    %2951 = vmatpush.msra.mxu0 0.0
    %2952 = vmatpush.msra.mxu0 0.0
    %2953 = vmatpush.msra.mxu0 0.0
    %2954 = vmatpush.msra.mxu0 0.0
    %2955 = vmatpush.msra.mxu0 0.0
    %2956 = vmatpush.msra.mxu0 %v2932
    %2957 = vmatmul.f32.gmra.mxu0 %v2939
    %v2958 = vpop.f32.mrf.mxu0
    %v2959 = vadd.f32 0.0, %v2958
    %2960 = vdwg.mxu0
    %2961 = vmatpush.msra.mxu0 0.0
    %2962 = vmatpush.msra.mxu0 0.0
    %2963 = vmatpush.msra.mxu0 0.0
    %2964 = vmatpush.msra.mxu0 0.0
    %2965 = vmatpush.msra.mxu0 0.0
    %2966 = vmatpush.msra.mxu0 0.0
    %2967 = vmatpush.msra.mxu0 0.0
    %2968 = vmatpush.msra.mxu0 0.0
    %2969 = vmatpush.msra.mxu0 0.0
    %2970 = vmatpush.msra.mxu0 0.0
    %2971 = vmatpush.msra.mxu0 0.0
    %2972 = vmatpush.msra.mxu0 0.0
    %2973 = vmatpush.msra.mxu0 0.0
    %2974 = vmatpush.msra.mxu0 0.0
    %2975 = vmatpush.msra.mxu0 0.0
    %2976 = vmatpush.msra.mxu0 %v2933
    %2977 = vmatmul.f32.gmra.mxu0 %v2939
    %v2978 = vpop.f32.mrf.mxu0
    %v2979 = vadd.f32 0.0, %v2978
    %2980 = vdwg.mxu0
    %2981 = vmatpush.msra.mxu0 0.0
    %2982 = vmatpush.msra.mxu0 0.0
    %2983 = vmatpush.msra.mxu0 0.0
    %2984 = vmatpush.msra.mxu0 0.0
    %2985 = vmatpush.msra.mxu0 0.0
    %2986 = vmatpush.msra.mxu0 0.0
    %2987 = vmatpush.msra.mxu0 0.0
    %2988 = vmatpush.msra.mxu0 0.0
    %2989 = vmatpush.msra.mxu0 0.0
    %2990 = vmatpush.msra.mxu0 0.0
    %2991 = vmatpush.msra.mxu0 0.0
    %2992 = vmatpush.msra.mxu0 0.0
    %2993 = vmatpush.msra.mxu0 0.0
    %2994 = vmatpush.msra.mxu0 0.0
    %2995 = vmatpush.msra.mxu0 0.0
    %2996 = vmatpush.msra.mxu0 %v2934
    %2997 = vmatmul.f32.gmra.mxu0 %v2939
    %v2998 = vpop.f32.mrf.mxu0
    %v2999 = vadd.f32 0.0, %v2998
    %3000 = vdwg.mxu0
    %v3001 = vadd.f32 %v2918, %v2959
    %v3002 = vadd.f32 %v2919, %v2979
    %v3003 = vadd.f32 %v2920, %v2999
    %s3004 = scalar_lea.vmem %s7, 104
    %v3005 = vld [vmem:[%s3004] sm:$0xff]
    %v3007 = vsel %vm525, %v3005, 0
    %3009 = vmatpush.msra.mxu0 0.0
    %3010 = vmatpush.msra.mxu0 0.0
    %3011 = vmatpush.msra.mxu0 0.0
    %3012 = vmatpush.msra.mxu0 0.0
    %3013 = vmatpush.msra.mxu0 0.0
    %3014 = vmatpush.msra.mxu0 0.0
    %3015 = vmatpush.msra.mxu0 0.0
    %3016 = vmatpush.msra.mxu0 0.0
    %3017 = vmatpush.msra.mxu0 0.0
    %3018 = vmatpush.msra.mxu0 0.0
    %3019 = vmatpush.msra.mxu0 0.0
    %3020 = vmatpush.msra.mxu0 0.0
    %3021 = vmatpush.msra.mxu0 0.0
    %3022 = vmatpush.msra.mxu0 0.0
    %3023 = vmatpush.msra.mxu0 0.0
    %3024 = vmatpush.msra.mxu0 %v2261
    %3025 = vmatmul.f32.gmra.mxu0 %v3007
    %v3026 = vpop.f32.mrf.mxu0
    %v3027 = vadd.f32 0.0, %v3026
    %3028 = vdwg.mxu0
    %3029 = vmatpush.msra.mxu0 0.0
    %3030 = vmatpush.msra.mxu0 0.0
    %3031 = vmatpush.msra.mxu0 0.0
    %3032 = vmatpush.msra.mxu0 0.0
    %3033 = vmatpush.msra.mxu0 0.0
    %3034 = vmatpush.msra.mxu0 0.0
    %3035 = vmatpush.msra.mxu0 0.0
    %3036 = vmatpush.msra.mxu0 0.0
    %3037 = vmatpush.msra.mxu0 0.0
    %3038 = vmatpush.msra.mxu0 0.0
    %3039 = vmatpush.msra.mxu0 0.0
    %3040 = vmatpush.msra.mxu0 0.0
    %3041 = vmatpush.msra.mxu0 0.0
    %3042 = vmatpush.msra.mxu0 0.0
    %3043 = vmatpush.msra.mxu0 0.0
    %3044 = vmatpush.msra.mxu0 %v2262
    %3045 = vmatmul.f32.gmra.mxu0 %v3007
    %v3046 = vpop.f32.mrf.mxu0
    %v3047 = vadd.f32 0.0, %v3046
    %3048 = vdwg.mxu0
    %3049 = vmatpush.msra.mxu0 0.0
    %3050 = vmatpush.msra.mxu0 0.0
    %3051 = vmatpush.msra.mxu0 0.0
    %3052 = vmatpush.msra.mxu0 0.0
    %3053 = vmatpush.msra.mxu0 0.0
    %3054 = vmatpush.msra.mxu0 0.0
    %3055 = vmatpush.msra.mxu0 0.0
    %3056 = vmatpush.msra.mxu0 0.0
    %3057 = vmatpush.msra.mxu0 0.0
    %3058 = vmatpush.msra.mxu0 0.0
    %3059 = vmatpush.msra.mxu0 0.0
    %3060 = vmatpush.msra.mxu0 0.0
    %3061 = vmatpush.msra.mxu0 0.0
    %3062 = vmatpush.msra.mxu0 0.0
    %3063 = vmatpush.msra.mxu0 0.0
    %3064 = vmatpush.msra.mxu0 %v2263
    %3065 = vmatmul.f32.gmra.mxu0 %v3007
    %v3066 = vpop.f32.mrf.mxu0
    %v3067 = vadd.f32 0.0, %v3066
    %3068 = vdwg.mxu0
    %v3069 = vadd.f32 %v3001, %v3027
    %v3070 = vadd.f32 %v3002, %v3047
    %v3071 = vadd.f32 %v3003, %v3067
    %s3072 = scalar_lea.vmem %s7, 112
    %v3073 = vld [vmem:[%s3072] sm:$0xff]
    %3074 = vrot.lane.b32.xlu0 %v1859, 58
    %v3075 = vpop.permute.xlu0 %3074
    %3076 = vrot.lane.b32.xlu0 %v1879, 58
    %v3077 = vpop.permute.xlu0 %3076
    %3078 = vrot.lane.b32.xlu0 %v1899, 58
    %v3079 = vpop.permute.xlu0 %3078
    %3080 = vrot.lane.b32.xlu0 %v1919, 58
    %v3081 = vpop.permute.xlu0 %3080
    %vm3082 = vcmask 474112
    %v3083 = vsel %vm3082, %v3075, %v3077
    %v3084 = vsel %vm3082, %v3077, %v3079
    %v3085 = vsel %vm3082, %v3079, %v3081
    %v3090 = vsel %vm525, %v3073, 0
    %3092 = vmatpush.msra.mxu0 0.0
    %3093 = vmatpush.msra.mxu0 0.0
    %3094 = vmatpush.msra.mxu0 0.0
    %3095 = vmatpush.msra.mxu0 0.0
    %3096 = vmatpush.msra.mxu0 0.0
    %3097 = vmatpush.msra.mxu0 0.0
    %3098 = vmatpush.msra.mxu0 0.0
    %3099 = vmatpush.msra.mxu0 0.0
    %3100 = vmatpush.msra.mxu0 0.0
    %3101 = vmatpush.msra.mxu0 0.0
    %3102 = vmatpush.msra.mxu0 0.0
    %3103 = vmatpush.msra.mxu0 0.0
    %3104 = vmatpush.msra.mxu0 0.0
    %3105 = vmatpush.msra.mxu0 0.0
    %3106 = vmatpush.msra.mxu0 0.0
    %3107 = vmatpush.msra.mxu0 %v3083
    %3108 = vmatmul.f32.gmra.mxu0 %v3090
    %v3109 = vpop.f32.mrf.mxu0
    %v3110 = vadd.f32 0.0, %v3109
    %3111 = vdwg.mxu0
    %3112 = vmatpush.msra.mxu0 0.0
    %3113 = vmatpush.msra.mxu0 0.0
    %3114 = vmatpush.msra.mxu0 0.0
    %3115 = vmatpush.msra.mxu0 0.0
    %3116 = vmatpush.msra.mxu0 0.0
    %3117 = vmatpush.msra.mxu0 0.0
    %3118 = vmatpush.msra.mxu0 0.0
    %3119 = vmatpush.msra.mxu0 0.0
    %3120 = vmatpush.msra.mxu0 0.0
    %3121 = vmatpush.msra.mxu0 0.0
    %3122 = vmatpush.msra.mxu0 0.0
    %3123 = vmatpush.msra.mxu0 0.0
    %3124 = vmatpush.msra.mxu0 0.0
    %3125 = vmatpush.msra.mxu0 0.0
    %3126 = vmatpush.msra.mxu0 0.0
    %3127 = vmatpush.msra.mxu0 %v3084
    %3128 = vmatmul.f32.gmra.mxu0 %v3090
    %v3129 = vpop.f32.mrf.mxu0
    %v3130 = vadd.f32 0.0, %v3129
    %3131 = vdwg.mxu0
    %3132 = vmatpush.msra.mxu0 0.0
    %3133 = vmatpush.msra.mxu0 0.0
    %3134 = vmatpush.msra.mxu0 0.0
    %3135 = vmatpush.msra.mxu0 0.0
    %3136 = vmatpush.msra.mxu0 0.0
    %3137 = vmatpush.msra.mxu0 0.0
    %3138 = vmatpush.msra.mxu0 0.0
    %3139 = vmatpush.msra.mxu0 0.0
    %3140 = vmatpush.msra.mxu0 0.0
    %3141 = vmatpush.msra.mxu0 0.0
    %3142 = vmatpush.msra.mxu0 0.0
    %3143 = vmatpush.msra.mxu0 0.0
    %3144 = vmatpush.msra.mxu0 0.0
    %3145 = vmatpush.msra.mxu0 0.0
    %3146 = vmatpush.msra.mxu0 0.0
    %3147 = vmatpush.msra.mxu0 %v3085
    %3148 = vmatmul.f32.gmra.mxu0 %v3090
    %v3149 = vpop.f32.mrf.mxu0
    %v3150 = vadd.f32 0.0, %v3149
    %3151 = vdwg.mxu0
    %v3152 = vadd.f32 %v3069, %v3110
    %v3153 = vadd.f32 %v3070, %v3130
    %v3154 = vadd.f32 %v3071, %v3150
    %s3155 = scalar_lea.vmem %s7, 120
    %v3156 = vld [vmem:[%s3155] sm:$0xff]
    %3157 = vrot.lane.b32.xlu0 %v1859, 30
    %v3158 = vpop.permute.xlu0 %3157
    %3159 = vrot.lane.b32.xlu0 %v1879, 30
    %v3160 = vpop.permute.xlu0 %3159
    %3161 = vrot.lane.b32.xlu0 %v1899, 30
    %v3162 = vpop.permute.xlu0 %3161
    %3163 = vrot.lane.b32.xlu0 %v1919, 30
    %v3164 = vpop.permute.xlu0 %3163
    %vm3165 = vcmask 244736
    %v3166 = vsel %vm3165, %v3158, %v3160
    %v3167 = vsel %vm3165, %v3160, %v3162
    %v3168 = vsel %vm3165, %v3162, %v3164
    %v3173 = vsel %vm525, %v3156, 0
    %3175 = vmatpush.msra.mxu0 0.0
    %3176 = vmatpush.msra.mxu0 0.0
    %3177 = vmatpush.msra.mxu0 0.0
    %3178 = vmatpush.msra.mxu0 0.0
    %3179 = vmatpush.msra.mxu0 0.0
    %3180 = vmatpush.msra.mxu0 0.0
    %3181 = vmatpush.msra.mxu0 0.0
    %3182 = vmatpush.msra.mxu0 0.0
    %3183 = vmatpush.msra.mxu0 0.0
    %3184 = vmatpush.msra.mxu0 0.0
    %3185 = vmatpush.msra.mxu0 0.0
    %3186 = vmatpush.msra.mxu0 0.0
    %3187 = vmatpush.msra.mxu0 0.0
    %3188 = vmatpush.msra.mxu0 0.0
    %3189 = vmatpush.msra.mxu0 0.0
    %3190 = vmatpush.msra.mxu0 %v3166
    %3191 = vmatmul.f32.gmra.mxu0 %v3173
    %v3192 = vpop.f32.mrf.mxu0
    %v3193 = vadd.f32 0.0, %v3192
    %3194 = vdwg.mxu0
    %3195 = vmatpush.msra.mxu0 0.0
    %3196 = vmatpush.msra.mxu0 0.0
    %3197 = vmatpush.msra.mxu0 0.0
    %3198 = vmatpush.msra.mxu0 0.0
    %3199 = vmatpush.msra.mxu0 0.0
    %3200 = vmatpush.msra.mxu0 0.0
    %3201 = vmatpush.msra.mxu0 0.0
    %3202 = vmatpush.msra.mxu0 0.0
    %3203 = vmatpush.msra.mxu0 0.0
    %3204 = vmatpush.msra.mxu0 0.0
    %3205 = vmatpush.msra.mxu0 0.0
    %3206 = vmatpush.msra.mxu0 0.0
    %3207 = vmatpush.msra.mxu0 0.0
    %3208 = vmatpush.msra.mxu0 0.0
    %3209 = vmatpush.msra.mxu0 0.0
    %3210 = vmatpush.msra.mxu0 %v3167
    %3211 = vmatmul.f32.gmra.mxu0 %v3173
    %v3212 = vpop.f32.mrf.mxu0
    %v3213 = vadd.f32 0.0, %v3212
    %3214 = vdwg.mxu0
    %3215 = vmatpush.msra.mxu0 0.0
    %3216 = vmatpush.msra.mxu0 0.0
    %3217 = vmatpush.msra.mxu0 0.0
    %3218 = vmatpush.msra.mxu0 0.0
    %3219 = vmatpush.msra.mxu0 0.0
    %3220 = vmatpush.msra.mxu0 0.0
    %3221 = vmatpush.msra.mxu0 0.0
    %3222 = vmatpush.msra.mxu0 0.0
    %3223 = vmatpush.msra.mxu0 0.0
    %3224 = vmatpush.msra.mxu0 0.0
    %3225 = vmatpush.msra.mxu0 0.0
    %3226 = vmatpush.msra.mxu0 0.0
    %3227 = vmatpush.msra.mxu0 0.0
    %3228 = vmatpush.msra.mxu0 0.0
    %3229 = vmatpush.msra.mxu0 0.0
    %3230 = vmatpush.msra.mxu0 %v3168
    %3231 = vmatmul.f32.gmra.mxu0 %v3173
    %v3232 = vpop.f32.mrf.mxu0
    %v3233 = vadd.f32 0.0, %v3232
    %3234 = vdwg.mxu0
    %v3235 = vadd.f32 %v3152, %v3193
    %v3236 = vadd.f32 %v3153, %v3213
    %v3237 = vadd.f32 %v3154, %v3233
    %s3238 = scalar_lea.vmem %s7, 128
    %v3239 = vld [vmem:[%s3238] sm:$0xff]
    %3240 = vrot.lane.b32.xlu0 %v1859, 28
    %v3241 = vpop.permute.xlu0 %3240
    %3242 = vrot.lane.b32.xlu0 %v1879, 28
    %v3243 = vpop.permute.xlu0 %3242
    %3244 = vrot.lane.b32.xlu0 %v1899, 28
    %v3245 = vpop.permute.xlu0 %3244
    %3246 = vrot.lane.b32.xlu0 %v1919, 28
    %v3247 = vpop.permute.xlu0 %3246
    %vm3248 = vcmask 228352
    %v3249 = vsel %vm3248, %v3241, %v3243
    %v3250 = vsel %vm3248, %v3243, %v3245
    %v3251 = vsel %vm3248, %v3245, %v3247
    %v3256 = vsel %vm525, %v3239, 0
    %3258 = vmatpush.msra.mxu0 0.0
    %3259 = vmatpush.msra.mxu0 0.0
    %3260 = vmatpush.msra.mxu0 0.0
    %3261 = vmatpush.msra.mxu0 0.0
    %3262 = vmatpush.msra.mxu0 0.0
    %3263 = vmatpush.msra.mxu0 0.0
    %3264 = vmatpush.msra.mxu0 0.0
    %3265 = vmatpush.msra.mxu0 0.0
    %3266 = vmatpush.msra.mxu0 0.0
    %3267 = vmatpush.msra.mxu0 0.0
    %3268 = vmatpush.msra.mxu0 0.0
    %3269 = vmatpush.msra.mxu0 0.0
    %3270 = vmatpush.msra.mxu0 0.0
    %3271 = vmatpush.msra.mxu0 0.0
    %3272 = vmatpush.msra.mxu0 0.0
    %3273 = vmatpush.msra.mxu0 %v3249
    %3274 = vmatmul.f32.gmra.mxu0 %v3256
    %v3275 = vpop.f32.mrf.mxu0
    %v3276 = vadd.f32 0.0, %v3275
    %3277 = vdwg.mxu0
    %3278 = vmatpush.msra.mxu0 0.0
    %3279 = vmatpush.msra.mxu0 0.0
    %3280 = vmatpush.msra.mxu0 0.0
    %3281 = vmatpush.msra.mxu0 0.0
    %3282 = vmatpush.msra.mxu0 0.0
    %3283 = vmatpush.msra.mxu0 0.0
    %3284 = vmatpush.msra.mxu0 0.0
    %3285 = vmatpush.msra.mxu0 0.0
    %3286 = vmatpush.msra.mxu0 0.0
    %3287 = vmatpush.msra.mxu0 0.0
    %3288 = vmatpush.msra.mxu0 0.0
    %3289 = vmatpush.msra.mxu0 0.0
    %3290 = vmatpush.msra.mxu0 0.0
    %3291 = vmatpush.msra.mxu0 0.0
    %3292 = vmatpush.msra.mxu0 0.0
    %3293 = vmatpush.msra.mxu0 %v3250
    %3294 = vmatmul.f32.gmra.mxu0 %v3256
    %v3295 = vpop.f32.mrf.mxu0
    %v3296 = vadd.f32 0.0, %v3295
    %3297 = vdwg.mxu0
    %3298 = vmatpush.msra.mxu0 0.0
    %3299 = vmatpush.msra.mxu0 0.0
    %3300 = vmatpush.msra.mxu0 0.0
    %3301 = vmatpush.msra.mxu0 0.0
    %3302 = vmatpush.msra.mxu0 0.0
    %3303 = vmatpush.msra.mxu0 0.0
    %3304 = vmatpush.msra.mxu0 0.0
    %3305 = vmatpush.msra.mxu0 0.0
    %3306 = vmatpush.msra.mxu0 0.0
    %3307 = vmatpush.msra.mxu0 0.0
    %3308 = vmatpush.msra.mxu0 0.0
    %3309 = vmatpush.msra.mxu0 0.0
    %3310 = vmatpush.msra.mxu0 0.0
    %3311 = vmatpush.msra.mxu0 0.0
    %3312 = vmatpush.msra.mxu0 0.0
    %3313 = vmatpush.msra.mxu0 %v3251
    %3314 = vmatmul.f32.gmra.mxu0 %v3256
    %v3315 = vpop.f32.mrf.mxu0
    %v3316 = vadd.f32 0.0, %v3315
    %3317 = vdwg.mxu0
    %v3318 = vadd.f32 %v3235, %v3276
    %v3319 = vadd.f32 %v3236, %v3296
    %v3320 = vadd.f32 %v3237, %v3316
    %s3321 = scalar_lea.vmem %s7, 136
    %v3322 = vld [vmem:[%s3321] sm:$0xff]
    %3323 = vrot.lane.b32.xlu0 %v1859, 26
    %v3324 = vpop.permute.xlu0 %3323
    %3325 = vrot.lane.b32.xlu0 %v1879, 26
    %v3326 = vpop.permute.xlu0 %3325
    %3327 = vrot.lane.b32.xlu0 %v1899, 26
    %v3328 = vpop.permute.xlu0 %3327
    %3329 = vrot.lane.b32.xlu0 %v1919, 26
    %v3330 = vpop.permute.xlu0 %3329
    %vm3331 = vcmask 211968
    %v3332 = vsel %vm3331, %v3324, %v3326
    %v3333 = vsel %vm3331, %v3326, %v3328
    %v3334 = vsel %vm3331, %v3328, %v3330
    %v3339 = vsel %vm525, %v3322, 0
    %3341 = vmatpush.msra.mxu0 0.0
    %3342 = vmatpush.msra.mxu0 0.0
    %3343 = vmatpush.msra.mxu0 0.0
    %3344 = vmatpush.msra.mxu0 0.0
    %3345 = vmatpush.msra.mxu0 0.0
    %3346 = vmatpush.msra.mxu0 0.0
    %3347 = vmatpush.msra.mxu0 0.0
    %3348 = vmatpush.msra.mxu0 0.0
    %3349 = vmatpush.msra.mxu0 0.0
    %3350 = vmatpush.msra.mxu0 0.0
    %3351 = vmatpush.msra.mxu0 0.0
    %3352 = vmatpush.msra.mxu0 0.0
    %3353 = vmatpush.msra.mxu0 0.0
    %3354 = vmatpush.msra.mxu0 0.0
    %3355 = vmatpush.msra.mxu0 0.0
    %3356 = vmatpush.msra.mxu0 %v3332
    %3357 = vmatmul.f32.gmra.mxu0 %v3339
    %v3358 = vpop.f32.mrf.mxu0
    %v3359 = vadd.f32 0.0, %v3358
    %3360 = vdwg.mxu0
    %3361 = vmatpush.msra.mxu0 0.0
    %3362 = vmatpush.msra.mxu0 0.0
    %3363 = vmatpush.msra.mxu0 0.0
    %3364 = vmatpush.msra.mxu0 0.0
    %3365 = vmatpush.msra.mxu0 0.0
    %3366 = vmatpush.msra.mxu0 0.0
    %3367 = vmatpush.msra.mxu0 0.0
    %3368 = vmatpush.msra.mxu0 0.0
    %3369 = vmatpush.msra.mxu0 0.0
    %3370 = vmatpush.msra.mxu0 0.0
    %3371 = vmatpush.msra.mxu0 0.0
    %3372 = vmatpush.msra.mxu0 0.0
    %3373 = vmatpush.msra.mxu0 0.0
    %3374 = vmatpush.msra.mxu0 0.0
    %3375 = vmatpush.msra.mxu0 0.0
    %3376 = vmatpush.msra.mxu0 %v3333
    %3377 = vmatmul.f32.gmra.mxu0 %v3339
    %v3378 = vpop.f32.mrf.mxu0
    %v3379 = vadd.f32 0.0, %v3378
    %3380 = vdwg.mxu0
    %3381 = vmatpush.msra.mxu0 0.0
    %3382 = vmatpush.msra.mxu0 0.0
    %3383 = vmatpush.msra.mxu0 0.0
    %3384 = vmatpush.msra.mxu0 0.0
    %3385 = vmatpush.msra.mxu0 0.0
    %3386 = vmatpush.msra.mxu0 0.0
    %3387 = vmatpush.msra.mxu0 0.0
    %3388 = vmatpush.msra.mxu0 0.0
    %3389 = vmatpush.msra.mxu0 0.0
    %3390 = vmatpush.msra.mxu0 0.0
    %3391 = vmatpush.msra.mxu0 0.0
    %3392 = vmatpush.msra.mxu0 0.0
    %3393 = vmatpush.msra.mxu0 0.0
    %3394 = vmatpush.msra.mxu0 0.0
    %3395 = vmatpush.msra.mxu0 0.0
    %3396 = vmatpush.msra.mxu0 %v3334
    %3397 = vmatmul.f32.gmra.mxu0 %v3339
    %v3398 = vpop.f32.mrf.mxu0
    %v3399 = vadd.f32 0.0, %v3398
    %3400 = vdwg.mxu0
    %v3401 = vadd.f32 %v3318, %v3359
    %v3402 = vadd.f32 %v3319, %v3379
    %v3403 = vadd.f32 %v3320, %v3399
    %s3404 = scalar_lea.vmem %s8, 8
    %v3405 = vld [vmem:[%s3404] sm:$0xff]
    %3407 = vset.pattern.permute.xlu0 0
    %3408 = vperm.xlu0 %3407, %v3405
    %v3409 = vpop.permute.xlu0 %3408
    %v3411 = vadd.f32 %v3401, %v3409
    %v3412 = vadd.f32 %v3402, %v3409
    %v3413 = vadd.f32 %v3403, %v3409
    %v3414 = vmax.f32 %v3411, 0.0
    %v3415 = vmax.f32 %v3412, 0.0
    %v3416 = vmax.f32 %v3413, 0.0
    %s3417 = scalar_lea.vmem [#allocation7], 8
    %v3418 = vld [vmem:[%s3417] sm:$0xff]
    %v3420 = vsel %vm525, %v3418, 0
    %3422 = vmatpush.msra.mxu0 0.0
    %3423 = vmatpush.msra.mxu0 0.0
    %3424 = vmatpush.msra.mxu0 0.0
    %3425 = vmatpush.msra.mxu0 0.0
    %3426 = vmatpush.msra.mxu0 0.0
    %3427 = vmatpush.msra.mxu0 0.0
    %3428 = vmatpush.msra.mxu0 0.0
    %3429 = vmatpush.msra.mxu0 0.0
    %3430 = vmatpush.msra.mxu0 0.0
    %3431 = vmatpush.msra.mxu0 0.0
    %3432 = vmatpush.msra.mxu0 0.0
    %3433 = vmatpush.msra.mxu0 0.0
    %3434 = vmatpush.msra.mxu0 0.0
    %3435 = vmatpush.msra.mxu0 0.0
    %3436 = vmatpush.msra.mxu0 0.0
    %3437 = vmatpush.msra.mxu0 %v3414
    %3438 = vmatmul.f32.gmra.mxu0 %v3420
    %v3439 = vpop.f32.mrf.mxu0
    %v3440 = vadd.f32 0.0, %v3439
    %3441 = vdwg.mxu0
    %3442 = vmatpush.msra.mxu0 0.0
    %3443 = vmatpush.msra.mxu0 0.0
    %3444 = vmatpush.msra.mxu0 0.0
    %3445 = vmatpush.msra.mxu0 0.0
    %3446 = vmatpush.msra.mxu0 0.0
    %3447 = vmatpush.msra.mxu0 0.0
    %3448 = vmatpush.msra.mxu0 0.0
    %3449 = vmatpush.msra.mxu0 0.0
    %3450 = vmatpush.msra.mxu0 0.0
    %3451 = vmatpush.msra.mxu0 0.0
    %3452 = vmatpush.msra.mxu0 0.0
    %3453 = vmatpush.msra.mxu0 0.0
    %3454 = vmatpush.msra.mxu0 0.0
    %3455 = vmatpush.msra.mxu0 0.0
    %3456 = vmatpush.msra.mxu0 0.0
    %3457 = vmatpush.msra.mxu0 %v3415
    %3458 = vmatmul.f32.gmra.mxu0 %v3420
    %v3459 = vpop.f32.mrf.mxu0
    %v3460 = vadd.f32 0.0, %v3459
    %3461 = vdwg.mxu0
    %3462 = vmatpush.msra.mxu0 0.0
    %3463 = vmatpush.msra.mxu0 0.0
    %3464 = vmatpush.msra.mxu0 0.0
    %3465 = vmatpush.msra.mxu0 0.0
    %3466 = vmatpush.msra.mxu0 0.0
    %3467 = vmatpush.msra.mxu0 0.0
    %3468 = vmatpush.msra.mxu0 0.0
    %3469 = vmatpush.msra.mxu0 0.0
    %3470 = vmatpush.msra.mxu0 0.0
    %3471 = vmatpush.msra.mxu0 0.0
    %3472 = vmatpush.msra.mxu0 0.0
    %3473 = vmatpush.msra.mxu0 0.0
    %3474 = vmatpush.msra.mxu0 0.0
    %3475 = vmatpush.msra.mxu0 0.0
    %3476 = vmatpush.msra.mxu0 0.0
    %3477 = vmatpush.msra.mxu0 %v3416
    %3478 = vmatmul.f32.gmra.mxu0 %v3420
    %v3479 = vpop.f32.mrf.mxu0
    %v3480 = vadd.f32 0.0, %v3479
    %3481 = vdwg.mxu0
    %v3483 = vsel %vm525, %v2677, 0
    %3485 = vmatpush.msra.mxu0 0.0
    %3486 = vmatpush.msra.mxu0 0.0
    %3487 = vmatpush.msra.mxu0 0.0
    %3488 = vmatpush.msra.mxu0 0.0
    %3489 = vmatpush.msra.mxu0 0.0
    %3490 = vmatpush.msra.mxu0 0.0
    %3491 = vmatpush.msra.mxu0 0.0
    %3492 = vmatpush.msra.mxu0 0.0
    %3493 = vmatpush.msra.mxu0 0.0
    %3494 = vmatpush.msra.mxu0 0.0
    %3495 = vmatpush.msra.mxu0 0.0
    %3496 = vmatpush.msra.mxu0 0.0
    %3497 = vmatpush.msra.mxu0 0.0
    %3498 = vmatpush.msra.mxu0 0.0
    %3499 = vmatpush.msra.mxu0 0.0
    %3500 = vmatpush.msra.mxu0 %v2674
    %3501 = vmatmul.f32.gmra.mxu0 %v3483
    %v3502 = vpop.f32.mrf.mxu0
    %v3503 = vadd.f32 %v3440, %v3502
    %3504 = vdwg.mxu0
    %3505 = vmatpush.msra.mxu0 0.0
    %3506 = vmatpush.msra.mxu0 0.0
    %3507 = vmatpush.msra.mxu0 0.0
    %3508 = vmatpush.msra.mxu0 0.0
    %3509 = vmatpush.msra.mxu0 0.0
    %3510 = vmatpush.msra.mxu0 0.0
    %3511 = vmatpush.msra.mxu0 0.0
    %3512 = vmatpush.msra.mxu0 0.0
    %3513 = vmatpush.msra.mxu0 0.0
    %3514 = vmatpush.msra.mxu0 0.0
    %3515 = vmatpush.msra.mxu0 0.0
    %3516 = vmatpush.msra.mxu0 0.0
    %3517 = vmatpush.msra.mxu0 0.0
    %3518 = vmatpush.msra.mxu0 0.0
    %3519 = vmatpush.msra.mxu0 0.0
    %3520 = vmatpush.msra.mxu0 %v2675
    %3521 = vmatmul.f32.gmra.mxu0 %v3483
    %v3522 = vpop.f32.mrf.mxu0
    %v3523 = vadd.f32 %v3460, %v3522
    %3524 = vdwg.mxu0
    %3525 = vmatpush.msra.mxu0 0.0
    %3526 = vmatpush.msra.mxu0 0.0
    %3527 = vmatpush.msra.mxu0 0.0
    %3528 = vmatpush.msra.mxu0 0.0
    %3529 = vmatpush.msra.mxu0 0.0
    %3530 = vmatpush.msra.mxu0 0.0
    %3531 = vmatpush.msra.mxu0 0.0
    %3532 = vmatpush.msra.mxu0 0.0
    %3533 = vmatpush.msra.mxu0 0.0
    %3534 = vmatpush.msra.mxu0 0.0
    %3535 = vmatpush.msra.mxu0 0.0
    %3536 = vmatpush.msra.mxu0 0.0
    %3537 = vmatpush.msra.mxu0 0.0
    %3538 = vmatpush.msra.mxu0 0.0
    %3539 = vmatpush.msra.mxu0 0.0
    %3540 = vmatpush.msra.mxu0 %v2676
    %3541 = vmatmul.f32.gmra.mxu0 %v3483
    %v3542 = vpop.f32.mrf.mxu0
    %v3543 = vadd.f32 %v3480, %v3542
    %3544 = vdwg.mxu0
    %s3545 = scalar_lea.vmem %s7, 144
    %v3546 = vld [vmem:[%s3545] sm:$0xff]
    %s3547 = scalar_lea.vmem %s7, 152
    %v3548 = vld [vmem:[%s3547] sm:$0xff]
    %3549 = vrot.lane.b32.xlu0 %v1859, 124
    %v3550 = vpop.permute.xlu0 %3549
    %3551 = vrot.lane.b32.xlu0 %v1879, 124
    %v3552 = vpop.permute.xlu0 %3551
    %3553 = vrot.lane.b32.xlu0 %v1899, 124
    %v3554 = vpop.permute.xlu0 %3553
    %vm3555 = vcmask 1014784
    %v3556 = vsel %vm3555, %v3550, %v3552
    %v3557 = vsel %vm3555, %v3552, %v3554
    %v3562 = vsel %vm525, %v3548, 0
    %3564 = vmatpush.msra.mxu0 0.0
    %3565 = vmatpush.msra.mxu0 0.0
    %3566 = vmatpush.msra.mxu0 0.0
    %3567 = vmatpush.msra.mxu0 0.0
    %3568 = vmatpush.msra.mxu0 0.0
    %3569 = vmatpush.msra.mxu0 0.0
    %3570 = vmatpush.msra.mxu0 0.0
    %3571 = vmatpush.msra.mxu0 0.0
    %3572 = vmatpush.msra.mxu0 0.0
    %3573 = vmatpush.msra.mxu0 0.0
    %3574 = vmatpush.msra.mxu0 0.0
    %3575 = vmatpush.msra.mxu0 0.0
    %3576 = vmatpush.msra.mxu0 0.0
    %3577 = vmatpush.msra.mxu0 0.0
    %3578 = vmatpush.msra.mxu0 0.0
    %3579 = vmatpush.msra.mxu0 %v3556
    %3580 = vmatmul.f32.gmra.mxu0 %v3562
    %v3581 = vpop.f32.mrf.mxu0
    %v3582 = vadd.f32 0.0, %v3581
    %3583 = vdwg.mxu0
    %3584 = vmatpush.msra.mxu0 0.0
    %3585 = vmatpush.msra.mxu0 0.0
    %3586 = vmatpush.msra.mxu0 0.0
    %3587 = vmatpush.msra.mxu0 0.0
    %3588 = vmatpush.msra.mxu0 0.0
    %3589 = vmatpush.msra.mxu0 0.0
    %3590 = vmatpush.msra.mxu0 0.0
    %3591 = vmatpush.msra.mxu0 0.0
    %3592 = vmatpush.msra.mxu0 0.0
    %3593 = vmatpush.msra.mxu0 0.0
    %3594 = vmatpush.msra.mxu0 0.0
    %3595 = vmatpush.msra.mxu0 0.0
    %3596 = vmatpush.msra.mxu0 0.0
    %3597 = vmatpush.msra.mxu0 0.0
    %3598 = vmatpush.msra.mxu0 0.0
    %3599 = vmatpush.msra.mxu0 %v3557
    %3600 = vmatmul.f32.gmra.mxu0 %v3562
    %v3601 = vpop.f32.mrf.mxu0
    %v3602 = vadd.f32 0.0, %v3601
    %3603 = vdwg.mxu0
    %3604 = vmatpush.msra.mxu0 0.0
    %3605 = vmatpush.msra.mxu0 0.0
    %3606 = vmatpush.msra.mxu0 0.0
    %3607 = vmatpush.msra.mxu0 0.0
    %3608 = vmatpush.msra.mxu0 0.0
    %3609 = vmatpush.msra.mxu0 0.0
    %3610 = vmatpush.msra.mxu0 0.0
    %3611 = vmatpush.msra.mxu0 0.0
    %3612 = vmatpush.msra.mxu0 0.0
    %3613 = vmatpush.msra.mxu0 0.0
    %3614 = vmatpush.msra.mxu0 0.0
    %3615 = vmatpush.msra.mxu0 0.0
    %3616 = vmatpush.msra.mxu0 0.0
    %3617 = vmatpush.msra.mxu0 0.0
    %3618 = vmatpush.msra.mxu0 0.0
    %3619 = vmatpush.msra.mxu0 %v3554
    %3620 = vmatmul.f32.gmra.mxu0 %v3562
    %v3621 = vpop.f32.mrf.mxu0
    %v3622 = vadd.f32 0.0, %v3621
    %3623 = vdwg.mxu0
    %v3625 = vsel %vm525, %v3546, 0
    %3627 = vmatpush.msra.mxu0 0.0
    %3628 = vmatpush.msra.mxu0 0.0
    %3629 = vmatpush.msra.mxu0 0.0
    %3630 = vmatpush.msra.mxu0 0.0
    %3631 = vmatpush.msra.mxu0 0.0
    %3632 = vmatpush.msra.mxu0 0.0
    %3633 = vmatpush.msra.mxu0 0.0
    %3634 = vmatpush.msra.mxu0 0.0
    %3635 = vmatpush.msra.mxu0 0.0
    %3636 = vmatpush.msra.mxu0 0.0
    %3637 = vmatpush.msra.mxu0 0.0
    %3638 = vmatpush.msra.mxu0 0.0
    %3639 = vmatpush.msra.mxu0 0.0
    %3640 = vmatpush.msra.mxu0 0.0
    %3641 = vmatpush.msra.mxu0 0.0
    %3642 = vmatpush.msra.mxu0 %v1859
    %3643 = vmatmul.f32.gmra.mxu0 %v3625
    %v3644 = vpop.f32.mrf.mxu0
    %v3645 = vadd.f32 %v3582, %v3644
    %3646 = vdwg.mxu0
    %3647 = vmatpush.msra.mxu0 0.0
    %3648 = vmatpush.msra.mxu0 0.0
    %3649 = vmatpush.msra.mxu0 0.0
    %3650 = vmatpush.msra.mxu0 0.0
    %3651 = vmatpush.msra.mxu0 0.0
    %3652 = vmatpush.msra.mxu0 0.0
    %3653 = vmatpush.msra.mxu0 0.0
    %3654 = vmatpush.msra.mxu0 0.0
    %3655 = vmatpush.msra.mxu0 0.0
    %3656 = vmatpush.msra.mxu0 0.0
    %3657 = vmatpush.msra.mxu0 0.0
    %3658 = vmatpush.msra.mxu0 0.0
    %3659 = vmatpush.msra.mxu0 0.0
    %3660 = vmatpush.msra.mxu0 0.0
    %3661 = vmatpush.msra.mxu0 0.0
    %3662 = vmatpush.msra.mxu0 %v1879
    %3663 = vmatmul.f32.gmra.mxu0 %v3625
    %v3664 = vpop.f32.mrf.mxu0
    %v3665 = vadd.f32 %v3602, %v3664
    %3666 = vdwg.mxu0
    %3667 = vmatpush.msra.mxu0 0.0
    %3668 = vmatpush.msra.mxu0 0.0
    %3669 = vmatpush.msra.mxu0 0.0
    %3670 = vmatpush.msra.mxu0 0.0
    %3671 = vmatpush.msra.mxu0 0.0
    %3672 = vmatpush.msra.mxu0 0.0
    %3673 = vmatpush.msra.mxu0 0.0
    %3674 = vmatpush.msra.mxu0 0.0
    %3675 = vmatpush.msra.mxu0 0.0
    %3676 = vmatpush.msra.mxu0 0.0
    %3677 = vmatpush.msra.mxu0 0.0
    %3678 = vmatpush.msra.mxu0 0.0
    %3679 = vmatpush.msra.mxu0 0.0
    %3680 = vmatpush.msra.mxu0 0.0
    %3681 = vmatpush.msra.mxu0 0.0
    %3682 = vmatpush.msra.mxu0 %v1899
    %3683 = vmatmul.f32.gmra.mxu0 %v3625
    %v3684 = vpop.f32.mrf.mxu0
    %v3685 = vadd.f32 %v3622, %v3684
    %3686 = vdwg.mxu0
    %s3687 = scalar_lea.vmem %s7, 160
    %v3688 = vld [vmem:[%s3687] sm:$0xff]
    %3689 = vrot.lane.b32.xlu0 %v1859, 120
    %v3690 = vpop.permute.xlu0 %3689
    %3691 = vrot.lane.b32.xlu0 %v1879, 120
    %v3692 = vpop.permute.xlu0 %3691
    %3693 = vrot.lane.b32.xlu0 %v1899, 120
    %v3694 = vpop.permute.xlu0 %3693
    %vm3695 = vcmask 982016
    %v3696 = vsel %vm3695, %v3690, %v3692
    %v3697 = vsel %vm3695, %v3692, %v3694
    %v3702 = vsel %vm525, %v3688, 0
    %3704 = vmatpush.msra.mxu0 0.0
    %3705 = vmatpush.msra.mxu0 0.0
    %3706 = vmatpush.msra.mxu0 0.0
    %3707 = vmatpush.msra.mxu0 0.0
    %3708 = vmatpush.msra.mxu0 0.0
    %3709 = vmatpush.msra.mxu0 0.0
    %3710 = vmatpush.msra.mxu0 0.0
    %3711 = vmatpush.msra.mxu0 0.0
    %3712 = vmatpush.msra.mxu0 0.0
    %3713 = vmatpush.msra.mxu0 0.0
    %3714 = vmatpush.msra.mxu0 0.0
    %3715 = vmatpush.msra.mxu0 0.0
    %3716 = vmatpush.msra.mxu0 0.0
    %3717 = vmatpush.msra.mxu0 0.0
    %3718 = vmatpush.msra.mxu0 0.0
    %3719 = vmatpush.msra.mxu0 %v3696
    %3720 = vmatmul.f32.gmra.mxu0 %v3702
    %v3721 = vpop.f32.mrf.mxu0
    %v3722 = vadd.f32 0.0, %v3721
    %3723 = vdwg.mxu0
    %3724 = vmatpush.msra.mxu0 0.0
    %3725 = vmatpush.msra.mxu0 0.0
    %3726 = vmatpush.msra.mxu0 0.0
    %3727 = vmatpush.msra.mxu0 0.0
    %3728 = vmatpush.msra.mxu0 0.0
    %3729 = vmatpush.msra.mxu0 0.0
    %3730 = vmatpush.msra.mxu0 0.0
    %3731 = vmatpush.msra.mxu0 0.0
    %3732 = vmatpush.msra.mxu0 0.0
    %3733 = vmatpush.msra.mxu0 0.0
    %3734 = vmatpush.msra.mxu0 0.0
    %3735 = vmatpush.msra.mxu0 0.0
    %3736 = vmatpush.msra.mxu0 0.0
    %3737 = vmatpush.msra.mxu0 0.0
    %3738 = vmatpush.msra.mxu0 0.0
    %3739 = vmatpush.msra.mxu0 %v3697
    %3740 = vmatmul.f32.gmra.mxu0 %v3702
    %v3741 = vpop.f32.mrf.mxu0
    %v3742 = vadd.f32 0.0, %v3741
    %3743 = vdwg.mxu0
    %3744 = vmatpush.msra.mxu0 0.0
    %3745 = vmatpush.msra.mxu0 0.0
    %3746 = vmatpush.msra.mxu0 0.0
    %3747 = vmatpush.msra.mxu0 0.0
    %3748 = vmatpush.msra.mxu0 0.0
    %3749 = vmatpush.msra.mxu0 0.0
    %3750 = vmatpush.msra.mxu0 0.0
    %3751 = vmatpush.msra.mxu0 0.0
    %3752 = vmatpush.msra.mxu0 0.0
    %3753 = vmatpush.msra.mxu0 0.0
    %3754 = vmatpush.msra.mxu0 0.0
    %3755 = vmatpush.msra.mxu0 0.0
    %3756 = vmatpush.msra.mxu0 0.0
    %3757 = vmatpush.msra.mxu0 0.0
    %3758 = vmatpush.msra.mxu0 0.0
    %3759 = vmatpush.msra.mxu0 %v3694
    %3760 = vmatmul.f32.gmra.mxu0 %v3702
    %v3761 = vpop.f32.mrf.mxu0
    %v3762 = vadd.f32 0.0, %v3761
    %3763 = vdwg.mxu0
    %v3764 = vadd.f32 %v3645, %v3722
    %v3765 = vadd.f32 %v3665, %v3742
    %v3766 = vadd.f32 %v3685, %v3762
    %s3767 = scalar_lea.vmem %s7, 168
    %v3768 = vld [vmem:[%s3767] sm:$0xff]
    %3769 = vrot.lane.b32.xlu0 %v1859, 64
    %v3770 = vpop.permute.xlu0 %3769
    %3771 = vrot.lane.b32.xlu0 %v1879, 64
    %v3772 = vpop.permute.xlu0 %3771
    %3773 = vrot.lane.b32.xlu0 %v1899, 64
    %v3774 = vpop.permute.xlu0 %3773
    %3775 = vrot.lane.b32.xlu0 %v1919, 64
    %v3776 = vpop.permute.xlu0 %3775
    %vm3777 = vcmask 523264
    %v3778 = vsel %vm3777, %v3770, %v3772
    %v3779 = vsel %vm3777, %v3772, %v3774
    %v3780 = vsel %vm3777, %v3774, %v3776
    %v3785 = vsel %vm525, %v3768, 0
    %3787 = vmatpush.msra.mxu0 0.0
    %3788 = vmatpush.msra.mxu0 0.0
    %3789 = vmatpush.msra.mxu0 0.0
    %3790 = vmatpush.msra.mxu0 0.0
    %3791 = vmatpush.msra.mxu0 0.0
    %3792 = vmatpush.msra.mxu0 0.0
    %3793 = vmatpush.msra.mxu0 0.0
    %3794 = vmatpush.msra.mxu0 0.0
    %3795 = vmatpush.msra.mxu0 0.0
    %3796 = vmatpush.msra.mxu0 0.0
    %3797 = vmatpush.msra.mxu0 0.0
    %3798 = vmatpush.msra.mxu0 0.0
    %3799 = vmatpush.msra.mxu0 0.0
    %3800 = vmatpush.msra.mxu0 0.0
    %3801 = vmatpush.msra.mxu0 0.0
    %3802 = vmatpush.msra.mxu0 %v3778
    %3803 = vmatmul.f32.gmra.mxu0 %v3785
    %v3804 = vpop.f32.mrf.mxu0
    %v3805 = vadd.f32 0.0, %v3804
    %3806 = vdwg.mxu0
    %3807 = vmatpush.msra.mxu0 0.0
    %3808 = vmatpush.msra.mxu0 0.0
    %3809 = vmatpush.msra.mxu0 0.0
    %3810 = vmatpush.msra.mxu0 0.0
    %3811 = vmatpush.msra.mxu0 0.0
    %3812 = vmatpush.msra.mxu0 0.0
    %3813 = vmatpush.msra.mxu0 0.0
    %3814 = vmatpush.msra.mxu0 0.0
    %3815 = vmatpush.msra.mxu0 0.0
    %3816 = vmatpush.msra.mxu0 0.0
    %3817 = vmatpush.msra.mxu0 0.0
    %3818 = vmatpush.msra.mxu0 0.0
    %3819 = vmatpush.msra.mxu0 0.0
    %3820 = vmatpush.msra.mxu0 0.0
    %3821 = vmatpush.msra.mxu0 0.0
    %3822 = vmatpush.msra.mxu0 %v3779
    %3823 = vmatmul.f32.gmra.mxu0 %v3785
    %v3824 = vpop.f32.mrf.mxu0
    %v3825 = vadd.f32 0.0, %v3824
    %3826 = vdwg.mxu0
    %3827 = vmatpush.msra.mxu0 0.0
    %3828 = vmatpush.msra.mxu0 0.0
    %3829 = vmatpush.msra.mxu0 0.0
    %3830 = vmatpush.msra.mxu0 0.0
    %3831 = vmatpush.msra.mxu0 0.0
    %3832 = vmatpush.msra.mxu0 0.0
    %3833 = vmatpush.msra.mxu0 0.0
    %3834 = vmatpush.msra.mxu0 0.0
    %3835 = vmatpush.msra.mxu0 0.0
    %3836 = vmatpush.msra.mxu0 0.0
    %3837 = vmatpush.msra.mxu0 0.0
    %3838 = vmatpush.msra.mxu0 0.0
    %3839 = vmatpush.msra.mxu0 0.0
    %3840 = vmatpush.msra.mxu0 0.0
    %3841 = vmatpush.msra.mxu0 0.0
    %3842 = vmatpush.msra.mxu0 %v3780
    %3843 = vmatmul.f32.gmra.mxu0 %v3785
    %v3844 = vpop.f32.mrf.mxu0
    %v3845 = vadd.f32 0.0, %v3844
    %3846 = vdwg.mxu0
    %v3847 = vadd.f32 %v3764, %v3805
    %v3848 = vadd.f32 %v3765, %v3825
    %v3849 = vadd.f32 %v3766, %v3845
    %s3850 = scalar_lea.vmem %s7, 176
    %v3851 = vld [vmem:[%s3850] sm:$0xff]
    %v3853 = vsel %vm525, %v3851, 0
    %3855 = vmatpush.msra.mxu0 0.0
    %3856 = vmatpush.msra.mxu0 0.0
    %3857 = vmatpush.msra.mxu0 0.0
    %3858 = vmatpush.msra.mxu0 0.0
    %3859 = vmatpush.msra.mxu0 0.0
    %3860 = vmatpush.msra.mxu0 0.0
    %3861 = vmatpush.msra.mxu0 0.0
    %3862 = vmatpush.msra.mxu0 0.0
    %3863 = vmatpush.msra.mxu0 0.0
    %3864 = vmatpush.msra.mxu0 0.0
    %3865 = vmatpush.msra.mxu0 0.0
    %3866 = vmatpush.msra.mxu0 0.0
    %3867 = vmatpush.msra.mxu0 0.0
    %3868 = vmatpush.msra.mxu0 0.0
    %3869 = vmatpush.msra.mxu0 0.0
    %3870 = vmatpush.msra.mxu0 %v2261
    %3871 = vmatmul.f32.gmra.mxu0 %v3853
    %v3872 = vpop.f32.mrf.mxu0
    %v3873 = vadd.f32 0.0, %v3872
    %3874 = vdwg.mxu0
    %3875 = vmatpush.msra.mxu0 0.0
    %3876 = vmatpush.msra.mxu0 0.0
    %3877 = vmatpush.msra.mxu0 0.0
    %3878 = vmatpush.msra.mxu0 0.0
    %3879 = vmatpush.msra.mxu0 0.0
    %3880 = vmatpush.msra.mxu0 0.0
    %3881 = vmatpush.msra.mxu0 0.0
    %3882 = vmatpush.msra.mxu0 0.0
    %3883 = vmatpush.msra.mxu0 0.0
    %3884 = vmatpush.msra.mxu0 0.0
    %3885 = vmatpush.msra.mxu0 0.0
    %3886 = vmatpush.msra.mxu0 0.0
    %3887 = vmatpush.msra.mxu0 0.0
    %3888 = vmatpush.msra.mxu0 0.0
    %3889 = vmatpush.msra.mxu0 0.0
    %3890 = vmatpush.msra.mxu0 %v2262
    %3891 = vmatmul.f32.gmra.mxu0 %v3853
    %v3892 = vpop.f32.mrf.mxu0
    %v3893 = vadd.f32 0.0, %v3892
    %3894 = vdwg.mxu0
    %3895 = vmatpush.msra.mxu0 0.0
    %3896 = vmatpush.msra.mxu0 0.0
    %3897 = vmatpush.msra.mxu0 0.0
    %3898 = vmatpush.msra.mxu0 0.0
    %3899 = vmatpush.msra.mxu0 0.0
    %3900 = vmatpush.msra.mxu0 0.0
    %3901 = vmatpush.msra.mxu0 0.0
    %3902 = vmatpush.msra.mxu0 0.0
    %3903 = vmatpush.msra.mxu0 0.0
    %3904 = vmatpush.msra.mxu0 0.0
    %3905 = vmatpush.msra.mxu0 0.0
    %3906 = vmatpush.msra.mxu0 0.0
    %3907 = vmatpush.msra.mxu0 0.0
    %3908 = vmatpush.msra.mxu0 0.0
    %3909 = vmatpush.msra.mxu0 0.0
    %3910 = vmatpush.msra.mxu0 %v2263
    %3911 = vmatmul.f32.gmra.mxu0 %v3853
    %v3912 = vpop.f32.mrf.mxu0
    %v3913 = vadd.f32 0.0, %v3912
    %3914 = vdwg.mxu0
    %v3915 = vadd.f32 %v3847, %v3873
    %v3916 = vadd.f32 %v3848, %v3893
    %v3917 = vadd.f32 %v3849, %v3913
    %s3918 = scalar_lea.vmem %s7, 184
    %v3919 = vld [vmem:[%s3918] sm:$0xff]
    %3920 = vrot.lane.b32.xlu0 %v1859, 56
    %v3921 = vpop.permute.xlu0 %3920
    %3922 = vrot.lane.b32.xlu0 %v1879, 56
    %v3923 = vpop.permute.xlu0 %3922
    %3924 = vrot.lane.b32.xlu0 %v1899, 56
    %v3925 = vpop.permute.xlu0 %3924
    %3926 = vrot.lane.b32.xlu0 %v1919, 56
    %v3927 = vpop.permute.xlu0 %3926
    %vm3928 = vcmask 457728
    %v3929 = vsel %vm3928, %v3921, %v3923
    %v3930 = vsel %vm3928, %v3923, %v3925
    %v3931 = vsel %vm3928, %v3925, %v3927
    %v3936 = vsel %vm525, %v3919, 0
    %3938 = vmatpush.msra.mxu0 0.0
    %3939 = vmatpush.msra.mxu0 0.0
    %3940 = vmatpush.msra.mxu0 0.0
    %3941 = vmatpush.msra.mxu0 0.0
    %3942 = vmatpush.msra.mxu0 0.0
    %3943 = vmatpush.msra.mxu0 0.0
    %3944 = vmatpush.msra.mxu0 0.0
    %3945 = vmatpush.msra.mxu0 0.0
    %3946 = vmatpush.msra.mxu0 0.0
    %3947 = vmatpush.msra.mxu0 0.0
    %3948 = vmatpush.msra.mxu0 0.0
    %3949 = vmatpush.msra.mxu0 0.0
    %3950 = vmatpush.msra.mxu0 0.0
    %3951 = vmatpush.msra.mxu0 0.0
    %3952 = vmatpush.msra.mxu0 0.0
    %3953 = vmatpush.msra.mxu0 %v3929
    %3954 = vmatmul.f32.gmra.mxu0 %v3936
    %v3955 = vpop.f32.mrf.mxu0
    %v3956 = vadd.f32 0.0, %v3955
    %3957 = vdwg.mxu0
    %3958 = vmatpush.msra.mxu0 0.0
    %3959 = vmatpush.msra.mxu0 0.0
    %3960 = vmatpush.msra.mxu0 0.0
    %3961 = vmatpush.msra.mxu0 0.0
    %3962 = vmatpush.msra.mxu0 0.0
    %3963 = vmatpush.msra.mxu0 0.0
    %3964 = vmatpush.msra.mxu0 0.0
    %3965 = vmatpush.msra.mxu0 0.0
    %3966 = vmatpush.msra.mxu0 0.0
    %3967 = vmatpush.msra.mxu0 0.0
    %3968 = vmatpush.msra.mxu0 0.0
    %3969 = vmatpush.msra.mxu0 0.0
    %3970 = vmatpush.msra.mxu0 0.0
    %3971 = vmatpush.msra.mxu0 0.0
    %3972 = vmatpush.msra.mxu0 0.0
    %3973 = vmatpush.msra.mxu0 %v3930
    %3974 = vmatmul.f32.gmra.mxu0 %v3936
    %v3975 = vpop.f32.mrf.mxu0
    %v3976 = vadd.f32 0.0, %v3975
    %3977 = vdwg.mxu0
    %3978 = vmatpush.msra.mxu0 0.0
    %3979 = vmatpush.msra.mxu0 0.0
    %3980 = vmatpush.msra.mxu0 0.0
    %3981 = vmatpush.msra.mxu0 0.0
    %3982 = vmatpush.msra.mxu0 0.0
    %3983 = vmatpush.msra.mxu0 0.0
    %3984 = vmatpush.msra.mxu0 0.0
    %3985 = vmatpush.msra.mxu0 0.0
    %3986 = vmatpush.msra.mxu0 0.0
    %3987 = vmatpush.msra.mxu0 0.0
    %3988 = vmatpush.msra.mxu0 0.0
    %3989 = vmatpush.msra.mxu0 0.0
    %3990 = vmatpush.msra.mxu0 0.0
    %3991 = vmatpush.msra.mxu0 0.0
    %3992 = vmatpush.msra.mxu0 0.0
    %3993 = vmatpush.msra.mxu0 %v3931
    %3994 = vmatmul.f32.gmra.mxu0 %v3936
    %v3995 = vpop.f32.mrf.mxu0
    %v3996 = vadd.f32 0.0, %v3995
    %3997 = vdwg.mxu0
    %v3998 = vadd.f32 %v3915, %v3956
    %v3999 = vadd.f32 %v3916, %v3976
    %v4000 = vadd.f32 %v3917, %v3996
    %s4001 = scalar_lea.vmem %s7, 192
    %v4002 = vld [vmem:[%s4001] sm:$0xff]
    %v4004 = vsel %vm525, %v4002, 0
    %4006 = vmatpush.msra.mxu0 0.0
    %4007 = vmatpush.msra.mxu0 0.0
    %4008 = vmatpush.msra.mxu0 0.0
    %4009 = vmatpush.msra.mxu0 0.0
    %4010 = vmatpush.msra.mxu0 0.0
    %4011 = vmatpush.msra.mxu0 0.0
    %4012 = vmatpush.msra.mxu0 0.0
    %4013 = vmatpush.msra.mxu0 0.0
    %4014 = vmatpush.msra.mxu0 0.0
    %4015 = vmatpush.msra.mxu0 0.0
    %4016 = vmatpush.msra.mxu0 0.0
    %4017 = vmatpush.msra.mxu0 0.0
    %4018 = vmatpush.msra.mxu0 0.0
    %4019 = vmatpush.msra.mxu0 0.0
    %4020 = vmatpush.msra.mxu0 0.0
    %4021 = vmatpush.msra.mxu0 %v1879
    %4022 = vmatmul.f32.gmra.mxu0 %v4004
    %v4023 = vpop.f32.mrf.mxu0
    %v4024 = vadd.f32 0.0, %v4023
    %4025 = vdwg.mxu0
    %4026 = vmatpush.msra.mxu0 0.0
    %4027 = vmatpush.msra.mxu0 0.0
    %4028 = vmatpush.msra.mxu0 0.0
    %4029 = vmatpush.msra.mxu0 0.0
    %4030 = vmatpush.msra.mxu0 0.0
    %4031 = vmatpush.msra.mxu0 0.0
    %4032 = vmatpush.msra.mxu0 0.0
    %4033 = vmatpush.msra.mxu0 0.0
    %4034 = vmatpush.msra.mxu0 0.0
    %4035 = vmatpush.msra.mxu0 0.0
    %4036 = vmatpush.msra.mxu0 0.0
    %4037 = vmatpush.msra.mxu0 0.0
    %4038 = vmatpush.msra.mxu0 0.0
    %4039 = vmatpush.msra.mxu0 0.0
    %4040 = vmatpush.msra.mxu0 0.0
    %4041 = vmatpush.msra.mxu0 %v1899
    %4042 = vmatmul.f32.gmra.mxu0 %v4004
    %v4043 = vpop.f32.mrf.mxu0
    %v4044 = vadd.f32 0.0, %v4043
    %4045 = vdwg.mxu0
    %4046 = vmatpush.msra.mxu0 0.0
    %4047 = vmatpush.msra.mxu0 0.0
    %4048 = vmatpush.msra.mxu0 0.0
    %4049 = vmatpush.msra.mxu0 0.0
    %4050 = vmatpush.msra.mxu0 0.0
    %4051 = vmatpush.msra.mxu0 0.0
    %4052 = vmatpush.msra.mxu0 0.0
    %4053 = vmatpush.msra.mxu0 0.0
    %4054 = vmatpush.msra.mxu0 0.0
    %4055 = vmatpush.msra.mxu0 0.0
    %4056 = vmatpush.msra.mxu0 0.0
    %4057 = vmatpush.msra.mxu0 0.0
    %4058 = vmatpush.msra.mxu0 0.0
    %4059 = vmatpush.msra.mxu0 0.0
    %4060 = vmatpush.msra.mxu0 0.0
    %4061 = vmatpush.msra.mxu0 %v1919
    %4062 = vmatmul.f32.gmra.mxu0 %v4004
    %v4063 = vpop.f32.mrf.mxu0
    %v4064 = vadd.f32 0.0, %v4063
    %4065 = vdwg.mxu0
    %v4066 = vadd.f32 %v3998, %v4024
    %v4067 = vadd.f32 %v3999, %v4044
    %v4068 = vadd.f32 %v4000, %v4064
    %s4069 = scalar_lea.vmem %s7, 200
    %v4070 = vld [vmem:[%s4069] sm:$0xff]
    %4071 = vrot.lane.b32.xlu0 %v1919, 124
    %v4072 = vpop.permute.xlu0 %4071
    %v4073 = vsel %vm3555, %v3554, %v4072
    %v4077 = vsel %vm525, %v4070, 0
    %4079 = vmatpush.msra.mxu0 0.0
    %4080 = vmatpush.msra.mxu0 0.0
    %4081 = vmatpush.msra.mxu0 0.0
    %4082 = vmatpush.msra.mxu0 0.0
    %4083 = vmatpush.msra.mxu0 0.0
    %4084 = vmatpush.msra.mxu0 0.0
    %4085 = vmatpush.msra.mxu0 0.0
    %4086 = vmatpush.msra.mxu0 0.0
    %4087 = vmatpush.msra.mxu0 0.0
    %4088 = vmatpush.msra.mxu0 0.0
    %4089 = vmatpush.msra.mxu0 0.0
    %4090 = vmatpush.msra.mxu0 0.0
    %4091 = vmatpush.msra.mxu0 0.0
    %4092 = vmatpush.msra.mxu0 0.0
    %4093 = vmatpush.msra.mxu0 0.0
    %4094 = vmatpush.msra.mxu0 %v3557
    %4095 = vmatmul.f32.gmra.mxu0 %v4077
    %v4096 = vpop.f32.mrf.mxu0
    %v4097 = vadd.f32 0.0, %v4096
    %4098 = vdwg.mxu0
    %4099 = vmatpush.msra.mxu0 0.0
    %4100 = vmatpush.msra.mxu0 0.0
    %4101 = vmatpush.msra.mxu0 0.0
    %4102 = vmatpush.msra.mxu0 0.0
    %4103 = vmatpush.msra.mxu0 0.0
    %4104 = vmatpush.msra.mxu0 0.0
    %4105 = vmatpush.msra.mxu0 0.0
    %4106 = vmatpush.msra.mxu0 0.0
    %4107 = vmatpush.msra.mxu0 0.0
    %4108 = vmatpush.msra.mxu0 0.0
    %4109 = vmatpush.msra.mxu0 0.0
    %4110 = vmatpush.msra.mxu0 0.0
    %4111 = vmatpush.msra.mxu0 0.0
    %4112 = vmatpush.msra.mxu0 0.0
    %4113 = vmatpush.msra.mxu0 0.0
    %4114 = vmatpush.msra.mxu0 %v4073
    %4115 = vmatmul.f32.gmra.mxu0 %v4077
    %v4116 = vpop.f32.mrf.mxu0
    %v4117 = vadd.f32 0.0, %v4116
    %4118 = vdwg.mxu0
    %4119 = vmatpush.msra.mxu0 0.0
    %4120 = vmatpush.msra.mxu0 0.0
    %4121 = vmatpush.msra.mxu0 0.0
    %4122 = vmatpush.msra.mxu0 0.0
    %4123 = vmatpush.msra.mxu0 0.0
    %4124 = vmatpush.msra.mxu0 0.0
    %4125 = vmatpush.msra.mxu0 0.0
    %4126 = vmatpush.msra.mxu0 0.0
    %4127 = vmatpush.msra.mxu0 0.0
    %4128 = vmatpush.msra.mxu0 0.0
    %4129 = vmatpush.msra.mxu0 0.0
    %4130 = vmatpush.msra.mxu0 0.0
    %4131 = vmatpush.msra.mxu0 0.0
    %4132 = vmatpush.msra.mxu0 0.0
    %4133 = vmatpush.msra.mxu0 0.0
    %4134 = vmatpush.msra.mxu0 %v4072
    %4135 = vmatmul.f32.gmra.mxu0 %v4077
    %v4136 = vpop.f32.mrf.mxu0
    %v4137 = vadd.f32 0.0, %v4136
    %4138 = vdwg.mxu0
    %v4139 = vadd.f32 %v4066, %v4097
    %v4140 = vadd.f32 %v4067, %v4117
    %v4141 = vadd.f32 %v4068, %v4137
    %s4142 = scalar_lea.vmem %s7, 208
    %v4143 = vld [vmem:[%s4142] sm:$0xff]
    %4144 = vrot.lane.b32.xlu0 %v1919, 120
    %v4145 = vpop.permute.xlu0 %4144
    %v4146 = vsel %vm3695, %v3694, %v4145
    %v4150 = vsel %vm525, %v4143, 0
    %4152 = vmatpush.msra.mxu0 0.0
    %4153 = vmatpush.msra.mxu0 0.0
    %4154 = vmatpush.msra.mxu0 0.0
    %4155 = vmatpush.msra.mxu0 0.0
    %4156 = vmatpush.msra.mxu0 0.0
    %4157 = vmatpush.msra.mxu0 0.0
    %4158 = vmatpush.msra.mxu0 0.0
    %4159 = vmatpush.msra.mxu0 0.0
    %4160 = vmatpush.msra.mxu0 0.0
    %4161 = vmatpush.msra.mxu0 0.0
    %4162 = vmatpush.msra.mxu0 0.0
    %4163 = vmatpush.msra.mxu0 0.0
    %4164 = vmatpush.msra.mxu0 0.0
    %4165 = vmatpush.msra.mxu0 0.0
    %4166 = vmatpush.msra.mxu0 0.0
    %4167 = vmatpush.msra.mxu0 %v3697
    %4168 = vmatmul.f32.gmra.mxu0 %v4150
    %v4169 = vpop.f32.mrf.mxu0
    %v4170 = vadd.f32 0.0, %v4169
    %4171 = vdwg.mxu0
    %4172 = vmatpush.msra.mxu0 0.0
    %4173 = vmatpush.msra.mxu0 0.0
    %4174 = vmatpush.msra.mxu0 0.0
    %4175 = vmatpush.msra.mxu0 0.0
    %4176 = vmatpush.msra.mxu0 0.0
    %4177 = vmatpush.msra.mxu0 0.0
    %4178 = vmatpush.msra.mxu0 0.0
    %4179 = vmatpush.msra.mxu0 0.0
    %4180 = vmatpush.msra.mxu0 0.0
    %4181 = vmatpush.msra.mxu0 0.0
    %4182 = vmatpush.msra.mxu0 0.0
    %4183 = vmatpush.msra.mxu0 0.0
    %4184 = vmatpush.msra.mxu0 0.0
    %4185 = vmatpush.msra.mxu0 0.0
    %4186 = vmatpush.msra.mxu0 0.0
    %4187 = vmatpush.msra.mxu0 %v4146
    %4188 = vmatmul.f32.gmra.mxu0 %v4150
    %v4189 = vpop.f32.mrf.mxu0
    %v4190 = vadd.f32 0.0, %v4189
    %4191 = vdwg.mxu0
    %4192 = vmatpush.msra.mxu0 0.0
    %4193 = vmatpush.msra.mxu0 0.0
    %4194 = vmatpush.msra.mxu0 0.0
    %4195 = vmatpush.msra.mxu0 0.0
    %4196 = vmatpush.msra.mxu0 0.0
    %4197 = vmatpush.msra.mxu0 0.0
    %4198 = vmatpush.msra.mxu0 0.0
    %4199 = vmatpush.msra.mxu0 0.0
    %4200 = vmatpush.msra.mxu0 0.0
    %4201 = vmatpush.msra.mxu0 0.0
    %4202 = vmatpush.msra.mxu0 0.0
    %4203 = vmatpush.msra.mxu0 0.0
    %4204 = vmatpush.msra.mxu0 0.0
    %4205 = vmatpush.msra.mxu0 0.0
    %4206 = vmatpush.msra.mxu0 0.0
    %4207 = vmatpush.msra.mxu0 %v4145
    %4208 = vmatmul.f32.gmra.mxu0 %v4150
    %v4209 = vpop.f32.mrf.mxu0
    %v4210 = vadd.f32 0.0, %v4209
    %4211 = vdwg.mxu0
    %v4212 = vadd.f32 %v4139, %v4170
    %v4213 = vadd.f32 %v4140, %v4190
    %v4214 = vadd.f32 %v4141, %v4210
    %s4215 = scalar_lea.vmem %s8, 16
    %v4216 = vld [vmem:[%s4215] sm:$0xff]
    %4218 = vset.pattern.permute.xlu0 0
    %4219 = vperm.xlu0 %4218, %v4216
    %v4220 = vpop.permute.xlu0 %4219
    %v4222 = vadd.f32 %v4212, %v4220
    %v4223 = vadd.f32 %v4213, %v4220
    %v4224 = vadd.f32 %v4214, %v4220
    %v4225 = vmax.f32 %v4222, 0.0
    %v4226 = vmax.f32 %v4223, 0.0
    %v4227 = vmax.f32 %v4224, 0.0
    %s4228 = scalar_lea.vmem [#allocation7], 16
    %v4229 = vld [vmem:[%s4228] sm:$0xff]
    %v4231 = vsel %vm525, %v4229, 0
    %4233 = vmatpush.msra.mxu0 0.0
    %4234 = vmatpush.msra.mxu0 0.0
    %4235 = vmatpush.msra.mxu0 0.0
    %4236 = vmatpush.msra.mxu0 0.0
    %4237 = vmatpush.msra.mxu0 0.0
    %4238 = vmatpush.msra.mxu0 0.0
    %4239 = vmatpush.msra.mxu0 0.0
    %4240 = vmatpush.msra.mxu0 0.0
    %4241 = vmatpush.msra.mxu0 0.0
    %4242 = vmatpush.msra.mxu0 0.0
    %4243 = vmatpush.msra.mxu0 0.0
    %4244 = vmatpush.msra.mxu0 0.0
    %4245 = vmatpush.msra.mxu0 0.0
    %4246 = vmatpush.msra.mxu0 0.0
    %4247 = vmatpush.msra.mxu0 0.0
    %4248 = vmatpush.msra.mxu0 %v4225
    %4249 = vmatmul.f32.gmra.mxu0 %v4231
    %v4250 = vpop.f32.mrf.mxu0
    %v4251 = vadd.f32 0.0, %v4250
    %4252 = vdwg.mxu0
    %4253 = vmatpush.msra.mxu0 0.0
    %4254 = vmatpush.msra.mxu0 0.0
    %4255 = vmatpush.msra.mxu0 0.0
    %4256 = vmatpush.msra.mxu0 0.0
    %4257 = vmatpush.msra.mxu0 0.0
    %4258 = vmatpush.msra.mxu0 0.0
    %4259 = vmatpush.msra.mxu0 0.0
    %4260 = vmatpush.msra.mxu0 0.0
    %4261 = vmatpush.msra.mxu0 0.0
    %4262 = vmatpush.msra.mxu0 0.0
    %4263 = vmatpush.msra.mxu0 0.0
    %4264 = vmatpush.msra.mxu0 0.0
    %4265 = vmatpush.msra.mxu0 0.0
    %4266 = vmatpush.msra.mxu0 0.0
    %4267 = vmatpush.msra.mxu0 0.0
    %4268 = vmatpush.msra.mxu0 %v4226
    %4269 = vmatmul.f32.gmra.mxu0 %v4231
    %v4270 = vpop.f32.mrf.mxu0
    %v4271 = vadd.f32 0.0, %v4270
    %4272 = vdwg.mxu0
    %4273 = vmatpush.msra.mxu0 0.0
    %4274 = vmatpush.msra.mxu0 0.0
    %4275 = vmatpush.msra.mxu0 0.0
    %4276 = vmatpush.msra.mxu0 0.0
    %4277 = vmatpush.msra.mxu0 0.0
    %4278 = vmatpush.msra.mxu0 0.0
    %4279 = vmatpush.msra.mxu0 0.0
    %4280 = vmatpush.msra.mxu0 0.0
    %4281 = vmatpush.msra.mxu0 0.0
    %4282 = vmatpush.msra.mxu0 0.0
    %4283 = vmatpush.msra.mxu0 0.0
    %4284 = vmatpush.msra.mxu0 0.0
    %4285 = vmatpush.msra.mxu0 0.0
    %4286 = vmatpush.msra.mxu0 0.0
    %4287 = vmatpush.msra.mxu0 0.0
    %4288 = vmatpush.msra.mxu0 %v4227
    %4289 = vmatmul.f32.gmra.mxu0 %v4231
    %v4290 = vpop.f32.mrf.mxu0
    %v4291 = vadd.f32 0.0, %v4290
    %4292 = vdwg.mxu0
    %v4293 = vadd.f32 %v3503, %v4251
    %v4294 = vadd.f32 %v3523, %v4271
    %v4295 = vadd.f32 %v3543, %v4291
    %v4296 = vld [vmem:[%s10] sm:$0xff]
    %4298 = vset.pattern.permute.xlu0 0
    %4299 = vperm.xlu0 %4298, %v4296
    %v4300 = vpop.permute.xlu0 %4299
    %v4302 = vadd.f32 %v4293, %v4300
    %v4303 = vadd.f32 %v4294, %v4300
    %v4304 = vadd.f32 %v4295, %v4300
    %v4305 = vmax.f32 %v4302, 0.0
    %v4306 = vmax.f32 %v4303, 0.0
    %v4307 = vmax.f32 %v4304, 0.0
    %v4308 = vld [vmem:[#allocation9] sm:$0xff]
    %v4309 = vld [vmem:[#allocation9 + $0x8] sm:$0xff]
    %v4310 = vld [vmem:[#allocation9 + $0x10] sm:$0xff]
    %v4311 = vld [vmem:[#allocation9 + $0x18] sm:$0xff]
    %v4312 = vld [vmem:[#allocation9 + $0x20] sm:$0xff]
    %v4313 = vld [vmem:[#allocation9 + $0x28] sm:$0xff]
    %v4314 = vld [vmem:[#allocation9 + $0x30] sm:$0xff]
    %v4315 = vld [vmem:[#allocation9 + $0x38] sm:$0xff]
    %v4316 = vld [vmem:[#allocation9 + $0x40] sm:$0xff]
    %v4317 = vld [vmem:[#allocation9 + $0x48] sm:$0xff]
    %v4318 = vld [vmem:[#allocation9 + $0x50] sm:$0xff]
    %v4319 = vld [vmem:[#allocation9 + $0x58] sm:$0xff]
    %v4320 = vld [vmem:[#allocation9 + $0x60] sm:$0xff]
    %v4321 = vld [vmem:[#allocation9 + $0x68] sm:$0xff]
    %v4322 = vld [vmem:[#allocation9 + $0x70] sm:$0xff]
    %v4323 = vld [vmem:[#allocation9 + $0x78] sm:$0xff]
    %v4324 = vld [vmem:[#allocation9 + $0x80] sm:$0xff]
    %v4325 = vld [vmem:[#allocation9 + $0x88] sm:$0xff]
    %v4326 = vld [vmem:[#allocation9 + $0x90] sm:$0xff]
    %v4327 = vld [vmem:[#allocation9 + $0x98] sm:$0xff]
    %v4328 = vld [vmem:[#allocation9 + $0xa0] sm:$0xff]
    %v4329 = vld [vmem:[#allocation9 + $0xa8] sm:$0xff]
    %v4330 = vld [vmem:[#allocation9 + $0xb0] sm:$0xff]
    %v4331 = vld [vmem:[#allocation9 + $0xb8] sm:$0xff]
    %v4332 = vld [vmem:[#allocation9 + $0xc0] sm:$0xff]
    %v4333 = vld [vmem:[#allocation9 + $0xc8] sm:$0xff]
    %v4334 = vld [vmem:[#allocation9 + $0xd0] sm:$0xff]
    %v4335 = vld [vmem:[#allocation9 + $0xd8] sm:$0xff]
    %v4336 = vld [vmem:[#allocation9 + $0xe0] sm:$0xff]
    %v4337 = vld [vmem:[#allocation9 + $0xe8] sm:$0xff]
    %v4338 = vld [vmem:[#allocation9 + $0xf0] sm:$0xff]
    %v4339 = vld [vmem:[#allocation9 + $0xf8] sm:$0xff]
    %v4340 = vld [vmem:[#allocation9 + $0x100] sm:$0xff]
    %v4341 = vld [vmem:[#allocation9 + $0x108] sm:$0xff]
    %v4342 = vld [vmem:[#allocation9 + $0x110] sm:$0xff]
    %v4343 = vld [vmem:[#allocation9 + $0x118] sm:$0xff]
    %v4344 = vld [vmem:[#allocation9 + $0x120] sm:$0xff]
    %v4345 = vld [vmem:[#allocation9 + $0x128] sm:$0xff]
    %v4346 = vld [vmem:[#allocation9 + $0x130] sm:$0xff]
    %v4347 = vld [vmem:[#allocation9 + $0x138] sm:$0xff]
    %v4348 = vld [vmem:[#allocation9 + $0x140] sm:$0xff]
    %v4349 = vld [vmem:[#allocation9 + $0x148] sm:$0xff]
    %v4350 = vld [vmem:[#allocation9 + $0x150] sm:$0xff]
    %v4351 = vld [vmem:[#allocation9 + $0x158] sm:$0xff]
    %v4352 = vld [vmem:[#allocation9 + $0x160] sm:$0xff]
    %v4353 = vld [vmem:[#allocation9 + $0x168] sm:$0xff]
    %v4354 = vld [vmem:[#allocation9 + $0x170] sm:$0xff]
    %v4355 = vld [vmem:[#allocation9 + $0x178] sm:$0xff]
    %v4356 = vld [vmem:[#allocation9 + $0x180] sm:$0xff]
    %v4357 = vld [vmem:[#allocation9 + $0x188] sm:$0xff]
    %v4358 = vld [vmem:[#allocation9 + $0x190] sm:$0xff]
    %v4359 = vld [vmem:[#allocation9 + $0x198] sm:$0xff]
    %v4360 = vld [vmem:[#allocation9 + $0x1a0] sm:$0xff]
    %v4361 = vld [vmem:[#allocation9 + $0x1a8] sm:$0xff]
    %v4362 = vld [vmem:[#allocation9 + $0x1b0] sm:$0xff]
    %v4363 = vld [vmem:[#allocation9 + $0x1b8] sm:$0xff]
    %v4364 = vld [vmem:[#allocation9 + $0x1c0] sm:$0xff]
    %v4365 = vld [vmem:[#allocation9 + $0x1c8] sm:$0xff]
    %v4366 = vld [vmem:[#allocation9 + $0x1d0] sm:$0xff]
    %v4367 = vld [vmem:[#allocation9 + $0x1d8] sm:$0xff]
    %v4368 = vld [vmem:[#allocation9 + $0x1e0] sm:$0xff]
    %v4369 = vld [vmem:[#allocation9 + $0x1e8] sm:$0xff]
    %v4370 = vld [vmem:[#allocation9 + $0x1f0] sm:$0xff]
    %v4371 = vld [vmem:[#allocation9 + $0x1f8] sm:$0xff]
    %v4372 = vld [vmem:[#allocation9 + $0x200] sm:$0xff]
    %v4373 = vld [vmem:[#allocation9 + $0x208] sm:$0xff]
    %v4374 = vld [vmem:[#allocation9 + $0x210] sm:$0xff]
    %v4375 = vld [vmem:[#allocation9 + $0x218] sm:$0xff]
    %v4376 = vld [vmem:[#allocation9 + $0x220] sm:$0xff]
    %v4377 = vld [vmem:[#allocation9 + $0x228] sm:$0xff]
    %v4378 = vld [vmem:[#allocation9 + $0x230] sm:$0xff]
    %v4379 = vld [vmem:[#allocation9 + $0x238] sm:$0xff]
    %v4380 = vld [vmem:[#allocation9 + $0x240] sm:$0xff]
    %v4381 = vld [vmem:[#allocation9 + $0x248] sm:$0xff]
    %v4382 = vld [vmem:[#allocation9 + $0x250] sm:$0xff]
    %v4383 = vld [vmem:[#allocation9 + $0x258] sm:$0xff]
    %v4384 = vld [vmem:[#allocation9 + $0x260] sm:$0xff]
    %v4385 = vld [vmem:[#allocation9 + $0x268] sm:$0xff]
    %v4386 = vld [vmem:[#allocation9 + $0x270] sm:$0xff]
    %v4387 = vld [vmem:[#allocation9 + $0x278] sm:$0xff]
    %v4388 = vld [vmem:[#allocation9 + $0x280] sm:$0xff]
    %v4389 = vld [vmem:[#allocation9 + $0x288] sm:$0xff]
    %v4390 = vld [vmem:[#allocation9 + $0x290] sm:$0xff]
    %v4391 = vld [vmem:[#allocation9 + $0x298] sm:$0xff]
    %v4392 = vld [vmem:[#allocation9 + $0x2a0] sm:$0xff]
    %v4393 = vld [vmem:[#allocation9 + $0x2a8] sm:$0xff]
    %v4394 = vld [vmem:[#allocation9 + $0x2b0] sm:$0xff]
    %v4395 = vld [vmem:[#allocation9 + $0x2b8] sm:$0xff]
    %v4396 = vld [vmem:[#allocation9 + $0x2c0] sm:$0xff]
    %v4397 = vld [vmem:[#allocation9 + $0x2c8] sm:$0xff]
    %v4398 = vld [vmem:[#allocation9 + $0x2d0] sm:$0xff]
    %v4399 = vld [vmem:[#allocation9 + $0x2d8] sm:$0xff]
    %v4400 = vld [vmem:[#allocation9 + $0x2e0] sm:$0xff]
    %v4401 = vld [vmem:[#allocation9 + $0x2e8] sm:$0xff]
    %v4402 = vld [vmem:[#allocation9 + $0x2f0] sm:$0xff]
    %v4403 = vld [vmem:[#allocation9 + $0x2f8] sm:$0xff]
    %v4404 = vld [vmem:[#allocation9 + $0x300] sm:$0xff]
    %v4405 = vld [vmem:[#allocation9 + $0x308] sm:$0xff]
    %v4406 = vld [vmem:[#allocation9 + $0x310] sm:$0xff]
    %v4407 = vld [vmem:[#allocation9 + $0x318] sm:$0xff]
    %v4408 = vld [vmem:[#allocation9 + $0x320] sm:$0xff]
    %v4409 = vld [vmem:[#allocation9 + $0x328] sm:$0xff]
    %v4410 = vld [vmem:[#allocation9 + $0x330] sm:$0xff]
    %v4411 = vld [vmem:[#allocation9 + $0x338] sm:$0xff]
    %v4412 = vld [vmem:[#allocation9 + $0x340] sm:$0xff]
    %v4413 = vld [vmem:[#allocation9 + $0x348] sm:$0xff]
    %v4414 = vld [vmem:[#allocation9 + $0x350] sm:$0xff]
    %v4415 = vld [vmem:[#allocation9 + $0x358] sm:$0xff]
    %v4416 = vld [vmem:[#allocation9 + $0x360] sm:$0xff]
    %v4417 = vld [vmem:[#allocation9 + $0x368] sm:$0xff]
    %v4418 = vld [vmem:[#allocation9 + $0x370] sm:$0xff]
    %v4419 = vld [vmem:[#allocation9 + $0x378] sm:$0xff]
    %v4420 = vld [vmem:[#allocation9 + $0x380] sm:$0xff]
    %v4421 = vld [vmem:[#allocation9 + $0x388] sm:$0xff]
    %v4422 = vld [vmem:[#allocation9 + $0x390] sm:$0xff]
    %v4423 = vld [vmem:[#allocation9 + $0x398] sm:$0xff]
    %v4424 = vld [vmem:[#allocation9 + $0x3a0] sm:$0xff]
    %v4425 = vld [vmem:[#allocation9 + $0x3a8] sm:$0xff]
    %v4426 = vld [vmem:[#allocation9 + $0x3b0] sm:$0xff]
    %v4427 = vld [vmem:[#allocation9 + $0x3b8] sm:$0xff]
    %v4428 = vld [vmem:[#allocation9 + $0x3c0] sm:$0xff]
    %v4429 = vld [vmem:[#allocation9 + $0x3c8] sm:$0xff]
    %v4430 = vld [vmem:[#allocation9 + $0x3d0] sm:$0xff]
    %v4431 = vld [vmem:[#allocation9 + $0x3d8] sm:$0xff]
    %v4432 = vld [vmem:[#allocation9 + $0x3e0] sm:$0xff]
    %v4433 = vld [vmem:[#allocation9 + $0x3e8] sm:$0xff]
    %v4434 = vld [vmem:[#allocation9 + $0x3f0] sm:$0xff]
    %v4435 = vld [vmem:[#allocation9 + $0x3f8] sm:$0xff]
    %v4436 = vld [vmem:[#allocation9 + $0x400] sm:$0xff]
    %v4437 = vld [vmem:[#allocation9 + $0x408] sm:$0xff]
    %v4438 = vld [vmem:[#allocation9 + $0x410] sm:$0xff]
    %v4439 = vld [vmem:[#allocation9 + $0x418] sm:$0xff]
    %v4440 = vld [vmem:[#allocation9 + $0x420] sm:$0xff]
    %v4441 = vld [vmem:[#allocation9 + $0x428] sm:$0xff]
    %v4442 = vld [vmem:[#allocation9 + $0x430] sm:$0xff]
    %v4443 = vld [vmem:[#allocation9 + $0x438] sm:$0xff]
    %v4444 = vld [vmem:[#allocation9 + $0x440] sm:$0xff]
    %v4445 = vld [vmem:[#allocation9 + $0x448] sm:$0xff]
    %v4446 = vld [vmem:[#allocation9 + $0x450] sm:$0xff]
    %v4447 = vld [vmem:[#allocation9 + $0x458] sm:$0xff]
    %v4448 = vld [vmem:[#allocation9 + $0x460] sm:$0xff]
    %v4449 = vld [vmem:[#allocation9 + $0x468] sm:$0xff]
    %v4450 = vld [vmem:[#allocation9 + $0x470] sm:$0xff]
    %v4451 = vld [vmem:[#allocation9 + $0x478] sm:$0xff]
    %v4452 = vld [vmem:[#allocation9 + $0x480] sm:$0xff]
    %v4453 = vld [vmem:[#allocation9 + $0x488] sm:$0xff]
    %v4454 = vld [vmem:[#allocation9 + $0x490] sm:$0xff]
    %v4455 = vld [vmem:[#allocation9 + $0x498] sm:$0xff]
    %v4456 = vld [vmem:[#allocation9 + $0x4a0] sm:$0xff]
    %v4457 = vld [vmem:[#allocation9 + $0x4a8] sm:$0xff]
    %v4458 = vld [vmem:[#allocation9 + $0x4b0] sm:$0xff]
    %v4459 = vld [vmem:[#allocation9 + $0x4b8] sm:$0xff]
    %v4460 = vld [vmem:[#allocation9 + $0x4c0] sm:$0xff]
    %v4461 = vld [vmem:[#allocation9 + $0x4c8] sm:$0xff]
    %v4462 = vld [vmem:[#allocation9 + $0x4d0] sm:$0xff]
    %v4463 = vld [vmem:[#allocation9 + $0x4d8] sm:$0xff]
    %v4464 = vld [vmem:[#allocation9 + $0x4e0] sm:$0xff]
    %v4465 = vld [vmem:[#allocation9 + $0x4e8] sm:$0xff]
    %v4466 = vld [vmem:[#allocation9 + $0x4f0] sm:$0xff]
    %v4467 = vld [vmem:[#allocation9 + $0x4f8] sm:$0xff]
    %v4468 = vld [vmem:[#allocation9 + $0x500] sm:$0xff]
    %v4469 = vld [vmem:[#allocation9 + $0x508] sm:$0xff]
    %v4470 = vld [vmem:[#allocation9 + $0x510] sm:$0xff]
    %v4471 = vld [vmem:[#allocation9 + $0x518] sm:$0xff]
    %v4472 = vld [vmem:[#allocation9 + $0x520] sm:$0xff]
    %v4473 = vld [vmem:[#allocation9 + $0x528] sm:$0xff]
    %v4474 = vld [vmem:[#allocation9 + $0x530] sm:$0xff]
    %v4475 = vld [vmem:[#allocation9 + $0x538] sm:$0xff]
    %v4476 = vld [vmem:[#allocation9 + $0x540] sm:$0xff]
    %v4477 = vld [vmem:[#allocation9 + $0x548] sm:$0xff]
    %v4478 = vld [vmem:[#allocation9 + $0x550] sm:$0xff]
    %v4479 = vld [vmem:[#allocation9 + $0x558] sm:$0xff]
    %v4480 = vld [vmem:[#allocation9 + $0x560] sm:$0xff]
    %v4481 = vld [vmem:[#allocation9 + $0x568] sm:$0xff]
    %v4482 = vld [vmem:[#allocation9 + $0x570] sm:$0xff]
    %v4483 = vld [vmem:[#allocation9 + $0x578] sm:$0xff]
    %v4484 = vld [vmem:[#allocation9 + $0x580] sm:$0xff]
    %v4485 = vld [vmem:[#allocation9 + $0x588] sm:$0xff]
    %v4486 = vld [vmem:[#allocation9 + $0x590] sm:$0xff]
    %v4487 = vld [vmem:[#allocation9 + $0x598] sm:$0xff]
    %v4488 = vld [vmem:[#allocation9 + $0x5a0] sm:$0xff]
    %v4489 = vld [vmem:[#allocation9 + $0x5a8] sm:$0xff]
    %v4490 = vld [vmem:[#allocation9 + $0x5b0] sm:$0xff]
    %v4491 = vld [vmem:[#allocation9 + $0x5b8] sm:$0xff]
    %v4492 = vld [vmem:[#allocation9 + $0x5c0] sm:$0xff]
    %v4493 = vld [vmem:[#allocation9 + $0x5c8] sm:$0xff]
    %v4494 = vld [vmem:[#allocation9 + $0x5d0] sm:$0xff]
    %v4495 = vld [vmem:[#allocation9 + $0x5d8] sm:$0xff]
    %v4497 = vsel %vm3695, %v4307, 0
    %4499 = vmatpush.msra.mxu0 %v4368
    %4500 = vmatpush.msra.mxu0 %v4364
    %4501 = vmatpush.msra.mxu0 %v4360
    %4502 = vmatpush.msra.mxu0 %v4356
    %4503 = vmatpush.msra.mxu0 %v4352
    %4504 = vmatpush.msra.mxu0 %v4348
    %4505 = vmatpush.msra.mxu0 %v4344
    %4506 = vmatpush.msra.mxu0 %v4340
    %4507 = vmatpush.msra.mxu0 %v4336
    %4508 = vmatpush.msra.mxu0 %v4332
    %4509 = vmatpush.msra.mxu0 %v4328
    %4510 = vmatpush.msra.mxu0 %v4324
    %4511 = vmatpush.msra.mxu0 %v4320
    %4512 = vmatpush.msra.mxu0 %v4316
    %4513 = vmatpush.msra.mxu0 %v4312
    %4514 = vmatpush.msra.mxu0 %v4308
    %4515 = vmatmul.f32.gmra.mxu0 %v4305
    %v4516 = vpop.f32.mrf.mxu0
    %v4517 = vadd.f32 0.0, %v4516
    %4518 = vdwg.mxu0
    %4519 = vmatpush.msra.mxu0 %v4432
    %4520 = vmatpush.msra.mxu0 %v4428
    %4521 = vmatpush.msra.mxu0 %v4424
    %4522 = vmatpush.msra.mxu0 %v4420
    %4523 = vmatpush.msra.mxu0 %v4416
    %4524 = vmatpush.msra.mxu0 %v4412
    %4525 = vmatpush.msra.mxu0 %v4408
    %4526 = vmatpush.msra.mxu0 %v4404
    %4527 = vmatpush.msra.mxu0 %v4400
    %4528 = vmatpush.msra.mxu0 %v4396
    %4529 = vmatpush.msra.mxu0 %v4392
    %4530 = vmatpush.msra.mxu0 %v4388
    %4531 = vmatpush.msra.mxu0 %v4384
    %4532 = vmatpush.msra.mxu0 %v4380
    %4533 = vmatpush.msra.mxu0 %v4376
    %4534 = vmatpush.msra.mxu0 %v4372
    %4535 = vmatmul.f32.gmra.mxu0 %v4306
    %v4536 = vpop.f32.mrf.mxu0
    %v4537 = vadd.f32 %v4517, %v4536
    %4538 = vdwg.mxu0
    %4539 = vmatpush.msra.mxu0 0.0
    %4540 = vmatpush.msra.mxu0 %v4492
    %4541 = vmatpush.msra.mxu0 %v4488
    %4542 = vmatpush.msra.mxu0 %v4484
    %4543 = vmatpush.msra.mxu0 %v4480
    %4544 = vmatpush.msra.mxu0 %v4476
    %4545 = vmatpush.msra.mxu0 %v4472
    %4546 = vmatpush.msra.mxu0 %v4468
    %4547 = vmatpush.msra.mxu0 %v4464
    %4548 = vmatpush.msra.mxu0 %v4460
    %4549 = vmatpush.msra.mxu0 %v4456
    %4550 = vmatpush.msra.mxu0 %v4452
    %4551 = vmatpush.msra.mxu0 %v4448
    %4552 = vmatpush.msra.mxu0 %v4444
    %4553 = vmatpush.msra.mxu0 %v4440
    %4554 = vmatpush.msra.mxu0 %v4436
    %4555 = vmatmul.f32.gmra.mxu0 %v4497
    %v4556 = vpop.f32.mrf.mxu0
    %v4557 = vadd.f32 %v4537, %v4556
    %4558 = vdwg.mxu0
    %4559 = vmatpush.msra.mxu0 %v4369
    %4560 = vmatpush.msra.mxu0 %v4365
    %4561 = vmatpush.msra.mxu0 %v4361
    %4562 = vmatpush.msra.mxu0 %v4357
    %4563 = vmatpush.msra.mxu0 %v4353
    %4564 = vmatpush.msra.mxu0 %v4349
    %4565 = vmatpush.msra.mxu0 %v4345
    %4566 = vmatpush.msra.mxu0 %v4341
    %4567 = vmatpush.msra.mxu0 %v4337
    %4568 = vmatpush.msra.mxu0 %v4333
    %4569 = vmatpush.msra.mxu0 %v4329
    %4570 = vmatpush.msra.mxu0 %v4325
    %4571 = vmatpush.msra.mxu0 %v4321
    %4572 = vmatpush.msra.mxu0 %v4317
    %4573 = vmatpush.msra.mxu0 %v4313
    %4574 = vmatpush.msra.mxu0 %v4309
    %4575 = vmatmul.f32.gmra.mxu0 %v4305
    %v4576 = vpop.f32.mrf.mxu0
    %v4577 = vadd.f32 0.0, %v4576
    %4578 = vdwg.mxu0
    %4579 = vmatpush.msra.mxu0 %v4433
    %4580 = vmatpush.msra.mxu0 %v4429
    %4581 = vmatpush.msra.mxu0 %v4425
    %4582 = vmatpush.msra.mxu0 %v4421
    %4583 = vmatpush.msra.mxu0 %v4417
    %4584 = vmatpush.msra.mxu0 %v4413
    %4585 = vmatpush.msra.mxu0 %v4409
    %4586 = vmatpush.msra.mxu0 %v4405
    %4587 = vmatpush.msra.mxu0 %v4401
    %4588 = vmatpush.msra.mxu0 %v4397
    %4589 = vmatpush.msra.mxu0 %v4393
    %4590 = vmatpush.msra.mxu0 %v4389
    %4591 = vmatpush.msra.mxu0 %v4385
    %4592 = vmatpush.msra.mxu0 %v4381
    %4593 = vmatpush.msra.mxu0 %v4377
    %4594 = vmatpush.msra.mxu0 %v4373
    %4595 = vmatmul.f32.gmra.mxu0 %v4306
    %v4596 = vpop.f32.mrf.mxu0
    %v4597 = vadd.f32 %v4577, %v4596
    %4598 = vdwg.mxu0
    %4599 = vmatpush.msra.mxu0 0.0
    %4600 = vmatpush.msra.mxu0 %v4493
    %4601 = vmatpush.msra.mxu0 %v4489
    %4602 = vmatpush.msra.mxu0 %v4485
    %4603 = vmatpush.msra.mxu0 %v4481
    %4604 = vmatpush.msra.mxu0 %v4477
    %4605 = vmatpush.msra.mxu0 %v4473
    %4606 = vmatpush.msra.mxu0 %v4469
    %4607 = vmatpush.msra.mxu0 %v4465
    %4608 = vmatpush.msra.mxu0 %v4461
    %4609 = vmatpush.msra.mxu0 %v4457
    %4610 = vmatpush.msra.mxu0 %v4453
    %4611 = vmatpush.msra.mxu0 %v4449
    %4612 = vmatpush.msra.mxu0 %v4445
    %4613 = vmatpush.msra.mxu0 %v4441
    %4614 = vmatpush.msra.mxu0 %v4437
    %4615 = vmatmul.f32.gmra.mxu0 %v4497
    %v4616 = vpop.f32.mrf.mxu0
    %v4617 = vadd.f32 %v4597, %v4616
    %4618 = vdwg.mxu0
    %4619 = vmatpush.msra.mxu0 %v4370
    %4620 = vmatpush.msra.mxu0 %v4366
    %4621 = vmatpush.msra.mxu0 %v4362
    %4622 = vmatpush.msra.mxu0 %v4358
    %4623 = vmatpush.msra.mxu0 %v4354
    %4624 = vmatpush.msra.mxu0 %v4350
    %4625 = vmatpush.msra.mxu0 %v4346
    %4626 = vmatpush.msra.mxu0 %v4342
    %4627 = vmatpush.msra.mxu0 %v4338
    %4628 = vmatpush.msra.mxu0 %v4334
    %4629 = vmatpush.msra.mxu0 %v4330
    %4630 = vmatpush.msra.mxu0 %v4326
    %4631 = vmatpush.msra.mxu0 %v4322
    %4632 = vmatpush.msra.mxu0 %v4318
    %4633 = vmatpush.msra.mxu0 %v4314
    %4634 = vmatpush.msra.mxu0 %v4310
    %4635 = vmatmul.f32.gmra.mxu0 %v4305
    %v4636 = vpop.f32.mrf.mxu0
    %v4637 = vadd.f32 0.0, %v4636
    %4638 = vdwg.mxu0
    %4639 = vmatpush.msra.mxu0 %v4434
    %4640 = vmatpush.msra.mxu0 %v4430
    %4641 = vmatpush.msra.mxu0 %v4426
    %4642 = vmatpush.msra.mxu0 %v4422
    %4643 = vmatpush.msra.mxu0 %v4418
    %4644 = vmatpush.msra.mxu0 %v4414
    %4645 = vmatpush.msra.mxu0 %v4410
    %4646 = vmatpush.msra.mxu0 %v4406
    %4647 = vmatpush.msra.mxu0 %v4402
    %4648 = vmatpush.msra.mxu0 %v4398
    %4649 = vmatpush.msra.mxu0 %v4394
    %4650 = vmatpush.msra.mxu0 %v4390
    %4651 = vmatpush.msra.mxu0 %v4386
    %4652 = vmatpush.msra.mxu0 %v4382
    %4653 = vmatpush.msra.mxu0 %v4378
    %4654 = vmatpush.msra.mxu0 %v4374
    %4655 = vmatmul.f32.gmra.mxu0 %v4306
    %v4656 = vpop.f32.mrf.mxu0
    %v4657 = vadd.f32 %v4637, %v4656
    %4658 = vdwg.mxu0
    %4659 = vmatpush.msra.mxu0 0.0
    %4660 = vmatpush.msra.mxu0 %v4494
    %4661 = vmatpush.msra.mxu0 %v4490
    %4662 = vmatpush.msra.mxu0 %v4486
    %4663 = vmatpush.msra.mxu0 %v4482
    %4664 = vmatpush.msra.mxu0 %v4478
    %4665 = vmatpush.msra.mxu0 %v4474
    %4666 = vmatpush.msra.mxu0 %v4470
    %4667 = vmatpush.msra.mxu0 %v4466
    %4668 = vmatpush.msra.mxu0 %v4462
    %4669 = vmatpush.msra.mxu0 %v4458
    %4670 = vmatpush.msra.mxu0 %v4454
    %4671 = vmatpush.msra.mxu0 %v4450
    %4672 = vmatpush.msra.mxu0 %v4446
    %4673 = vmatpush.msra.mxu0 %v4442
    %4674 = vmatpush.msra.mxu0 %v4438
    %4675 = vmatmul.f32.gmra.mxu0 %v4497
    %v4676 = vpop.f32.mrf.mxu0
    %v4677 = vadd.f32 %v4657, %v4676
    %4678 = vdwg.mxu0
    %4679 = vmatpush.msra.mxu0 %v4371
    %4680 = vmatpush.msra.mxu0 %v4367
    %4681 = vmatpush.msra.mxu0 %v4363
    %4682 = vmatpush.msra.mxu0 %v4359
    %4683 = vmatpush.msra.mxu0 %v4355
    %4684 = vmatpush.msra.mxu0 %v4351
    %4685 = vmatpush.msra.mxu0 %v4347
    %4686 = vmatpush.msra.mxu0 %v4343
    %4687 = vmatpush.msra.mxu0 %v4339
    %4688 = vmatpush.msra.mxu0 %v4335
    %4689 = vmatpush.msra.mxu0 %v4331
    %4690 = vmatpush.msra.mxu0 %v4327
    %4691 = vmatpush.msra.mxu0 %v4323
    %4692 = vmatpush.msra.mxu0 %v4319
    %4693 = vmatpush.msra.mxu0 %v4315
    %4694 = vmatpush.msra.mxu0 %v4311
    %4695 = vmatmul.f32.gmra.mxu0 %v4305
    %v4696 = vpop.f32.mrf.mxu0
    %v4697 = vadd.f32 0.0, %v4696
    %4698 = vdwg.mxu0
    %4699 = vmatpush.msra.mxu0 %v4435
    %4700 = vmatpush.msra.mxu0 %v4431
    %4701 = vmatpush.msra.mxu0 %v4427
    %4702 = vmatpush.msra.mxu0 %v4423
    %4703 = vmatpush.msra.mxu0 %v4419
    %4704 = vmatpush.msra.mxu0 %v4415
    %4705 = vmatpush.msra.mxu0 %v4411
    %4706 = vmatpush.msra.mxu0 %v4407
    %4707 = vmatpush.msra.mxu0 %v4403
    %4708 = vmatpush.msra.mxu0 %v4399
    %4709 = vmatpush.msra.mxu0 %v4395
    %4710 = vmatpush.msra.mxu0 %v4391
    %4711 = vmatpush.msra.mxu0 %v4387
    %4712 = vmatpush.msra.mxu0 %v4383
    %4713 = vmatpush.msra.mxu0 %v4379
    %4714 = vmatpush.msra.mxu0 %v4375
    %4715 = vmatmul.f32.gmra.mxu0 %v4306
    %v4716 = vpop.f32.mrf.mxu0
    %v4717 = vadd.f32 %v4697, %v4716
    %4718 = vdwg.mxu0
    %4719 = vmatpush.msra.mxu0 0.0
    %4720 = vmatpush.msra.mxu0 %v4495
    %4721 = vmatpush.msra.mxu0 %v4491
    %4722 = vmatpush.msra.mxu0 %v4487
    %4723 = vmatpush.msra.mxu0 %v4483
    %4724 = vmatpush.msra.mxu0 %v4479
    %4725 = vmatpush.msra.mxu0 %v4475
    %4726 = vmatpush.msra.mxu0 %v4471
    %4727 = vmatpush.msra.mxu0 %v4467
    %4728 = vmatpush.msra.mxu0 %v4463
    %4729 = vmatpush.msra.mxu0 %v4459
    %4730 = vmatpush.msra.mxu0 %v4455
    %4731 = vmatpush.msra.mxu0 %v4451
    %4732 = vmatpush.msra.mxu0 %v4447
    %4733 = vmatpush.msra.mxu0 %v4443
    %4734 = vmatpush.msra.mxu0 %v4439
    %4735 = vmatmul.f32.gmra.mxu0 %v4497
    %v4736 = vpop.f32.mrf.mxu0
    %v4737 = vadd.f32 %v4717, %v4736
    %4738 = vdwg.mxu0
    %4739 = vst [vmem:[%s12] sm:$0xff] %v4557
    %4740 = vst [vmem:[%s12 + $0x8] sm:$0xff] %v4617
    %4741 = vst [vmem:[%s12 + $0x10] sm:$0xff] %v4677
    %4742 = vst [vmem:[%s12 + $0x18] sm:$0xff] %v4737
    // Predicated region
    $region70: #{attentive_nf_resnet_forward.3} parent=1 // pred_check
      _
    $region71: #{attentive_nf_resnet_forward.3} parent=1 // pred_check_branch
      %4744 = sbr.rel (0) target = $region73
    $region72: #{attentive_nf_resnet_forward.3} parent=1 // pred_region
      _
    $region73: #{attentive_nf_resnet_forward.3} parent=1 // pred_fallthru
      _
    // Predicated region
    $region74: #{attentive_nf_resnet_forward.3} parent=1 // pred_check
      _
    $region75: #{attentive_nf_resnet_forward.3} parent=1 // pred_check_branch
      %4746 = sbr.rel (0) target = $region77
    $region76: #{attentive_nf_resnet_forward.3} parent=1 // pred_region
      _
    $region77: #{attentive_nf_resnet_forward.3} parent=1 // pred_fallthru
      _
    %4747 = vsyncpa [#allocation3], 1
    %4748 = vsyncpa [#allocation5], 1
    %4749 = vsyncpa [#allocation8], 1

</llo_original>
